<compile_context>
chip_gen: v6e
topology: v6e:2x2x1
jax: 0.10.0
libtpu: 0.0.40
codegen_flags: <defaults>
</compile_context>

<pallas_src>
import functools

import jax
import jax.numpy as jnp
from jax import lax
from jax.experimental import pallas as pl
from jax.experimental.pallas import tpu as pltpu

_NEG_BIG = -1e30     # masked-max sentinel (representable in bf16 and f32)
_LANE = 128          # pad hidden/latent feature dims to multiples of this
_NODE_ROUND = 32     # pad node count to multiples of this (sublane-safe for f32 & bf16)


def _round_up(v, m):
    return ((v + m - 1) // m) * m


# --------------------------------------------------------------------------
# Per-generation configuration: VMEM budget + h1 broadcast-add dtype.
# --------------------------------------------------------------------------
def _chip_config():
    try:
        kind = jax.devices()[0].device_kind.lower()
    except Exception:
        kind = ""
    if "v7" in kind:                              # 64 MiB physical VMEM, bf16 VPU
        return 48 * 1024 * 1024, True
    if "v6" in kind:                              # 128 MiB physical, bf16 VPU
        return 100 * 1024 * 1024, True
    if ("v5 lite" in kind) or ("v5e" in kind) or ("v5lite" in kind):
        return 100 * 1024 * 1024, False           # v5e VPU has no bf16 ALUs: keep h1 in f32
    return 64 * 1024 * 1024, True                 # unknown chip: conservative default


def _derive_tiles(n_pad, hp, latp, vmem_limit, h1_bf16):
    """Target rows per grid step (tm) and source rows per inner block (ns), VMEM-budgeted."""
    tm = min(256, n_pad)                          # multiple of 32 (n_pad is)
    # live bytes per (target,source) pair in one inner block:
    #   h1 (bf16 only, or f32 + bf16 copy on the f32 path), h2 (f32 + bf16 copy), msg (f32)
    per_pair = hp * ((2 if h1_bf16 else 6) + 6) + latp * 4
    budget = int(vmem_limit * 0.45)               # leave room for mask double-buffer, src, weights
    ns_cap = budget // max(1, tm * per_pair)
    step = 16 if h1_bf16 else 8                   # keep bf16 sublane slices pack-aligned
    ns = step
    for cand in range(step, tm + 1, step):        # ns must divide tm (and hence padded N)
        if tm % cand == 0 and cand <= ns_cap:
            ns = cand
    return tm, ns


# --------------------------------------------------------------------------
# One EdgeLayer: grid over target-node chunks, fori_loop over source blocks.
# Trick: cat([x_i, x_j - x_i]) @ W1 + b1 == tgt_i + src_j with
#        tgt = x@W1a - x@W1b,  src = x@W1b + b1   (W1 = [W1a; W1b]).
# --------------------------------------------------------------------------
def _edge_layer_kernel(ns, h1_bf16,
                       x_ref, maskb_ref, hasedge_ref,
                       w1a_ref, w1b_ref, b1_ref, w2_ref, b2_ref, w3_ref, b3_ref,
                       out_ref, src_scr):
    tm, latp = out_ref.shape
    hp = w2_ref.shape[0]
    nsb = maskb_ref.shape[0]
    h1_dt = jnp.bfloat16 if h1_bf16 else jnp.float32

    # Per-source term for ALL nodes (recomputed per grid step: O(N*C*H) << pair work).
    xb = x_ref[...].astype(jnp.bfloat16)                                    # [N_pad, C]
    src = jnp.dot(xb, w1b_ref[...], preferred_element_type=jnp.float32) + b1_ref[...]
    src_scr[...] = src.astype(h1_dt)

    # Per-target term for this chunk's rows only.
    i0 = pl.multiple_of(pl.program_id(0) * tm, tm)
    xt = x_ref[pl.ds(i0, tm), :].astype(jnp.bfloat16)                       # [tm, C]
    tgt = (jnp.dot(xt, w1a_ref[...], preferred_element_type=jnp.float32)
           - jnp.dot(xt, w1b_ref[...], preferred_element_type=jnp.float32)).astype(h1_dt)

    def body(s, carry):                                                     # source block s
        j0 = pl.multiple_of(s * ns, ns)
        src_blk = src_scr[pl.ds(j0, ns), :]                                 # [ns, Hp]
        h1 = jnp.maximum(tgt[:, None, :] + src_blk[None, :, :], 0.0)        # [tm, ns, Hp]
        h1 = h1.astype(jnp.bfloat16).reshape(tm * ns, hp)
        h2 = jnp.maximum(
            jnp.dot(h1, w2_ref[...], preferred_element_type=jnp.float32) + b2_ref[...], 0.0)
        msg = (jnp.dot(h2.astype(jnp.bfloat16), w3_ref[...],
                       preferred_element_type=jnp.float32) + b3_ref[...])
        msg = msg.reshape(tm, ns, latp) + maskb_ref[s][:, :, None].astype(jnp.float32)
        return jnp.maximum(carry, jnp.max(msg, axis=1))                     # running max over j

    agg = lax.fori_loop(0, nsb, body, jnp.full((tm, latp), _NEG_BIG, jnp.float32))
    agg = jnp.where(hasedge_ref[...] > 0.0, agg, 0.0)     # PyG scatter-max: no edges -> 0
    out_ref[...] = jnp.maximum(agg, 0.0)                  # x = x.relu() in ModelGNN.forward


def _edge_layer_call(x, maskb3, has_edge, layer_p, *, tm, ns, h1_bf16, vmem_limit):
    n_pad, cp = x.shape
    hp = layer_p["w2"].shape[0]
    latp = layer_p["w3"].shape[1]
    nsb = maskb3.shape[0]
    h1_dt = jnp.bfloat16 if h1_bf16 else jnp.float32
    kernel = functools.partial(_edge_layer_kernel, ns, h1_bf16)
    in_specs = [
        pl.BlockSpec((n_pad, cp), lambda c: (0, 0)),        # x: VMEM-resident across chunks
        pl.BlockSpec((nsb, tm, ns), lambda c: (0, c, 0)),   # adjacency bias: row slab per chunk
        pl.BlockSpec((tm, 1), lambda c: (c, 0)),            # has_edge row slab
        pl.BlockSpec((cp, hp), lambda c: (0, 0)),           # w1a
        pl.BlockSpec((cp, hp), lambda c: (0, 0)),           # w1b
        pl.BlockSpec((1, hp), lambda c: (0, 0)),            # b1
        pl.BlockSpec((hp, hp), lambda c: (0, 0)),           # w2
        pl.BlockSpec((1, hp), lambda c: (0, 0)),            # b2
        pl.BlockSpec((hp, latp), lambda c: (0, 0)),         # w3
        pl.BlockSpec((1, latp), lambda c: (0, 0)),          # b3
    ]
    # TODO(synk): if profiling shows the w2/w3 dots MXU-bound on v7x, try fp8 weights there.
    return pl.pallas_call(
        kernel,
        out_shape=jax.ShapeDtypeStruct((n_pad, latp), jnp.float32),
        grid_spec=pltpu.PrefetchScalarGridSpec(
            num_scalar_prefetch=0,
            grid=(n_pad // tm,),
            in_specs=in_specs,
            out_specs=pl.BlockSpec((tm, latp), lambda c: (c, 0)),
            scratch_shapes=[pltpu.VMEM((n_pad, hp), h1_dt)],
        ),
        compiler_params=pltpu.CompilerParams(
            dimension_semantics=("parallel",),   # v7x: chunk loop shards across the 2 TCs
            vmem_limit_bytes=vmem_limit,
        ),
    )(x, maskb3, has_edge,
      layer_p["w1a"], layer_p["w1b"], layer_p["b1"],
      layer_p["w2"], layer_p["b2"], layer_p["w3"], layer_p["b3"])


# --------------------------------------------------------------------------
# Global add/mean/max pooling + 3-layer head MLP (single small pallas_call).
# --------------------------------------------------------------------------
def _pool_head_kernel(x_ref, oh_ref, invc_ref, poolb_ref, u_ref,
                      lw1a_ref, lw1b_ref, lw1c_ref, lw1d_ref, lb1_ref,
                      lw2_ref, lb2_ref, lw3_ref, lb3_ref, out_ref):
    x = x_ref[...]                                              # [N_pad, Lp] (relu'd, >= 0)
    oh = oh_ref[...]                                            # [B, N_pad]
    addp = jnp.dot(oh, x, preferred_element_type=jnp.float32)   # global_add_pool
    meanp = addp * invc_ref[...]                                # global_mean_pool (exact 1/count)
    # global_max_pool via additive bias (0 in-graph / -1e30 otherwise), no select pass.
    # TODO(synk): chunk this over nodes if B*N_pad*Lp ever approaches the VMEM budget.
    maxp = jnp.max(x[None, :, :] + poolb_ref[...][:, :, None], axis=1)
    # cat([add, mean, max, u]) @ LW1 split into 4 row-blocks of LW1 (no in-kernel concat)
    h = (jnp.dot(addp, lw1a_ref[...], preferred_element_type=jnp.float32)
         + jnp.dot(meanp, lw1b_ref[...], preferred_element_type=jnp.float32)
         + jnp.dot(maxp, lw1c_ref[...], preferred_element_type=jnp.float32)
         + u_ref[...] * lw1d_ref[...]
         + lb1_ref[...])
    h = jnp.maximum(h, 0.0)
    h = jnp.maximum(jnp.dot(h, lw2_ref[...], preferred_element_type=jnp.float32)
                    + lb2_ref[...], 0.0)
    out_ref[...] = jnp.dot(h, lw3_ref[...], preferred_element_type=jnp.float32) + lb3_ref[...]


def _pool_head_call(x, onehot, inv_counts, poolbias, u, head_p, *, vmem_limit):
    nb = u.shape[0]
    args = [x, onehot, inv_counts, poolbias, u,
            head_p["lw1a"], head_p["lw1b"], head_p["lw1c"], head_p["lw1d"], head_p["lb1"],
            head_p["lw2"], head_p["lb2"], head_p["lw3"], head_p["lb3"]]
    return pl.pallas_call(
        _pool_head_kernel,
        out_shape=jax.ShapeDtypeStruct((nb, 2), jnp.float32),
        in_specs=[pl.BlockSpec(memory_space=pltpu.MemorySpace.VMEM)] * len(args),
        out_specs=pl.BlockSpec(memory_space=pltpu.MemorySpace.VMEM),
        compiler_params=pltpu.CompilerParams(vmem_limit_bytes=vmem_limit),
    )(*args)


# --------------------------------------------------------------------------
# Parameter init (PyTorch Linear default init), zero-padded to lane-dense dims.
# --------------------------------------------------------------------------
def _pad2(a, rows, cols, dtype=None):
    out = jnp.zeros((rows, cols), a.dtype).at[:a.shape[0], :a.shape[1]].set(a)
    return out.astype(dtype) if dtype is not None else out


def _linear(key, fan_in, fan_out):
    kw, kb = jax.random.split(key)
    bound = 1.0 / (fan_in ** 0.5)
    w = jax.random.uniform(kw, (fan_in, fan_out), jnp.float32, -bound, bound)
    b = jax.random.uniform(kb, (1, fan_out), jnp.float32, -bound, bound)
    return w, b


def init_model_params(key, node_features, hidden, latent, n_layers):
    """Zero padding of weights/biases is exactly equivalent to the unpadded model: padded
    hidden units stay 0 through every ReLU, padded latent lanes stay 0 through the
    masked max-aggregation, pooling and the head."""
    hp = _round_up(hidden, _LANE)
    lp = _round_up(latent, _LANE)
    layers = []
    in_c, in_c_pad = node_features, node_features
    for _ in range(n_layers):
        key, k1, k2, k3 = jax.random.split(key, 4)
        w1, b1 = _linear(k1, 2 * in_c, hidden)
        w2, b2 = _linear(k2, hidden, hidden)
        w3, b3 = _linear(k3, hidden, latent)
        layers.append(dict(
            w1a=_pad2(w1[:in_c], in_c_pad, hp, jnp.bfloat16),
            w1b=_pad2(w1[in_c:], in_c_pad, hp, jnp.bfloat16),
            b1=_pad2(b1, 1, hp),
            w2=_pad2(w2, hp, hp, jnp.bfloat16),
            b2=_pad2(b2, 1, hp),
            w3=_pad2(w3, hp, lp, jnp.bfloat16),
            b3=_pad2(b3, 1, lp),
        ))
        in_c, in_c_pad = latent, lp
    key, k1, k2, k3 = jax.random.split(key, 4)
    lin_in = latent * 3 + 1
    lw1, lb1 = _linear(k1, lin_in, latent)
    lw2, lb2 = _linear(k2, latent, latent)
    lw3, lb3 = _linear(k3, latent, 2)
    lin = dict(
        lw1a=_pad2(lw1[0:latent], lp, lp),
        lw1b=_pad2(lw1[latent:2 * latent], lp, lp),
        lw1c=_pad2(lw1[2 * latent:3 * latent], lp, lp),
        lw1d=_pad2(lw1[3 * latent:3 * latent + 1], 1, lp),
        lb1=_pad2(lb1, 1, lp),
        lw2=_pad2(lw2, lp, lp),
        lb2=_pad2(lb2, 1, lp),
        lw3=_pad2(lw3, lp, 2),
        lb3=lb3,
    )
    return dict(layers=layers, lin=lin)


# --------------------------------------------------------------------------
# Full forward: dense radius_graph (additive bias), node padding, layer calls, head.
# --------------------------------------------------------------------------
@functools.partial(jax.jit, static_argnames=("r",))
def model_gnn_forward(x, pos, batch, u, params, r):
    # radius_graph(loop=False): edges between distinct nodes of the same graph within r.
    # TODO(synk): radius_graph's max_num_neighbors=32 truncation is not modeled.
    n = pos.shape[0]
    hp = params["layers"][0]["w2"].shape[0]
    latp = params["layers"][0]["w3"].shape[1]
    vmem_limit, h1_bf16 = _chip_config()
    n_pad = _round_up(n, _NODE_ROUND)
    tm, ns = _derive_tiles(n_pad, hp, latp, vmem_limit, h1_bf16)
    n_pad = _round_up(n_pad, tm)                  # grid axis: exact multiple of target chunk
    nsb = n_pad // ns

    d2 = jnp.sum((pos[:, None, :] - pos[None, :, :]) ** 2, axis=-1)
    same = batch[:, None] == batch[None, :]
    notself = ~jnp.eye(n, dtype=bool)
    adj = (d2 <= r * r) & same & notself                          # [target, source]
    adj_bias = jnp.full((n_pad, n_pad), _NEG_BIG, jnp.float32)
    adj_bias = adj_bias.at[:n, :n].set(jnp.where(adj, 0.0, _NEG_BIG))
    # [target, source] -> [source_block, target, source_within_block]: source blocks are
    # indexed off the leading axis in-kernel (no dynamic lane slicing, no relayouts).
    maskb3 = adj_bias.reshape(n_pad, nsb, ns).transpose(1, 0, 2).astype(jnp.bfloat16)
    has_edge = jnp.zeros((n_pad, 1), jnp.float32).at[:n, :].set(
        jnp.any(adj, axis=1, keepdims=True).astype(jnp.float32))

    num_graphs = u.shape[0]
    onehot = jnp.zeros((num_graphs, n_pad), jnp.float32).at[:, :n].set(
        (batch[None, :] == jnp.arange(num_graphs)[:, None]).astype(jnp.float32))
    counts = jnp.sum(onehot, axis=1, keepdims=True)
    inv_counts = jnp.where(counts > 0, 1.0 / jnp.maximum(counts, 1.0), 0.0)   # exact mean pool
    poolbias = jnp.where(onehot > 0, 0.0, _NEG_BIG).astype(jnp.float32)

    h = jnp.zeros((n_pad, x.shape[1]), jnp.float32).at[:n, :].set(x)
    for layer_p in params["layers"]:
        h = _edge_layer_call(h, maskb3, has_edge, layer_p,
                             tm=tm, ns=ns, h1_bf16=h1_bf16, vmem_limit=vmem_limit)
    return _pool_head_call(h, onehot, inv_counts, poolbias, u, params["lin"],
                           vmem_limit=vmem_limit)


if __name__ == "__main__":
    key = jax.random.PRNGKey(0)
    N, B = 32, 2                        # 32 nodes, 2 graphs of 16 nodes
    node_features, hidden, latent = 8, 64, 32
    n_layers, k_nn = 2, 0.6             # k_nn is the radius passed to radius_graph

    k_x, k_pos, k_u, k_p = jax.random.split(key, 4)
    x = jax.random.normal(k_x, (N, node_features), jnp.float32)
    pos = jax.random.uniform(k_pos, (N, 3), jnp.float32)
    batch = jnp.repeat(jnp.arange(B, dtype=jnp.int32), N // B)
    u = jax.random.normal(k_u, (B, 1), jnp.float32)

    params = init_model_params(k_p, node_features, hidden, latent, n_layers)

    out = model_gnn_forward(x, pos, batch, u, params, k_nn)
    out = jax.block_until_ready(out)
    assert out.shape == (B, 2) and out.dtype == jnp.float32
    assert bool(jnp.all(jnp.isfinite(out)))
    print("KERNEL_OK")
</pallas_src>

<mosaic_0001>
module attributes {stable_mosaic.version = 11 : i64} {
  func.func @_edge_layer_kernel(%arg0: i32, %arg1: memref<32x128xf32, #tpu.memory_space<vmem>>, %arg2: memref<1x32x32xbf16, #tpu.memory_space<vmem>>, %arg3: memref<32x1xf32, #tpu.memory_space<vmem>>, %arg4: memref<128x128xbf16, #tpu.memory_space<vmem>>, %arg5: memref<128x128xbf16, #tpu.memory_space<vmem>>, %arg6: memref<1x128xf32, #tpu.memory_space<vmem>>, %arg7: memref<128x128xbf16, #tpu.memory_space<vmem>>, %arg8: memref<1x128xf32, #tpu.memory_space<vmem>>, %arg9: memref<128x128xbf16, #tpu.memory_space<vmem>>, %arg10: memref<1x128xf32, #tpu.memory_space<vmem>>, %arg11: memref<32x128xf32, #tpu.memory_space<vmem>>, %arg12: memref<32x128xbf16, #tpu.memory_space<vmem>>) attributes {dimension_semantics = [#tpu.dimension_semantics<parallel>], iteration_bounds = array<i64: 1>, scalar_prefetch = 0 : i64, scratch_operands = 1 : i64, tpu.core_type = #tpu.core_type<tc>, window_params = [{pipeline_mode = #tpu.pipeline_mode<synchronous>, transform_indices = @transform_0, window_bounds = array<i64: 32, 128>}, {transform_indices = @transform_1, window_bounds = array<i64: 1, 32, 32>}, {transform_indices = @transform_2, window_bounds = array<i64: 32, 1>}, {pipeline_mode = #tpu.pipeline_mode<synchronous>, transform_indices = @transform_3, window_bounds = array<i64: 128, 128>}, {pipeline_mode = #tpu.pipeline_mode<synchronous>, transform_indices = @transform_4, window_bounds = array<i64: 128, 128>}, {pipeline_mode = #tpu.pipeline_mode<synchronous>, transform_indices = @transform_5, window_bounds = array<i64: 1, 128>}, {pipeline_mode = #tpu.pipeline_mode<synchronous>, transform_indices = @transform_6, window_bounds = array<i64: 128, 128>}, {pipeline_mode = #tpu.pipeline_mode<synchronous>, transform_indices = @transform_7, window_bounds = array<i64: 1, 128>}, {pipeline_mode = #tpu.pipeline_mode<synchronous>, transform_indices = @transform_8, window_bounds = array<i64: 128, 128>}, {pipeline_mode = #tpu.pipeline_mode<synchronous>, transform_indices = @transform_9, window_bounds = array<i64: 1, 128>}, {transform_indices = @transform_10, window_bounds = array<i64: 32, 128>}]} {
    %c0 = arith.constant 0 : index
    %c0_0 = arith.constant 0 : index
    %0 = vector.load %arg1[%c0, %c0_0] : memref<32x128xf32, #tpu.memory_space<vmem>>, vector<32x128xf32>
    %1 = arith.truncf %0 : vector<32x128xf32> to vector<32x128xbf16>
    %c0_1 = arith.constant 0 : index
    %c0_2 = arith.constant 0 : index
    %2 = vector.load %arg5[%c0_1, %c0_2] : memref<128x128xbf16, #tpu.memory_space<vmem>>, vector<128x128xbf16>
    %cst = arith.constant dense<0.000000e+00> : vector<32x128xf32>
    %3 = tpu.matmul %1, %2, %cst {dimension_numbers = #tpu.dot_dimension_numbers<[1], [0], [0], [1], [0, 0, 1, 1], [], []>} : vector<32x128xbf16>, vector<128x128xbf16>, vector<32x128xf32> -> vector<32x128xf32>
    %c0_3 = arith.constant 0 : index
    %c0_4 = arith.constant 0 : index
    %4 = vector.load %arg6[%c0_3, %c0_4] : memref<1x128xf32, #tpu.memory_space<vmem>>, vector<1x128xf32>
    %5 = vector.broadcast %4 : vector<1x128xf32> to vector<32x128xf32>
    %6 = arith.addf %3, %5 : vector<32x128xf32>
    %7 = arith.truncf %6 : vector<32x128xf32> to vector<32x128xbf16>
    %c0_5 = arith.constant 0 : index
    %c0_6 = arith.constant 0 : index
    %8 = vector.load %arg12[%c0_5, %c0_6] : memref<32x128xbf16, #tpu.memory_space<vmem>>, vector<32x128xbf16>
    tpu.vector_store %arg12[%c0_5, %c0_6], %7 {strides = array<i32>} : memref<32x128xbf16, #tpu.memory_space<vmem>>, vector<32x128xbf16>,
    %c32_i32 = arith.constant 32 : i32
    %9 = arith.muli %arg0, %c32_i32 : i32
    %10 = tpu.assume_multiple %9, 32 : i32
    %11 = arith.index_cast %10 : i32 to index
    %c0_7 = arith.constant 0 : index
    %12 = vector.load %arg1[%11, %c0_7] : memref<32x128xf32, #tpu.memory_space<vmem>>, vector<32x128xf32>
    %13 = arith.truncf %12 : vector<32x128xf32> to vector<32x128xbf16>
    %c0_8 = arith.constant 0 : index
    %c0_9 = arith.constant 0 : index
    %14 = vector.load %arg4[%c0_8, %c0_9] : memref<128x128xbf16, #tpu.memory_space<vmem>>, vector<128x128xbf16>
    %cst_10 = arith.constant dense<0.000000e+00> : vector<32x128xf32>
    %15 = tpu.matmul %13, %14, %cst_10 {dimension_numbers = #tpu.dot_dimension_numbers<[1], [0], [0], [1], [0, 0, 1, 1], [], []>} : vector<32x128xbf16>, vector<128x128xbf16>, vector<32x128xf32> -> vector<32x128xf32>
    %c0_11 = arith.constant 0 : index
    %c0_12 = arith.constant 0 : index
    %16 = vector.load %arg5[%c0_11, %c0_12] : memref<128x128xbf16, #tpu.memory_space<vmem>>, vector<128x128xbf16>
    %cst_13 = arith.constant dense<0.000000e+00> : vector<32x128xf32>
    %17 = tpu.matmul %13, %16, %cst_13 {dimension_numbers = #tpu.dot_dimension_numbers<[1], [0], [0], [1], [0, 0, 1, 1], [], []>} : vector<32x128xbf16>, vector<128x128xbf16>, vector<32x128xf32> -> vector<32x128xf32>
    %18 = arith.subf %15, %17 : vector<32x128xf32>
    %19 = arith.truncf %18 : vector<32x128xf32> to vector<32x128xbf16>
    %cst_14 = arith.constant -1.000000e+30 : f32
    %20 = vector.broadcast %cst_14 : f32 to vector<32x128xf32>
    %c0_i32 = arith.constant 0 : i32
    %c32_i32_15 = arith.constant 32 : i32
    %21 = arith.muli %c0_i32, %c32_i32_15 : i32
    %22 = tpu.assume_multiple %21, 32 : i32
    %23 = arith.index_cast %22 : i32 to index
    %c0_16 = arith.constant 0 : index
    %24 = vector.load %arg12[%23, %c0_16] : memref<32x128xbf16, #tpu.memory_space<vmem>>, vector<32x128xbf16>
    %25 = vector.shape_cast %19 : vector<32x128xbf16> to vector<32x1x128xbf16>
    %26 = vector.shape_cast %24 : vector<32x128xbf16> to vector<1x32x128xbf16>
    %27 = vector.broadcast %25 : vector<32x1x128xbf16> to vector<32x32x128xbf16>
    %28 = vector.broadcast %26 : vector<1x32x128xbf16> to vector<32x32x128xbf16>
    %29 = arith.addf %27, %28 : vector<32x32x128xbf16>
    %cst_17 = arith.constant 0.000000e+00 : bf16
    %30 = vector.broadcast %cst_17 : bf16 to vector<32x32x128xbf16>
    %31 = arith.maximumf %29, %30 : vector<32x32x128xbf16>
    %32 = vector.shape_cast %31 : vector<32x32x128xbf16> to vector<1024x128xbf16>
    %c0_18 = arith.constant 0 : index
    %c0_19 = arith.constant 0 : index
    %33 = vector.load %arg7[%c0_18, %c0_19] : memref<128x128xbf16, #tpu.memory_space<vmem>>, vector<128x128xbf16>
    %cst_20 = arith.constant dense<0.000000e+00> : vector<1024x128xf32>
    %34 = tpu.matmul %32, %33, %cst_20 {dimension_numbers = #tpu.dot_dimension_numbers<[1], [0], [0], [1], [0, 0, 1, 1], [], []>} : vector<1024x128xbf16>, vector<128x128xbf16>, vector<1024x128xf32> -> vector<1024x128xf32>
    %c0_21 = arith.constant 0 : index
    %c0_22 = arith.constant 0 : index
    %35 = vector.load %arg8[%c0_21, %c0_22] : memref<1x128xf32, #tpu.memory_space<vmem>>, vector<1x128xf32>
    %36 = vector.broadcast %35 : vector<1x128xf32> to vector<1024x128xf32>
    %37 = arith.addf %34, %36 : vector<1024x128xf32>
    %cst_23 = arith.constant 0.000000e+00 : f32
    %38 = vector.broadcast %cst_23 : f32 to vector<1024x128xf32>
    %39 = arith.maximumf %37, %38 : vector<1024x128xf32>
    %40 = arith.truncf %39 : vector<1024x128xf32> to vector<1024x128xbf16>
    %c0_24 = arith.constant 0 : index
    %c0_25 = arith.constant 0 : index
    %41 = vector.load %arg9[%c0_24, %c0_25] : memref<128x128xbf16, #tpu.memory_space<vmem>>, vector<128x128xbf16>
    %cst_26 = arith.constant dense<0.000000e+00> : vector<1024x128xf32>
    %42 = tpu.matmul %40, %41, %cst_26 {dimension_numbers = #tpu.dot_dimension_numbers<[1], [0], [0], [1], [0, 0, 1, 1], [], []>} : vector<1024x128xbf16>, vector<128x128xbf16>, vector<1024x128xf32> -> vector<1024x128xf32>
    %c0_27 = arith.constant 0 : index
    %c0_28 = arith.constant 0 : index
    %43 = vector.load %arg10[%c0_27, %c0_28] : memref<1x128xf32, #tpu.memory_space<vmem>>, vector<1x128xf32>
    %44 = vector.broadcast %43 : vector<1x128xf32> to vector<1024x128xf32>
    %45 = arith.addf %42, %44 : vector<1024x128xf32>
    %46 = vector.shape_cast %45 : vector<1024x128xf32> to vector<32x32x128xf32>
    %47 = arith.index_cast %c0_i32 : i32 to index
    %c0_29 = arith.constant 0 : index
    %c0_30 = arith.constant 0 : index
    %48 = vector.load %arg2[%47, %c0_29, %c0_30] : memref<1x32x32xbf16, #tpu.memory_space<vmem>>, vector<1x32x32xbf16>
    %49 = vector.shape_cast %48 : vector<1x32x32xbf16> to vector<32x32xbf16>
    %50 = vector.shape_cast %49 : vector<32x32xbf16> to vector<32x32x1xbf16>
    %51 = arith.extf %50 : vector<32x32x1xbf16> to vector<32x32x1xf32>
    %52 = vector.broadcast %51 : vector<32x32x1xf32> to vector<32x32x128xf32>
    %53 = arith.addf %46, %52 : vector<32x32x128xf32>
    %cst_31 = arith.constant dense<0xFF800000> : vector<32x128xf32>
    %54 = vector.multi_reduction <maximumf>, %53, %cst_31 [1] : vector<32x32x128xf32> to vector<32x128xf32>
    %55 = arith.maximumf %20, %54 : vector<32x128xf32>
    %c1_i32 = arith.constant 1 : i32
    %c0_32 = arith.constant 0 : index
    %c0_33 = arith.constant 0 : index
    %56 = vector.load %arg3[%c0_32, %c0_33] : memref<32x1xf32, #tpu.memory_space<vmem>>, vector<32x1xf32>
    %cst_34 = arith.constant 0.000000e+00 : f32
    %57 = vector.broadcast %cst_34 : f32 to vector<32x1xf32>
    %58 = arith.cmpf ogt, %56, %57 : vector<32x1xf32>
    %cst_35 = arith.constant 0.000000e+00 : f32
    %59 = vector.shape_cast %58 : vector<32x1xi1> to vector<32x1xi1>
    %60 = vector.broadcast %59 : vector<32x1xi1> to vector<32x128xi1>
    %61 = vector.broadcast %cst_35 : f32 to vector<32x128xf32>
    %62 = arith.select %60, %55, %61 : vector<32x128xi1>, vector<32x128xf32>
    %cst_36 = arith.constant 0.000000e+00 : f32
    %63 = vector.broadcast %cst_36 : f32 to vector<32x128xf32>
    %64 = arith.maximumf %62, %63 : vector<32x128xf32>
    %c0_37 = arith.constant 0 : index
    %c0_38 = arith.constant 0 : index
    %65 = vector.load %arg11[%c0_37, %c0_38] : memref<32x128xf32, #tpu.memory_space<vmem>>, vector<32x128xf32>
    tpu.vector_store %arg11[%c0_37, %c0_38], %64 {strides = array<i32>} : memref<32x128xf32, #tpu.memory_space<vmem>>, vector<32x128xf32>,
    return
  }
  func.func @transform_0(%arg0: i32) -> (i32, i32) {
    %c0_i32 = arith.constant 0 : i32
    %c0_i32_0 = arith.constant 0 : i32
    %c0_i32_1 = arith.constant 0 : i32
    return %c0_i32, %c0_i32_0 : i32, i32
  }
  func.func @transform_1(%arg0: i32) -> (i32, i32, i32) {
    %c0_i32 = arith.constant 0 : i32
    %c0_i32_0 = arith.constant 0 : i32
    %c0_i32_1 = arith.constant 0 : i32
    return %c0_i32, %arg0, %c0_i32_0 : i32, i32, i32
  }
  func.func @transform_2(%arg0: i32) -> (i32, i32) {
    %c0_i32 = arith.constant 0 : i32
    %c0_i32_0 = arith.constant 0 : i32
    return %arg0, %c0_i32 : i32, i32
  }
  func.func @transform_3(%arg0: i32) -> (i32, i32) {
    %c0_i32 = arith.constant 0 : i32
    %c0_i32_0 = arith.constant 0 : i32
    %c0_i32_1 = arith.constant 0 : i32
    return %c0_i32, %c0_i32_0 : i32, i32
  }
  func.func @transform_4(%arg0: i32) -> (i32, i32) {
    %c0_i32 = arith.constant 0 : i32
    %c0_i32_0 = arith.constant 0 : i32
    %c0_i32_1 = arith.constant 0 : i32
    return %c0_i32, %c0_i32_0 : i32, i32
  }
  func.func @transform_5(%arg0: i32) -> (i32, i32) {
    %c0_i32 = arith.constant 0 : i32
    %c0_i32_0 = arith.constant 0 : i32
    %c0_i32_1 = arith.constant 0 : i32
    return %c0_i32, %c0_i32_0 : i32, i32
  }
  func.func @transform_6(%arg0: i32) -> (i32, i32) {
    %c0_i32 = arith.constant 0 : i32
    %c0_i32_0 = arith.constant 0 : i32
    %c0_i32_1 = arith.constant 0 : i32
    return %c0_i32, %c0_i32_0 : i32, i32
  }
  func.func @transform_7(%arg0: i32) -> (i32, i32) {
    %c0_i32 = arith.constant 0 : i32
    %c0_i32_0 = arith.constant 0 : i32
    %c0_i32_1 = arith.constant 0 : i32
    return %c0_i32, %c0_i32_0 : i32, i32
  }
  func.func @transform_8(%arg0: i32) -> (i32, i32) {
    %c0_i32 = arith.constant 0 : i32
    %c0_i32_0 = arith.constant 0 : i32
    %c0_i32_1 = arith.constant 0 : i32
    return %c0_i32, %c0_i32_0 : i32, i32
  }
  func.func @transform_9(%arg0: i32) -> (i32, i32) {
    %c0_i32 = arith.constant 0 : i32
    %c0_i32_0 = arith.constant 0 : i32
    %c0_i32_1 = arith.constant 0 : i32
    return %c0_i32, %c0_i32_0 : i32, i32
  }
  func.func @transform_10(%arg0: i32) -> (i32, i32) {
    %c0_i32 = arith.constant 0 : i32
    %c0_i32_0 = arith.constant 0 : i32
    return %arg0, %c0_i32 : i32, i32
  }
}

module attributes {stable_mosaic.version = 11 : i64} {
  func.func @_edge_layer_kernel(%arg0: i32, %arg1: memref<32x8xf32, #tpu.memory_space<vmem>>, %arg2: memref<1x32x32xbf16, #tpu.memory_space<vmem>>, %arg3: memref<32x1xf32, #tpu.memory_space<vmem>>, %arg4: memref<8x128xbf16, #tpu.memory_space<vmem>>, %arg5: memref<8x128xbf16, #tpu.memory_space<vmem>>, %arg6: memref<1x128xf32, #tpu.memory_space<vmem>>, %arg7: memref<128x128xbf16, #tpu.memory_space<vmem>>, %arg8: memref<1x128xf32, #tpu.memory_space<vmem>>, %arg9: memref<128x128xbf16, #tpu.memory_space<vmem>>, %arg10: memref<1x128xf32, #tpu.memory_space<vmem>>, %arg11: memref<32x128xf32, #tpu.memory_space<vmem>>, %arg12: memref<32x128xbf16, #tpu.memory_space<vmem>>) attributes {dimension_semantics = [#tpu.dimension_semantics<parallel>], iteration_bounds = array<i64: 1>, scalar_prefetch = 0 : i64, scratch_operands = 1 : i64, tpu.core_type = #tpu.core_type<tc>, window_params = [{pipeline_mode = #tpu.pipeline_mode<synchronous>, transform_indices = @transform_0, window_bounds = array<i64: 32, 8>}, {transform_indices = @transform_1, window_bounds = array<i64: 1, 32, 32>}, {transform_indices = @transform_2, window_bounds = array<i64: 32, 1>}, {pipeline_mode = #tpu.pipeline_mode<synchronous>, transform_indices = @transform_3, window_bounds = array<i64: 8, 128>}, {pipeline_mode = #tpu.pipeline_mode<synchronous>, transform_indices = @transform_4, window_bounds = array<i64: 8, 128>}, {pipeline_mode = #tpu.pipeline_mode<synchronous>, transform_indices = @transform_5, window_bounds = array<i64: 1, 128>}, {pipeline_mode = #tpu.pipeline_mode<synchronous>, transform_indices = @transform_6, window_bounds = array<i64: 128, 128>}, {pipeline_mode = #tpu.pipeline_mode<synchronous>, transform_indices = @transform_7, window_bounds = array<i64: 1, 128>}, {pipeline_mode = #tpu.pipeline_mode<synchronous>, transform_indices = @transform_8, window_bounds = array<i64: 128, 128>}, {pipeline_mode = #tpu.pipeline_mode<synchronous>, transform_indices = @transform_9, window_bounds = array<i64: 1, 128>}, {transform_indices = @transform_10, window_bounds = array<i64: 32, 128>}]} {
    %c0 = arith.constant 0 : index
    %c0_0 = arith.constant 0 : index
    %0 = vector.load %arg1[%c0, %c0_0] : memref<32x8xf32, #tpu.memory_space<vmem>>, vector<32x8xf32>
    %1 = arith.truncf %0 : vector<32x8xf32> to vector<32x8xbf16>
    %c0_1 = arith.constant 0 : index
    %c0_2 = arith.constant 0 : index
    %2 = vector.load %arg5[%c0_1, %c0_2] : memref<8x128xbf16, #tpu.memory_space<vmem>>, vector<8x128xbf16>
    %cst = arith.constant dense<0.000000e+00> : vector<32x128xf32>
    %3 = tpu.matmul %1, %2, %cst {dimension_numbers = #tpu.dot_dimension_numbers<[1], [0], [0], [1], [0, 0, 1, 1], [], []>} : vector<32x8xbf16>, vector<8x128xbf16>, vector<32x128xf32> -> vector<32x128xf32>
    %c0_3 = arith.constant 0 : index
    %c0_4 = arith.constant 0 : index
    %4 = vector.load %arg6[%c0_3, %c0_4] : memref<1x128xf32, #tpu.memory_space<vmem>>, vector<1x128xf32>
    %5 = vector.broadcast %4 : vector<1x128xf32> to vector<32x128xf32>
    %6 = arith.addf %3, %5 : vector<32x128xf32>
    %7 = arith.truncf %6 : vector<32x128xf32> to vector<32x128xbf16>
    %c0_5 = arith.constant 0 : index
    %c0_6 = arith.constant 0 : index
    %8 = vector.load %arg12[%c0_5, %c0_6] : memref<32x128xbf16, #tpu.memory_space<vmem>>, vector<32x128xbf16>
    tpu.vector_store %arg12[%c0_5, %c0_6], %7 {strides = array<i32>} : memref<32x128xbf16, #tpu.memory_space<vmem>>, vector<32x128xbf16>,
    %c32_i32 = arith.constant 32 : i32
    %9 = arith.muli %arg0, %c32_i32 : i32
    %10 = tpu.assume_multiple %9, 32 : i32
    %11 = arith.index_cast %10 : i32 to index
    %c0_7 = arith.constant 0 : index
    %12 = vector.load %arg1[%11, %c0_7] : memref<32x8xf32, #tpu.memory_space<vmem>>, vector<32x8xf32>
    %13 = arith.truncf %12 : vector<32x8xf32> to vector<32x8xbf16>
    %c0_8 = arith.constant 0 : index
    %c0_9 = arith.constant 0 : index
    %14 = vector.load %arg4[%c0_8, %c0_9] : memref<8x128xbf16, #tpu.memory_space<vmem>>, vector<8x128xbf16>
    %cst_10 = arith.constant dense<0.000000e+00> : vector<32x128xf32>
    %15 = tpu.matmul %13, %14, %cst_10 {dimension_numbers = #tpu.dot_dimension_numbers<[1], [0], [0], [1], [0, 0, 1, 1], [], []>} : vector<32x8xbf16>, vector<8x128xbf16>, vector<32x128xf32> -> vector<32x128xf32>
    %c0_11 = arith.constant 0 : index
    %c0_12 = arith.constant 0 : index
    %16 = vector.load %arg5[%c0_11, %c0_12] : memref<8x128xbf16, #tpu.memory_space<vmem>>, vector<8x128xbf16>
    %cst_13 = arith.constant dense<0.000000e+00> : vector<32x128xf32>
    %17 = tpu.matmul %13, %16, %cst_13 {dimension_numbers = #tpu.dot_dimension_numbers<[1], [0], [0], [1], [0, 0, 1, 1], [], []>} : vector<32x8xbf16>, vector<8x128xbf16>, vector<32x128xf32> -> vector<32x128xf32>
    %18 = arith.subf %15, %17 : vector<32x128xf32>
    %19 = arith.truncf %18 : vector<32x128xf32> to vector<32x128xbf16>
    %cst_14 = arith.constant -1.000000e+30 : f32
    %20 = vector.broadcast %cst_14 : f32 to vector<32x128xf32>
    %c0_i32 = arith.constant 0 : i32
    %c32_i32_15 = arith.constant 32 : i32
    %21 = arith.muli %c0_i32, %c32_i32_15 : i32
    %22 = tpu.assume_multiple %21, 32 : i32
    %23 = arith.index_cast %22 : i32 to index
    %c0_16 = arith.constant 0 : index
    %24 = vector.load %arg12[%23, %c0_16] : memref<32x128xbf16, #tpu.memory_space<vmem>>, vector<32x128xbf16>
    %25 = vector.shape_cast %19 : vector<32x128xbf16> to vector<32x1x128xbf16>
    %26 = vector.shape_cast %24 : vector<32x128xbf16> to vector<1x32x128xbf16>
    %27 = vector.broadcast %25 : vector<32x1x128xbf16> to vector<32x32x128xbf16>
    %28 = vector.broadcast %26 : vector<1x32x128xbf16> to vector<32x32x128xbf16>
    %29 = arith.addf %27, %28 : vector<32x32x128xbf16>
    %cst_17 = arith.constant 0.000000e+00 : bf16
    %30 = vector.broadcast %cst_17 : bf16 to vector<32x32x128xbf16>
    %31 = arith.maximumf %29, %30 : vector<32x32x128xbf16>
    %32 = vector.shape_cast %31 : vector<32x32x128xbf16> to vector<1024x128xbf16>
    %c0_18 = arith.constant 0 : index
    %c0_19 = arith.constant 0 : index
    %33 = vector.load %arg7[%c0_18, %c0_19] : memref<128x128xbf16, #tpu.memory_space<vmem>>, vector<128x128xbf16>
    %cst_20 = arith.constant dense<0.000000e+00> : vector<1024x128xf32>
    %34 = tpu.matmul %32, %33, %cst_20 {dimension_numbers = #tpu.dot_dimension_numbers<[1], [0], [0], [1], [0, 0, 1, 1], [], []>} : vector<1024x128xbf16>, vector<128x128xbf16>, vector<1024x128xf32> -> vector<1024x128xf32>
    %c0_21 = arith.constant 0 : index
    %c0_22 = arith.constant 0 : index
    %35 = vector.load %arg8[%c0_21, %c0_22] : memref<1x128xf32, #tpu.memory_space<vmem>>, vector<1x128xf32>
    %36 = vector.broadcast %35 : vector<1x128xf32> to vector<1024x128xf32>
    %37 = arith.addf %34, %36 : vector<1024x128xf32>
    %cst_23 = arith.constant 0.000000e+00 : f32
    %38 = vector.broadcast %cst_23 : f32 to vector<1024x128xf32>
    %39 = arith.maximumf %37, %38 : vector<1024x128xf32>
    %40 = arith.truncf %39 : vector<1024x128xf32> to vector<1024x128xbf16>
    %c0_24 = arith.constant 0 : index
    %c0_25 = arith.constant 0 : index
    %41 = vector.load %arg9[%c0_24, %c0_25] : memref<128x128xbf16, #tpu.memory_space<vmem>>, vector<128x128xbf16>
    %cst_26 = arith.constant dense<0.000000e+00> : vector<1024x128xf32>
    %42 = tpu.matmul %40, %41, %cst_26 {dimension_numbers = #tpu.dot_dimension_numbers<[1], [0], [0], [1], [0, 0, 1, 1], [], []>} : vector<1024x128xbf16>, vector<128x128xbf16>, vector<1024x128xf32> -> vector<1024x128xf32>
    %c0_27 = arith.constant 0 : index
    %c0_28 = arith.constant 0 : index
    %43 = vector.load %arg10[%c0_27, %c0_28] : memref<1x128xf32, #tpu.memory_space<vmem>>, vector<1x128xf32>
    %44 = vector.broadcast %43 : vector<1x128xf32> to vector<1024x128xf32>
    %45 = arith.addf %42, %44 : vector<1024x128xf32>
    %46 = vector.shape_cast %45 : vector<1024x128xf32> to vector<32x32x128xf32>
    %47 = arith.index_cast %c0_i32 : i32 to index
    %c0_29 = arith.constant 0 : index
    %c0_30 = arith.constant 0 : index
    %48 = vector.load %arg2[%47, %c0_29, %c0_30] : memref<1x32x32xbf16, #tpu.memory_space<vmem>>, vector<1x32x32xbf16>
    %49 = vector.shape_cast %48 : vector<1x32x32xbf16> to vector<32x32xbf16>
    %50 = vector.shape_cast %49 : vector<32x32xbf16> to vector<32x32x1xbf16>
    %51 = arith.extf %50 : vector<32x32x1xbf16> to vector<32x32x1xf32>
    %52 = vector.broadcast %51 : vector<32x32x1xf32> to vector<32x32x128xf32>
    %53 = arith.addf %46, %52 : vector<32x32x128xf32>
    %cst_31 = arith.constant dense<0xFF800000> : vector<32x128xf32>
    %54 = vector.multi_reduction <maximumf>, %53, %cst_31 [1] : vector<32x32x128xf32> to vector<32x128xf32>
    %55 = arith.maximumf %20, %54 : vector<32x128xf32>
    %c1_i32 = arith.constant 1 : i32
    %c0_32 = arith.constant 0 : index
    %c0_33 = arith.constant 0 : index
    %56 = vector.load %arg3[%c0_32, %c0_33] : memref<32x1xf32, #tpu.memory_space<vmem>>, vector<32x1xf32>
    %cst_34 = arith.constant 0.000000e+00 : f32
    %57 = vector.broadcast %cst_34 : f32 to vector<32x1xf32>
    %58 = arith.cmpf ogt, %56, %57 : vector<32x1xf32>
    %cst_35 = arith.constant 0.000000e+00 : f32
    %59 = vector.shape_cast %58 : vector<32x1xi1> to vector<32x1xi1>
    %60 = vector.broadcast %59 : vector<32x1xi1> to vector<32x128xi1>
    %61 = vector.broadcast %cst_35 : f32 to vector<32x128xf32>
    %62 = arith.select %60, %55, %61 : vector<32x128xi1>, vector<32x128xf32>
    %cst_36 = arith.constant 0.000000e+00 : f32
    %63 = vector.broadcast %cst_36 : f32 to vector<32x128xf32>
    %64 = arith.maximumf %62, %63 : vector<32x128xf32>
    %c0_37 = arith.constant 0 : index
    %c0_38 = arith.constant 0 : index
    %65 = vector.load %arg11[%c0_37, %c0_38] : memref<32x128xf32, #tpu.memory_space<vmem>>, vector<32x128xf32>
    tpu.vector_store %arg11[%c0_37, %c0_38], %64 {strides = array<i32>} : memref<32x128xf32, #tpu.memory_space<vmem>>, vector<32x128xf32>,
    return
  }
  func.func @transform_0(%arg0: i32) -> (i32, i32) {
    %c0_i32 = arith.constant 0 : i32
    %c0_i32_0 = arith.constant 0 : i32
    %c0_i32_1 = arith.constant 0 : i32
    return %c0_i32, %c0_i32_0 : i32, i32
  }
  func.func @transform_1(%arg0: i32) -> (i32, i32, i32) {
    %c0_i32 = arith.constant 0 : i32
    %c0_i32_0 = arith.constant 0 : i32
    %c0_i32_1 = arith.constant 0 : i32
    return %c0_i32, %arg0, %c0_i32_0 : i32, i32, i32
  }
  func.func @transform_2(%arg0: i32) -> (i32, i32) {
    %c0_i32 = arith.constant 0 : i32
    %c0_i32_0 = arith.constant 0 : i32
    return %arg0, %c0_i32 : i32, i32
  }
  func.func @transform_3(%arg0: i32) -> (i32, i32) {
    %c0_i32 = arith.constant 0 : i32
    %c0_i32_0 = arith.constant 0 : i32
    %c0_i32_1 = arith.constant 0 : i32
    return %c0_i32, %c0_i32_0 : i32, i32
  }
  func.func @transform_4(%arg0: i32) -> (i32, i32) {
    %c0_i32 = arith.constant 0 : i32
    %c0_i32_0 = arith.constant 0 : i32
    %c0_i32_1 = arith.constant 0 : i32
    return %c0_i32, %c0_i32_0 : i32, i32
  }
  func.func @transform_5(%arg0: i32) -> (i32, i32) {
    %c0_i32 = arith.constant 0 : i32
    %c0_i32_0 = arith.constant 0 : i32
    %c0_i32_1 = arith.constant 0 : i32
    return %c0_i32, %c0_i32_0 : i32, i32
  }
  func.func @transform_6(%arg0: i32) -> (i32, i32) {
    %c0_i32 = arith.constant 0 : i32
    %c0_i32_0 = arith.constant 0 : i32
    %c0_i32_1 = arith.constant 0 : i32
    return %c0_i32, %c0_i32_0 : i32, i32
  }
  func.func @transform_7(%arg0: i32) -> (i32, i32) {
    %c0_i32 = arith.constant 0 : i32
    %c0_i32_0 = arith.constant 0 : i32
    %c0_i32_1 = arith.constant 0 : i32
    return %c0_i32, %c0_i32_0 : i32, i32
  }
  func.func @transform_8(%arg0: i32) -> (i32, i32) {
    %c0_i32 = arith.constant 0 : i32
    %c0_i32_0 = arith.constant 0 : i32
    %c0_i32_1 = arith.constant 0 : i32
    return %c0_i32, %c0_i32_0 : i32, i32
  }
  func.func @transform_9(%arg0: i32) -> (i32, i32) {
    %c0_i32 = arith.constant 0 : i32
    %c0_i32_0 = arith.constant 0 : i32
    %c0_i32_1 = arith.constant 0 : i32
    return %c0_i32, %c0_i32_0 : i32, i32
  }
  func.func @transform_10(%arg0: i32) -> (i32, i32) {
    %c0_i32 = arith.constant 0 : i32
    %c0_i32_0 = arith.constant 0 : i32
    return %arg0, %c0_i32 : i32, i32
  }
}

module attributes {stable_mosaic.version = 11 : i64} {
  func.func @_pool_head_kernel(%arg0: memref<32x128xf32, #tpu.memory_space<vmem>>, %arg1: memref<2x32xf32, #tpu.memory_space<vmem>>, %arg2: memref<2x1xf32, #tpu.memory_space<vmem>>, %arg3: memref<2x32xf32, #tpu.memory_space<vmem>>, %arg4: memref<2x1xf32, #tpu.memory_space<vmem>>, %arg5: memref<128x128xf32, #tpu.memory_space<vmem>>, %arg6: memref<128x128xf32, #tpu.memory_space<vmem>>, %arg7: memref<128x128xf32, #tpu.memory_space<vmem>>, %arg8: memref<1x128xf32, #tpu.memory_space<vmem>>, %arg9: memref<1x128xf32, #tpu.memory_space<vmem>>, %arg10: memref<128x128xf32, #tpu.memory_space<vmem>>, %arg11: memref<1x128xf32, #tpu.memory_space<vmem>>, %arg12: memref<128x2xf32, #tpu.memory_space<vmem>>, %arg13: memref<1x2xf32, #tpu.memory_space<vmem>>, %arg14: memref<2x2xf32, #tpu.memory_space<vmem>>) attributes {dimension_semantics = [], scalar_prefetch = 0 : i64, scratch_operands = 0 : i64, tpu.core_type = #tpu.core_type<tc>} {
    %c0 = arith.constant 0 : index
    %c0_0 = arith.constant 0 : index
    %0 = vector.load %arg0[%c0, %c0_0] : memref<32x128xf32, #tpu.memory_space<vmem>>, vector<32x128xf32>
    %c0_1 = arith.constant 0 : index
    %c0_2 = arith.constant 0 : index
    %1 = vector.load %arg1[%c0_1, %c0_2] : memref<2x32xf32, #tpu.memory_space<vmem>>, vector<2x32xf32>
    %cst = arith.constant dense<0.000000e+00> : vector<2x128xf32>
    %2 = tpu.matmul %1, %0, %cst {dimension_numbers = #tpu.dot_dimension_numbers<[1], [0], [0], [1], [0, 0, 1, 1], [], []>} : vector<2x32xf32>, vector<32x128xf32>, vector<2x128xf32> -> vector<2x128xf32>
    %c0_3 = arith.constant 0 : index
    %c0_4 = arith.constant 0 : index
    %3 = vector.load %arg2[%c0_3, %c0_4] : memref<2x1xf32, #tpu.memory_space<vmem>>, vector<2x1xf32>
    %4 = vector.broadcast %3 : vector<2x1xf32> to vector<2x128xf32>
    %5 = arith.mulf %2, %4 : vector<2x128xf32>
    %6 = vector.shape_cast %0 : vector<32x128xf32> to vector<1x32x128xf32>
    %c0_5 = arith.constant 0 : index
    %c0_6 = arith.constant 0 : index
    %7 = vector.load %arg3[%c0_5, %c0_6] : memref<2x32xf32, #tpu.memory_space<vmem>>, vector<2x32xf32>
    %8 = vector.shape_cast %7 : vector<2x32xf32> to vector<2x32x1xf32>
    %9 = vector.broadcast %6 : vector<1x32x128xf32> to vector<2x32x128xf32>
    %10 = vector.broadcast %8 : vector<2x32x1xf32> to vector<2x32x128xf32>
    %11 = arith.addf %9, %10 : vector<2x32x128xf32>
    %cst_7 = arith.constant dense<0xFF800000> : vector<2x128xf32>
    %12 = vector.multi_reduction <maximumf>, %11, %cst_7 [1] : vector<2x32x128xf32> to vector<2x128xf32>
    %c0_8 = arith.constant 0 : index
    %c0_9 = arith.constant 0 : index
    %13 = vector.load %arg5[%c0_8, %c0_9] : memref<128x128xf32, #tpu.memory_space<vmem>>, vector<128x128xf32>
    %cst_10 = arith.constant dense<0.000000e+00> : vector<2x128xf32>
    %14 = tpu.matmul %2, %13, %cst_10 {dimension_numbers = #tpu.dot_dimension_numbers<[1], [0], [0], [1], [0, 0, 1, 1], [], []>} : vector<2x128xf32>, vector<128x128xf32>, vector<2x128xf32> -> vector<2x128xf32>
    %c0_11 = arith.constant 0 : index
    %c0_12 = arith.constant 0 : index
    %15 = vector.load %arg6[%c0_11, %c0_12] : memref<128x128xf32, #tpu.memory_space<vmem>>, vector<128x128xf32>
    %cst_13 = arith.constant dense<0.000000e+00> : vector<2x128xf32>
    %16 = tpu.matmul %5, %15, %cst_13 {dimension_numbers = #tpu.dot_dimension_numbers<[1], [0], [0], [1], [0, 0, 1, 1], [], []>} : vector<2x128xf32>, vector<128x128xf32>, vector<2x128xf32> -> vector<2x128xf32>
    %17 = arith.addf %14, %16 : vector<2x128xf32>
    %c0_14 = arith.constant 0 : index
    %c0_15 = arith.constant 0 : index
    %18 = vector.load %arg7[%c0_14, %c0_15] : memref<128x128xf32, #tpu.memory_space<vmem>>, vector<128x128xf32>
    %cst_16 = arith.constant dense<0.000000e+00> : vector<2x128xf32>
    %19 = tpu.matmul %12, %18, %cst_16 {dimension_numbers = #tpu.dot_dimension_numbers<[1], [0], [0], [1], [0, 0, 1, 1], [], []>} : vector<2x128xf32>, vector<128x128xf32>, vector<2x128xf32> -> vector<2x128xf32>
    %20 = arith.addf %17, %19 : vector<2x128xf32>
    %c0_17 = arith.constant 0 : index
    %c0_18 = arith.constant 0 : index
    %21 = vector.load %arg4[%c0_17, %c0_18] : memref<2x1xf32, #tpu.memory_space<vmem>>, vector<2x1xf32>
    %c0_19 = arith.constant 0 : index
    %c0_20 = arith.constant 0 : index
    %22 = vector.load %arg8[%c0_19, %c0_20] : memref<1x128xf32, #tpu.memory_space<vmem>>, vector<1x128xf32>
    %23 = vector.broadcast %21 : vector<2x1xf32> to vector<2x128xf32>
    %24 = vector.broadcast %22 : vector<1x128xf32> to vector<2x128xf32>
    %25 = arith.mulf %23, %24 : vector<2x128xf32>
    %26 = arith.addf %20, %25 : vector<2x128xf32>
    %c0_21 = arith.constant 0 : index
    %c0_22 = arith.constant 0 : index
    %27 = vector.load %arg9[%c0_21, %c0_22] : memref<1x128xf32, #tpu.memory_space<vmem>>, vector<1x128xf32>
    %28 = vector.broadcast %27 : vector<1x128xf32> to vector<2x128xf32>
    %29 = arith.addf %26, %28 : vector<2x128xf32>
    %cst_23 = arith.constant 0.000000e+00 : f32
    %30 = vector.broadcast %cst_23 : f32 to vector<2x128xf32>
    %31 = arith.maximumf %29, %30 : vector<2x128xf32>
    %c0_24 = arith.constant 0 : index
    %c0_25 = arith.constant 0 : index
    %32 = vector.load %arg10[%c0_24, %c0_25] : memref<128x128xf32, #tpu.memory_space<vmem>>, vector<128x128xf32>
    %cst_26 = arith.constant dense<0.000000e+00> : vector<2x128xf32>
    %33 = tpu.matmul %31, %32, %cst_26 {dimension_numbers = #tpu.dot_dimension_numbers<[1], [0], [0], [1], [0, 0, 1, 1], [], []>} : vector<2x128xf32>, vector<128x128xf32>, vector<2x128xf32> -> vector<2x128xf32>
    %c0_27 = arith.constant 0 : index
    %c0_28 = arith.constant 0 : index
    %34 = vector.load %arg11[%c0_27, %c0_28] : memref<1x128xf32, #tpu.memory_space<vmem>>, vector<1x128xf32>
    %35 = vector.broadcast %34 : vector<1x128xf32> to vector<2x128xf32>
    %36 = arith.addf %33, %35 : vector<2x128xf32>
    %cst_29 = arith.constant 0.000000e+00 : f32
    %37 = vector.broadcast %cst_29 : f32 to vector<2x128xf32>
    %38 = arith.maximumf %36, %37 : vector<2x128xf32>
    %c0_30 = arith.constant 0 : index
    %c0_31 = arith.constant 0 : index
    %39 = vector.load %arg12[%c0_30, %c0_31] : memref<128x2xf32, #tpu.memory_space<vmem>>, vector<128x2xf32>
    %cst_32 = arith.constant dense<0.000000e+00> : vector<2x2xf32>
    %40 = tpu.matmul %38, %39, %cst_32 {dimension_numbers = #tpu.dot_dimension_numbers<[1], [0], [0], [1], [0, 0, 1, 1], [], []>} : vector<2x128xf32>, vector<128x2xf32>, vector<2x2xf32> -> vector<2x2xf32>
    %c0_33 = arith.constant 0 : index
    %c0_34 = arith.constant 0 : index
    %41 = vector.load %arg13[%c0_33, %c0_34] : memref<1x2xf32, #tpu.memory_space<vmem>>, vector<1x2xf32>
    %42 = vector.broadcast %41 : vector<1x2xf32> to vector<2x2xf32>
    %43 = arith.addf %40, %42 : vector<2x2xf32>
    %c0_35 = arith.constant 0 : index
    %c0_36 = arith.constant 0 : index
    %44 = vector.load %arg14[%c0_35, %c0_36] : memref<2x2xf32, #tpu.memory_space<vmem>>, vector<2x2xf32>
    tpu.vector_store %arg14[%c0_35, %c0_36], %43 {strides = array<i32>} : memref<2x2xf32, #tpu.memory_space<vmem>>, vector<2x2xf32>,
    return
  }
}

</mosaic_0001>

<llo_original>
// kernel: model_gnn_forward.5
$region0: #{model_gnn_forward.5}
  #allocation0 [shape = 'u32[]', space=smem, size = 0x4, offset = 0x4, fixed_abs, tag = 'smem constant byte address 0x4 - core index']
  #allocation1 [shape = 'u32[144,128]{1,0:T(1,128)}', space=vmem, size = 0x12000, scoped, tag = 'internal scratch']
  %s0 = inlined_call_operand.vmem [shape: f32[32,128], index: 0, kind: input, shape index: {}]
  %s1 = inlined_call_operand.vmem [shape: f32[2,32], index: 1, kind: input, shape index: {}]
  %s2 = inlined_call_operand.vmem [shape: f32[2,1], index: 2, kind: input, shape index: {}]
  %s3 = inlined_call_operand.vmem [shape: f32[2,32], index: 3, kind: input, shape index: {}]
  %s4 = inlined_call_operand.vmem [shape: f32[2,1], index: 4, kind: input, shape index: {}]
  %s5 = inlined_call_operand.vmem [shape: f32[128,128], index: 5, kind: input, shape index: {}]
  %s6 = inlined_call_operand.vmem [shape: f32[128,128], index: 6, kind: input, shape index: {}]
  %s7 = inlined_call_operand.vmem [shape: f32[128,128], index: 7, kind: input, shape index: {}]
  %s8 = inlined_call_operand.vmem [shape: f32[1,128], index: 8, kind: input, shape index: {}]
  %s9 = inlined_call_operand.vmem [shape: f32[1,128], index: 9, kind: input, shape index: {}]
  %s10 = inlined_call_operand.vmem [shape: f32[128,128], index: 10, kind: input, shape index: {}]
  %s11 = inlined_call_operand.vmem [shape: f32[1,128], index: 11, kind: input, shape index: {}]
  %s12 = inlined_call_operand.vmem [shape: f32[128,2], index: 12, kind: input, shape index: {}]
  %s13 = inlined_call_operand.vmem [shape: f32[1,2], index: 13, kind: input, shape index: {}]
  %s14 = inlined_call_operand.hbm [shape: f32[2,2], index: 14, kind: output, shape index: {}]
  %s15 = sld [smem:[#allocation0]]
  $region66: #{model_gnn_forward.5} parent=0
    _
  %s17 = ssub.s32 1, %s15
  %s18 = scalar_select 0, %s17, %s15
  $region1: #{model_gnn_forward.5} parent=0
    #allocation2 [shape = 'u8[1024]{0}', space=vmem, size = 0x400, scoped, tag = 'output window, operand 0, single buffered']
    #allocation3 [shape = 's32[1]{0}', space=sflag, size = 0x4, scoped, tag = 'scoped memory for model_gnn_forward.5']
    %19 = vsyncpa [#allocation3], 0
    // Predicated region
    $region2: #{model_gnn_forward.5} parent=1 // pred_check
      _
    $region3: #{model_gnn_forward.5} parent=1 // pred_check_branch
      %21 = sbr.rel (0) target = $region5
    $region4: #{model_gnn_forward.5} parent=1 // pred_region
      _
    $region5: #{model_gnn_forward.5} parent=1 // pred_fallthru
      _
    // Predicated region
    $region6: #{model_gnn_forward.5} parent=1 // pred_check
      _
    $region7: #{model_gnn_forward.5} parent=1 // pred_check_branch
      %23 = sbr.rel (0) target = $region9
    $region8: #{model_gnn_forward.5} parent=1 // pred_region
      _
    $region9: #{model_gnn_forward.5} parent=1 // pred_fallthru
      _
    // Predicated region
    $region10: #{model_gnn_forward.5} parent=1 // pred_check
      _
    $region11: #{model_gnn_forward.5} parent=1 // pred_check_branch
      %25 = sbr.rel (0) target = $region13
    $region12: #{model_gnn_forward.5} parent=1 // pred_region
      _
    $region13: #{model_gnn_forward.5} parent=1 // pred_fallthru
      _
    // Predicated region
    $region14: #{model_gnn_forward.5} parent=1 // pred_check
      _
    $region15: #{model_gnn_forward.5} parent=1 // pred_check_branch
      %27 = sbr.rel (0) target = $region17
    $region16: #{model_gnn_forward.5} parent=1 // pred_region
      _
    $region17: #{model_gnn_forward.5} parent=1 // pred_fallthru
      _
    // Predicated region
    $region18: #{model_gnn_forward.5} parent=1 // pred_check
      _
    $region19: #{model_gnn_forward.5} parent=1 // pred_check_branch
      %29 = sbr.rel (0) target = $region21
    $region20: #{model_gnn_forward.5} parent=1 // pred_region
      _
    $region21: #{model_gnn_forward.5} parent=1 // pred_fallthru
      _
    // Predicated region
    $region22: #{model_gnn_forward.5} parent=1 // pred_check
      _
    $region23: #{model_gnn_forward.5} parent=1 // pred_check_branch
      %31 = sbr.rel (0) target = $region25
    $region24: #{model_gnn_forward.5} parent=1 // pred_region
      _
    $region25: #{model_gnn_forward.5} parent=1 // pred_fallthru
      _
    // Predicated region
    $region26: #{model_gnn_forward.5} parent=1 // pred_check
      _
    $region27: #{model_gnn_forward.5} parent=1 // pred_check_branch
      %33 = sbr.rel (0) target = $region29
    $region28: #{model_gnn_forward.5} parent=1 // pred_region
      _
    $region29: #{model_gnn_forward.5} parent=1 // pred_fallthru
      _
    // Predicated region
    $region30: #{model_gnn_forward.5} parent=1 // pred_check
      _
    $region31: #{model_gnn_forward.5} parent=1 // pred_check_branch
      %35 = sbr.rel (0) target = $region33
    $region32: #{model_gnn_forward.5} parent=1 // pred_region
      _
    $region33: #{model_gnn_forward.5} parent=1 // pred_fallthru
      _
    // Predicated region
    $region34: #{model_gnn_forward.5} parent=1 // pred_check
      _
    $region35: #{model_gnn_forward.5} parent=1 // pred_check_branch
      %37 = sbr.rel (0) target = $region37
    $region36: #{model_gnn_forward.5} parent=1 // pred_region
      _
    $region37: #{model_gnn_forward.5} parent=1 // pred_fallthru
      _
    // Predicated region
    $region38: #{model_gnn_forward.5} parent=1 // pred_check
      _
    $region39: #{model_gnn_forward.5} parent=1 // pred_check_branch
      %39 = sbr.rel (0) target = $region41
    $region40: #{model_gnn_forward.5} parent=1 // pred_region
      _
    $region41: #{model_gnn_forward.5} parent=1 // pred_fallthru
      _
    // Predicated region
    $region42: #{model_gnn_forward.5} parent=1 // pred_check
      _
    $region43: #{model_gnn_forward.5} parent=1 // pred_check_branch
      %41 = sbr.rel (0) target = $region45
    $region44: #{model_gnn_forward.5} parent=1 // pred_region
      _
    $region45: #{model_gnn_forward.5} parent=1 // pred_fallthru
      _
    // Predicated region
    $region46: #{model_gnn_forward.5} parent=1 // pred_check
      _
    $region47: #{model_gnn_forward.5} parent=1 // pred_check_branch
      %43 = sbr.rel (0) target = $region49
    $region48: #{model_gnn_forward.5} parent=1 // pred_region
      _
    $region49: #{model_gnn_forward.5} parent=1 // pred_fallthru
      _
    // Predicated region
    $region50: #{model_gnn_forward.5} parent=1 // pred_check
      _
    $region51: #{model_gnn_forward.5} parent=1 // pred_check_branch
      %45 = sbr.rel (0) target = $region53
    $region52: #{model_gnn_forward.5} parent=1 // pred_region
      _
    $region53: #{model_gnn_forward.5} parent=1 // pred_fallthru
      _
    // Predicated region
    $region54: #{model_gnn_forward.5} parent=1 // pred_check
      _
    $region55: #{model_gnn_forward.5} parent=1 // pred_check_branch
      %47 = sbr.rel (0) target = $region57
    $region56: #{model_gnn_forward.5} parent=1 // pred_region
      _
    $region57: #{model_gnn_forward.5} parent=1 // pred_fallthru
      _
    %v48 = vld [vmem:[%s0] sm:$0xff]
    %v49 = vld [vmem:[%s0 + $0x8] sm:$0xff]
    %v50 = vld [vmem:[%s0 + $0x10] sm:$0xff]
    %v51 = vld [vmem:[%s0 + $0x18] sm:$0xff]
    %v52 = vld [vmem:[%s1] sm:$0x3]
    %vm53 = vcmask 261120
    %v55 = vsel %vm53, %v52, 0
    %57 = vmatprep.subr.mxu0 0.0
    %58 = vmatpush1.msra.mxu0 0.0
    %59 = vmatprep.subr.mxu0 0.0
    %60 = vmatpush1.msra.mxu0 0.0
    %61 = vmatprep.subr.mxu0 0.0
    %62 = vmatpush1.msra.mxu0 0.0
    %63 = vmatprep.subr.mxu0 0.0
    %64 = vmatpush1.msra.mxu0 0.0
    %65 = vmatprep.subr.mxu0 0.0
    %66 = vmatpush1.msra.mxu0 0.0
    %67 = vmatprep.subr.mxu0 0.0
    %68 = vmatpush1.msra.mxu0 0.0
    %69 = vmatprep.subr.mxu0 0.0
    %70 = vmatpush1.msra.mxu0 0.0
    %71 = vmatprep.subr.mxu0 0.0
    %72 = vmatpush1.msra.mxu0 0.0
    %73 = vmatprep.subr.mxu0 0.0
    %74 = vmatpush1.msra.mxu0 0.0
    %75 = vmatprep.subr.mxu0 0.0
    %76 = vmatpush1.msra.mxu0 0.0
    %77 = vmatprep.subr.mxu0 0.0
    %78 = vmatpush1.msra.mxu0 0.0
    %79 = vmatprep.subr.mxu0 0.0
    %80 = vmatpush1.msra.mxu0 0.0
    %81 = vmatprep.subr.mxu0 0.0
    %82 = vmatpush1.msra.mxu0 %v51
    %83 = vmatprep.subr.mxu0 0.0
    %84 = vmatpush1.msra.mxu0 %v50
    %85 = vmatprep.subr.mxu0 0.0
    %86 = vmatpush1.msra.mxu0 %v49
    %87 = vmatprep.subr.mxu0 0.0
    %88 = vmatpush1.msra.mxu0 %v48
    %89 = vmatprep.subr.mxu0 0.0
    %90 = vmatpush2.msra.mxu0 0.0
    %91 = vmatprep.subr.mxu0 0.0
    %92 = vmatpush2.msra.mxu0 0.0
    %93 = vmatprep.subr.mxu0 0.0
    %94 = vmatpush2.msra.mxu0 0.0
    %95 = vmatprep.subr.mxu0 0.0
    %96 = vmatpush2.msra.mxu0 0.0
    %97 = vmatprep.subr.mxu0 0.0
    %98 = vmatpush2.msra.mxu0 0.0
    %99 = vmatprep.subr.mxu0 0.0
    %100 = vmatpush2.msra.mxu0 0.0
    %101 = vmatprep.subr.mxu0 0.0
    %102 = vmatpush2.msra.mxu0 0.0
    %103 = vmatprep.subr.mxu0 0.0
    %104 = vmatpush2.msra.mxu0 0.0
    %105 = vmatprep.subr.mxu0 0.0
    %106 = vmatpush2.msra.mxu0 0.0
    %107 = vmatprep.subr.mxu0 0.0
    %108 = vmatpush2.msra.mxu0 0.0
    %109 = vmatprep.subr.mxu0 0.0
    %110 = vmatpush2.msra.mxu0 0.0
    %111 = vmatprep.subr.mxu0 0.0
    %112 = vmatpush2.msra.mxu0 0.0
    %113 = vmatprep.subr.mxu0 0.0
    %114 = vmatpush2.msra.mxu0 0.0
    %115 = vmatprep.subr.mxu0 0.0
    %116 = vmatpush2.msra.mxu0 0.0
    %117 = vmatprep.subr.mxu0 0.0
    %118 = vmatpush2.msra.mxu0 0.0
    %119 = vmatprep.subr.mxu0 0.0
    %120 = vmatpush2.msra.mxu0 0.0
    %121 = vmatprep.mubr.f32.mxu0 0.0
    %122 = vmatmul.mubr.f32.gmra.mxu0 %v55
    %v123 = vpop.f32.mrf.mxu0
    %v124 = vadd.f32 0.0, %v123
    %v125 = vpop.f32.mrf.mxu0
    %126 = vdwg.mxu0
    %v127 = vld [vmem:[%s2] sm:$0x3]
    %129 = vset.pattern.permute.xlu0 0
    %130 = vperm.xlu0 %129, %v127
    %v131 = vpop.permute.xlu0 %130
    %v133 = vmul.f32 %v124, %v131
    %v134 = vld [vmem:[%s3] sm:$0x3]
    %v135 = vlaneseq
    %v136 = vshrl.u32 %v135, 7
    %v137 = vsub.s32 0, %v136
    %v138 = vrot.slane %v134, %v137
    %140 = vbcast.lane.b32.xlu0 %v138, 256
    %v141 = vpop.permute.xlu0 %140
    %s143 = sor.u32 256, 8
    %144 = vbcast.lane.b32.xlu0 %v138, %s143
    %v145 = vpop.permute.xlu0 %144
    %s147 = sor.u32 256, 16
    %148 = vbcast.lane.b32.xlu0 %v138, %s147
    %v149 = vpop.permute.xlu0 %148
    %s151 = sor.u32 256, 24
    %152 = vbcast.lane.b32.xlu0 %v138, %s151
    %v153 = vpop.permute.xlu0 %152
    %v154 = vlaneseq
    %v155 = vshrl.u32 %v154, 7
    %v156 = vsub.s32 1, %v155
    %v157 = vrot.slane %v134, %v156
    %159 = vbcast.lane.b32.xlu0 %v157, 256
    %v160 = vpop.permute.xlu0 %159
    %s162 = sor.u32 256, 8
    %163 = vbcast.lane.b32.xlu0 %v157, %s162
    %v164 = vpop.permute.xlu0 %163
    %s166 = sor.u32 256, 16
    %167 = vbcast.lane.b32.xlu0 %v157, %s166
    %v168 = vpop.permute.xlu0 %167
    %s170 = sor.u32 256, 24
    %171 = vbcast.lane.b32.xlu0 %v157, %s170
    %v172 = vpop.permute.xlu0 %171
    %v173 = vadd.f32 %v48, %v141
    %v174 = vadd.f32 %v49, %v145
    %v175 = vadd.f32 %v50, %v149
    %v176 = vadd.f32 %v51, %v153
    %v177 = vadd.f32 %v48, %v160
    %v178 = vadd.f32 %v49, %v164
    %v179 = vadd.f32 %v50, %v168
    %v180 = vadd.f32 %v51, %v172
    %v181 = vmax.f32 %v173, %v175
    %v182 = vmax.f32 %v174, %v176
    %v183 = vmax.f32 %v181, %v182
    %v184 = vrot.slane %v183, 4
    %v185 = vmax.f32 %v183, %v184
    %v186 = vrot.slane %v185, 2
    %v187 = vmax.f32 %v185, %v186
    %v188 = vrot.slane %v187, 1
    %v189 = vmax.f32 %v187, %v188
    %v190 = vmax.f32 %v177, %v179
    %v191 = vmax.f32 %v178, %v180
    %v192 = vmax.f32 %v190, %v191
    %v193 = vrot.slane %v192, 4
    %v194 = vmax.f32 %v192, %v193
    %v195 = vrot.slane %v194, 2
    %v196 = vmax.f32 %v194, %v195
    %v197 = vrot.slane %v196, 1
    %v198 = vmax.f32 %v196, %v197
    %v199 = vld [vmem:[%s5] sm:$0xff]
    %v200 = vld [vmem:[%s5 + $0x8] sm:$0xff]
    %v201 = vld [vmem:[%s5 + $0x10] sm:$0xff]
    %v202 = vld [vmem:[%s5 + $0x18] sm:$0xff]
    %v203 = vld [vmem:[%s5 + $0x20] sm:$0xff]
    %v204 = vld [vmem:[%s5 + $0x28] sm:$0xff]
    %v205 = vld [vmem:[%s5 + $0x30] sm:$0xff]
    %v206 = vld [vmem:[%s5 + $0x38] sm:$0xff]
    %v207 = vld [vmem:[%s5 + $0x40] sm:$0xff]
    %v208 = vld [vmem:[%s5 + $0x48] sm:$0xff]
    %v209 = vld [vmem:[%s5 + $0x50] sm:$0xff]
    %v210 = vld [vmem:[%s5 + $0x58] sm:$0xff]
    %v211 = vld [vmem:[%s5 + $0x60] sm:$0xff]
    %v212 = vld [vmem:[%s5 + $0x68] sm:$0xff]
    %v213 = vld [vmem:[%s5 + $0x70] sm:$0xff]
    %v214 = vld [vmem:[%s5 + $0x78] sm:$0xff]
    %v215 = vld [vmem:[%s6] sm:$0xff]
    %v216 = vld [vmem:[%s6 + $0x8] sm:$0xff]
    %v217 = vld [vmem:[%s6 + $0x10] sm:$0xff]
    %v218 = vld [vmem:[%s6 + $0x18] sm:$0xff]
    %v219 = vld [vmem:[%s6 + $0x20] sm:$0xff]
    %v220 = vld [vmem:[%s6 + $0x28] sm:$0xff]
    %v221 = vld [vmem:[%s6 + $0x30] sm:$0xff]
    %v222 = vld [vmem:[%s6 + $0x38] sm:$0xff]
    %v223 = vld [vmem:[%s6 + $0x40] sm:$0xff]
    %v224 = vld [vmem:[%s6 + $0x48] sm:$0xff]
    %v225 = vld [vmem:[%s6 + $0x50] sm:$0xff]
    %v226 = vld [vmem:[%s6 + $0x58] sm:$0xff]
    %v227 = vld [vmem:[%s6 + $0x60] sm:$0xff]
    %v228 = vld [vmem:[%s6 + $0x68] sm:$0xff]
    %v229 = vld [vmem:[%s6 + $0x70] sm:$0xff]
    %v230 = vld [vmem:[%s6 + $0x78] sm:$0xff]
    %231 = vmatprep.subr.mxu0 0.0
    %232 = vmatpush1.msra.mxu0 %v230
    %233 = vmatprep.subr.mxu0 0.0
    %234 = vmatpush1.msra.mxu0 %v229
    %235 = vmatprep.subr.mxu0 0.0
    %236 = vmatpush1.msra.mxu0 %v228
    %237 = vmatprep.subr.mxu0 0.0
    %238 = vmatpush1.msra.mxu0 %v227
    %239 = vmatprep.subr.mxu0 0.0
    %240 = vmatpush1.msra.mxu0 %v226
    %241 = vmatprep.subr.mxu0 0.0
    %242 = vmatpush1.msra.mxu0 %v225
    %243 = vmatprep.subr.mxu0 0.0
    %244 = vmatpush1.msra.mxu0 %v224
    %245 = vmatprep.subr.mxu0 0.0
    %246 = vmatpush1.msra.mxu0 %v223
    %247 = vmatprep.subr.mxu0 0.0
    %248 = vmatpush1.msra.mxu0 %v222
    %249 = vmatprep.subr.mxu0 0.0
    %250 = vmatpush1.msra.mxu0 %v221
    %251 = vmatprep.subr.mxu0 0.0
    %252 = vmatpush1.msra.mxu0 %v220
    %253 = vmatprep.subr.mxu0 0.0
    %254 = vmatpush1.msra.mxu0 %v219
    %255 = vmatprep.subr.mxu0 0.0
    %256 = vmatpush1.msra.mxu0 %v218
    %257 = vmatprep.subr.mxu0 0.0
    %258 = vmatpush1.msra.mxu0 %v217
    %259 = vmatprep.subr.mxu0 0.0
    %260 = vmatpush1.msra.mxu0 %v216
    %261 = vmatprep.subr.mxu0 0.0
    %262 = vmatpush1.msra.mxu0 %v215
    %263 = vmatprep.subr.mxu0 0.0
    %264 = vmatpush2.msra.mxu0 0.0
    %265 = vmatprep.subr.mxu0 0.0
    %266 = vmatpush2.msra.mxu0 0.0
    %267 = vmatprep.subr.mxu0 0.0
    %268 = vmatpush2.msra.mxu0 0.0
    %269 = vmatprep.subr.mxu0 0.0
    %270 = vmatpush2.msra.mxu0 0.0
    %271 = vmatprep.subr.mxu0 0.0
    %272 = vmatpush2.msra.mxu0 0.0
    %273 = vmatprep.subr.mxu0 0.0
    %274 = vmatpush2.msra.mxu0 0.0
    %275 = vmatprep.subr.mxu0 0.0
    %276 = vmatpush2.msra.mxu0 0.0
    %277 = vmatprep.subr.mxu0 0.0
    %278 = vmatpush2.msra.mxu0 0.0
    %279 = vmatprep.subr.mxu0 0.0
    %280 = vmatpush2.msra.mxu0 0.0
    %281 = vmatprep.subr.mxu0 0.0
    %282 = vmatpush2.msra.mxu0 0.0
    %283 = vmatprep.subr.mxu0 0.0
    %284 = vmatpush2.msra.mxu0 0.0
    %285 = vmatprep.subr.mxu0 0.0
    %286 = vmatpush2.msra.mxu0 0.0
    %287 = vmatprep.subr.mxu0 0.0
    %288 = vmatpush2.msra.mxu0 0.0
    %289 = vmatprep.subr.mxu0 0.0
    %290 = vmatpush2.msra.mxu0 0.0
    %291 = vmatprep.subr.mxu0 0.0
    %292 = vmatpush2.msra.mxu0 0.0
    %293 = vmatprep.subr.mxu0 0.0
    %294 = vmatpush2.msra.mxu0 0.0
    %295 = vmatprep.mubr.f32.mxu0 0.0
    %296 = vmatmul.mubr.f32.gmra.mxu0 %v133
    %v297 = vpop.f32.mrf.mxu0
    %v298 = vadd.f32 0.0, %v297
    %v299 = vpop.f32.mrf.mxu0
    %300 = vdwg.mxu0
    %301 = vmatprep.subr.mxu0 0.0
    %302 = vmatpush1.msra.mxu0 %v214
    %303 = vmatprep.subr.mxu0 0.0
    %304 = vmatpush1.msra.mxu0 %v213
    %305 = vmatprep.subr.mxu0 0.0
    %306 = vmatpush1.msra.mxu0 %v212
    %307 = vmatprep.subr.mxu0 0.0
    %308 = vmatpush1.msra.mxu0 %v211
    %309 = vmatprep.subr.mxu0 0.0
    %310 = vmatpush1.msra.mxu0 %v210
    %311 = vmatprep.subr.mxu0 0.0
    %312 = vmatpush1.msra.mxu0 %v209
    %313 = vmatprep.subr.mxu0 0.0
    %314 = vmatpush1.msra.mxu0 %v208
    %315 = vmatprep.subr.mxu0 0.0
    %316 = vmatpush1.msra.mxu0 %v207
    %317 = vmatprep.subr.mxu0 0.0
    %318 = vmatpush1.msra.mxu0 %v206
    %319 = vmatprep.subr.mxu0 0.0
    %320 = vmatpush1.msra.mxu0 %v205
    %321 = vmatprep.subr.mxu0 0.0
    %322 = vmatpush1.msra.mxu0 %v204
    %323 = vmatprep.subr.mxu0 0.0
    %324 = vmatpush1.msra.mxu0 %v203
    %325 = vmatprep.subr.mxu0 0.0
    %326 = vmatpush1.msra.mxu0 %v202
    %327 = vmatprep.subr.mxu0 0.0
    %328 = vmatpush1.msra.mxu0 %v201
    %329 = vmatprep.subr.mxu0 0.0
    %330 = vmatpush1.msra.mxu0 %v200
    %331 = vmatprep.subr.mxu0 0.0
    %332 = vmatpush1.msra.mxu0 %v199
    %333 = vmatprep.subr.mxu0 0.0
    %334 = vmatpush2.msra.mxu0 0.0
    %335 = vmatprep.subr.mxu0 0.0
    %336 = vmatpush2.msra.mxu0 0.0
    %337 = vmatprep.subr.mxu0 0.0
    %338 = vmatpush2.msra.mxu0 0.0
    %339 = vmatprep.subr.mxu0 0.0
    %340 = vmatpush2.msra.mxu0 0.0
    %341 = vmatprep.subr.mxu0 0.0
    %342 = vmatpush2.msra.mxu0 0.0
    %343 = vmatprep.subr.mxu0 0.0
    %344 = vmatpush2.msra.mxu0 0.0
    %345 = vmatprep.subr.mxu0 0.0
    %346 = vmatpush2.msra.mxu0 0.0
    %347 = vmatprep.subr.mxu0 0.0
    %348 = vmatpush2.msra.mxu0 0.0
    %349 = vmatprep.subr.mxu0 0.0
    %350 = vmatpush2.msra.mxu0 0.0
    %351 = vmatprep.subr.mxu0 0.0
    %352 = vmatpush2.msra.mxu0 0.0
    %353 = vmatprep.subr.mxu0 0.0
    %354 = vmatpush2.msra.mxu0 0.0
    %355 = vmatprep.subr.mxu0 0.0
    %356 = vmatpush2.msra.mxu0 0.0
    %357 = vmatprep.subr.mxu0 0.0
    %358 = vmatpush2.msra.mxu0 0.0
    %359 = vmatprep.subr.mxu0 0.0
    %360 = vmatpush2.msra.mxu0 0.0
    %361 = vmatprep.subr.mxu0 0.0
    %362 = vmatpush2.msra.mxu0 0.0
    %363 = vmatprep.subr.mxu0 0.0
    %364 = vmatpush2.msra.mxu0 0.0
    %365 = vmatprep.mubr.f32.mxu0 0.0
    %366 = vmatmul.mubr.f32.gmra.mxu0 %v124
    %v367 = vpop.f32.mrf.mxu0
    %v368 = vadd.f32 %v298, %v367
    %v369 = vpop.f32.mrf.mxu0
    %370 = vdwg.mxu0
    %v371 = vld [vmem:[%s7] sm:$0xff]
    %v372 = vld [vmem:[%s7 + $0x8] sm:$0xff]
    %v373 = vld [vmem:[%s7 + $0x10] sm:$0xff]
    %v374 = vld [vmem:[%s7 + $0x18] sm:$0xff]
    %v375 = vld [vmem:[%s7 + $0x20] sm:$0xff]
    %v376 = vld [vmem:[%s7 + $0x28] sm:$0xff]
    %v377 = vld [vmem:[%s7 + $0x30] sm:$0xff]
    %v378 = vld [vmem:[%s7 + $0x38] sm:$0xff]
    %v379 = vld [vmem:[%s7 + $0x40] sm:$0xff]
    %v380 = vld [vmem:[%s7 + $0x48] sm:$0xff]
    %v381 = vld [vmem:[%s7 + $0x50] sm:$0xff]
    %v382 = vld [vmem:[%s7 + $0x58] sm:$0xff]
    %v383 = vld [vmem:[%s7 + $0x60] sm:$0xff]
    %v384 = vld [vmem:[%s7 + $0x68] sm:$0xff]
    %v385 = vld [vmem:[%s7 + $0x70] sm:$0xff]
    %v386 = vld [vmem:[%s7 + $0x78] sm:$0xff]
    %vm389 = vcmask 1041409
    %v390 = vsel %vm389, %v198, %v189
    %392 = vmatprep.subr.mxu0 0.0
    %393 = vmatpush1.msra.mxu0 %v386
    %394 = vmatprep.subr.mxu0 0.0
    %395 = vmatpush1.msra.mxu0 %v385
    %396 = vmatprep.subr.mxu0 0.0
    %397 = vmatpush1.msra.mxu0 %v384
    %398 = vmatprep.subr.mxu0 0.0
    %399 = vmatpush1.msra.mxu0 %v383
    %400 = vmatprep.subr.mxu0 0.0
    %401 = vmatpush1.msra.mxu0 %v382
    %402 = vmatprep.subr.mxu0 0.0
    %403 = vmatpush1.msra.mxu0 %v381
    %404 = vmatprep.subr.mxu0 0.0
    %405 = vmatpush1.msra.mxu0 %v380
    %406 = vmatprep.subr.mxu0 0.0
    %407 = vmatpush1.msra.mxu0 %v379
    %408 = vmatprep.subr.mxu0 0.0
    %409 = vmatpush1.msra.mxu0 %v378
    %410 = vmatprep.subr.mxu0 0.0
    %411 = vmatpush1.msra.mxu0 %v377
    %412 = vmatprep.subr.mxu0 0.0
    %413 = vmatpush1.msra.mxu0 %v376
    %414 = vmatprep.subr.mxu0 0.0
    %415 = vmatpush1.msra.mxu0 %v375
    %416 = vmatprep.subr.mxu0 0.0
    %417 = vmatpush1.msra.mxu0 %v374
    %418 = vmatprep.subr.mxu0 0.0
    %419 = vmatpush1.msra.mxu0 %v373
    %420 = vmatprep.subr.mxu0 0.0
    %421 = vmatpush1.msra.mxu0 %v372
    %422 = vmatprep.subr.mxu0 0.0
    %423 = vmatpush1.msra.mxu0 %v371
    %424 = vmatprep.subr.mxu0 0.0
    %425 = vmatpush2.msra.mxu0 0.0
    %426 = vmatprep.subr.mxu0 0.0
    %427 = vmatpush2.msra.mxu0 0.0
    %428 = vmatprep.subr.mxu0 0.0
    %429 = vmatpush2.msra.mxu0 0.0
    %430 = vmatprep.subr.mxu0 0.0
    %431 = vmatpush2.msra.mxu0 0.0
    %432 = vmatprep.subr.mxu0 0.0
    %433 = vmatpush2.msra.mxu0 0.0
    %434 = vmatprep.subr.mxu0 0.0
    %435 = vmatpush2.msra.mxu0 0.0
    %436 = vmatprep.subr.mxu0 0.0
    %437 = vmatpush2.msra.mxu0 0.0
    %438 = vmatprep.subr.mxu0 0.0
    %439 = vmatpush2.msra.mxu0 0.0
    %440 = vmatprep.subr.mxu0 0.0
    %441 = vmatpush2.msra.mxu0 0.0
    %442 = vmatprep.subr.mxu0 0.0
    %443 = vmatpush2.msra.mxu0 0.0
    %444 = vmatprep.subr.mxu0 0.0
    %445 = vmatpush2.msra.mxu0 0.0
    %446 = vmatprep.subr.mxu0 0.0
    %447 = vmatpush2.msra.mxu0 0.0
    %448 = vmatprep.subr.mxu0 0.0
    %449 = vmatpush2.msra.mxu0 0.0
    %450 = vmatprep.subr.mxu0 0.0
    %451 = vmatpush2.msra.mxu0 0.0
    %452 = vmatprep.subr.mxu0 0.0
    %453 = vmatpush2.msra.mxu0 0.0
    %454 = vmatprep.subr.mxu0 0.0
    %455 = vmatpush2.msra.mxu0 0.0
    %456 = vmatprep.mubr.f32.mxu0 0.0
    %457 = vmatmul.mubr.f32.gmra.mxu0 %v390
    %v458 = vpop.f32.mrf.mxu0
    %v459 = vadd.f32 0.0, %v458
    %v460 = vpop.f32.mrf.mxu0
    %461 = vdwg.mxu0
    %v462 = vadd.f32 %v368, %v459
    %v463 = vld [vmem:[%s4] sm:$0x3]
    %v464 = vld [vmem:[%s8] sm:$0x1]
    %466 = vset.pattern.permute.xlu0 0
    %467 = vperm.xlu0 %466, %v463
    %v468 = vpop.permute.xlu0 %467
    %v471 = vlaneseq
    %v472 = vshrl.u32 %v471, 7
    %v473 = vsub.s32 0, %v472
    %v474 = vrot.slane %v464, %v473
    %v476 = vmul.f32 %v468, %v474
    %v477 = vadd.f32 %v462, %v476
    %v478 = vld [vmem:[%s9] sm:$0x1]
    %v480 = vlaneseq
    %v481 = vshrl.u32 %v480, 7
    %v482 = vsub.s32 0, %v481
    %v483 = vrot.slane %v478, %v482
    %v485 = vadd.f32 %v477, %v483
    %v486 = vmax.f32 %v485, 0.0
    %v487 = vld [vmem:[%s10] sm:$0xff]
    %v488 = vld [vmem:[%s10 + $0x8] sm:$0xff]
    %v489 = vld [vmem:[%s10 + $0x10] sm:$0xff]
    %v490 = vld [vmem:[%s10 + $0x18] sm:$0xff]
    %v491 = vld [vmem:[%s10 + $0x20] sm:$0xff]
    %v492 = vld [vmem:[%s10 + $0x28] sm:$0xff]
    %v493 = vld [vmem:[%s10 + $0x30] sm:$0xff]
    %v494 = vld [vmem:[%s10 + $0x38] sm:$0xff]
    %v495 = vld [vmem:[%s10 + $0x40] sm:$0xff]
    %v496 = vld [vmem:[%s10 + $0x48] sm:$0xff]
    %v497 = vld [vmem:[%s10 + $0x50] sm:$0xff]
    %v498 = vld [vmem:[%s10 + $0x58] sm:$0xff]
    %v499 = vld [vmem:[%s10 + $0x60] sm:$0xff]
    %v500 = vld [vmem:[%s10 + $0x68] sm:$0xff]
    %v501 = vld [vmem:[%s10 + $0x70] sm:$0xff]
    %v502 = vld [vmem:[%s10 + $0x78] sm:$0xff]
    %v503 = vld [vmem:[%s11] sm:$0x1]
    %v505 = vlaneseq
    %v506 = vshrl.u32 %v505, 7
    %v507 = vsub.s32 0, %v506
    %v508 = vrot.slane %v503, %v507
    %510 = vmatprep.subr.mxu0 0.0
    %511 = vmatpush1.msra.mxu0 %v502
    %512 = vmatprep.subr.mxu0 0.0
    %513 = vmatpush1.msra.mxu0 %v501
    %514 = vmatprep.subr.mxu0 0.0
    %515 = vmatpush1.msra.mxu0 %v500
    %516 = vmatprep.subr.mxu0 0.0
    %517 = vmatpush1.msra.mxu0 %v499
    %518 = vmatprep.subr.mxu0 0.0
    %519 = vmatpush1.msra.mxu0 %v498
    %520 = vmatprep.subr.mxu0 0.0
    %521 = vmatpush1.msra.mxu0 %v497
    %522 = vmatprep.subr.mxu0 0.0
    %523 = vmatpush1.msra.mxu0 %v496
    %524 = vmatprep.subr.mxu0 0.0
    %525 = vmatpush1.msra.mxu0 %v495
    %526 = vmatprep.subr.mxu0 0.0
    %527 = vmatpush1.msra.mxu0 %v494
    %528 = vmatprep.subr.mxu0 0.0
    %529 = vmatpush1.msra.mxu0 %v493
    %530 = vmatprep.subr.mxu0 0.0
    %531 = vmatpush1.msra.mxu0 %v492
    %532 = vmatprep.subr.mxu0 0.0
    %533 = vmatpush1.msra.mxu0 %v491
    %534 = vmatprep.subr.mxu0 0.0
    %535 = vmatpush1.msra.mxu0 %v490
    %536 = vmatprep.subr.mxu0 0.0
    %537 = vmatpush1.msra.mxu0 %v489
    %538 = vmatprep.subr.mxu0 0.0
    %539 = vmatpush1.msra.mxu0 %v488
    %540 = vmatprep.subr.mxu0 0.0
    %541 = vmatpush1.msra.mxu0 %v487
    %542 = vmatprep.subr.mxu0 0.0
    %543 = vmatpush2.msra.mxu0 0.0
    %544 = vmatprep.subr.mxu0 0.0
    %545 = vmatpush2.msra.mxu0 0.0
    %546 = vmatprep.subr.mxu0 0.0
    %547 = vmatpush2.msra.mxu0 0.0
    %548 = vmatprep.subr.mxu0 0.0
    %549 = vmatpush2.msra.mxu0 0.0
    %550 = vmatprep.subr.mxu0 0.0
    %551 = vmatpush2.msra.mxu0 0.0
    %552 = vmatprep.subr.mxu0 0.0
    %553 = vmatpush2.msra.mxu0 0.0
    %554 = vmatprep.subr.mxu0 0.0
    %555 = vmatpush2.msra.mxu0 0.0
    %556 = vmatprep.subr.mxu0 0.0
    %557 = vmatpush2.msra.mxu0 0.0
    %558 = vmatprep.subr.mxu0 0.0
    %559 = vmatpush2.msra.mxu0 0.0
    %560 = vmatprep.subr.mxu0 0.0
    %561 = vmatpush2.msra.mxu0 0.0
    %562 = vmatprep.subr.mxu0 0.0
    %563 = vmatpush2.msra.mxu0 0.0
    %564 = vmatprep.subr.mxu0 0.0
    %565 = vmatpush2.msra.mxu0 0.0
    %566 = vmatprep.subr.mxu0 0.0
    %567 = vmatpush2.msra.mxu0 0.0
    %568 = vmatprep.subr.mxu0 0.0
    %569 = vmatpush2.msra.mxu0 0.0
    %570 = vmatprep.subr.mxu0 0.0
    %571 = vmatpush2.msra.mxu0 0.0
    %572 = vmatprep.subr.mxu0 0.0
    %573 = vmatpush2.msra.mxu0 0.0
    %574 = vmatprep.mubr.f32.mxu0 0.0
    %575 = vmatmul.mubr.f32.gmra.mxu0 %v486
    %v576 = vpop.f32.mrf.mxu0
    %v577 = vadd.f32 %v508, %v576
    %v578 = vpop.f32.mrf.mxu0
    %579 = vdwg.mxu0
    %v580 = vmax.f32 %v577, 0.0
    %v581 = vld [vmem:[%s12] sm:$0xff]
    %v582 = vld [vmem:[%s12 + $0x8] sm:$0xff]
    %v583 = vld [vmem:[%s12 + $0x10] sm:$0xff]
    %v584 = vld [vmem:[%s12 + $0x18] sm:$0xff]
    %v585 = vld [vmem:[%s12 + $0x20] sm:$0xff]
    %v586 = vld [vmem:[%s12 + $0x28] sm:$0xff]
    %v587 = vld [vmem:[%s12 + $0x30] sm:$0xff]
    %v588 = vld [vmem:[%s12 + $0x38] sm:$0xff]
    %v589 = vld [vmem:[%s12 + $0x40] sm:$0xff]
    %v590 = vld [vmem:[%s12 + $0x48] sm:$0xff]
    %v591 = vld [vmem:[%s12 + $0x50] sm:$0xff]
    %v592 = vld [vmem:[%s12 + $0x58] sm:$0xff]
    %v593 = vld [vmem:[%s12 + $0x60] sm:$0xff]
    %v594 = vld [vmem:[%s12 + $0x68] sm:$0xff]
    %v595 = vld [vmem:[%s12 + $0x70] sm:$0xff]
    %v596 = vld [vmem:[%s12 + $0x78] sm:$0xff]
    %v597 = vld [vmem:[%s13] sm:$0x1]
    %v599 = vlaneseq
    %v600 = vshrl.u32 %v599, 7
    %v601 = vsub.s32 0, %v600
    %v602 = vrot.slane %v597, %v601
    %604 = vmatprep.subr.mxu0 0.0
    %605 = vmatpush1.msra.mxu0 %v596
    %606 = vmatprep.subr.mxu0 0.0
    %607 = vmatpush1.msra.mxu0 %v595
    %608 = vmatprep.subr.mxu0 0.0
    %609 = vmatpush1.msra.mxu0 %v594
    %610 = vmatprep.subr.mxu0 0.0
    %611 = vmatpush1.msra.mxu0 %v593
    %612 = vmatprep.subr.mxu0 0.0
    %613 = vmatpush1.msra.mxu0 %v592
    %614 = vmatprep.subr.mxu0 0.0
    %615 = vmatpush1.msra.mxu0 %v591
    %616 = vmatprep.subr.mxu0 0.0
    %617 = vmatpush1.msra.mxu0 %v590
    %618 = vmatprep.subr.mxu0 0.0
    %619 = vmatpush1.msra.mxu0 %v589
    %620 = vmatprep.subr.mxu0 0.0
    %621 = vmatpush1.msra.mxu0 %v588
    %622 = vmatprep.subr.mxu0 0.0
    %623 = vmatpush1.msra.mxu0 %v587
    %624 = vmatprep.subr.mxu0 0.0
    %625 = vmatpush1.msra.mxu0 %v586
    %626 = vmatprep.subr.mxu0 0.0
    %627 = vmatpush1.msra.mxu0 %v585
    %628 = vmatprep.subr.mxu0 0.0
    %629 = vmatpush1.msra.mxu0 %v584
    %630 = vmatprep.subr.mxu0 0.0
    %631 = vmatpush1.msra.mxu0 %v583
    %632 = vmatprep.subr.mxu0 0.0
    %633 = vmatpush1.msra.mxu0 %v582
    %634 = vmatprep.subr.mxu0 0.0
    %635 = vmatpush1.msra.mxu0 %v581
    %636 = vmatprep.subr.mxu0 0.0
    %637 = vmatpush2.msra.mxu0 0.0
    %638 = vmatprep.subr.mxu0 0.0
    %639 = vmatpush2.msra.mxu0 0.0
    %640 = vmatprep.subr.mxu0 0.0
    %641 = vmatpush2.msra.mxu0 0.0
    %642 = vmatprep.subr.mxu0 0.0
    %643 = vmatpush2.msra.mxu0 0.0
    %644 = vmatprep.subr.mxu0 0.0
    %645 = vmatpush2.msra.mxu0 0.0
    %646 = vmatprep.subr.mxu0 0.0
    %647 = vmatpush2.msra.mxu0 0.0
    %648 = vmatprep.subr.mxu0 0.0
    %649 = vmatpush2.msra.mxu0 0.0
    %650 = vmatprep.subr.mxu0 0.0
    %651 = vmatpush2.msra.mxu0 0.0
    %652 = vmatprep.subr.mxu0 0.0
    %653 = vmatpush2.msra.mxu0 0.0
    %654 = vmatprep.subr.mxu0 0.0
    %655 = vmatpush2.msra.mxu0 0.0
    %656 = vmatprep.subr.mxu0 0.0
    %657 = vmatpush2.msra.mxu0 0.0
    %658 = vmatprep.subr.mxu0 0.0
    %659 = vmatpush2.msra.mxu0 0.0
    %660 = vmatprep.subr.mxu0 0.0
    %661 = vmatpush2.msra.mxu0 0.0
    %662 = vmatprep.subr.mxu0 0.0
    %663 = vmatpush2.msra.mxu0 0.0
    %664 = vmatprep.subr.mxu0 0.0
    %665 = vmatpush2.msra.mxu0 0.0
    %666 = vmatprep.subr.mxu0 0.0
    %667 = vmatpush2.msra.mxu0 0.0
    %668 = vmatprep.mubr.f32.mxu0 0.0
    %669 = vmatmul.mubr.f32.gmra.mxu0 %v580
    %v670 = vpop.f32.mrf.mxu0
    %v671 = vadd.f32 %v602, %v670
    %v672 = vpop.f32.mrf.mxu0
    %673 = vdwg.mxu0
    %vm674 = vcmask 9216
    %675 = vst.msk [vmem:[#allocation2] sm:$0x3] %vm674, %v671
    // Predicated region
    $region58: #{model_gnn_forward.5} parent=1 // pred_check
      _
    $region59: #{model_gnn_forward.5} parent=1 // pred_check_branch
      %677 = sbr.rel (0) target = $region61
    $region60: #{model_gnn_forward.5} parent=1 // pred_region
      %s679 = ssub.s32 32, 32
      %680 = vsyncadd [#allocation3], %s679
      %s682 = sshll.u32 [#allocation2], 4
      %s683 = int_to_ptr.vmem [resolvable:$true] %s682
      %685 = dma.vmem_to_hbm [thread:$0]  %s683, 32, %s14, [#allocation3]
    $region61: #{model_gnn_forward.5} parent=1 // pred_fallthru
      _
    // Predicated region
    $region62: #{model_gnn_forward.5} parent=1 // pred_check
      _
    $region63: #{model_gnn_forward.5} parent=1 // pred_check_branch
      %687 = sbr.rel (0) target = $region65
    $region64: #{model_gnn_forward.5} parent=1 // pred_region
      %688 = dma.done [#allocation3], 32
    $region65: #{model_gnn_forward.5} parent=1 // pred_fallthru
      _
    %689 = vsyncpa [#allocation3], 1

// kernel: model_gnn_forward.3
$region0: #{model_gnn_forward.3}
  #allocation0 [shape = 'u32[]', space=smem, size = 0x4, offset = 0x4, fixed_abs, tag = 'smem constant byte address 0x4 - core index']
  #allocation1 [shape = 'u32[144,128]{1,0:T(1,128)}', space=vmem, size = 0x12000, scoped, tag = 'internal scratch']
  #allocation2 [shape = 'bf16[32,128]{1,0:T(8,128)(2,1)}', space=vmem, size = 0x2000, scoped, tag = 'scratch operand']
  %s0 = inlined_call_operand.vmem [shape: f32[32,8], index: 0, kind: input, shape index: {}]
  %s1 = inlined_call_operand.vmem [shape: bf16[1,32,32], index: 1, kind: input, shape index: {}]
  %s2 = inlined_call_operand.vmem [shape: f32[32,1], index: 2, kind: input, shape index: {}]
  %s3 = inlined_call_operand.vmem [shape: bf16[8,128], index: 3, kind: input, shape index: {}]
  %s4 = inlined_call_operand.vmem [shape: bf16[8,128], index: 4, kind: input, shape index: {}]
  %s5 = inlined_call_operand.vmem [shape: f32[1,128], index: 5, kind: input, shape index: {}]
  %s6 = inlined_call_operand.vmem [shape: bf16[128,128], index: 6, kind: input, shape index: {}]
  %s7 = inlined_call_operand.vmem [shape: f32[1,128], index: 7, kind: input, shape index: {}]
  %s8 = inlined_call_operand.hbm [shape: bf16[128,128], index: 8, kind: input, shape index: {}]
  %s9 = inlined_call_operand.hbm [shape: f32[1,128], index: 9, kind: input, shape index: {}]
  %s10 = inlined_call_operand.vmem [shape: f32[32,128], index: 10, kind: output, shape index: {}]
  %s11 = sld [smem:[#allocation0]]
  $region58: #{model_gnn_forward.3} parent=0
    _
  %s13 = ssub.s32 1, %s11
  %s14 = scalar_select 0, %s13, %s11
  $region1: #{model_gnn_forward.3} parent=0
    #allocation3 [shape = 'u8[32768]{0}', space=vmem, size = 0x8000, scoped, tag = 'input window, operand 8, single buffered']
    #allocation4 [shape = 's32[1]{0}', space=sflag, size = 0x4, scoped, tag = 'scoped memory for model_gnn_forward.3']
    #allocation5 [shape = 'u8[512]{0}', space=vmem, size = 0x400, scoped, tag = 'input window, operand 9, single buffered']
    #allocation6 [shape = 's32[1]{0}', space=sflag, size = 0x4, scoped, tag = 'scoped memory for model_gnn_forward.3']
    %15 = vsyncpa [#allocation4], 0
    %16 = vsyncpa [#allocation6], 0
    // Predicated region
    $region2: #{model_gnn_forward.3} parent=1 // pred_check
      _
    $region3: #{model_gnn_forward.3} parent=1 // pred_check_branch
      %18 = sbr.rel (0) target = $region5
    $region4: #{model_gnn_forward.3} parent=1 // pred_region
      _
    $region5: #{model_gnn_forward.3} parent=1 // pred_fallthru
      _
    // Predicated region
    $region6: #{model_gnn_forward.3} parent=1 // pred_check
      _
    $region7: #{model_gnn_forward.3} parent=1 // pred_check_branch
      %20 = sbr.rel (0) target = $region9
    $region8: #{model_gnn_forward.3} parent=1 // pred_region
      _
    $region9: #{model_gnn_forward.3} parent=1 // pred_fallthru
      _
    // Predicated region
    $region10: #{model_gnn_forward.3} parent=1 // pred_check
      _
    $region11: #{model_gnn_forward.3} parent=1 // pred_check_branch
      %22 = sbr.rel (0) target = $region13
    $region12: #{model_gnn_forward.3} parent=1 // pred_region
      _
    $region13: #{model_gnn_forward.3} parent=1 // pred_fallthru
      _
    // Predicated region
    $region14: #{model_gnn_forward.3} parent=1 // pred_check
      _
    $region15: #{model_gnn_forward.3} parent=1 // pred_check_branch
      %24 = sbr.rel (0) target = $region17
    $region16: #{model_gnn_forward.3} parent=1 // pred_region
      _
    $region17: #{model_gnn_forward.3} parent=1 // pred_fallthru
      _
    // Predicated region
    $region18: #{model_gnn_forward.3} parent=1 // pred_check
      _
    $region19: #{model_gnn_forward.3} parent=1 // pred_check_branch
      %26 = sbr.rel (0) target = $region21
    $region20: #{model_gnn_forward.3} parent=1 // pred_region
      _
    $region21: #{model_gnn_forward.3} parent=1 // pred_fallthru
      _
    // Predicated region
    $region22: #{model_gnn_forward.3} parent=1 // pred_check
      _
    $region23: #{model_gnn_forward.3} parent=1 // pred_check_branch
      %28 = sbr.rel (0) target = $region25
    $region24: #{model_gnn_forward.3} parent=1 // pred_region
      _
    $region25: #{model_gnn_forward.3} parent=1 // pred_fallthru
      _
    // Predicated region
    $region26: #{model_gnn_forward.3} parent=1 // pred_check
      _
    $region27: #{model_gnn_forward.3} parent=1 // pred_check_branch
      %30 = sbr.rel (0) target = $region29
    $region28: #{model_gnn_forward.3} parent=1 // pred_region
      _
    $region29: #{model_gnn_forward.3} parent=1 // pred_fallthru
      _
    // Predicated region
    $region30: #{model_gnn_forward.3} parent=1 // pred_check
      _
    $region31: #{model_gnn_forward.3} parent=1 // pred_check_branch
      %32 = sbr.rel (0) target = $region33
    $region32: #{model_gnn_forward.3} parent=1 // pred_region
      _
    $region33: #{model_gnn_forward.3} parent=1 // pred_fallthru
      _
    // Predicated region
    $region34: #{model_gnn_forward.3} parent=1 // pred_check
      _
    $region35: #{model_gnn_forward.3} parent=1 // pred_check_branch
      %34 = sbr.rel (0) target = $region37
    $region36: #{model_gnn_forward.3} parent=1 // pred_region
      %s36 = ssub.s32 1024, 1024
      %37 = vsyncadd [#allocation4], %s36
      %s38 = sshll.u32 [#allocation3], 4
      %s39 = int_to_ptr.vmem [resolvable:$true] %s38
      %44 = dma.hbm_to_vmem [thread:$0]  %s8, 1024, %s39, [#allocation4], 64, 64, 4
    $region37: #{model_gnn_forward.3} parent=1 // pred_fallthru
      _
    // Predicated region
    $region38: #{model_gnn_forward.3} parent=1 // pred_check
      _
    $region39: #{model_gnn_forward.3} parent=1 // pred_check_branch
      %46 = sbr.rel (0) target = $region41
    $region40: #{model_gnn_forward.3} parent=1 // pred_region
      %s48 = ssub.s32 16, 16
      %49 = vsyncadd [#allocation6], %s48
      %s51 = sshll.u32 [#allocation5], 4
      %s52 = int_to_ptr.vmem [resolvable:$true] %s51
      %54 = dma.hbm_to_vmem [thread:$0]  %s9, 16, %s52, [#allocation6]
    $region41: #{model_gnn_forward.3} parent=1 // pred_fallthru
      _
    // Predicated region
    $region42: #{model_gnn_forward.3} parent=1 // pred_check
      _
    $region43: #{model_gnn_forward.3} parent=1 // pred_check_branch
      %56 = sbr.rel (0) target = $region45
    $region44: #{model_gnn_forward.3} parent=1 // pred_region
      %57 = dma.done [#allocation4], 1024
    $region45: #{model_gnn_forward.3} parent=1 // pred_fallthru
      _
    // Predicated region
    $region46: #{model_gnn_forward.3} parent=1 // pred_check
      _
    $region47: #{model_gnn_forward.3} parent=1 // pred_check_branch
      %59 = sbr.rel (0) target = $region49
    $region48: #{model_gnn_forward.3} parent=1 // pred_region
      %60 = dma.done [#allocation6], 16
    $region49: #{model_gnn_forward.3} parent=1 // pred_fallthru
      _
    %v62 = vld [vmem:[%s0] sm:$0xff]
    %v63 = vld [vmem:[%s0 + $0x8] sm:$0xff]
    %v64 = vld [vmem:[%s0 + $0x10] sm:$0xff]
    %v65 = vld [vmem:[%s0 + $0x18] sm:$0xff]
    %v66 = vpack.c.bf16 %v63, %v62
    %v67 = vpack.c.bf16 %v65, %v64
    %v68 = vld [vmem:[%s4] sm:$0xf]
    %v69 = vld [vmem:[%s5] sm:$0x1]
    %v71 = vlaneseq
    %v72 = vshrl.u32 %v71, 7
    %v73 = vsub.s32 0, %v72
    %v74 = vrot.slane %v69, %v73
    %vm76 = vcmask 64512
    %v78 = vsel %vm76, %v66, 0
    %v81 = vsel %vm76, %v67, 0
    %vm83 = vcmask 1043456
    %v85 = vsel %vm83, %v68, 0
    %87 = vmatprep.subr.bf16.mxu0 0
    %88 = vmatpush1.bf16.msra.mxu0 0
    %89 = vmatprep.subr.bf16.mxu0 0
    %90 = vmatpush1.bf16.msra.mxu0 0
    %91 = vmatprep.subr.bf16.mxu0 0
    %92 = vmatpush1.bf16.msra.mxu0 0
    %93 = vmatprep.subr.bf16.mxu0 0
    %94 = vmatpush1.bf16.msra.mxu0 0
    %95 = vmatprep.subr.bf16.mxu0 0
    %96 = vmatpush1.bf16.msra.mxu0 0
    %97 = vmatprep.subr.bf16.mxu0 0
    %98 = vmatpush1.bf16.msra.mxu0 0
    %99 = vmatprep.subr.bf16.mxu0 0
    %100 = vmatpush1.bf16.msra.mxu0 0
    %101 = vmatprep.subr.bf16.mxu0 0
    %102 = vmatpush1.bf16.msra.mxu0 %v85
    %103 = vmatprep.subr.bf16.mxu0 0
    %104 = vmatpush2.bf16.msra.mxu0 0
    %105 = vmatprep.subr.bf16.mxu0 0
    %106 = vmatpush2.bf16.msra.mxu0 0
    %107 = vmatprep.subr.bf16.mxu0 0
    %108 = vmatpush2.bf16.msra.mxu0 0
    %109 = vmatprep.subr.bf16.mxu0 0
    %110 = vmatpush2.bf16.msra.mxu0 0
    %111 = vmatprep.subr.bf16.mxu0 0
    %112 = vmatpush2.bf16.msra.mxu0 0
    %113 = vmatprep.subr.bf16.mxu0 0
    %114 = vmatpush2.bf16.msra.mxu0 0
    %115 = vmatprep.subr.bf16.mxu0 0
    %116 = vmatpush2.bf16.msra.mxu0 0
    %117 = vmatprep.subr.bf16.mxu0 0
    %118 = vmatpush2.bf16.msra.mxu0 0
    %119 = vmatprep.mubr.bf16.mxu0 0
    %120 = vmatmul.mubr.bf16.gmra.mxu0 %v78
    %v121 = vpop.f32.mrf.mxu0
    %v122 = vadd.f32 %v74, %v121
    %v123 = vpop.f32.mrf.mxu0
    %v124 = vpop.f32.mrf.mxu0
    %v125 = vadd.f32 %v74, %v124
    %v126 = vpop.f32.mrf.mxu0
    %127 = vmatprep.mubr.bf16.mxu0 0
    %128 = vmatmul.mubr.bf16.gmra.mxu0 %v81
    %v129 = vpop.f32.mrf.mxu0
    %v130 = vadd.f32 %v74, %v129
    %v131 = vpop.f32.mrf.mxu0
    %v132 = vpop.f32.mrf.mxu0
    %v133 = vadd.f32 %v74, %v132
    %v134 = vpop.f32.mrf.mxu0
    %135 = vdwg.mxu0
    %v136 = vpack.c.bf16 %v125, %v122
    %v137 = vpack.c.bf16 %v133, %v130
    %v140 = vunpack.c.l.b16 %v136
    %v141 = vunpack.c.h.b16 %v136
    %v142 = vunpack.c.l.b16 %v137
    %v143 = vunpack.c.h.b16 %v137
    %v144 = vpack.c.b16 %v140, %v140
    %v145 = vpack.c.b16 %v141, %v141
    %v146 = vpack.c.b16 %v142, %v142
    %v147 = vpack.c.b16 %v143, %v143
    %152 = vst [vmem:[#allocation2] sm:$0xf] %v144
    %153 = vst [vmem:[#allocation2 + $0x4] sm:$0xf] %v145
    %154 = vst [vmem:[#allocation2 + $0x8] sm:$0xf] %v146
    %155 = vst [vmem:[#allocation2 + $0xc] sm:$0xf] %v147
    %s156 = smul.u32 0, 32
    %s157 = scalar_lea.vmem %s0, %s156
    %v158 = vld [vmem:[%s157] sm:$0xff]
    %v159 = vld [vmem:[%s157 + $0x8] sm:$0xff]
    %v160 = vld [vmem:[%s157 + $0x10] sm:$0xff]
    %v161 = vld [vmem:[%s157 + $0x18] sm:$0xff]
    %v162 = vpack.c.bf16 %v159, %v158
    %v163 = vpack.c.bf16 %v161, %v160
    %v164 = vld [vmem:[%s3] sm:$0xf]
    %v166 = vsel %vm76, %v162, 0
    %v169 = vsel %vm76, %v163, 0
    %v172 = vsel %vm83, %v164, 0
    %174 = vmatprep.subr.bf16.mxu0 0
    %175 = vmatpush1.bf16.msra.mxu0 0
    %176 = vmatprep.subr.bf16.mxu0 0
    %177 = vmatpush1.bf16.msra.mxu0 0
    %178 = vmatprep.subr.bf16.mxu0 0
    %179 = vmatpush1.bf16.msra.mxu0 0
    %180 = vmatprep.subr.bf16.mxu0 0
    %181 = vmatpush1.bf16.msra.mxu0 0
    %182 = vmatprep.subr.bf16.mxu0 0
    %183 = vmatpush1.bf16.msra.mxu0 0
    %184 = vmatprep.subr.bf16.mxu0 0
    %185 = vmatpush1.bf16.msra.mxu0 0
    %186 = vmatprep.subr.bf16.mxu0 0
    %187 = vmatpush1.bf16.msra.mxu0 0
    %188 = vmatprep.subr.bf16.mxu0 0
    %189 = vmatpush1.bf16.msra.mxu0 %v172
    %190 = vmatprep.subr.bf16.mxu0 0
    %191 = vmatpush2.bf16.msra.mxu0 0
    %192 = vmatprep.subr.bf16.mxu0 0
    %193 = vmatpush2.bf16.msra.mxu0 0
    %194 = vmatprep.subr.bf16.mxu0 0
    %195 = vmatpush2.bf16.msra.mxu0 0
    %196 = vmatprep.subr.bf16.mxu0 0
    %197 = vmatpush2.bf16.msra.mxu0 0
    %198 = vmatprep.subr.bf16.mxu0 0
    %199 = vmatpush2.bf16.msra.mxu0 0
    %200 = vmatprep.subr.bf16.mxu0 0
    %201 = vmatpush2.bf16.msra.mxu0 0
    %202 = vmatprep.subr.bf16.mxu0 0
    %203 = vmatpush2.bf16.msra.mxu0 0
    %204 = vmatprep.subr.bf16.mxu0 0
    %205 = vmatpush2.bf16.msra.mxu0 0
    %206 = vmatprep.mubr.bf16.mxu0 0
    %207 = vmatmul.mubr.bf16.gmra.mxu0 %v166
    %v208 = vpop.f32.mrf.mxu0
    %v209 = vadd.f32 0.0, %v208
    %v210 = vpop.f32.mrf.mxu0
    %v211 = vpop.f32.mrf.mxu0
    %v212 = vadd.f32 0.0, %v211
    %v213 = vpop.f32.mrf.mxu0
    %214 = vmatprep.mubr.bf16.mxu0 0
    %215 = vmatmul.mubr.bf16.gmra.mxu0 %v169
    %v216 = vpop.f32.mrf.mxu0
    %v217 = vadd.f32 0.0, %v216
    %v218 = vpop.f32.mrf.mxu0
    %v219 = vpop.f32.mrf.mxu0
    %v220 = vadd.f32 0.0, %v219
    %v221 = vpop.f32.mrf.mxu0
    %222 = vdwg.mxu0
    %v223 = vld [vmem:[%s4] sm:$0xf]
    %v225 = vsel %vm83, %v223, 0
    %227 = vmatprep.subr.bf16.mxu0 0
    %228 = vmatpush1.bf16.msra.mxu0 0
    %229 = vmatprep.subr.bf16.mxu0 0
    %230 = vmatpush1.bf16.msra.mxu0 0
    %231 = vmatprep.subr.bf16.mxu0 0
    %232 = vmatpush1.bf16.msra.mxu0 0
    %233 = vmatprep.subr.bf16.mxu0 0
    %234 = vmatpush1.bf16.msra.mxu0 0
    %235 = vmatprep.subr.bf16.mxu0 0
    %236 = vmatpush1.bf16.msra.mxu0 0
    %237 = vmatprep.subr.bf16.mxu0 0
    %238 = vmatpush1.bf16.msra.mxu0 0
    %239 = vmatprep.subr.bf16.mxu0 0
    %240 = vmatpush1.bf16.msra.mxu0 0
    %241 = vmatprep.subr.bf16.mxu0 0
    %242 = vmatpush1.bf16.msra.mxu0 %v225
    %243 = vmatprep.subr.bf16.mxu0 0
    %244 = vmatpush2.bf16.msra.mxu0 0
    %245 = vmatprep.subr.bf16.mxu0 0
    %246 = vmatpush2.bf16.msra.mxu0 0
    %247 = vmatprep.subr.bf16.mxu0 0
    %248 = vmatpush2.bf16.msra.mxu0 0
    %249 = vmatprep.subr.bf16.mxu0 0
    %250 = vmatpush2.bf16.msra.mxu0 0
    %251 = vmatprep.subr.bf16.mxu0 0
    %252 = vmatpush2.bf16.msra.mxu0 0
    %253 = vmatprep.subr.bf16.mxu0 0
    %254 = vmatpush2.bf16.msra.mxu0 0
    %255 = vmatprep.subr.bf16.mxu0 0
    %256 = vmatpush2.bf16.msra.mxu0 0
    %257 = vmatprep.subr.bf16.mxu0 0
    %258 = vmatpush2.bf16.msra.mxu0 0
    %259 = vmatprep.mubr.bf16.mxu0 0
    %260 = vmatmul.mubr.bf16.gmra.mxu0 %v166
    %v261 = vpop.f32.mrf.mxu0
    %v262 = vadd.f32 0.0, %v261
    %v263 = vpop.f32.mrf.mxu0
    %v264 = vpop.f32.mrf.mxu0
    %v265 = vadd.f32 0.0, %v264
    %v266 = vpop.f32.mrf.mxu0
    %267 = vmatprep.mubr.bf16.mxu0 0
    %268 = vmatmul.mubr.bf16.gmra.mxu0 %v169
    %v269 = vpop.f32.mrf.mxu0
    %v270 = vadd.f32 0.0, %v269
    %v271 = vpop.f32.mrf.mxu0
    %v272 = vpop.f32.mrf.mxu0
    %v273 = vadd.f32 0.0, %v272
    %v274 = vpop.f32.mrf.mxu0
    %275 = vdwg.mxu0
    %v276 = vsub.f32 %v209, %v262
    %v277 = vsub.f32 %v212, %v265
    %v278 = vsub.f32 %v217, %v270
    %v279 = vsub.f32 %v220, %v273
    %v280 = vpack.c.bf16 %v277, %v276
    %v281 = vpack.c.bf16 %v279, %v278
    %v282 = vld [vmem:[#allocation2] sm:$0xf]
    %v283 = vld [vmem:[#allocation2 + $0x4] sm:$0xf]
    %v284 = vld [vmem:[#allocation2 + $0x8] sm:$0xf]
    %v285 = vld [vmem:[#allocation2 + $0xc] sm:$0xf]
    %v288 = vcombine.high %v280, %v280
    %v290 = vunpack.c.l.s4 1966171168
    %v291 = vunpack.c.0.s8 %v290
    %v292 = vlaneseq
    %v293 = vshrl.u32 %v292, 7
    %v294 = vsub.s32 %v291, %v293
    %v295 = vrot.slane %v280, %v294
    %v297 = vunpack.c.l.s4 1966171168
    %v298 = vunpack.c.0.s8 %v297
    %v299 = vlaneseq
    %v300 = vshrl.u32 %v299, 7
    %v301 = vsub.s32 %v298, %v300
    %v302 = vrot.slane %v288, %v301
    %v303 = vcombine.high %v295, %v295
    %v304 = vcombine.high %v302, %v302
    %v306 = vunpack.c.l.s4 1966171168
    %v307 = vunpack.c.0.s8 %v306
    %v308 = vlaneseq
    %v309 = vshrl.u32 %v308, 7
    %v310 = vsub.s32 %v307, %v309
    %v311 = vrot.slane %v295, %v310
    %v313 = vunpack.c.l.s4 1966171168
    %v314 = vunpack.c.0.s8 %v313
    %v315 = vlaneseq
    %v316 = vshrl.u32 %v315, 7
    %v317 = vsub.s32 %v314, %v316
    %v318 = vrot.slane %v302, %v317
    %v320 = vunpack.c.l.s4 1966171168
    %v321 = vunpack.c.0.s8 %v320
    %v322 = vlaneseq
    %v323 = vshrl.u32 %v322, 7
    %v324 = vsub.s32 %v321, %v323
    %v325 = vrot.slane %v303, %v324
    %v327 = vunpack.c.l.s4 1966171168
    %v328 = vunpack.c.0.s8 %v327
    %v329 = vlaneseq
    %v330 = vshrl.u32 %v329, 7
    %v331 = vsub.s32 %v328, %v330
    %v332 = vrot.slane %v304, %v331
    %v333 = vcombine.high %v311, %v311
    %v334 = vcombine.high %v318, %v318
    %v335 = vcombine.high %v325, %v325
    %v336 = vcombine.high %v332, %v332
    %v337 = vcombine.high %v281, %v281
    %v339 = vunpack.c.l.s4 1966171168
    %v340 = vunpack.c.0.s8 %v339
    %v341 = vlaneseq
    %v342 = vshrl.u32 %v341, 7
    %v343 = vsub.s32 %v340, %v342
    %v344 = vrot.slane %v281, %v343
    %v346 = vunpack.c.l.s4 1966171168
    %v347 = vunpack.c.0.s8 %v346
    %v348 = vlaneseq
    %v349 = vshrl.u32 %v348, 7
    %v350 = vsub.s32 %v347, %v349
    %v351 = vrot.slane %v337, %v350
    %v352 = vcombine.high %v344, %v344
    %v353 = vcombine.high %v351, %v351
    %v355 = vunpack.c.l.s4 1966171168
    %v356 = vunpack.c.0.s8 %v355
    %v357 = vlaneseq
    %v358 = vshrl.u32 %v357, 7
    %v359 = vsub.s32 %v356, %v358
    %v360 = vrot.slane %v344, %v359
    %v362 = vunpack.c.l.s4 1966171168
    %v363 = vunpack.c.0.s8 %v362
    %v364 = vlaneseq
    %v365 = vshrl.u32 %v364, 7
    %v366 = vsub.s32 %v363, %v365
    %v367 = vrot.slane %v351, %v366
    %v369 = vunpack.c.l.s4 1966171168
    %v370 = vunpack.c.0.s8 %v369
    %v371 = vlaneseq
    %v372 = vshrl.u32 %v371, 7
    %v373 = vsub.s32 %v370, %v372
    %v374 = vrot.slane %v352, %v373
    %v376 = vunpack.c.l.s4 1966171168
    %v377 = vunpack.c.0.s8 %v376
    %v378 = vlaneseq
    %v379 = vshrl.u32 %v378, 7
    %v380 = vsub.s32 %v377, %v379
    %v381 = vrot.slane %v353, %v380
    %v382 = vcombine.high %v360, %v360
    %v383 = vcombine.high %v367, %v367
    %v384 = vcombine.high %v374, %v374
    %v385 = vcombine.high %v381, %v381
    %v386 = vunpack.i.l.s16 %v311
    %v387 = vunpack.i.h.s16 %v311
    %v388 = vunpack.i.l.s16 %v325
    %v389 = vunpack.i.h.s16 %v325
    %v390 = vunpack.i.l.s16 %v333
    %v391 = vunpack.i.h.s16 %v333
    %v392 = vunpack.i.l.s16 %v335
    %v393 = vunpack.i.h.s16 %v335
    %v394 = vunpack.i.l.s16 %v318
    %v395 = vunpack.i.h.s16 %v318
    %v396 = vunpack.i.l.s16 %v332
    %v397 = vunpack.i.h.s16 %v332
    %v398 = vunpack.i.l.s16 %v334
    %v399 = vunpack.i.h.s16 %v334
    %v400 = vunpack.i.l.s16 %v336
    %v401 = vunpack.i.h.s16 %v336
    %v402 = vunpack.i.l.s16 %v360
    %v403 = vunpack.i.h.s16 %v360
    %v404 = vunpack.i.l.s16 %v374
    %v405 = vunpack.i.h.s16 %v374
    %v406 = vunpack.i.l.s16 %v382
    %v407 = vunpack.i.h.s16 %v382
    %v408 = vunpack.i.l.s16 %v384
    %v409 = vunpack.i.h.s16 %v384
    %v410 = vunpack.i.l.s16 %v367
    %v411 = vunpack.i.h.s16 %v367
    %v412 = vunpack.i.l.s16 %v381
    %v413 = vunpack.i.h.s16 %v381
    %v414 = vunpack.i.l.s16 %v383
    %v415 = vunpack.i.h.s16 %v383
    %v416 = vunpack.i.l.s16 %v385
    %v417 = vunpack.i.h.s16 %v385
    %v418 = vpack.i.b16 %v386, %v386
    %v419 = vpack.i.b16 %v387, %v387
    %v420 = vpack.i.b16 %v388, %v388
    %v421 = vpack.i.b16 %v389, %v389
    %v422 = vpack.i.b16 %v390, %v390
    %v423 = vpack.i.b16 %v391, %v391
    %v424 = vpack.i.b16 %v392, %v392
    %v425 = vpack.i.b16 %v393, %v393
    %v426 = vpack.i.b16 %v394, %v394
    %v427 = vpack.i.b16 %v395, %v395
    %v428 = vpack.i.b16 %v396, %v396
    %v429 = vpack.i.b16 %v397, %v397
    %v430 = vpack.i.b16 %v398, %v398
    %v431 = vpack.i.b16 %v399, %v399
    %v432 = vpack.i.b16 %v400, %v400
    %v433 = vpack.i.b16 %v401, %v401
    %v434 = vpack.i.b16 %v402, %v402
    %v435 = vpack.i.b16 %v403, %v403
    %v436 = vpack.i.b16 %v404, %v404
    %v437 = vpack.i.b16 %v405, %v405
    %v438 = vpack.i.b16 %v406, %v406
    %v439 = vpack.i.b16 %v407, %v407
    %v440 = vpack.i.b16 %v408, %v408
    %v441 = vpack.i.b16 %v409, %v409
    %v442 = vpack.i.b16 %v410, %v410
    %v443 = vpack.i.b16 %v411, %v411
    %v444 = vpack.i.b16 %v412, %v412
    %v445 = vpack.i.b16 %v413, %v413
    %v446 = vpack.i.b16 %v414, %v414
    %v447 = vpack.i.b16 %v415, %v415
    %v448 = vpack.i.b16 %v416, %v416
    %v449 = vpack.i.b16 %v417, %v417
    %v450 = vlaneseq
    %v451 = vshrl.u32 %v450, 7
    %v452 = vsub.s32 0, %v451
    %v453 = vrot.slane %v418, %v452
    %v454 = vlaneseq
    %v455 = vshrl.u32 %v454, 7
    %v456 = vsub.s32 0, %v455
    %v457 = vrot.slane %v419, %v456
    %v458 = vlaneseq
    %v459 = vshrl.u32 %v458, 7
    %v460 = vsub.s32 0, %v459
    %v461 = vrot.slane %v420, %v460
    %v462 = vlaneseq
    %v463 = vshrl.u32 %v462, 7
    %v464 = vsub.s32 0, %v463
    %v465 = vrot.slane %v421, %v464
    %v466 = vlaneseq
    %v467 = vshrl.u32 %v466, 7
    %v468 = vsub.s32 0, %v467
    %v469 = vrot.slane %v422, %v468
    %v470 = vlaneseq
    %v471 = vshrl.u32 %v470, 7
    %v472 = vsub.s32 0, %v471
    %v473 = vrot.slane %v423, %v472
    %v474 = vlaneseq
    %v475 = vshrl.u32 %v474, 7
    %v476 = vsub.s32 0, %v475
    %v477 = vrot.slane %v424, %v476
    %v478 = vlaneseq
    %v479 = vshrl.u32 %v478, 7
    %v480 = vsub.s32 0, %v479
    %v481 = vrot.slane %v425, %v480
    %v482 = vlaneseq
    %v483 = vshrl.u32 %v482, 7
    %v484 = vsub.s32 0, %v483
    %v485 = vrot.slane %v426, %v484
    %v486 = vlaneseq
    %v487 = vshrl.u32 %v486, 7
    %v488 = vsub.s32 0, %v487
    %v489 = vrot.slane %v427, %v488
    %v490 = vlaneseq
    %v491 = vshrl.u32 %v490, 7
    %v492 = vsub.s32 0, %v491
    %v493 = vrot.slane %v428, %v492
    %v494 = vlaneseq
    %v495 = vshrl.u32 %v494, 7
    %v496 = vsub.s32 0, %v495
    %v497 = vrot.slane %v429, %v496
    %v498 = vlaneseq
    %v499 = vshrl.u32 %v498, 7
    %v500 = vsub.s32 0, %v499
    %v501 = vrot.slane %v430, %v500
    %v502 = vlaneseq
    %v503 = vshrl.u32 %v502, 7
    %v504 = vsub.s32 0, %v503
    %v505 = vrot.slane %v431, %v504
    %v506 = vlaneseq
    %v507 = vshrl.u32 %v506, 7
    %v508 = vsub.s32 0, %v507
    %v509 = vrot.slane %v432, %v508
    %v510 = vlaneseq
    %v511 = vshrl.u32 %v510, 7
    %v512 = vsub.s32 0, %v511
    %v513 = vrot.slane %v433, %v512
    %v514 = vlaneseq
    %v515 = vshrl.u32 %v514, 7
    %v516 = vsub.s32 0, %v515
    %v517 = vrot.slane %v434, %v516
    %v518 = vlaneseq
    %v519 = vshrl.u32 %v518, 7
    %v520 = vsub.s32 0, %v519
    %v521 = vrot.slane %v435, %v520
    %v522 = vlaneseq
    %v523 = vshrl.u32 %v522, 7
    %v524 = vsub.s32 0, %v523
    %v525 = vrot.slane %v436, %v524
    %v526 = vlaneseq
    %v527 = vshrl.u32 %v526, 7
    %v528 = vsub.s32 0, %v527
    %v529 = vrot.slane %v437, %v528
    %v530 = vlaneseq
    %v531 = vshrl.u32 %v530, 7
    %v532 = vsub.s32 0, %v531
    %v533 = vrot.slane %v438, %v532
    %v534 = vlaneseq
    %v535 = vshrl.u32 %v534, 7
    %v536 = vsub.s32 0, %v535
    %v537 = vrot.slane %v439, %v536
    %v538 = vlaneseq
    %v539 = vshrl.u32 %v538, 7
    %v540 = vsub.s32 0, %v539
    %v541 = vrot.slane %v440, %v540
    %v542 = vlaneseq
    %v543 = vshrl.u32 %v542, 7
    %v544 = vsub.s32 0, %v543
    %v545 = vrot.slane %v441, %v544
    %v546 = vlaneseq
    %v547 = vshrl.u32 %v546, 7
    %v548 = vsub.s32 0, %v547
    %v549 = vrot.slane %v442, %v548
    %v550 = vlaneseq
    %v551 = vshrl.u32 %v550, 7
    %v552 = vsub.s32 0, %v551
    %v553 = vrot.slane %v443, %v552
    %v554 = vlaneseq
    %v555 = vshrl.u32 %v554, 7
    %v556 = vsub.s32 0, %v555
    %v557 = vrot.slane %v444, %v556
    %v558 = vlaneseq
    %v559 = vshrl.u32 %v558, 7
    %v560 = vsub.s32 0, %v559
    %v561 = vrot.slane %v445, %v560
    %v562 = vlaneseq
    %v563 = vshrl.u32 %v562, 7
    %v564 = vsub.s32 0, %v563
    %v565 = vrot.slane %v446, %v564
    %v566 = vlaneseq
    %v567 = vshrl.u32 %v566, 7
    %v568 = vsub.s32 0, %v567
    %v569 = vrot.slane %v447, %v568
    %v570 = vlaneseq
    %v571 = vshrl.u32 %v570, 7
    %v572 = vsub.s32 0, %v571
    %v573 = vrot.slane %v448, %v572
    %v574 = vlaneseq
    %v575 = vshrl.u32 %v574, 7
    %v576 = vsub.s32 0, %v575
    %v577 = vrot.slane %v449, %v576
    %v579 = vpack.i.b16 %v453, %v453
    %v581 = vlaneseq
    %v582 = vshrl.u32 %v581, 7
    %v583 = vsub.s32 0, %v582
    %v584 = vrot.slane %v579, %v583
    %v586 = vpack.i.b16 %v457, %v457
    %v588 = vlaneseq
    %v589 = vshrl.u32 %v588, 7
    %v590 = vsub.s32 0, %v589
    %v591 = vrot.slane %v586, %v590
    %v593 = vpack.i.b16 %v461, %v461
    %v595 = vlaneseq
    %v596 = vshrl.u32 %v595, 7
    %v597 = vsub.s32 0, %v596
    %v598 = vrot.slane %v593, %v597
    %v600 = vpack.i.b16 %v465, %v465
    %v602 = vlaneseq
    %v603 = vshrl.u32 %v602, 7
    %v604 = vsub.s32 0, %v603
    %v605 = vrot.slane %v600, %v604
    %v607 = vpack.i.b16 %v469, %v469
    %v609 = vlaneseq
    %v610 = vshrl.u32 %v609, 7
    %v611 = vsub.s32 0, %v610
    %v612 = vrot.slane %v607, %v611
    %v614 = vpack.i.b16 %v473, %v473
    %v616 = vlaneseq
    %v617 = vshrl.u32 %v616, 7
    %v618 = vsub.s32 0, %v617
    %v619 = vrot.slane %v614, %v618
    %v621 = vpack.i.b16 %v477, %v477
    %v623 = vlaneseq
    %v624 = vshrl.u32 %v623, 7
    %v625 = vsub.s32 0, %v624
    %v626 = vrot.slane %v621, %v625
    %v628 = vpack.i.b16 %v481, %v481
    %v630 = vlaneseq
    %v631 = vshrl.u32 %v630, 7
    %v632 = vsub.s32 0, %v631
    %v633 = vrot.slane %v628, %v632
    %v635 = vpack.i.b16 %v485, %v485
    %v637 = vlaneseq
    %v638 = vshrl.u32 %v637, 7
    %v639 = vsub.s32 0, %v638
    %v640 = vrot.slane %v635, %v639
    %v642 = vpack.i.b16 %v489, %v489
    %v644 = vlaneseq
    %v645 = vshrl.u32 %v644, 7
    %v646 = vsub.s32 0, %v645
    %v647 = vrot.slane %v642, %v646
    %v649 = vpack.i.b16 %v493, %v493
    %v651 = vlaneseq
    %v652 = vshrl.u32 %v651, 7
    %v653 = vsub.s32 0, %v652
    %v654 = vrot.slane %v649, %v653
    %v656 = vpack.i.b16 %v497, %v497
    %v658 = vlaneseq
    %v659 = vshrl.u32 %v658, 7
    %v660 = vsub.s32 0, %v659
    %v661 = vrot.slane %v656, %v660
    %v663 = vpack.i.b16 %v501, %v501
    %v665 = vlaneseq
    %v666 = vshrl.u32 %v665, 7
    %v667 = vsub.s32 0, %v666
    %v668 = vrot.slane %v663, %v667
    %v670 = vpack.i.b16 %v505, %v505
    %v672 = vlaneseq
    %v673 = vshrl.u32 %v672, 7
    %v674 = vsub.s32 0, %v673
    %v675 = vrot.slane %v670, %v674
    %v677 = vpack.i.b16 %v509, %v509
    %v679 = vlaneseq
    %v680 = vshrl.u32 %v679, 7
    %v681 = vsub.s32 0, %v680
    %v682 = vrot.slane %v677, %v681
    %v684 = vpack.i.b16 %v513, %v513
    %v686 = vlaneseq
    %v687 = vshrl.u32 %v686, 7
    %v688 = vsub.s32 0, %v687
    %v689 = vrot.slane %v684, %v688
    %v691 = vpack.i.b16 %v517, %v517
    %v693 = vlaneseq
    %v694 = vshrl.u32 %v693, 7
    %v695 = vsub.s32 0, %v694
    %v696 = vrot.slane %v691, %v695
    %v698 = vpack.i.b16 %v521, %v521
    %v700 = vlaneseq
    %v701 = vshrl.u32 %v700, 7
    %v702 = vsub.s32 0, %v701
    %v703 = vrot.slane %v698, %v702
    %v705 = vpack.i.b16 %v525, %v525
    %v707 = vlaneseq
    %v708 = vshrl.u32 %v707, 7
    %v709 = vsub.s32 0, %v708
    %v710 = vrot.slane %v705, %v709
    %v712 = vpack.i.b16 %v529, %v529
    %v714 = vlaneseq
    %v715 = vshrl.u32 %v714, 7
    %v716 = vsub.s32 0, %v715
    %v717 = vrot.slane %v712, %v716
    %v719 = vpack.i.b16 %v533, %v533
    %v721 = vlaneseq
    %v722 = vshrl.u32 %v721, 7
    %v723 = vsub.s32 0, %v722
    %v724 = vrot.slane %v719, %v723
    %v726 = vpack.i.b16 %v537, %v537
    %v728 = vlaneseq
    %v729 = vshrl.u32 %v728, 7
    %v730 = vsub.s32 0, %v729
    %v731 = vrot.slane %v726, %v730
    %v733 = vpack.i.b16 %v541, %v541
    %v735 = vlaneseq
    %v736 = vshrl.u32 %v735, 7
    %v737 = vsub.s32 0, %v736
    %v738 = vrot.slane %v733, %v737
    %v740 = vpack.i.b16 %v545, %v545
    %v742 = vlaneseq
    %v743 = vshrl.u32 %v742, 7
    %v744 = vsub.s32 0, %v743
    %v745 = vrot.slane %v740, %v744
    %v747 = vpack.i.b16 %v549, %v549
    %v749 = vlaneseq
    %v750 = vshrl.u32 %v749, 7
    %v751 = vsub.s32 0, %v750
    %v752 = vrot.slane %v747, %v751
    %v754 = vpack.i.b16 %v553, %v553
    %v756 = vlaneseq
    %v757 = vshrl.u32 %v756, 7
    %v758 = vsub.s32 0, %v757
    %v759 = vrot.slane %v754, %v758
    %v761 = vpack.i.b16 %v557, %v557
    %v763 = vlaneseq
    %v764 = vshrl.u32 %v763, 7
    %v765 = vsub.s32 0, %v764
    %v766 = vrot.slane %v761, %v765
    %v768 = vpack.i.b16 %v561, %v561
    %v770 = vlaneseq
    %v771 = vshrl.u32 %v770, 7
    %v772 = vsub.s32 0, %v771
    %v773 = vrot.slane %v768, %v772
    %v775 = vpack.i.b16 %v565, %v565
    %v777 = vlaneseq
    %v778 = vshrl.u32 %v777, 7
    %v779 = vsub.s32 0, %v778
    %v780 = vrot.slane %v775, %v779
    %v782 = vpack.i.b16 %v569, %v569
    %v784 = vlaneseq
    %v785 = vshrl.u32 %v784, 7
    %v786 = vsub.s32 0, %v785
    %v787 = vrot.slane %v782, %v786
    %v789 = vpack.i.b16 %v573, %v573
    %v791 = vlaneseq
    %v792 = vshrl.u32 %v791, 7
    %v793 = vsub.s32 0, %v792
    %v794 = vrot.slane %v789, %v793
    %v796 = vpack.i.b16 %v577, %v577
    %v798 = vlaneseq
    %v799 = vshrl.u32 %v798, 7
    %v800 = vsub.s32 0, %v799
    %v801 = vrot.slane %v796, %v800
    %v806 = vunpack.c.l.b16 %v282
    %v807 = vunpack.c.l.b16 %v283
    %v808 = vunpack.c.l.b16 %v284
    %v809 = vunpack.c.l.b16 %v285
    %v810 = vpack.c.b16 %v807, %v806
    %v811 = vpack.c.b16 %v809, %v808
    %v814 = vadd.bf16 %v584, %v810
    %v815 = vadd.bf16 %v584, %v811
    %v816 = vadd.bf16 %v591, %v810
    %v817 = vadd.bf16 %v591, %v811
    %v818 = vadd.bf16 %v598, %v810
    %v819 = vadd.bf16 %v598, %v811
    %v820 = vadd.bf16 %v605, %v810
    %v821 = vadd.bf16 %v605, %v811
    %v822 = vadd.bf16 %v612, %v810
    %v823 = vadd.bf16 %v612, %v811
    %v824 = vadd.bf16 %v619, %v810
    %v825 = vadd.bf16 %v619, %v811
    %v826 = vadd.bf16 %v626, %v810
    %v827 = vadd.bf16 %v626, %v811
    %v828 = vadd.bf16 %v633, %v810
    %v829 = vadd.bf16 %v633, %v811
    %v830 = vadd.bf16 %v640, %v810
    %v831 = vadd.bf16 %v640, %v811
    %v832 = vadd.bf16 %v647, %v810
    %v833 = vadd.bf16 %v647, %v811
    %v834 = vadd.bf16 %v654, %v810
    %v835 = vadd.bf16 %v654, %v811
    %v836 = vadd.bf16 %v661, %v810
    %v837 = vadd.bf16 %v661, %v811
    %v838 = vadd.bf16 %v668, %v810
    %v839 = vadd.bf16 %v668, %v811
    %v840 = vadd.bf16 %v675, %v810
    %v841 = vadd.bf16 %v675, %v811
    %v842 = vadd.bf16 %v682, %v810
    %v843 = vadd.bf16 %v682, %v811
    %v844 = vadd.bf16 %v689, %v810
    %v845 = vadd.bf16 %v689, %v811
    %v846 = vadd.bf16 %v696, %v810
    %v847 = vadd.bf16 %v696, %v811
    %v848 = vadd.bf16 %v703, %v810
    %v849 = vadd.bf16 %v703, %v811
    %v850 = vadd.bf16 %v710, %v810
    %v851 = vadd.bf16 %v710, %v811
    %v852 = vadd.bf16 %v717, %v810
    %v853 = vadd.bf16 %v717, %v811
    %v854 = vadd.bf16 %v724, %v810
    %v855 = vadd.bf16 %v724, %v811
    %v856 = vadd.bf16 %v731, %v810
    %v857 = vadd.bf16 %v731, %v811
    %v858 = vadd.bf16 %v738, %v810
    %v859 = vadd.bf16 %v738, %v811
    %v860 = vadd.bf16 %v745, %v810
    %v861 = vadd.bf16 %v745, %v811
    %v862 = vadd.bf16 %v752, %v810
    %v863 = vadd.bf16 %v752, %v811
    %v864 = vadd.bf16 %v759, %v810
    %v865 = vadd.bf16 %v759, %v811
    %v866 = vadd.bf16 %v766, %v810
    %v867 = vadd.bf16 %v766, %v811
    %v868 = vadd.bf16 %v773, %v810
    %v869 = vadd.bf16 %v773, %v811
    %v870 = vadd.bf16 %v780, %v810
    %v871 = vadd.bf16 %v780, %v811
    %v872 = vadd.bf16 %v787, %v810
    %v873 = vadd.bf16 %v787, %v811
    %v874 = vadd.bf16 %v794, %v810
    %v875 = vadd.bf16 %v794, %v811
    %v876 = vadd.bf16 %v801, %v810
    %v877 = vadd.bf16 %v801, %v811
    %v878 = vmax.bf16 %v814, 0
    %v879 = vmax.bf16 %v815, 0
    %v880 = vmax.bf16 %v816, 0
    %v881 = vmax.bf16 %v817, 0
    %v882 = vmax.bf16 %v818, 0
    %v883 = vmax.bf16 %v819, 0
    %v884 = vmax.bf16 %v820, 0
    %v885 = vmax.bf16 %v821, 0
    %v886 = vmax.bf16 %v822, 0
    %v887 = vmax.bf16 %v823, 0
    %v888 = vmax.bf16 %v824, 0
    %v889 = vmax.bf16 %v825, 0
    %v890 = vmax.bf16 %v826, 0
    %v891 = vmax.bf16 %v827, 0
    %v892 = vmax.bf16 %v828, 0
    %v893 = vmax.bf16 %v829, 0
    %v894 = vmax.bf16 %v830, 0
    %v895 = vmax.bf16 %v831, 0
    %v896 = vmax.bf16 %v832, 0
    %v897 = vmax.bf16 %v833, 0
    %v898 = vmax.bf16 %v834, 0
    %v899 = vmax.bf16 %v835, 0
    %v900 = vmax.bf16 %v836, 0
    %v901 = vmax.bf16 %v837, 0
    %v902 = vmax.bf16 %v838, 0
    %v903 = vmax.bf16 %v839, 0
    %v904 = vmax.bf16 %v840, 0
    %v905 = vmax.bf16 %v841, 0
    %v906 = vmax.bf16 %v842, 0
    %v907 = vmax.bf16 %v843, 0
    %v908 = vmax.bf16 %v844, 0
    %v909 = vmax.bf16 %v845, 0
    %v910 = vmax.bf16 %v846, 0
    %v911 = vmax.bf16 %v847, 0
    %v912 = vmax.bf16 %v848, 0
    %v913 = vmax.bf16 %v849, 0
    %v914 = vmax.bf16 %v850, 0
    %v915 = vmax.bf16 %v851, 0
    %v916 = vmax.bf16 %v852, 0
    %v917 = vmax.bf16 %v853, 0
    %v918 = vmax.bf16 %v854, 0
    %v919 = vmax.bf16 %v855, 0
    %v920 = vmax.bf16 %v856, 0
    %v921 = vmax.bf16 %v857, 0
    %v922 = vmax.bf16 %v858, 0
    %v923 = vmax.bf16 %v859, 0
    %v924 = vmax.bf16 %v860, 0
    %v925 = vmax.bf16 %v861, 0
    %v926 = vmax.bf16 %v862, 0
    %v927 = vmax.bf16 %v863, 0
    %v928 = vmax.bf16 %v864, 0
    %v929 = vmax.bf16 %v865, 0
    %v930 = vmax.bf16 %v866, 0
    %v931 = vmax.bf16 %v867, 0
    %v932 = vmax.bf16 %v868, 0
    %v933 = vmax.bf16 %v869, 0
    %v934 = vmax.bf16 %v870, 0
    %v935 = vmax.bf16 %v871, 0
    %v936 = vmax.bf16 %v872, 0
    %v937 = vmax.bf16 %v873, 0
    %v938 = vmax.bf16 %v874, 0
    %v939 = vmax.bf16 %v875, 0
    %v940 = vmax.bf16 %v876, 0
    %v941 = vmax.bf16 %v877, 0
    %v942 = vld [vmem:[%s6] sm:$0xf]
    %v943 = vld [vmem:[%s6 + $0x4] sm:$0xf]
    %v944 = vld [vmem:[%s6 + $0x8] sm:$0xf]
    %v945 = vld [vmem:[%s6 + $0xc] sm:$0xf]
    %v946 = vld [vmem:[%s6 + $0x10] sm:$0xf]
    %v947 = vld [vmem:[%s6 + $0x14] sm:$0xf]
    %v948 = vld [vmem:[%s6 + $0x18] sm:$0xf]
    %v949 = vld [vmem:[%s6 + $0x1c] sm:$0xf]
    %v950 = vld [vmem:[%s6 + $0x20] sm:$0xf]
    %v951 = vld [vmem:[%s6 + $0x24] sm:$0xf]
    %v952 = vld [vmem:[%s6 + $0x28] sm:$0xf]
    %v953 = vld [vmem:[%s6 + $0x2c] sm:$0xf]
    %v954 = vld [vmem:[%s6 + $0x30] sm:$0xf]
    %v955 = vld [vmem:[%s6 + $0x34] sm:$0xf]
    %v956 = vld [vmem:[%s6 + $0x38] sm:$0xf]
    %v957 = vld [vmem:[%s6 + $0x3c] sm:$0xf]
    %v958 = vld [vmem:[%s7] sm:$0x1]
    %v960 = vlaneseq
    %v961 = vshrl.u32 %v960, 7
    %v962 = vsub.s32 0, %v961
    %v963 = vrot.slane %v958, %v962
    %v981 = vunpack.c.l.b16 %v942
    %v982 = vunpack.c.l.b16 %v943
    %v983 = vunpack.c.l.b16 %v944
    %v984 = vunpack.c.l.b16 %v945
    %v985 = vunpack.c.l.b16 %v946
    %v986 = vunpack.c.l.b16 %v947
    %v987 = vunpack.c.l.b16 %v948
    %v988 = vunpack.c.l.b16 %v949
    %v989 = vunpack.c.l.b16 %v950
    %v990 = vunpack.c.l.b16 %v951
    %v991 = vunpack.c.l.b16 %v952
    %v992 = vunpack.c.l.b16 %v953
    %v993 = vunpack.c.l.b16 %v954
    %v994 = vunpack.c.l.b16 %v955
    %v995 = vunpack.c.l.b16 %v956
    %v996 = vunpack.c.l.b16 %v957
    %v997 = vpack.c.b16 %v982, %v981
    %v998 = vpack.c.b16 %v984, %v983
    %v999 = vpack.c.b16 %v986, %v985
    %v1000 = vpack.c.b16 %v988, %v987
    %v1001 = vpack.c.b16 %v990, %v989
    %v1002 = vpack.c.b16 %v992, %v991
    %v1003 = vpack.c.b16 %v994, %v993
    %v1004 = vpack.c.b16 %v996, %v995
    %1013 = vmatprep.subr.bf16.mxu0 0
    %1014 = vmatpush1.bf16.msra.mxu0 %v1004
    %1015 = vmatprep.subr.bf16.mxu0 0
    %1016 = vmatpush1.bf16.msra.mxu0 %v1003
    %1017 = vmatprep.subr.bf16.mxu0 0
    %1018 = vmatpush1.bf16.msra.mxu0 %v1002
    %1019 = vmatprep.subr.bf16.mxu0 0
    %1020 = vmatpush1.bf16.msra.mxu0 %v1001
    %1021 = vmatprep.subr.bf16.mxu0 0
    %1022 = vmatpush1.bf16.msra.mxu0 %v1000
    %1023 = vmatprep.subr.bf16.mxu0 0
    %1024 = vmatpush1.bf16.msra.mxu0 %v999
    %1025 = vmatprep.subr.bf16.mxu0 0
    %1026 = vmatpush1.bf16.msra.mxu0 %v998
    %1027 = vmatprep.subr.bf16.mxu0 0
    %1028 = vmatpush1.bf16.msra.mxu0 %v997
    %1029 = vmatprep.subr.bf16.mxu0 0
    %1030 = vmatpush2.bf16.msra.mxu0 0
    %1031 = vmatprep.subr.bf16.mxu0 0
    %1032 = vmatpush2.bf16.msra.mxu0 0
    %1033 = vmatprep.subr.bf16.mxu0 0
    %1034 = vmatpush2.bf16.msra.mxu0 0
    %1035 = vmatprep.subr.bf16.mxu0 0
    %1036 = vmatpush2.bf16.msra.mxu0 0
    %1037 = vmatprep.subr.bf16.mxu0 0
    %1038 = vmatpush2.bf16.msra.mxu0 0
    %1039 = vmatprep.subr.bf16.mxu0 0
    %1040 = vmatpush2.bf16.msra.mxu0 0
    %1041 = vmatprep.subr.bf16.mxu0 0
    %1042 = vmatpush2.bf16.msra.mxu0 0
    %1043 = vmatprep.subr.bf16.mxu0 0
    %1044 = vmatpush2.bf16.msra.mxu0 0
    %1045 = vmatprep.mubr.bf16.mxu0 0
    %1046 = vmatmul.mubr.bf16.gmra.mxu0 %v878
    %v1047 = vpop.f32.mrf.mxu0
    %v1048 = vadd.f32 %v963, %v1047
    %v1049 = vpop.f32.mrf.mxu0
    %v1050 = vpop.f32.mrf.mxu0
    %v1051 = vadd.f32 %v963, %v1050
    %v1052 = vpop.f32.mrf.mxu0
    %1053 = vmatprep.mubr.bf16.mxu0 0
    %1054 = vmatmul.mubr.bf16.gmra.mxu0 %v879
    %v1055 = vpop.f32.mrf.mxu0
    %v1056 = vadd.f32 %v963, %v1055
    %v1057 = vpop.f32.mrf.mxu0
    %v1058 = vpop.f32.mrf.mxu0
    %v1059 = vadd.f32 %v963, %v1058
    %v1060 = vpop.f32.mrf.mxu0
    %1061 = vmatprep.mubr.bf16.mxu0 0
    %1062 = vmatmul.mubr.bf16.gmra.mxu0 %v880
    %v1063 = vpop.f32.mrf.mxu0
    %v1064 = vadd.f32 %v963, %v1063
    %v1065 = vpop.f32.mrf.mxu0
    %v1066 = vpop.f32.mrf.mxu0
    %v1067 = vadd.f32 %v963, %v1066
    %v1068 = vpop.f32.mrf.mxu0
    %1069 = vmatprep.mubr.bf16.mxu0 0
    %1070 = vmatmul.mubr.bf16.gmra.mxu0 %v881
    %v1071 = vpop.f32.mrf.mxu0
    %v1072 = vadd.f32 %v963, %v1071
    %v1073 = vpop.f32.mrf.mxu0
    %v1074 = vpop.f32.mrf.mxu0
    %v1075 = vadd.f32 %v963, %v1074
    %v1076 = vpop.f32.mrf.mxu0
    %1077 = vmatprep.mubr.bf16.mxu0 0
    %1078 = vmatmul.mubr.bf16.gmra.mxu0 %v882
    %v1079 = vpop.f32.mrf.mxu0
    %v1080 = vadd.f32 %v963, %v1079
    %v1081 = vpop.f32.mrf.mxu0
    %v1082 = vpop.f32.mrf.mxu0
    %v1083 = vadd.f32 %v963, %v1082
    %v1084 = vpop.f32.mrf.mxu0
    %1085 = vmatprep.mubr.bf16.mxu0 0
    %1086 = vmatmul.mubr.bf16.gmra.mxu0 %v883
    %v1087 = vpop.f32.mrf.mxu0
    %v1088 = vadd.f32 %v963, %v1087
    %v1089 = vpop.f32.mrf.mxu0
    %v1090 = vpop.f32.mrf.mxu0
    %v1091 = vadd.f32 %v963, %v1090
    %v1092 = vpop.f32.mrf.mxu0
    %1093 = vmatprep.mubr.bf16.mxu0 0
    %1094 = vmatmul.mubr.bf16.gmra.mxu0 %v884
    %v1095 = vpop.f32.mrf.mxu0
    %v1096 = vadd.f32 %v963, %v1095
    %v1097 = vpop.f32.mrf.mxu0
    %v1098 = vpop.f32.mrf.mxu0
    %v1099 = vadd.f32 %v963, %v1098
    %v1100 = vpop.f32.mrf.mxu0
    %1101 = vmatprep.mubr.bf16.mxu0 0
    %1102 = vmatmul.mubr.bf16.gmra.mxu0 %v885
    %v1103 = vpop.f32.mrf.mxu0
    %v1104 = vadd.f32 %v963, %v1103
    %v1105 = vpop.f32.mrf.mxu0
    %v1106 = vpop.f32.mrf.mxu0
    %v1107 = vadd.f32 %v963, %v1106
    %v1108 = vpop.f32.mrf.mxu0
    %1109 = vmatprep.mubr.bf16.mxu0 0
    %1110 = vmatmul.mubr.bf16.gmra.mxu0 %v886
    %v1111 = vpop.f32.mrf.mxu0
    %v1112 = vadd.f32 %v963, %v1111
    %v1113 = vpop.f32.mrf.mxu0
    %v1114 = vpop.f32.mrf.mxu0
    %v1115 = vadd.f32 %v963, %v1114
    %v1116 = vpop.f32.mrf.mxu0
    %1117 = vmatprep.mubr.bf16.mxu0 0
    %1118 = vmatmul.mubr.bf16.gmra.mxu0 %v887
    %v1119 = vpop.f32.mrf.mxu0
    %v1120 = vadd.f32 %v963, %v1119
    %v1121 = vpop.f32.mrf.mxu0
    %v1122 = vpop.f32.mrf.mxu0
    %v1123 = vadd.f32 %v963, %v1122
    %v1124 = vpop.f32.mrf.mxu0
    %1125 = vmatprep.mubr.bf16.mxu0 0
    %1126 = vmatmul.mubr.bf16.gmra.mxu0 %v888
    %v1127 = vpop.f32.mrf.mxu0
    %v1128 = vadd.f32 %v963, %v1127
    %v1129 = vpop.f32.mrf.mxu0
    %v1130 = vpop.f32.mrf.mxu0
    %v1131 = vadd.f32 %v963, %v1130
    %v1132 = vpop.f32.mrf.mxu0
    %1133 = vmatprep.mubr.bf16.mxu0 0
    %1134 = vmatmul.mubr.bf16.gmra.mxu0 %v889
    %v1135 = vpop.f32.mrf.mxu0
    %v1136 = vadd.f32 %v963, %v1135
    %v1137 = vpop.f32.mrf.mxu0
    %v1138 = vpop.f32.mrf.mxu0
    %v1139 = vadd.f32 %v963, %v1138
    %v1140 = vpop.f32.mrf.mxu0
    %1141 = vmatprep.mubr.bf16.mxu0 0
    %1142 = vmatmul.mubr.bf16.gmra.mxu0 %v890
    %v1143 = vpop.f32.mrf.mxu0
    %v1144 = vadd.f32 %v963, %v1143
    %v1145 = vpop.f32.mrf.mxu0
    %v1146 = vpop.f32.mrf.mxu0
    %v1147 = vadd.f32 %v963, %v1146
    %v1148 = vpop.f32.mrf.mxu0
    %1149 = vmatprep.mubr.bf16.mxu0 0
    %1150 = vmatmul.mubr.bf16.gmra.mxu0 %v891
    %v1151 = vpop.f32.mrf.mxu0
    %v1152 = vadd.f32 %v963, %v1151
    %v1153 = vpop.f32.mrf.mxu0
    %v1154 = vpop.f32.mrf.mxu0
    %v1155 = vadd.f32 %v963, %v1154
    %v1156 = vpop.f32.mrf.mxu0
    %1157 = vmatprep.mubr.bf16.mxu0 0
    %1158 = vmatmul.mubr.bf16.gmra.mxu0 %v892
    %v1159 = vpop.f32.mrf.mxu0
    %v1160 = vadd.f32 %v963, %v1159
    %v1161 = vpop.f32.mrf.mxu0
    %v1162 = vpop.f32.mrf.mxu0
    %v1163 = vadd.f32 %v963, %v1162
    %v1164 = vpop.f32.mrf.mxu0
    %1165 = vmatprep.mubr.bf16.mxu0 0
    %1166 = vmatmul.mubr.bf16.gmra.mxu0 %v893
    %v1167 = vpop.f32.mrf.mxu0
    %v1168 = vadd.f32 %v963, %v1167
    %v1169 = vpop.f32.mrf.mxu0
    %v1170 = vpop.f32.mrf.mxu0
    %v1171 = vadd.f32 %v963, %v1170
    %v1172 = vpop.f32.mrf.mxu0
    %1173 = vmatprep.mubr.bf16.mxu0 0
    %1174 = vmatmul.mubr.bf16.gmra.mxu0 %v894
    %v1175 = vpop.f32.mrf.mxu0
    %v1176 = vadd.f32 %v963, %v1175
    %v1177 = vpop.f32.mrf.mxu0
    %v1178 = vpop.f32.mrf.mxu0
    %v1179 = vadd.f32 %v963, %v1178
    %v1180 = vpop.f32.mrf.mxu0
    %1181 = vmatprep.mubr.bf16.mxu0 0
    %1182 = vmatmul.mubr.bf16.gmra.mxu0 %v895
    %v1183 = vpop.f32.mrf.mxu0
    %v1184 = vadd.f32 %v963, %v1183
    %v1185 = vpop.f32.mrf.mxu0
    %v1186 = vpop.f32.mrf.mxu0
    %v1187 = vadd.f32 %v963, %v1186
    %v1188 = vpop.f32.mrf.mxu0
    %1189 = vmatprep.mubr.bf16.mxu0 0
    %1190 = vmatmul.mubr.bf16.gmra.mxu0 %v896
    %v1191 = vpop.f32.mrf.mxu0
    %v1192 = vadd.f32 %v963, %v1191
    %v1193 = vpop.f32.mrf.mxu0
    %v1194 = vpop.f32.mrf.mxu0
    %v1195 = vadd.f32 %v963, %v1194
    %v1196 = vpop.f32.mrf.mxu0
    %1197 = vmatprep.mubr.bf16.mxu0 0
    %1198 = vmatmul.mubr.bf16.gmra.mxu0 %v897
    %v1199 = vpop.f32.mrf.mxu0
    %v1200 = vadd.f32 %v963, %v1199
    %v1201 = vpop.f32.mrf.mxu0
    %v1202 = vpop.f32.mrf.mxu0
    %v1203 = vadd.f32 %v963, %v1202
    %v1204 = vpop.f32.mrf.mxu0
    %1205 = vmatprep.mubr.bf16.mxu0 0
    %1206 = vmatmul.mubr.bf16.gmra.mxu0 %v898
    %v1207 = vpop.f32.mrf.mxu0
    %v1208 = vadd.f32 %v963, %v1207
    %v1209 = vpop.f32.mrf.mxu0
    %v1210 = vpop.f32.mrf.mxu0
    %v1211 = vadd.f32 %v963, %v1210
    %v1212 = vpop.f32.mrf.mxu0
    %1213 = vmatprep.mubr.bf16.mxu0 0
    %1214 = vmatmul.mubr.bf16.gmra.mxu0 %v899
    %v1215 = vpop.f32.mrf.mxu0
    %v1216 = vadd.f32 %v963, %v1215
    %v1217 = vpop.f32.mrf.mxu0
    %v1218 = vpop.f32.mrf.mxu0
    %v1219 = vadd.f32 %v963, %v1218
    %v1220 = vpop.f32.mrf.mxu0
    %1221 = vmatprep.mubr.bf16.mxu0 0
    %1222 = vmatmul.mubr.bf16.gmra.mxu0 %v900
    %v1223 = vpop.f32.mrf.mxu0
    %v1224 = vadd.f32 %v963, %v1223
    %v1225 = vpop.f32.mrf.mxu0
    %v1226 = vpop.f32.mrf.mxu0
    %v1227 = vadd.f32 %v963, %v1226
    %v1228 = vpop.f32.mrf.mxu0
    %1229 = vmatprep.mubr.bf16.mxu0 0
    %1230 = vmatmul.mubr.bf16.gmra.mxu0 %v901
    %v1231 = vpop.f32.mrf.mxu0
    %v1232 = vadd.f32 %v963, %v1231
    %v1233 = vpop.f32.mrf.mxu0
    %v1234 = vpop.f32.mrf.mxu0
    %v1235 = vadd.f32 %v963, %v1234
    %v1236 = vpop.f32.mrf.mxu0
    %1237 = vmatprep.mubr.bf16.mxu0 0
    %1238 = vmatmul.mubr.bf16.gmra.mxu0 %v902
    %v1239 = vpop.f32.mrf.mxu0
    %v1240 = vadd.f32 %v963, %v1239
    %v1241 = vpop.f32.mrf.mxu0
    %v1242 = vpop.f32.mrf.mxu0
    %v1243 = vadd.f32 %v963, %v1242
    %v1244 = vpop.f32.mrf.mxu0
    %1245 = vmatprep.mubr.bf16.mxu0 0
    %1246 = vmatmul.mubr.bf16.gmra.mxu0 %v903
    %v1247 = vpop.f32.mrf.mxu0
    %v1248 = vadd.f32 %v963, %v1247
    %v1249 = vpop.f32.mrf.mxu0
    %v1250 = vpop.f32.mrf.mxu0
    %v1251 = vadd.f32 %v963, %v1250
    %v1252 = vpop.f32.mrf.mxu0
    %1253 = vmatprep.mubr.bf16.mxu0 0
    %1254 = vmatmul.mubr.bf16.gmra.mxu0 %v904
    %v1255 = vpop.f32.mrf.mxu0
    %v1256 = vadd.f32 %v963, %v1255
    %v1257 = vpop.f32.mrf.mxu0
    %v1258 = vpop.f32.mrf.mxu0
    %v1259 = vadd.f32 %v963, %v1258
    %v1260 = vpop.f32.mrf.mxu0
    %1261 = vmatprep.mubr.bf16.mxu0 0
    %1262 = vmatmul.mubr.bf16.gmra.mxu0 %v905
    %v1263 = vpop.f32.mrf.mxu0
    %v1264 = vadd.f32 %v963, %v1263
    %v1265 = vpop.f32.mrf.mxu0
    %v1266 = vpop.f32.mrf.mxu0
    %v1267 = vadd.f32 %v963, %v1266
    %v1268 = vpop.f32.mrf.mxu0
    %1269 = vmatprep.mubr.bf16.mxu0 0
    %1270 = vmatmul.mubr.bf16.gmra.mxu0 %v906
    %v1271 = vpop.f32.mrf.mxu0
    %v1272 = vadd.f32 %v963, %v1271
    %v1273 = vpop.f32.mrf.mxu0
    %v1274 = vpop.f32.mrf.mxu0
    %v1275 = vadd.f32 %v963, %v1274
    %v1276 = vpop.f32.mrf.mxu0
    %1277 = vmatprep.mubr.bf16.mxu0 0
    %1278 = vmatmul.mubr.bf16.gmra.mxu0 %v907
    %v1279 = vpop.f32.mrf.mxu0
    %v1280 = vadd.f32 %v963, %v1279
    %v1281 = vpop.f32.mrf.mxu0
    %v1282 = vpop.f32.mrf.mxu0
    %v1283 = vadd.f32 %v963, %v1282
    %v1284 = vpop.f32.mrf.mxu0
    %1285 = vmatprep.mubr.bf16.mxu0 0
    %1286 = vmatmul.mubr.bf16.gmra.mxu0 %v908
    %v1287 = vpop.f32.mrf.mxu0
    %v1288 = vadd.f32 %v963, %v1287
    %v1289 = vpop.f32.mrf.mxu0
    %v1290 = vpop.f32.mrf.mxu0
    %v1291 = vadd.f32 %v963, %v1290
    %v1292 = vpop.f32.mrf.mxu0
    %1293 = vmatprep.mubr.bf16.mxu0 0
    %1294 = vmatmul.mubr.bf16.gmra.mxu0 %v909
    %v1295 = vpop.f32.mrf.mxu0
    %v1296 = vadd.f32 %v963, %v1295
    %v1297 = vpop.f32.mrf.mxu0
    %v1298 = vpop.f32.mrf.mxu0
    %v1299 = vadd.f32 %v963, %v1298
    %v1300 = vpop.f32.mrf.mxu0
    %1301 = vmatprep.mubr.bf16.mxu0 0
    %1302 = vmatmul.mubr.bf16.gmra.mxu0 %v910
    %v1303 = vpop.f32.mrf.mxu0
    %v1304 = vadd.f32 %v963, %v1303
    %v1305 = vpop.f32.mrf.mxu0
    %v1306 = vpop.f32.mrf.mxu0
    %v1307 = vadd.f32 %v963, %v1306
    %v1308 = vpop.f32.mrf.mxu0
    %1309 = vmatprep.mubr.bf16.mxu0 0
    %1310 = vmatmul.mubr.bf16.gmra.mxu0 %v911
    %v1311 = vpop.f32.mrf.mxu0
    %v1312 = vadd.f32 %v963, %v1311
    %v1313 = vpop.f32.mrf.mxu0
    %v1314 = vpop.f32.mrf.mxu0
    %v1315 = vadd.f32 %v963, %v1314
    %v1316 = vpop.f32.mrf.mxu0
    %1317 = vmatprep.mubr.bf16.mxu0 0
    %1318 = vmatmul.mubr.bf16.gmra.mxu0 %v912
    %v1319 = vpop.f32.mrf.mxu0
    %v1320 = vadd.f32 %v963, %v1319
    %v1321 = vpop.f32.mrf.mxu0
    %v1322 = vpop.f32.mrf.mxu0
    %v1323 = vadd.f32 %v963, %v1322
    %v1324 = vpop.f32.mrf.mxu0
    %1325 = vmatprep.mubr.bf16.mxu0 0
    %1326 = vmatmul.mubr.bf16.gmra.mxu0 %v913
    %v1327 = vpop.f32.mrf.mxu0
    %v1328 = vadd.f32 %v963, %v1327
    %v1329 = vpop.f32.mrf.mxu0
    %v1330 = vpop.f32.mrf.mxu0
    %v1331 = vadd.f32 %v963, %v1330
    %v1332 = vpop.f32.mrf.mxu0
    %1333 = vmatprep.mubr.bf16.mxu0 0
    %1334 = vmatmul.mubr.bf16.gmra.mxu0 %v914
    %v1335 = vpop.f32.mrf.mxu0
    %v1336 = vadd.f32 %v963, %v1335
    %v1337 = vpop.f32.mrf.mxu0
    %v1338 = vpop.f32.mrf.mxu0
    %v1339 = vadd.f32 %v963, %v1338
    %v1340 = vpop.f32.mrf.mxu0
    %1341 = vmatprep.mubr.bf16.mxu0 0
    %1342 = vmatmul.mubr.bf16.gmra.mxu0 %v915
    %v1343 = vpop.f32.mrf.mxu0
    %v1344 = vadd.f32 %v963, %v1343
    %v1345 = vpop.f32.mrf.mxu0
    %v1346 = vpop.f32.mrf.mxu0
    %v1347 = vadd.f32 %v963, %v1346
    %v1348 = vpop.f32.mrf.mxu0
    %1349 = vmatprep.mubr.bf16.mxu0 0
    %1350 = vmatmul.mubr.bf16.gmra.mxu0 %v916
    %v1351 = vpop.f32.mrf.mxu0
    %v1352 = vadd.f32 %v963, %v1351
    %v1353 = vpop.f32.mrf.mxu0
    %v1354 = vpop.f32.mrf.mxu0
    %v1355 = vadd.f32 %v963, %v1354
    %v1356 = vpop.f32.mrf.mxu0
    %1357 = vmatprep.mubr.bf16.mxu0 0
    %1358 = vmatmul.mubr.bf16.gmra.mxu0 %v917
    %v1359 = vpop.f32.mrf.mxu0
    %v1360 = vadd.f32 %v963, %v1359
    %v1361 = vpop.f32.mrf.mxu0
    %v1362 = vpop.f32.mrf.mxu0
    %v1363 = vadd.f32 %v963, %v1362
    %v1364 = vpop.f32.mrf.mxu0
    %1365 = vmatprep.mubr.bf16.mxu0 0
    %1366 = vmatmul.mubr.bf16.gmra.mxu0 %v918
    %v1367 = vpop.f32.mrf.mxu0
    %v1368 = vadd.f32 %v963, %v1367
    %v1369 = vpop.f32.mrf.mxu0
    %v1370 = vpop.f32.mrf.mxu0
    %v1371 = vadd.f32 %v963, %v1370
    %v1372 = vpop.f32.mrf.mxu0
    %1373 = vmatprep.mubr.bf16.mxu0 0
    %1374 = vmatmul.mubr.bf16.gmra.mxu0 %v919
    %v1375 = vpop.f32.mrf.mxu0
    %v1376 = vadd.f32 %v963, %v1375
    %v1377 = vpop.f32.mrf.mxu0
    %v1378 = vpop.f32.mrf.mxu0
    %v1379 = vadd.f32 %v963, %v1378
    %v1380 = vpop.f32.mrf.mxu0
    %1381 = vmatprep.mubr.bf16.mxu0 0
    %1382 = vmatmul.mubr.bf16.gmra.mxu0 %v920
    %v1383 = vpop.f32.mrf.mxu0
    %v1384 = vadd.f32 %v963, %v1383
    %v1385 = vpop.f32.mrf.mxu0
    %v1386 = vpop.f32.mrf.mxu0
    %v1387 = vadd.f32 %v963, %v1386
    %v1388 = vpop.f32.mrf.mxu0
    %1389 = vmatprep.mubr.bf16.mxu0 0
    %1390 = vmatmul.mubr.bf16.gmra.mxu0 %v921
    %v1391 = vpop.f32.mrf.mxu0
    %v1392 = vadd.f32 %v963, %v1391
    %v1393 = vpop.f32.mrf.mxu0
    %v1394 = vpop.f32.mrf.mxu0
    %v1395 = vadd.f32 %v963, %v1394
    %v1396 = vpop.f32.mrf.mxu0
    %1397 = vmatprep.mubr.bf16.mxu0 0
    %1398 = vmatmul.mubr.bf16.gmra.mxu0 %v922
    %v1399 = vpop.f32.mrf.mxu0
    %v1400 = vadd.f32 %v963, %v1399
    %v1401 = vpop.f32.mrf.mxu0
    %v1402 = vpop.f32.mrf.mxu0
    %v1403 = vadd.f32 %v963, %v1402
    %v1404 = vpop.f32.mrf.mxu0
    %1405 = vmatprep.mubr.bf16.mxu0 0
    %1406 = vmatmul.mubr.bf16.gmra.mxu0 %v923
    %v1407 = vpop.f32.mrf.mxu0
    %v1408 = vadd.f32 %v963, %v1407
    %v1409 = vpop.f32.mrf.mxu0
    %v1410 = vpop.f32.mrf.mxu0
    %v1411 = vadd.f32 %v963, %v1410
    %v1412 = vpop.f32.mrf.mxu0
    %1413 = vmatprep.mubr.bf16.mxu0 0
    %1414 = vmatmul.mubr.bf16.gmra.mxu0 %v924
    %v1415 = vpop.f32.mrf.mxu0
    %v1416 = vadd.f32 %v963, %v1415
    %v1417 = vpop.f32.mrf.mxu0
    %v1418 = vpop.f32.mrf.mxu0
    %v1419 = vadd.f32 %v963, %v1418
    %v1420 = vpop.f32.mrf.mxu0
    %1421 = vmatprep.mubr.bf16.mxu0 0
    %1422 = vmatmul.mubr.bf16.gmra.mxu0 %v925
    %v1423 = vpop.f32.mrf.mxu0
    %v1424 = vadd.f32 %v963, %v1423
    %v1425 = vpop.f32.mrf.mxu0
    %v1426 = vpop.f32.mrf.mxu0
    %v1427 = vadd.f32 %v963, %v1426
    %v1428 = vpop.f32.mrf.mxu0
    %1429 = vmatprep.mubr.bf16.mxu0 0
    %1430 = vmatmul.mubr.bf16.gmra.mxu0 %v926
    %v1431 = vpop.f32.mrf.mxu0
    %v1432 = vadd.f32 %v963, %v1431
    %v1433 = vpop.f32.mrf.mxu0
    %v1434 = vpop.f32.mrf.mxu0
    %v1435 = vadd.f32 %v963, %v1434
    %v1436 = vpop.f32.mrf.mxu0
    %1437 = vmatprep.mubr.bf16.mxu0 0
    %1438 = vmatmul.mubr.bf16.gmra.mxu0 %v927
    %v1439 = vpop.f32.mrf.mxu0
    %v1440 = vadd.f32 %v963, %v1439
    %v1441 = vpop.f32.mrf.mxu0
    %v1442 = vpop.f32.mrf.mxu0
    %v1443 = vadd.f32 %v963, %v1442
    %v1444 = vpop.f32.mrf.mxu0
    %1445 = vmatprep.mubr.bf16.mxu0 0
    %1446 = vmatmul.mubr.bf16.gmra.mxu0 %v928
    %v1447 = vpop.f32.mrf.mxu0
    %v1448 = vadd.f32 %v963, %v1447
    %v1449 = vpop.f32.mrf.mxu0
    %v1450 = vpop.f32.mrf.mxu0
    %v1451 = vadd.f32 %v963, %v1450
    %v1452 = vpop.f32.mrf.mxu0
    %1453 = vmatprep.mubr.bf16.mxu0 0
    %1454 = vmatmul.mubr.bf16.gmra.mxu0 %v929
    %v1455 = vpop.f32.mrf.mxu0
    %v1456 = vadd.f32 %v963, %v1455
    %v1457 = vpop.f32.mrf.mxu0
    %v1458 = vpop.f32.mrf.mxu0
    %v1459 = vadd.f32 %v963, %v1458
    %v1460 = vpop.f32.mrf.mxu0
    %1461 = vmatprep.mubr.bf16.mxu0 0
    %1462 = vmatmul.mubr.bf16.gmra.mxu0 %v930
    %v1463 = vpop.f32.mrf.mxu0
    %v1464 = vadd.f32 %v963, %v1463
    %v1465 = vpop.f32.mrf.mxu0
    %v1466 = vpop.f32.mrf.mxu0
    %v1467 = vadd.f32 %v963, %v1466
    %v1468 = vpop.f32.mrf.mxu0
    %1469 = vmatprep.mubr.bf16.mxu0 0
    %1470 = vmatmul.mubr.bf16.gmra.mxu0 %v931
    %v1471 = vpop.f32.mrf.mxu0
    %v1472 = vadd.f32 %v963, %v1471
    %v1473 = vpop.f32.mrf.mxu0
    %v1474 = vpop.f32.mrf.mxu0
    %v1475 = vadd.f32 %v963, %v1474
    %v1476 = vpop.f32.mrf.mxu0
    %1477 = vmatprep.mubr.bf16.mxu0 0
    %1478 = vmatmul.mubr.bf16.gmra.mxu0 %v932
    %v1479 = vpop.f32.mrf.mxu0
    %v1480 = vadd.f32 %v963, %v1479
    %v1481 = vpop.f32.mrf.mxu0
    %v1482 = vpop.f32.mrf.mxu0
    %v1483 = vadd.f32 %v963, %v1482
    %v1484 = vpop.f32.mrf.mxu0
    %1485 = vmatprep.mubr.bf16.mxu0 0
    %1486 = vmatmul.mubr.bf16.gmra.mxu0 %v933
    %v1487 = vpop.f32.mrf.mxu0
    %v1488 = vadd.f32 %v963, %v1487
    %v1489 = vpop.f32.mrf.mxu0
    %v1490 = vpop.f32.mrf.mxu0
    %v1491 = vadd.f32 %v963, %v1490
    %v1492 = vpop.f32.mrf.mxu0
    %1493 = vmatprep.mubr.bf16.mxu0 0
    %1494 = vmatmul.mubr.bf16.gmra.mxu0 %v934
    %v1495 = vpop.f32.mrf.mxu0
    %v1496 = vadd.f32 %v963, %v1495
    %v1497 = vpop.f32.mrf.mxu0
    %v1498 = vpop.f32.mrf.mxu0
    %v1499 = vadd.f32 %v963, %v1498
    %v1500 = vpop.f32.mrf.mxu0
    %1501 = vmatprep.mubr.bf16.mxu0 0
    %1502 = vmatmul.mubr.bf16.gmra.mxu0 %v935
    %v1503 = vpop.f32.mrf.mxu0
    %v1504 = vadd.f32 %v963, %v1503
    %v1505 = vpop.f32.mrf.mxu0
    %v1506 = vpop.f32.mrf.mxu0
    %v1507 = vadd.f32 %v963, %v1506
    %v1508 = vpop.f32.mrf.mxu0
    %1509 = vmatprep.mubr.bf16.mxu0 0
    %1510 = vmatmul.mubr.bf16.gmra.mxu0 %v936
    %v1511 = vpop.f32.mrf.mxu0
    %v1512 = vadd.f32 %v963, %v1511
    %v1513 = vpop.f32.mrf.mxu0
    %v1514 = vpop.f32.mrf.mxu0
    %v1515 = vadd.f32 %v963, %v1514
    %v1516 = vpop.f32.mrf.mxu0
    %1517 = vmatprep.mubr.bf16.mxu0 0
    %1518 = vmatmul.mubr.bf16.gmra.mxu0 %v937
    %v1519 = vpop.f32.mrf.mxu0
    %v1520 = vadd.f32 %v963, %v1519
    %v1521 = vpop.f32.mrf.mxu0
    %v1522 = vpop.f32.mrf.mxu0
    %v1523 = vadd.f32 %v963, %v1522
    %v1524 = vpop.f32.mrf.mxu0
    %1525 = vmatprep.mubr.bf16.mxu0 0
    %1526 = vmatmul.mubr.bf16.gmra.mxu0 %v938
    %v1527 = vpop.f32.mrf.mxu0
    %v1528 = vadd.f32 %v963, %v1527
    %v1529 = vpop.f32.mrf.mxu0
    %v1530 = vpop.f32.mrf.mxu0
    %v1531 = vadd.f32 %v963, %v1530
    %v1532 = vpop.f32.mrf.mxu0
    %1533 = vmatprep.mubr.bf16.mxu0 0
    %1534 = vmatmul.mubr.bf16.gmra.mxu0 %v939
    %v1535 = vpop.f32.mrf.mxu0
    %v1536 = vadd.f32 %v963, %v1535
    %v1537 = vpop.f32.mrf.mxu0
    %v1538 = vpop.f32.mrf.mxu0
    %v1539 = vadd.f32 %v963, %v1538
    %v1540 = vpop.f32.mrf.mxu0
    %1541 = vmatprep.mubr.bf16.mxu0 0
    %1542 = vmatmul.mubr.bf16.gmra.mxu0 %v940
    %v1543 = vpop.f32.mrf.mxu0
    %v1544 = vadd.f32 %v963, %v1543
    %v1545 = vpop.f32.mrf.mxu0
    %v1546 = vpop.f32.mrf.mxu0
    %v1547 = vadd.f32 %v963, %v1546
    %v1548 = vpop.f32.mrf.mxu0
    %1549 = vmatprep.mubr.bf16.mxu0 0
    %1550 = vmatmul.mubr.bf16.gmra.mxu0 %v941
    %v1551 = vpop.f32.mrf.mxu0
    %v1552 = vadd.f32 %v963, %v1551
    %v1553 = vpop.f32.mrf.mxu0
    %v1554 = vpop.f32.mrf.mxu0
    %v1555 = vadd.f32 %v963, %v1554
    %v1556 = vpop.f32.mrf.mxu0
    %1557 = vdwg.mxu0
    %v1558 = vmax.f32 %v1048, 0.0
    %v1559 = vmax.f32 %v1051, 0.0
    %v1560 = vmax.f32 %v1056, 0.0
    %v1561 = vmax.f32 %v1059, 0.0
    %v1562 = vmax.f32 %v1064, 0.0
    %v1563 = vmax.f32 %v1067, 0.0
    %v1564 = vmax.f32 %v1072, 0.0
    %v1565 = vmax.f32 %v1075, 0.0
    %v1566 = vmax.f32 %v1080, 0.0
    %v1567 = vmax.f32 %v1083, 0.0
    %v1568 = vmax.f32 %v1088, 0.0
    %v1569 = vmax.f32 %v1091, 0.0
    %v1570 = vmax.f32 %v1096, 0.0
    %v1571 = vmax.f32 %v1099, 0.0
    %v1572 = vmax.f32 %v1104, 0.0
    %v1573 = vmax.f32 %v1107, 0.0
    %v1574 = vmax.f32 %v1112, 0.0
    %v1575 = vmax.f32 %v1115, 0.0
    %v1576 = vmax.f32 %v1120, 0.0
    %v1577 = vmax.f32 %v1123, 0.0
    %v1578 = vmax.f32 %v1128, 0.0
    %v1579 = vmax.f32 %v1131, 0.0
    %v1580 = vmax.f32 %v1136, 0.0
    %v1581 = vmax.f32 %v1139, 0.0
    %v1582 = vmax.f32 %v1144, 0.0
    %v1583 = vmax.f32 %v1147, 0.0
    %v1584 = vmax.f32 %v1152, 0.0
    %v1585 = vmax.f32 %v1155, 0.0
    %v1586 = vmax.f32 %v1160, 0.0
    %v1587 = vmax.f32 %v1163, 0.0
    %v1588 = vmax.f32 %v1168, 0.0
    %v1589 = vmax.f32 %v1171, 0.0
    %v1590 = vmax.f32 %v1176, 0.0
    %v1591 = vmax.f32 %v1179, 0.0
    %v1592 = vmax.f32 %v1184, 0.0
    %v1593 = vmax.f32 %v1187, 0.0
    %v1594 = vmax.f32 %v1192, 0.0
    %v1595 = vmax.f32 %v1195, 0.0
    %v1596 = vmax.f32 %v1200, 0.0
    %v1597 = vmax.f32 %v1203, 0.0
    %v1598 = vmax.f32 %v1208, 0.0
    %v1599 = vmax.f32 %v1211, 0.0
    %v1600 = vmax.f32 %v1216, 0.0
    %v1601 = vmax.f32 %v1219, 0.0
    %v1602 = vmax.f32 %v1224, 0.0
    %v1603 = vmax.f32 %v1227, 0.0
    %v1604 = vmax.f32 %v1232, 0.0
    %v1605 = vmax.f32 %v1235, 0.0
    %v1606 = vmax.f32 %v1240, 0.0
    %v1607 = vmax.f32 %v1243, 0.0
    %v1608 = vmax.f32 %v1248, 0.0
    %v1609 = vmax.f32 %v1251, 0.0
    %v1610 = vmax.f32 %v1256, 0.0
    %v1611 = vmax.f32 %v1259, 0.0
    %v1612 = vmax.f32 %v1264, 0.0
    %v1613 = vmax.f32 %v1267, 0.0
    %v1614 = vmax.f32 %v1272, 0.0
    %v1615 = vmax.f32 %v1275, 0.0
    %v1616 = vmax.f32 %v1280, 0.0
    %v1617 = vmax.f32 %v1283, 0.0
    %v1618 = vmax.f32 %v1288, 0.0
    %v1619 = vmax.f32 %v1291, 0.0
    %v1620 = vmax.f32 %v1296, 0.0
    %v1621 = vmax.f32 %v1299, 0.0
    %v1622 = vmax.f32 %v1304, 0.0
    %v1623 = vmax.f32 %v1307, 0.0
    %v1624 = vmax.f32 %v1312, 0.0
    %v1625 = vmax.f32 %v1315, 0.0
    %v1626 = vmax.f32 %v1320, 0.0
    %v1627 = vmax.f32 %v1323, 0.0
    %v1628 = vmax.f32 %v1328, 0.0
    %v1629 = vmax.f32 %v1331, 0.0
    %v1630 = vmax.f32 %v1336, 0.0
    %v1631 = vmax.f32 %v1339, 0.0
    %v1632 = vmax.f32 %v1344, 0.0
    %v1633 = vmax.f32 %v1347, 0.0
    %v1634 = vmax.f32 %v1352, 0.0
    %v1635 = vmax.f32 %v1355, 0.0
    %v1636 = vmax.f32 %v1360, 0.0
    %v1637 = vmax.f32 %v1363, 0.0
    %v1638 = vmax.f32 %v1368, 0.0
    %v1639 = vmax.f32 %v1371, 0.0
    %v1640 = vmax.f32 %v1376, 0.0
    %v1641 = vmax.f32 %v1379, 0.0
    %v1642 = vmax.f32 %v1384, 0.0
    %v1643 = vmax.f32 %v1387, 0.0
    %v1644 = vmax.f32 %v1392, 0.0
    %v1645 = vmax.f32 %v1395, 0.0
    %v1646 = vmax.f32 %v1400, 0.0
    %v1647 = vmax.f32 %v1403, 0.0
    %v1648 = vmax.f32 %v1408, 0.0
    %v1649 = vmax.f32 %v1411, 0.0
    %v1650 = vmax.f32 %v1416, 0.0
    %v1651 = vmax.f32 %v1419, 0.0
    %v1652 = vmax.f32 %v1424, 0.0
    %v1653 = vmax.f32 %v1427, 0.0
    %v1654 = vmax.f32 %v1432, 0.0
    %v1655 = vmax.f32 %v1435, 0.0
    %v1656 = vmax.f32 %v1440, 0.0
    %v1657 = vmax.f32 %v1443, 0.0
    %v1658 = vmax.f32 %v1448, 0.0
    %v1659 = vmax.f32 %v1451, 0.0
    %v1660 = vmax.f32 %v1456, 0.0
    %v1661 = vmax.f32 %v1459, 0.0
    %v1662 = vmax.f32 %v1464, 0.0
    %v1663 = vmax.f32 %v1467, 0.0
    %v1664 = vmax.f32 %v1472, 0.0
    %v1665 = vmax.f32 %v1475, 0.0
    %v1666 = vmax.f32 %v1480, 0.0
    %v1667 = vmax.f32 %v1483, 0.0
    %v1668 = vmax.f32 %v1488, 0.0
    %v1669 = vmax.f32 %v1491, 0.0
    %v1670 = vmax.f32 %v1496, 0.0
    %v1671 = vmax.f32 %v1499, 0.0
    %v1672 = vmax.f32 %v1504, 0.0
    %v1673 = vmax.f32 %v1507, 0.0
    %v1674 = vmax.f32 %v1512, 0.0
    %v1675 = vmax.f32 %v1515, 0.0
    %v1676 = vmax.f32 %v1520, 0.0
    %v1677 = vmax.f32 %v1523, 0.0
    %v1678 = vmax.f32 %v1528, 0.0
    %v1679 = vmax.f32 %v1531, 0.0
    %v1680 = vmax.f32 %v1536, 0.0
    %v1681 = vmax.f32 %v1539, 0.0
    %v1682 = vmax.f32 %v1544, 0.0
    %v1683 = vmax.f32 %v1547, 0.0
    %v1684 = vmax.f32 %v1552, 0.0
    %v1685 = vmax.f32 %v1555, 0.0
    %v1686 = vpack.c.bf16 %v1559, %v1558
    %v1687 = vpack.c.bf16 %v1561, %v1560
    %v1688 = vpack.c.bf16 %v1563, %v1562
    %v1689 = vpack.c.bf16 %v1565, %v1564
    %v1690 = vpack.c.bf16 %v1567, %v1566
    %v1691 = vpack.c.bf16 %v1569, %v1568
    %v1692 = vpack.c.bf16 %v1571, %v1570
    %v1693 = vpack.c.bf16 %v1573, %v1572
    %v1694 = vpack.c.bf16 %v1575, %v1574
    %v1695 = vpack.c.bf16 %v1577, %v1576
    %v1696 = vpack.c.bf16 %v1579, %v1578
    %v1697 = vpack.c.bf16 %v1581, %v1580
    %v1698 = vpack.c.bf16 %v1583, %v1582
    %v1699 = vpack.c.bf16 %v1585, %v1584
    %v1700 = vpack.c.bf16 %v1587, %v1586
    %v1701 = vpack.c.bf16 %v1589, %v1588
    %v1702 = vpack.c.bf16 %v1591, %v1590
    %v1703 = vpack.c.bf16 %v1593, %v1592
    %v1704 = vpack.c.bf16 %v1595, %v1594
    %v1705 = vpack.c.bf16 %v1597, %v1596
    %v1706 = vpack.c.bf16 %v1599, %v1598
    %v1707 = vpack.c.bf16 %v1601, %v1600
    %v1708 = vpack.c.bf16 %v1603, %v1602
    %v1709 = vpack.c.bf16 %v1605, %v1604
    %v1710 = vpack.c.bf16 %v1607, %v1606
    %v1711 = vpack.c.bf16 %v1609, %v1608
    %v1712 = vpack.c.bf16 %v1611, %v1610
    %v1713 = vpack.c.bf16 %v1613, %v1612
    %v1714 = vpack.c.bf16 %v1615, %v1614
    %v1715 = vpack.c.bf16 %v1617, %v1616
    %v1716 = vpack.c.bf16 %v1619, %v1618
    %v1717 = vpack.c.bf16 %v1621, %v1620
    %v1718 = vpack.c.bf16 %v1623, %v1622
    %v1719 = vpack.c.bf16 %v1625, %v1624
    %v1720 = vpack.c.bf16 %v1627, %v1626
    %v1721 = vpack.c.bf16 %v1629, %v1628
    %v1722 = vpack.c.bf16 %v1631, %v1630
    %v1723 = vpack.c.bf16 %v1633, %v1632
    %v1724 = vpack.c.bf16 %v1635, %v1634
    %v1725 = vpack.c.bf16 %v1637, %v1636
    %v1726 = vpack.c.bf16 %v1639, %v1638
    %v1727 = vpack.c.bf16 %v1641, %v1640
    %v1728 = vpack.c.bf16 %v1643, %v1642
    %v1729 = vpack.c.bf16 %v1645, %v1644
    %v1730 = vpack.c.bf16 %v1647, %v1646
    %v1731 = vpack.c.bf16 %v1649, %v1648
    %v1732 = vpack.c.bf16 %v1651, %v1650
    %v1733 = vpack.c.bf16 %v1653, %v1652
    %v1734 = vpack.c.bf16 %v1655, %v1654
    %v1735 = vpack.c.bf16 %v1657, %v1656
    %v1736 = vpack.c.bf16 %v1659, %v1658
    %v1737 = vpack.c.bf16 %v1661, %v1660
    %v1738 = vpack.c.bf16 %v1663, %v1662
    %v1739 = vpack.c.bf16 %v1665, %v1664
    %v1740 = vpack.c.bf16 %v1667, %v1666
    %v1741 = vpack.c.bf16 %v1669, %v1668
    %v1742 = vpack.c.bf16 %v1671, %v1670
    %v1743 = vpack.c.bf16 %v1673, %v1672
    %v1744 = vpack.c.bf16 %v1675, %v1674
    %v1745 = vpack.c.bf16 %v1677, %v1676
    %v1746 = vpack.c.bf16 %v1679, %v1678
    %v1747 = vpack.c.bf16 %v1681, %v1680
    %v1748 = vpack.c.bf16 %v1683, %v1682
    %v1749 = vpack.c.bf16 %v1685, %v1684
    %v1750 = vld [vmem:[#allocation3] sm:$0xf]
    %v1751 = vld [vmem:[#allocation3 + $0x4] sm:$0xf]
    %v1752 = vld [vmem:[#allocation3 + $0x8] sm:$0xf]
    %v1753 = vld [vmem:[#allocation3 + $0xc] sm:$0xf]
    %v1754 = vld [vmem:[#allocation3 + $0x10] sm:$0xf]
    %v1755 = vld [vmem:[#allocation3 + $0x14] sm:$0xf]
    %v1756 = vld [vmem:[#allocation3 + $0x18] sm:$0xf]
    %v1757 = vld [vmem:[#allocation3 + $0x1c] sm:$0xf]
    %v1758 = vld [vmem:[#allocation3 + $0x20] sm:$0xf]
    %v1759 = vld [vmem:[#allocation3 + $0x24] sm:$0xf]
    %v1760 = vld [vmem:[#allocation3 + $0x28] sm:$0xf]
    %v1761 = vld [vmem:[#allocation3 + $0x2c] sm:$0xf]
    %v1762 = vld [vmem:[#allocation3 + $0x30] sm:$0xf]
    %v1763 = vld [vmem:[#allocation3 + $0x34] sm:$0xf]
    %v1764 = vld [vmem:[#allocation3 + $0x38] sm:$0xf]
    %v1765 = vld [vmem:[#allocation3 + $0x3c] sm:$0xf]
    %v1766 = vld [vmem:[#allocation5] sm:$0x1]
    %v1768 = vlaneseq
    %v1769 = vshrl.u32 %v1768, 7
    %v1770 = vsub.s32 0, %v1769
    %v1771 = vrot.slane %v1766, %v1770
    %v1789 = vunpack.c.l.b16 %v1750
    %v1790 = vunpack.c.l.b16 %v1751
    %v1791 = vunpack.c.l.b16 %v1752
    %v1792 = vunpack.c.l.b16 %v1753
    %v1793 = vunpack.c.l.b16 %v1754
    %v1794 = vunpack.c.l.b16 %v1755
    %v1795 = vunpack.c.l.b16 %v1756
    %v1796 = vunpack.c.l.b16 %v1757
    %v1797 = vunpack.c.l.b16 %v1758
    %v1798 = vunpack.c.l.b16 %v1759
    %v1799 = vunpack.c.l.b16 %v1760
    %v1800 = vunpack.c.l.b16 %v1761
    %v1801 = vunpack.c.l.b16 %v1762
    %v1802 = vunpack.c.l.b16 %v1763
    %v1803 = vunpack.c.l.b16 %v1764
    %v1804 = vunpack.c.l.b16 %v1765
    %v1805 = vpack.c.b16 %v1790, %v1789
    %v1806 = vpack.c.b16 %v1792, %v1791
    %v1807 = vpack.c.b16 %v1794, %v1793
    %v1808 = vpack.c.b16 %v1796, %v1795
    %v1809 = vpack.c.b16 %v1798, %v1797
    %v1810 = vpack.c.b16 %v1800, %v1799
    %v1811 = vpack.c.b16 %v1802, %v1801
    %v1812 = vpack.c.b16 %v1804, %v1803
    %1821 = vmatprep.subr.bf16.mxu0 0
    %1822 = vmatpush1.bf16.msra.mxu0 %v1812
    %1823 = vmatprep.subr.bf16.mxu0 0
    %1824 = vmatpush1.bf16.msra.mxu0 %v1811
    %1825 = vmatprep.subr.bf16.mxu0 0
    %1826 = vmatpush1.bf16.msra.mxu0 %v1810
    %1827 = vmatprep.subr.bf16.mxu0 0
    %1828 = vmatpush1.bf16.msra.mxu0 %v1809
    %1829 = vmatprep.subr.bf16.mxu0 0
    %1830 = vmatpush1.bf16.msra.mxu0 %v1808
    %1831 = vmatprep.subr.bf16.mxu0 0
    %1832 = vmatpush1.bf16.msra.mxu0 %v1807
    %1833 = vmatprep.subr.bf16.mxu0 0
    %1834 = vmatpush1.bf16.msra.mxu0 %v1806
    %1835 = vmatprep.subr.bf16.mxu0 0
    %1836 = vmatpush1.bf16.msra.mxu0 %v1805
    %1837 = vmatprep.subr.bf16.mxu0 0
    %1838 = vmatpush2.bf16.msra.mxu0 0
    %1839 = vmatprep.subr.bf16.mxu0 0
    %1840 = vmatpush2.bf16.msra.mxu0 0
    %1841 = vmatprep.subr.bf16.mxu0 0
    %1842 = vmatpush2.bf16.msra.mxu0 0
    %1843 = vmatprep.subr.bf16.mxu0 0
    %1844 = vmatpush2.bf16.msra.mxu0 0
    %1845 = vmatprep.subr.bf16.mxu0 0
    %1846 = vmatpush2.bf16.msra.mxu0 0
    %1847 = vmatprep.subr.bf16.mxu0 0
    %1848 = vmatpush2.bf16.msra.mxu0 0
    %1849 = vmatprep.subr.bf16.mxu0 0
    %1850 = vmatpush2.bf16.msra.mxu0 0
    %1851 = vmatprep.subr.bf16.mxu0 0
    %1852 = vmatpush2.bf16.msra.mxu0 0
    %1853 = vmatprep.mubr.bf16.mxu0 0
    %1854 = vmatmul.mubr.bf16.gmra.mxu0 %v1686
    %v1855 = vpop.f32.mrf.mxu0
    %v1856 = vadd.f32 %v1771, %v1855
    %v1857 = vpop.f32.mrf.mxu0
    %v1858 = vpop.f32.mrf.mxu0
    %v1859 = vadd.f32 %v1771, %v1858
    %v1860 = vpop.f32.mrf.mxu0
    %1861 = vmatprep.mubr.bf16.mxu0 0
    %1862 = vmatmul.mubr.bf16.gmra.mxu0 %v1687
    %v1863 = vpop.f32.mrf.mxu0
    %v1864 = vadd.f32 %v1771, %v1863
    %v1865 = vpop.f32.mrf.mxu0
    %v1866 = vpop.f32.mrf.mxu0
    %v1867 = vadd.f32 %v1771, %v1866
    %v1868 = vpop.f32.mrf.mxu0
    %1869 = vmatprep.mubr.bf16.mxu0 0
    %1870 = vmatmul.mubr.bf16.gmra.mxu0 %v1688
    %v1871 = vpop.f32.mrf.mxu0
    %v1872 = vadd.f32 %v1771, %v1871
    %v1873 = vpop.f32.mrf.mxu0
    %v1874 = vpop.f32.mrf.mxu0
    %v1875 = vadd.f32 %v1771, %v1874
    %v1876 = vpop.f32.mrf.mxu0
    %1877 = vmatprep.mubr.bf16.mxu0 0
    %1878 = vmatmul.mubr.bf16.gmra.mxu0 %v1689
    %v1879 = vpop.f32.mrf.mxu0
    %v1880 = vadd.f32 %v1771, %v1879
    %v1881 = vpop.f32.mrf.mxu0
    %v1882 = vpop.f32.mrf.mxu0
    %v1883 = vadd.f32 %v1771, %v1882
    %v1884 = vpop.f32.mrf.mxu0
    %1885 = vmatprep.mubr.bf16.mxu0 0
    %1886 = vmatmul.mubr.bf16.gmra.mxu0 %v1690
    %v1887 = vpop.f32.mrf.mxu0
    %v1888 = vadd.f32 %v1771, %v1887
    %v1889 = vpop.f32.mrf.mxu0
    %v1890 = vpop.f32.mrf.mxu0
    %v1891 = vadd.f32 %v1771, %v1890
    %v1892 = vpop.f32.mrf.mxu0
    %1893 = vmatprep.mubr.bf16.mxu0 0
    %1894 = vmatmul.mubr.bf16.gmra.mxu0 %v1691
    %v1895 = vpop.f32.mrf.mxu0
    %v1896 = vadd.f32 %v1771, %v1895
    %v1897 = vpop.f32.mrf.mxu0
    %v1898 = vpop.f32.mrf.mxu0
    %v1899 = vadd.f32 %v1771, %v1898
    %v1900 = vpop.f32.mrf.mxu0
    %1901 = vmatprep.mubr.bf16.mxu0 0
    %1902 = vmatmul.mubr.bf16.gmra.mxu0 %v1692
    %v1903 = vpop.f32.mrf.mxu0
    %v1904 = vadd.f32 %v1771, %v1903
    %v1905 = vpop.f32.mrf.mxu0
    %v1906 = vpop.f32.mrf.mxu0
    %v1907 = vadd.f32 %v1771, %v1906
    %v1908 = vpop.f32.mrf.mxu0
    %1909 = vmatprep.mubr.bf16.mxu0 0
    %1910 = vmatmul.mubr.bf16.gmra.mxu0 %v1693
    %v1911 = vpop.f32.mrf.mxu0
    %v1912 = vadd.f32 %v1771, %v1911
    %v1913 = vpop.f32.mrf.mxu0
    %v1914 = vpop.f32.mrf.mxu0
    %v1915 = vadd.f32 %v1771, %v1914
    %v1916 = vpop.f32.mrf.mxu0
    %1917 = vmatprep.mubr.bf16.mxu0 0
    %1918 = vmatmul.mubr.bf16.gmra.mxu0 %v1694
    %v1919 = vpop.f32.mrf.mxu0
    %v1920 = vadd.f32 %v1771, %v1919
    %v1921 = vpop.f32.mrf.mxu0
    %v1922 = vpop.f32.mrf.mxu0
    %v1923 = vadd.f32 %v1771, %v1922
    %v1924 = vpop.f32.mrf.mxu0
    %1925 = vmatprep.mubr.bf16.mxu0 0
    %1926 = vmatmul.mubr.bf16.gmra.mxu0 %v1695
    %v1927 = vpop.f32.mrf.mxu0
    %v1928 = vadd.f32 %v1771, %v1927
    %v1929 = vpop.f32.mrf.mxu0
    %v1930 = vpop.f32.mrf.mxu0
    %v1931 = vadd.f32 %v1771, %v1930
    %v1932 = vpop.f32.mrf.mxu0
    %1933 = vmatprep.mubr.bf16.mxu0 0
    %1934 = vmatmul.mubr.bf16.gmra.mxu0 %v1696
    %v1935 = vpop.f32.mrf.mxu0
    %v1936 = vadd.f32 %v1771, %v1935
    %v1937 = vpop.f32.mrf.mxu0
    %v1938 = vpop.f32.mrf.mxu0
    %v1939 = vadd.f32 %v1771, %v1938
    %v1940 = vpop.f32.mrf.mxu0
    %1941 = vmatprep.mubr.bf16.mxu0 0
    %1942 = vmatmul.mubr.bf16.gmra.mxu0 %v1697
    %v1943 = vpop.f32.mrf.mxu0
    %v1944 = vadd.f32 %v1771, %v1943
    %v1945 = vpop.f32.mrf.mxu0
    %v1946 = vpop.f32.mrf.mxu0
    %v1947 = vadd.f32 %v1771, %v1946
    %v1948 = vpop.f32.mrf.mxu0
    %1949 = vmatprep.mubr.bf16.mxu0 0
    %1950 = vmatmul.mubr.bf16.gmra.mxu0 %v1698
    %v1951 = vpop.f32.mrf.mxu0
    %v1952 = vadd.f32 %v1771, %v1951
    %v1953 = vpop.f32.mrf.mxu0
    %v1954 = vpop.f32.mrf.mxu0
    %v1955 = vadd.f32 %v1771, %v1954
    %v1956 = vpop.f32.mrf.mxu0
    %1957 = vmatprep.mubr.bf16.mxu0 0
    %1958 = vmatmul.mubr.bf16.gmra.mxu0 %v1699
    %v1959 = vpop.f32.mrf.mxu0
    %v1960 = vadd.f32 %v1771, %v1959
    %v1961 = vpop.f32.mrf.mxu0
    %v1962 = vpop.f32.mrf.mxu0
    %v1963 = vadd.f32 %v1771, %v1962
    %v1964 = vpop.f32.mrf.mxu0
    %1965 = vmatprep.mubr.bf16.mxu0 0
    %1966 = vmatmul.mubr.bf16.gmra.mxu0 %v1700
    %v1967 = vpop.f32.mrf.mxu0
    %v1968 = vadd.f32 %v1771, %v1967
    %v1969 = vpop.f32.mrf.mxu0
    %v1970 = vpop.f32.mrf.mxu0
    %v1971 = vadd.f32 %v1771, %v1970
    %v1972 = vpop.f32.mrf.mxu0
    %1973 = vmatprep.mubr.bf16.mxu0 0
    %1974 = vmatmul.mubr.bf16.gmra.mxu0 %v1701
    %v1975 = vpop.f32.mrf.mxu0
    %v1976 = vadd.f32 %v1771, %v1975
    %v1977 = vpop.f32.mrf.mxu0
    %v1978 = vpop.f32.mrf.mxu0
    %v1979 = vadd.f32 %v1771, %v1978
    %v1980 = vpop.f32.mrf.mxu0
    %1981 = vmatprep.mubr.bf16.mxu0 0
    %1982 = vmatmul.mubr.bf16.gmra.mxu0 %v1702
    %v1983 = vpop.f32.mrf.mxu0
    %v1984 = vadd.f32 %v1771, %v1983
    %v1985 = vpop.f32.mrf.mxu0
    %v1986 = vpop.f32.mrf.mxu0
    %v1987 = vadd.f32 %v1771, %v1986
    %v1988 = vpop.f32.mrf.mxu0
    %1989 = vmatprep.mubr.bf16.mxu0 0
    %1990 = vmatmul.mubr.bf16.gmra.mxu0 %v1703
    %v1991 = vpop.f32.mrf.mxu0
    %v1992 = vadd.f32 %v1771, %v1991
    %v1993 = vpop.f32.mrf.mxu0
    %v1994 = vpop.f32.mrf.mxu0
    %v1995 = vadd.f32 %v1771, %v1994
    %v1996 = vpop.f32.mrf.mxu0
    %1997 = vmatprep.mubr.bf16.mxu0 0
    %1998 = vmatmul.mubr.bf16.gmra.mxu0 %v1704
    %v1999 = vpop.f32.mrf.mxu0
    %v2000 = vadd.f32 %v1771, %v1999
    %v2001 = vpop.f32.mrf.mxu0
    %v2002 = vpop.f32.mrf.mxu0
    %v2003 = vadd.f32 %v1771, %v2002
    %v2004 = vpop.f32.mrf.mxu0
    %2005 = vmatprep.mubr.bf16.mxu0 0
    %2006 = vmatmul.mubr.bf16.gmra.mxu0 %v1705
    %v2007 = vpop.f32.mrf.mxu0
    %v2008 = vadd.f32 %v1771, %v2007
    %v2009 = vpop.f32.mrf.mxu0
    %v2010 = vpop.f32.mrf.mxu0
    %v2011 = vadd.f32 %v1771, %v2010
    %v2012 = vpop.f32.mrf.mxu0
    %2013 = vmatprep.mubr.bf16.mxu0 0
    %2014 = vmatmul.mubr.bf16.gmra.mxu0 %v1706
    %v2015 = vpop.f32.mrf.mxu0
    %v2016 = vadd.f32 %v1771, %v2015
    %v2017 = vpop.f32.mrf.mxu0
    %v2018 = vpop.f32.mrf.mxu0
    %v2019 = vadd.f32 %v1771, %v2018
    %v2020 = vpop.f32.mrf.mxu0
    %2021 = vmatprep.mubr.bf16.mxu0 0
    %2022 = vmatmul.mubr.bf16.gmra.mxu0 %v1707
    %v2023 = vpop.f32.mrf.mxu0
    %v2024 = vadd.f32 %v1771, %v2023
    %v2025 = vpop.f32.mrf.mxu0
    %v2026 = vpop.f32.mrf.mxu0
    %v2027 = vadd.f32 %v1771, %v2026
    %v2028 = vpop.f32.mrf.mxu0
    %2029 = vmatprep.mubr.bf16.mxu0 0
    %2030 = vmatmul.mubr.bf16.gmra.mxu0 %v1708
    %v2031 = vpop.f32.mrf.mxu0
    %v2032 = vadd.f32 %v1771, %v2031
    %v2033 = vpop.f32.mrf.mxu0
    %v2034 = vpop.f32.mrf.mxu0
    %v2035 = vadd.f32 %v1771, %v2034
    %v2036 = vpop.f32.mrf.mxu0
    %2037 = vmatprep.mubr.bf16.mxu0 0
    %2038 = vmatmul.mubr.bf16.gmra.mxu0 %v1709
    %v2039 = vpop.f32.mrf.mxu0
    %v2040 = vadd.f32 %v1771, %v2039
    %v2041 = vpop.f32.mrf.mxu0
    %v2042 = vpop.f32.mrf.mxu0
    %v2043 = vadd.f32 %v1771, %v2042
    %v2044 = vpop.f32.mrf.mxu0
    %2045 = vmatprep.mubr.bf16.mxu0 0
    %2046 = vmatmul.mubr.bf16.gmra.mxu0 %v1710
    %v2047 = vpop.f32.mrf.mxu0
    %v2048 = vadd.f32 %v1771, %v2047
    %v2049 = vpop.f32.mrf.mxu0
    %v2050 = vpop.f32.mrf.mxu0
    %v2051 = vadd.f32 %v1771, %v2050
    %v2052 = vpop.f32.mrf.mxu0
    %2053 = vmatprep.mubr.bf16.mxu0 0
    %2054 = vmatmul.mubr.bf16.gmra.mxu0 %v1711
    %v2055 = vpop.f32.mrf.mxu0
    %v2056 = vadd.f32 %v1771, %v2055
    %v2057 = vpop.f32.mrf.mxu0
    %v2058 = vpop.f32.mrf.mxu0
    %v2059 = vadd.f32 %v1771, %v2058
    %v2060 = vpop.f32.mrf.mxu0
    %2061 = vmatprep.mubr.bf16.mxu0 0
    %2062 = vmatmul.mubr.bf16.gmra.mxu0 %v1712
    %v2063 = vpop.f32.mrf.mxu0
    %v2064 = vadd.f32 %v1771, %v2063
    %v2065 = vpop.f32.mrf.mxu0
    %v2066 = vpop.f32.mrf.mxu0
    %v2067 = vadd.f32 %v1771, %v2066
    %v2068 = vpop.f32.mrf.mxu0
    %2069 = vmatprep.mubr.bf16.mxu0 0
    %2070 = vmatmul.mubr.bf16.gmra.mxu0 %v1713
    %v2071 = vpop.f32.mrf.mxu0
    %v2072 = vadd.f32 %v1771, %v2071
    %v2073 = vpop.f32.mrf.mxu0
    %v2074 = vpop.f32.mrf.mxu0
    %v2075 = vadd.f32 %v1771, %v2074
    %v2076 = vpop.f32.mrf.mxu0
    %2077 = vmatprep.mubr.bf16.mxu0 0
    %2078 = vmatmul.mubr.bf16.gmra.mxu0 %v1714
    %v2079 = vpop.f32.mrf.mxu0
    %v2080 = vadd.f32 %v1771, %v2079
    %v2081 = vpop.f32.mrf.mxu0
    %v2082 = vpop.f32.mrf.mxu0
    %v2083 = vadd.f32 %v1771, %v2082
    %v2084 = vpop.f32.mrf.mxu0
    %2085 = vmatprep.mubr.bf16.mxu0 0
    %2086 = vmatmul.mubr.bf16.gmra.mxu0 %v1715
    %v2087 = vpop.f32.mrf.mxu0
    %v2088 = vadd.f32 %v1771, %v2087
    %v2089 = vpop.f32.mrf.mxu0
    %v2090 = vpop.f32.mrf.mxu0
    %v2091 = vadd.f32 %v1771, %v2090
    %v2092 = vpop.f32.mrf.mxu0
    %2093 = vmatprep.mubr.bf16.mxu0 0
    %2094 = vmatmul.mubr.bf16.gmra.mxu0 %v1716
    %v2095 = vpop.f32.mrf.mxu0
    %v2096 = vadd.f32 %v1771, %v2095
    %v2097 = vpop.f32.mrf.mxu0
    %v2098 = vpop.f32.mrf.mxu0
    %v2099 = vadd.f32 %v1771, %v2098
    %v2100 = vpop.f32.mrf.mxu0
    %2101 = vmatprep.mubr.bf16.mxu0 0
    %2102 = vmatmul.mubr.bf16.gmra.mxu0 %v1717
    %v2103 = vpop.f32.mrf.mxu0
    %v2104 = vadd.f32 %v1771, %v2103
    %v2105 = vpop.f32.mrf.mxu0
    %v2106 = vpop.f32.mrf.mxu0
    %v2107 = vadd.f32 %v1771, %v2106
    %v2108 = vpop.f32.mrf.mxu0
    %2109 = vmatprep.mubr.bf16.mxu0 0
    %2110 = vmatmul.mubr.bf16.gmra.mxu0 %v1718
    %v2111 = vpop.f32.mrf.mxu0
    %v2112 = vadd.f32 %v1771, %v2111
    %v2113 = vpop.f32.mrf.mxu0
    %v2114 = vpop.f32.mrf.mxu0
    %v2115 = vadd.f32 %v1771, %v2114
    %v2116 = vpop.f32.mrf.mxu0
    %2117 = vmatprep.mubr.bf16.mxu0 0
    %2118 = vmatmul.mubr.bf16.gmra.mxu0 %v1719
    %v2119 = vpop.f32.mrf.mxu0
    %v2120 = vadd.f32 %v1771, %v2119
    %v2121 = vpop.f32.mrf.mxu0
    %v2122 = vpop.f32.mrf.mxu0
    %v2123 = vadd.f32 %v1771, %v2122
    %v2124 = vpop.f32.mrf.mxu0
    %2125 = vmatprep.mubr.bf16.mxu0 0
    %2126 = vmatmul.mubr.bf16.gmra.mxu0 %v1720
    %v2127 = vpop.f32.mrf.mxu0
    %v2128 = vadd.f32 %v1771, %v2127
    %v2129 = vpop.f32.mrf.mxu0
    %v2130 = vpop.f32.mrf.mxu0
    %v2131 = vadd.f32 %v1771, %v2130
    %v2132 = vpop.f32.mrf.mxu0
    %2133 = vmatprep.mubr.bf16.mxu0 0
    %2134 = vmatmul.mubr.bf16.gmra.mxu0 %v1721
    %v2135 = vpop.f32.mrf.mxu0
    %v2136 = vadd.f32 %v1771, %v2135
    %v2137 = vpop.f32.mrf.mxu0
    %v2138 = vpop.f32.mrf.mxu0
    %v2139 = vadd.f32 %v1771, %v2138
    %v2140 = vpop.f32.mrf.mxu0
    %2141 = vmatprep.mubr.bf16.mxu0 0
    %2142 = vmatmul.mubr.bf16.gmra.mxu0 %v1722
    %v2143 = vpop.f32.mrf.mxu0
    %v2144 = vadd.f32 %v1771, %v2143
    %v2145 = vpop.f32.mrf.mxu0
    %v2146 = vpop.f32.mrf.mxu0
    %v2147 = vadd.f32 %v1771, %v2146
    %v2148 = vpop.f32.mrf.mxu0
    %2149 = vmatprep.mubr.bf16.mxu0 0
    %2150 = vmatmul.mubr.bf16.gmra.mxu0 %v1723
    %v2151 = vpop.f32.mrf.mxu0
    %v2152 = vadd.f32 %v1771, %v2151
    %v2153 = vpop.f32.mrf.mxu0
    %v2154 = vpop.f32.mrf.mxu0
    %v2155 = vadd.f32 %v1771, %v2154
    %v2156 = vpop.f32.mrf.mxu0
    %2157 = vmatprep.mubr.bf16.mxu0 0
    %2158 = vmatmul.mubr.bf16.gmra.mxu0 %v1724
    %v2159 = vpop.f32.mrf.mxu0
    %v2160 = vadd.f32 %v1771, %v2159
    %v2161 = vpop.f32.mrf.mxu0
    %v2162 = vpop.f32.mrf.mxu0
    %v2163 = vadd.f32 %v1771, %v2162
    %v2164 = vpop.f32.mrf.mxu0
    %2165 = vmatprep.mubr.bf16.mxu0 0
    %2166 = vmatmul.mubr.bf16.gmra.mxu0 %v1725
    %v2167 = vpop.f32.mrf.mxu0
    %v2168 = vadd.f32 %v1771, %v2167
    %v2169 = vpop.f32.mrf.mxu0
    %v2170 = vpop.f32.mrf.mxu0
    %v2171 = vadd.f32 %v1771, %v2170
    %v2172 = vpop.f32.mrf.mxu0
    %2173 = vmatprep.mubr.bf16.mxu0 0
    %2174 = vmatmul.mubr.bf16.gmra.mxu0 %v1726
    %v2175 = vpop.f32.mrf.mxu0
    %v2176 = vadd.f32 %v1771, %v2175
    %v2177 = vpop.f32.mrf.mxu0
    %v2178 = vpop.f32.mrf.mxu0
    %v2179 = vadd.f32 %v1771, %v2178
    %v2180 = vpop.f32.mrf.mxu0
    %2181 = vmatprep.mubr.bf16.mxu0 0
    %2182 = vmatmul.mubr.bf16.gmra.mxu0 %v1727
    %v2183 = vpop.f32.mrf.mxu0
    %v2184 = vadd.f32 %v1771, %v2183
    %v2185 = vpop.f32.mrf.mxu0
    %v2186 = vpop.f32.mrf.mxu0
    %v2187 = vadd.f32 %v1771, %v2186
    %v2188 = vpop.f32.mrf.mxu0
    %2189 = vmatprep.mubr.bf16.mxu0 0
    %2190 = vmatmul.mubr.bf16.gmra.mxu0 %v1728
    %v2191 = vpop.f32.mrf.mxu0
    %v2192 = vadd.f32 %v1771, %v2191
    %v2193 = vpop.f32.mrf.mxu0
    %v2194 = vpop.f32.mrf.mxu0
    %v2195 = vadd.f32 %v1771, %v2194
    %v2196 = vpop.f32.mrf.mxu0
    %2197 = vmatprep.mubr.bf16.mxu0 0
    %2198 = vmatmul.mubr.bf16.gmra.mxu0 %v1729
    %v2199 = vpop.f32.mrf.mxu0
    %v2200 = vadd.f32 %v1771, %v2199
    %v2201 = vpop.f32.mrf.mxu0
    %v2202 = vpop.f32.mrf.mxu0
    %v2203 = vadd.f32 %v1771, %v2202
    %v2204 = vpop.f32.mrf.mxu0
    %2205 = vmatprep.mubr.bf16.mxu0 0
    %2206 = vmatmul.mubr.bf16.gmra.mxu0 %v1730
    %v2207 = vpop.f32.mrf.mxu0
    %v2208 = vadd.f32 %v1771, %v2207
    %v2209 = vpop.f32.mrf.mxu0
    %v2210 = vpop.f32.mrf.mxu0
    %v2211 = vadd.f32 %v1771, %v2210
    %v2212 = vpop.f32.mrf.mxu0
    %2213 = vmatprep.mubr.bf16.mxu0 0
    %2214 = vmatmul.mubr.bf16.gmra.mxu0 %v1731
    %v2215 = vpop.f32.mrf.mxu0
    %v2216 = vadd.f32 %v1771, %v2215
    %v2217 = vpop.f32.mrf.mxu0
    %v2218 = vpop.f32.mrf.mxu0
    %v2219 = vadd.f32 %v1771, %v2218
    %v2220 = vpop.f32.mrf.mxu0
    %2221 = vmatprep.mubr.bf16.mxu0 0
    %2222 = vmatmul.mubr.bf16.gmra.mxu0 %v1732
    %v2223 = vpop.f32.mrf.mxu0
    %v2224 = vadd.f32 %v1771, %v2223
    %v2225 = vpop.f32.mrf.mxu0
    %v2226 = vpop.f32.mrf.mxu0
    %v2227 = vadd.f32 %v1771, %v2226
    %v2228 = vpop.f32.mrf.mxu0
    %2229 = vmatprep.mubr.bf16.mxu0 0
    %2230 = vmatmul.mubr.bf16.gmra.mxu0 %v1733
    %v2231 = vpop.f32.mrf.mxu0
    %v2232 = vadd.f32 %v1771, %v2231
    %v2233 = vpop.f32.mrf.mxu0
    %v2234 = vpop.f32.mrf.mxu0
    %v2235 = vadd.f32 %v1771, %v2234
    %v2236 = vpop.f32.mrf.mxu0
    %2237 = vmatprep.mubr.bf16.mxu0 0
    %2238 = vmatmul.mubr.bf16.gmra.mxu0 %v1734
    %v2239 = vpop.f32.mrf.mxu0
    %v2240 = vadd.f32 %v1771, %v2239
    %v2241 = vpop.f32.mrf.mxu0
    %v2242 = vpop.f32.mrf.mxu0
    %v2243 = vadd.f32 %v1771, %v2242
    %v2244 = vpop.f32.mrf.mxu0
    %2245 = vmatprep.mubr.bf16.mxu0 0
    %2246 = vmatmul.mubr.bf16.gmra.mxu0 %v1735
    %v2247 = vpop.f32.mrf.mxu0
    %v2248 = vadd.f32 %v1771, %v2247
    %v2249 = vpop.f32.mrf.mxu0
    %v2250 = vpop.f32.mrf.mxu0
    %v2251 = vadd.f32 %v1771, %v2250
    %v2252 = vpop.f32.mrf.mxu0
    %2253 = vmatprep.mubr.bf16.mxu0 0
    %2254 = vmatmul.mubr.bf16.gmra.mxu0 %v1736
    %v2255 = vpop.f32.mrf.mxu0
    %v2256 = vadd.f32 %v1771, %v2255
    %v2257 = vpop.f32.mrf.mxu0
    %v2258 = vpop.f32.mrf.mxu0
    %v2259 = vadd.f32 %v1771, %v2258
    %v2260 = vpop.f32.mrf.mxu0
    %2261 = vmatprep.mubr.bf16.mxu0 0
    %2262 = vmatmul.mubr.bf16.gmra.mxu0 %v1737
    %v2263 = vpop.f32.mrf.mxu0
    %v2264 = vadd.f32 %v1771, %v2263
    %v2265 = vpop.f32.mrf.mxu0
    %v2266 = vpop.f32.mrf.mxu0
    %v2267 = vadd.f32 %v1771, %v2266
    %v2268 = vpop.f32.mrf.mxu0
    %2269 = vmatprep.mubr.bf16.mxu0 0
    %2270 = vmatmul.mubr.bf16.gmra.mxu0 %v1738
    %v2271 = vpop.f32.mrf.mxu0
    %v2272 = vadd.f32 %v1771, %v2271
    %v2273 = vpop.f32.mrf.mxu0
    %v2274 = vpop.f32.mrf.mxu0
    %v2275 = vadd.f32 %v1771, %v2274
    %v2276 = vpop.f32.mrf.mxu0
    %2277 = vmatprep.mubr.bf16.mxu0 0
    %2278 = vmatmul.mubr.bf16.gmra.mxu0 %v1739
    %v2279 = vpop.f32.mrf.mxu0
    %v2280 = vadd.f32 %v1771, %v2279
    %v2281 = vpop.f32.mrf.mxu0
    %v2282 = vpop.f32.mrf.mxu0
    %v2283 = vadd.f32 %v1771, %v2282
    %v2284 = vpop.f32.mrf.mxu0
    %2285 = vmatprep.mubr.bf16.mxu0 0
    %2286 = vmatmul.mubr.bf16.gmra.mxu0 %v1740
    %v2287 = vpop.f32.mrf.mxu0
    %v2288 = vadd.f32 %v1771, %v2287
    %v2289 = vpop.f32.mrf.mxu0
    %v2290 = vpop.f32.mrf.mxu0
    %v2291 = vadd.f32 %v1771, %v2290
    %v2292 = vpop.f32.mrf.mxu0
    %2293 = vmatprep.mubr.bf16.mxu0 0
    %2294 = vmatmul.mubr.bf16.gmra.mxu0 %v1741
    %v2295 = vpop.f32.mrf.mxu0
    %v2296 = vadd.f32 %v1771, %v2295
    %v2297 = vpop.f32.mrf.mxu0
    %v2298 = vpop.f32.mrf.mxu0
    %v2299 = vadd.f32 %v1771, %v2298
    %v2300 = vpop.f32.mrf.mxu0
    %2301 = vmatprep.mubr.bf16.mxu0 0
    %2302 = vmatmul.mubr.bf16.gmra.mxu0 %v1742
    %v2303 = vpop.f32.mrf.mxu0
    %v2304 = vadd.f32 %v1771, %v2303
    %v2305 = vpop.f32.mrf.mxu0
    %v2306 = vpop.f32.mrf.mxu0
    %v2307 = vadd.f32 %v1771, %v2306
    %v2308 = vpop.f32.mrf.mxu0
    %2309 = vmatprep.mubr.bf16.mxu0 0
    %2310 = vmatmul.mubr.bf16.gmra.mxu0 %v1743
    %v2311 = vpop.f32.mrf.mxu0
    %v2312 = vadd.f32 %v1771, %v2311
    %v2313 = vpop.f32.mrf.mxu0
    %v2314 = vpop.f32.mrf.mxu0
    %v2315 = vadd.f32 %v1771, %v2314
    %v2316 = vpop.f32.mrf.mxu0
    %2317 = vmatprep.mubr.bf16.mxu0 0
    %2318 = vmatmul.mubr.bf16.gmra.mxu0 %v1744
    %v2319 = vpop.f32.mrf.mxu0
    %v2320 = vadd.f32 %v1771, %v2319
    %v2321 = vpop.f32.mrf.mxu0
    %v2322 = vpop.f32.mrf.mxu0
    %v2323 = vadd.f32 %v1771, %v2322
    %v2324 = vpop.f32.mrf.mxu0
    %2325 = vmatprep.mubr.bf16.mxu0 0
    %2326 = vmatmul.mubr.bf16.gmra.mxu0 %v1745
    %v2327 = vpop.f32.mrf.mxu0
    %v2328 = vadd.f32 %v1771, %v2327
    %v2329 = vpop.f32.mrf.mxu0
    %v2330 = vpop.f32.mrf.mxu0
    %v2331 = vadd.f32 %v1771, %v2330
    %v2332 = vpop.f32.mrf.mxu0
    %2333 = vmatprep.mubr.bf16.mxu0 0
    %2334 = vmatmul.mubr.bf16.gmra.mxu0 %v1746
    %v2335 = vpop.f32.mrf.mxu0
    %v2336 = vadd.f32 %v1771, %v2335
    %v2337 = vpop.f32.mrf.mxu0
    %v2338 = vpop.f32.mrf.mxu0
    %v2339 = vadd.f32 %v1771, %v2338
    %v2340 = vpop.f32.mrf.mxu0
    %2341 = vmatprep.mubr.bf16.mxu0 0
    %2342 = vmatmul.mubr.bf16.gmra.mxu0 %v1747
    %v2343 = vpop.f32.mrf.mxu0
    %v2344 = vadd.f32 %v1771, %v2343
    %v2345 = vpop.f32.mrf.mxu0
    %v2346 = vpop.f32.mrf.mxu0
    %v2347 = vadd.f32 %v1771, %v2346
    %v2348 = vpop.f32.mrf.mxu0
    %2349 = vmatprep.mubr.bf16.mxu0 0
    %2350 = vmatmul.mubr.bf16.gmra.mxu0 %v1748
    %v2351 = vpop.f32.mrf.mxu0
    %v2352 = vadd.f32 %v1771, %v2351
    %v2353 = vpop.f32.mrf.mxu0
    %v2354 = vpop.f32.mrf.mxu0
    %v2355 = vadd.f32 %v1771, %v2354
    %v2356 = vpop.f32.mrf.mxu0
    %2357 = vmatprep.mubr.bf16.mxu0 0
    %2358 = vmatmul.mubr.bf16.gmra.mxu0 %v1749
    %v2359 = vpop.f32.mrf.mxu0
    %v2360 = vadd.f32 %v1771, %v2359
    %v2361 = vpop.f32.mrf.mxu0
    %v2362 = vpop.f32.mrf.mxu0
    %v2363 = vadd.f32 %v1771, %v2362
    %v2364 = vpop.f32.mrf.mxu0
    %2365 = vdwg.mxu0
    %v2366 = vld [vmem:[%s1] sm:$0xf]
    %v2367 = vld [vmem:[%s1 + $0x4] sm:$0xf]
    %v2368 = vld [vmem:[%s1 + $0x8] sm:$0xf]
    %v2369 = vld [vmem:[%s1 + $0xc] sm:$0xf]
    %v2374 = vunpack.c.l.b16 %v2366
    %v2375 = vunpack.c.l.b16 %v2367
    %v2376 = vunpack.c.l.b16 %v2368
    %v2377 = vunpack.c.l.b16 %v2369
    %v2378 = vpack.c.b16 %v2375, %v2374
    %v2379 = vpack.c.b16 %v2377, %v2376
    %v2381 = vpack.i.b16 %v2378, %v2378
    %v2383 = vlaneseq
    %v2384 = vshrl.u32 %v2383, 7
    %v2385 = vsub.s32 0, %v2384
    %v2386 = vrot.slane %v2381, %v2385
    %2388 = vbcast.lane.c.b16.xlu0 %v2386, 256
    %v2389 = vpop.permute.xlu0 %2388
    %s2391 = sor.u32 256, 16
    %2392 = vbcast.lane.c.b16.xlu0 %v2386, %s2391
    %v2393 = vpop.permute.xlu0 %2392
    %v2394 = vshrl.u32 %v2378, 16
    %v2395 = vpack.i.b16 %v2394, %v2394
    %v2397 = vlaneseq
    %v2398 = vshrl.u32 %v2397, 7
    %v2399 = vsub.s32 0, %v2398
    %v2400 = vrot.slane %v2395, %v2399
    %2402 = vbcast.lane.c.b16.xlu0 %v2400, 256
    %v2403 = vpop.permute.xlu0 %2402
    %s2405 = sor.u32 256, 16
    %2406 = vbcast.lane.c.b16.xlu0 %v2400, %s2405
    %v2407 = vpop.permute.xlu0 %2406
    %v2408 = vlaneseq
    %v2409 = vshrl.u32 %v2408, 7
    %v2410 = vsub.s32 1, %v2409
    %v2411 = vrot.slane %v2381, %v2410
    %2413 = vbcast.lane.c.b16.xlu0 %v2411, 256
    %v2414 = vpop.permute.xlu0 %2413
    %s2416 = sor.u32 256, 16
    %2417 = vbcast.lane.c.b16.xlu0 %v2411, %s2416
    %v2418 = vpop.permute.xlu0 %2417
    %v2419 = vlaneseq
    %v2420 = vshrl.u32 %v2419, 7
    %v2421 = vsub.s32 1, %v2420
    %v2422 = vrot.slane %v2395, %v2421
    %2424 = vbcast.lane.c.b16.xlu0 %v2422, 256
    %v2425 = vpop.permute.xlu0 %2424
    %s2427 = sor.u32 256, 16
    %2428 = vbcast.lane.c.b16.xlu0 %v2422, %s2427
    %v2429 = vpop.permute.xlu0 %2428
    %v2430 = vlaneseq
    %v2431 = vshrl.u32 %v2430, 7
    %v2432 = vsub.s32 2, %v2431
    %v2433 = vrot.slane %v2381, %v2432
    %2435 = vbcast.lane.c.b16.xlu0 %v2433, 256
    %v2436 = vpop.permute.xlu0 %2435
    %s2438 = sor.u32 256, 16
    %2439 = vbcast.lane.c.b16.xlu0 %v2433, %s2438
    %v2440 = vpop.permute.xlu0 %2439
    %v2441 = vlaneseq
    %v2442 = vshrl.u32 %v2441, 7
    %v2443 = vsub.s32 2, %v2442
    %v2444 = vrot.slane %v2395, %v2443
    %2446 = vbcast.lane.c.b16.xlu0 %v2444, 256
    %v2447 = vpop.permute.xlu0 %2446
    %s2449 = sor.u32 256, 16
    %2450 = vbcast.lane.c.b16.xlu0 %v2444, %s2449
    %v2451 = vpop.permute.xlu0 %2450
    %v2452 = vlaneseq
    %v2453 = vshrl.u32 %v2452, 7
    %v2454 = vsub.s32 3, %v2453
    %v2455 = vrot.slane %v2381, %v2454
    %2457 = vbcast.lane.c.b16.xlu0 %v2455, 256
    %v2458 = vpop.permute.xlu0 %2457
    %s2460 = sor.u32 256, 16
    %2461 = vbcast.lane.c.b16.xlu0 %v2455, %s2460
    %v2462 = vpop.permute.xlu0 %2461
    %v2463 = vlaneseq
    %v2464 = vshrl.u32 %v2463, 7
    %v2465 = vsub.s32 3, %v2464
    %v2466 = vrot.slane %v2395, %v2465
    %2468 = vbcast.lane.c.b16.xlu0 %v2466, 256
    %v2469 = vpop.permute.xlu0 %2468
    %s2471 = sor.u32 256, 16
    %2472 = vbcast.lane.c.b16.xlu0 %v2466, %s2471
    %v2473 = vpop.permute.xlu0 %2472
    %v2474 = vlaneseq
    %v2475 = vshrl.u32 %v2474, 7
    %v2476 = vsub.s32 4, %v2475
    %v2477 = vrot.slane %v2381, %v2476
    %2479 = vbcast.lane.c.b16.xlu0 %v2477, 256
    %v2480 = vpop.permute.xlu0 %2479
    %s2482 = sor.u32 256, 16
    %2483 = vbcast.lane.c.b16.xlu0 %v2477, %s2482
    %v2484 = vpop.permute.xlu0 %2483
    %v2485 = vlaneseq
    %v2486 = vshrl.u32 %v2485, 7
    %v2487 = vsub.s32 4, %v2486
    %v2488 = vrot.slane %v2395, %v2487
    %2490 = vbcast.lane.c.b16.xlu0 %v2488, 256
    %v2491 = vpop.permute.xlu0 %2490
    %s2493 = sor.u32 256, 16
    %2494 = vbcast.lane.c.b16.xlu0 %v2488, %s2493
    %v2495 = vpop.permute.xlu0 %2494
    %v2496 = vlaneseq
    %v2497 = vshrl.u32 %v2496, 7
    %v2498 = vsub.s32 5, %v2497
    %v2499 = vrot.slane %v2381, %v2498
    %2501 = vbcast.lane.c.b16.xlu0 %v2499, 256
    %v2502 = vpop.permute.xlu0 %2501
    %s2504 = sor.u32 256, 16
    %2505 = vbcast.lane.c.b16.xlu0 %v2499, %s2504
    %v2506 = vpop.permute.xlu0 %2505
    %v2507 = vlaneseq
    %v2508 = vshrl.u32 %v2507, 7
    %v2509 = vsub.s32 5, %v2508
    %v2510 = vrot.slane %v2395, %v2509
    %2512 = vbcast.lane.c.b16.xlu0 %v2510, 256
    %v2513 = vpop.permute.xlu0 %2512
    %s2515 = sor.u32 256, 16
    %2516 = vbcast.lane.c.b16.xlu0 %v2510, %s2515
    %v2517 = vpop.permute.xlu0 %2516
    %v2518 = vlaneseq
    %v2519 = vshrl.u32 %v2518, 7
    %v2520 = vsub.s32 6, %v2519
    %v2521 = vrot.slane %v2381, %v2520
    %2523 = vbcast.lane.c.b16.xlu0 %v2521, 256
    %v2524 = vpop.permute.xlu0 %2523
    %s2526 = sor.u32 256, 16
    %2527 = vbcast.lane.c.b16.xlu0 %v2521, %s2526
    %v2528 = vpop.permute.xlu0 %2527
    %v2529 = vlaneseq
    %v2530 = vshrl.u32 %v2529, 7
    %v2531 = vsub.s32 6, %v2530
    %v2532 = vrot.slane %v2395, %v2531
    %2534 = vbcast.lane.c.b16.xlu0 %v2532, 256
    %v2535 = vpop.permute.xlu0 %2534
    %s2537 = sor.u32 256, 16
    %2538 = vbcast.lane.c.b16.xlu0 %v2532, %s2537
    %v2539 = vpop.permute.xlu0 %2538
    %v2540 = vlaneseq
    %v2541 = vshrl.u32 %v2540, 7
    %v2542 = vsub.s32 7, %v2541
    %v2543 = vrot.slane %v2381, %v2542
    %2545 = vbcast.lane.c.b16.xlu0 %v2543, 256
    %v2546 = vpop.permute.xlu0 %2545
    %s2548 = sor.u32 256, 16
    %2549 = vbcast.lane.c.b16.xlu0 %v2543, %s2548
    %v2550 = vpop.permute.xlu0 %2549
    %v2551 = vlaneseq
    %v2552 = vshrl.u32 %v2551, 7
    %v2553 = vsub.s32 7, %v2552
    %v2554 = vrot.slane %v2395, %v2553
    %2556 = vbcast.lane.c.b16.xlu0 %v2554, 256
    %v2557 = vpop.permute.xlu0 %2556
    %s2559 = sor.u32 256, 16
    %2560 = vbcast.lane.c.b16.xlu0 %v2554, %s2559
    %v2561 = vpop.permute.xlu0 %2560
    %v2563 = vpack.i.b16 %v2379, %v2379
    %v2565 = vlaneseq
    %v2566 = vshrl.u32 %v2565, 7
    %v2567 = vsub.s32 0, %v2566
    %v2568 = vrot.slane %v2563, %v2567
    %2570 = vbcast.lane.c.b16.xlu0 %v2568, 256
    %v2571 = vpop.permute.xlu0 %2570
    %s2573 = sor.u32 256, 16
    %2574 = vbcast.lane.c.b16.xlu0 %v2568, %s2573
    %v2575 = vpop.permute.xlu0 %2574
    %v2576 = vshrl.u32 %v2379, 16
    %v2577 = vpack.i.b16 %v2576, %v2576
    %v2579 = vlaneseq
    %v2580 = vshrl.u32 %v2579, 7
    %v2581 = vsub.s32 0, %v2580
    %v2582 = vrot.slane %v2577, %v2581
    %2584 = vbcast.lane.c.b16.xlu0 %v2582, 256
    %v2585 = vpop.permute.xlu0 %2584
    %s2587 = sor.u32 256, 16
    %2588 = vbcast.lane.c.b16.xlu0 %v2582, %s2587
    %v2589 = vpop.permute.xlu0 %2588
    %v2590 = vlaneseq
    %v2591 = vshrl.u32 %v2590, 7
    %v2592 = vsub.s32 1, %v2591
    %v2593 = vrot.slane %v2563, %v2592
    %2595 = vbcast.lane.c.b16.xlu0 %v2593, 256
    %v2596 = vpop.permute.xlu0 %2595
    %s2598 = sor.u32 256, 16
    %2599 = vbcast.lane.c.b16.xlu0 %v2593, %s2598
    %v2600 = vpop.permute.xlu0 %2599
    %v2601 = vlaneseq
    %v2602 = vshrl.u32 %v2601, 7
    %v2603 = vsub.s32 1, %v2602
    %v2604 = vrot.slane %v2577, %v2603
    %2606 = vbcast.lane.c.b16.xlu0 %v2604, 256
    %v2607 = vpop.permute.xlu0 %2606
    %s2609 = sor.u32 256, 16
    %2610 = vbcast.lane.c.b16.xlu0 %v2604, %s2609
    %v2611 = vpop.permute.xlu0 %2610
    %v2612 = vlaneseq
    %v2613 = vshrl.u32 %v2612, 7
    %v2614 = vsub.s32 2, %v2613
    %v2615 = vrot.slane %v2563, %v2614
    %2617 = vbcast.lane.c.b16.xlu0 %v2615, 256
    %v2618 = vpop.permute.xlu0 %2617
    %s2620 = sor.u32 256, 16
    %2621 = vbcast.lane.c.b16.xlu0 %v2615, %s2620
    %v2622 = vpop.permute.xlu0 %2621
    %v2623 = vlaneseq
    %v2624 = vshrl.u32 %v2623, 7
    %v2625 = vsub.s32 2, %v2624
    %v2626 = vrot.slane %v2577, %v2625
    %2628 = vbcast.lane.c.b16.xlu0 %v2626, 256
    %v2629 = vpop.permute.xlu0 %2628
    %s2631 = sor.u32 256, 16
    %2632 = vbcast.lane.c.b16.xlu0 %v2626, %s2631
    %v2633 = vpop.permute.xlu0 %2632
    %v2634 = vlaneseq
    %v2635 = vshrl.u32 %v2634, 7
    %v2636 = vsub.s32 3, %v2635
    %v2637 = vrot.slane %v2563, %v2636
    %2639 = vbcast.lane.c.b16.xlu0 %v2637, 256
    %v2640 = vpop.permute.xlu0 %2639
    %s2642 = sor.u32 256, 16
    %2643 = vbcast.lane.c.b16.xlu0 %v2637, %s2642
    %v2644 = vpop.permute.xlu0 %2643
    %v2645 = vlaneseq
    %v2646 = vshrl.u32 %v2645, 7
    %v2647 = vsub.s32 3, %v2646
    %v2648 = vrot.slane %v2577, %v2647
    %2650 = vbcast.lane.c.b16.xlu0 %v2648, 256
    %v2651 = vpop.permute.xlu0 %2650
    %s2653 = sor.u32 256, 16
    %2654 = vbcast.lane.c.b16.xlu0 %v2648, %s2653
    %v2655 = vpop.permute.xlu0 %2654
    %v2656 = vlaneseq
    %v2657 = vshrl.u32 %v2656, 7
    %v2658 = vsub.s32 4, %v2657
    %v2659 = vrot.slane %v2563, %v2658
    %2661 = vbcast.lane.c.b16.xlu0 %v2659, 256
    %v2662 = vpop.permute.xlu0 %2661
    %s2664 = sor.u32 256, 16
    %2665 = vbcast.lane.c.b16.xlu0 %v2659, %s2664
    %v2666 = vpop.permute.xlu0 %2665
    %v2667 = vlaneseq
    %v2668 = vshrl.u32 %v2667, 7
    %v2669 = vsub.s32 4, %v2668
    %v2670 = vrot.slane %v2577, %v2669
    %2672 = vbcast.lane.c.b16.xlu0 %v2670, 256
    %v2673 = vpop.permute.xlu0 %2672
    %s2675 = sor.u32 256, 16
    %2676 = vbcast.lane.c.b16.xlu0 %v2670, %s2675
    %v2677 = vpop.permute.xlu0 %2676
    %v2678 = vlaneseq
    %v2679 = vshrl.u32 %v2678, 7
    %v2680 = vsub.s32 5, %v2679
    %v2681 = vrot.slane %v2563, %v2680
    %2683 = vbcast.lane.c.b16.xlu0 %v2681, 256
    %v2684 = vpop.permute.xlu0 %2683
    %s2686 = sor.u32 256, 16
    %2687 = vbcast.lane.c.b16.xlu0 %v2681, %s2686
    %v2688 = vpop.permute.xlu0 %2687
    %v2689 = vlaneseq
    %v2690 = vshrl.u32 %v2689, 7
    %v2691 = vsub.s32 5, %v2690
    %v2692 = vrot.slane %v2577, %v2691
    %2694 = vbcast.lane.c.b16.xlu0 %v2692, 256
    %v2695 = vpop.permute.xlu0 %2694
    %s2697 = sor.u32 256, 16
    %2698 = vbcast.lane.c.b16.xlu0 %v2692, %s2697
    %v2699 = vpop.permute.xlu0 %2698
    %v2700 = vlaneseq
    %v2701 = vshrl.u32 %v2700, 7
    %v2702 = vsub.s32 6, %v2701
    %v2703 = vrot.slane %v2563, %v2702
    %2705 = vbcast.lane.c.b16.xlu0 %v2703, 256
    %v2706 = vpop.permute.xlu0 %2705
    %s2708 = sor.u32 256, 16
    %2709 = vbcast.lane.c.b16.xlu0 %v2703, %s2708
    %v2710 = vpop.permute.xlu0 %2709
    %v2711 = vlaneseq
    %v2712 = vshrl.u32 %v2711, 7
    %v2713 = vsub.s32 6, %v2712
    %v2714 = vrot.slane %v2577, %v2713
    %2716 = vbcast.lane.c.b16.xlu0 %v2714, 256
    %v2717 = vpop.permute.xlu0 %2716
    %s2719 = sor.u32 256, 16
    %2720 = vbcast.lane.c.b16.xlu0 %v2714, %s2719
    %v2721 = vpop.permute.xlu0 %2720
    %v2722 = vlaneseq
    %v2723 = vshrl.u32 %v2722, 7
    %v2724 = vsub.s32 7, %v2723
    %v2725 = vrot.slane %v2563, %v2724
    %2727 = vbcast.lane.c.b16.xlu0 %v2725, 256
    %v2728 = vpop.permute.xlu0 %2727
    %s2730 = sor.u32 256, 16
    %2731 = vbcast.lane.c.b16.xlu0 %v2725, %s2730
    %v2732 = vpop.permute.xlu0 %2731
    %v2733 = vlaneseq
    %v2734 = vshrl.u32 %v2733, 7
    %v2735 = vsub.s32 7, %v2734
    %v2736 = vrot.slane %v2577, %v2735
    %2738 = vbcast.lane.c.b16.xlu0 %v2736, 256
    %v2739 = vpop.permute.xlu0 %2738
    %s2741 = sor.u32 256, 16
    %2742 = vbcast.lane.c.b16.xlu0 %v2736, %s2741
    %v2743 = vpop.permute.xlu0 %2742
    %v2744 = vunpack.c.l.bf16 %v2389
    %v2745 = vunpack.c.h.bf16 %v2389
    %v2746 = vunpack.c.l.bf16 %v2393
    %v2747 = vunpack.c.h.bf16 %v2393
    %v2748 = vunpack.c.l.bf16 %v2403
    %v2749 = vunpack.c.h.bf16 %v2403
    %v2750 = vunpack.c.l.bf16 %v2407
    %v2751 = vunpack.c.h.bf16 %v2407
    %v2752 = vunpack.c.l.bf16 %v2414
    %v2753 = vunpack.c.h.bf16 %v2414
    %v2754 = vunpack.c.l.bf16 %v2418
    %v2755 = vunpack.c.h.bf16 %v2418
    %v2756 = vunpack.c.l.bf16 %v2425
    %v2757 = vunpack.c.h.bf16 %v2425
    %v2758 = vunpack.c.l.bf16 %v2429
    %v2759 = vunpack.c.h.bf16 %v2429
    %v2760 = vunpack.c.l.bf16 %v2436
    %v2761 = vunpack.c.h.bf16 %v2436
    %v2762 = vunpack.c.l.bf16 %v2440
    %v2763 = vunpack.c.h.bf16 %v2440
    %v2764 = vunpack.c.l.bf16 %v2447
    %v2765 = vunpack.c.h.bf16 %v2447
    %v2766 = vunpack.c.l.bf16 %v2451
    %v2767 = vunpack.c.h.bf16 %v2451
    %v2768 = vunpack.c.l.bf16 %v2458
    %v2769 = vunpack.c.h.bf16 %v2458
    %v2770 = vunpack.c.l.bf16 %v2462
    %v2771 = vunpack.c.h.bf16 %v2462
    %v2772 = vunpack.c.l.bf16 %v2469
    %v2773 = vunpack.c.h.bf16 %v2469
    %v2774 = vunpack.c.l.bf16 %v2473
    %v2775 = vunpack.c.h.bf16 %v2473
    %v2776 = vunpack.c.l.bf16 %v2480
    %v2777 = vunpack.c.h.bf16 %v2480
    %v2778 = vunpack.c.l.bf16 %v2484
    %v2779 = vunpack.c.h.bf16 %v2484
    %v2780 = vunpack.c.l.bf16 %v2491
    %v2781 = vunpack.c.h.bf16 %v2491
    %v2782 = vunpack.c.l.bf16 %v2495
    %v2783 = vunpack.c.h.bf16 %v2495
    %v2784 = vunpack.c.l.bf16 %v2502
    %v2785 = vunpack.c.h.bf16 %v2502
    %v2786 = vunpack.c.l.bf16 %v2506
    %v2787 = vunpack.c.h.bf16 %v2506
    %v2788 = vunpack.c.l.bf16 %v2513
    %v2789 = vunpack.c.h.bf16 %v2513
    %v2790 = vunpack.c.l.bf16 %v2517
    %v2791 = vunpack.c.h.bf16 %v2517
    %v2792 = vunpack.c.l.bf16 %v2524
    %v2793 = vunpack.c.h.bf16 %v2524
    %v2794 = vunpack.c.l.bf16 %v2528
    %v2795 = vunpack.c.h.bf16 %v2528
    %v2796 = vunpack.c.l.bf16 %v2535
    %v2797 = vunpack.c.h.bf16 %v2535
    %v2798 = vunpack.c.l.bf16 %v2539
    %v2799 = vunpack.c.h.bf16 %v2539
    %v2800 = vunpack.c.l.bf16 %v2546
    %v2801 = vunpack.c.h.bf16 %v2546
    %v2802 = vunpack.c.l.bf16 %v2550
    %v2803 = vunpack.c.h.bf16 %v2550
    %v2804 = vunpack.c.l.bf16 %v2557
    %v2805 = vunpack.c.h.bf16 %v2557
    %v2806 = vunpack.c.l.bf16 %v2561
    %v2807 = vunpack.c.h.bf16 %v2561
    %v2808 = vunpack.c.l.bf16 %v2571
    %v2809 = vunpack.c.h.bf16 %v2571
    %v2810 = vunpack.c.l.bf16 %v2575
    %v2811 = vunpack.c.h.bf16 %v2575
    %v2812 = vunpack.c.l.bf16 %v2585
    %v2813 = vunpack.c.h.bf16 %v2585
    %v2814 = vunpack.c.l.bf16 %v2589
    %v2815 = vunpack.c.h.bf16 %v2589
    %v2816 = vunpack.c.l.bf16 %v2596
    %v2817 = vunpack.c.h.bf16 %v2596
    %v2818 = vunpack.c.l.bf16 %v2600
    %v2819 = vunpack.c.h.bf16 %v2600
    %v2820 = vunpack.c.l.bf16 %v2607
    %v2821 = vunpack.c.h.bf16 %v2607
    %v2822 = vunpack.c.l.bf16 %v2611
    %v2823 = vunpack.c.h.bf16 %v2611
    %v2824 = vunpack.c.l.bf16 %v2618
    %v2825 = vunpack.c.h.bf16 %v2618
    %v2826 = vunpack.c.l.bf16 %v2622
    %v2827 = vunpack.c.h.bf16 %v2622
    %v2828 = vunpack.c.l.bf16 %v2629
    %v2829 = vunpack.c.h.bf16 %v2629
    %v2830 = vunpack.c.l.bf16 %v2633
    %v2831 = vunpack.c.h.bf16 %v2633
    %v2832 = vunpack.c.l.bf16 %v2640
    %v2833 = vunpack.c.h.bf16 %v2640
    %v2834 = vunpack.c.l.bf16 %v2644
    %v2835 = vunpack.c.h.bf16 %v2644
    %v2836 = vunpack.c.l.bf16 %v2651
    %v2837 = vunpack.c.h.bf16 %v2651
    %v2838 = vunpack.c.l.bf16 %v2655
    %v2839 = vunpack.c.h.bf16 %v2655
    %v2840 = vunpack.c.l.bf16 %v2662
    %v2841 = vunpack.c.h.bf16 %v2662
    %v2842 = vunpack.c.l.bf16 %v2666
    %v2843 = vunpack.c.h.bf16 %v2666
    %v2844 = vunpack.c.l.bf16 %v2673
    %v2845 = vunpack.c.h.bf16 %v2673
    %v2846 = vunpack.c.l.bf16 %v2677
    %v2847 = vunpack.c.h.bf16 %v2677
    %v2848 = vunpack.c.l.bf16 %v2684
    %v2849 = vunpack.c.h.bf16 %v2684
    %v2850 = vunpack.c.l.bf16 %v2688
    %v2851 = vunpack.c.h.bf16 %v2688
    %v2852 = vunpack.c.l.bf16 %v2695
    %v2853 = vunpack.c.h.bf16 %v2695
    %v2854 = vunpack.c.l.bf16 %v2699
    %v2855 = vunpack.c.h.bf16 %v2699
    %v2856 = vunpack.c.l.bf16 %v2706
    %v2857 = vunpack.c.h.bf16 %v2706
    %v2858 = vunpack.c.l.bf16 %v2710
    %v2859 = vunpack.c.h.bf16 %v2710
    %v2860 = vunpack.c.l.bf16 %v2717
    %v2861 = vunpack.c.h.bf16 %v2717
    %v2862 = vunpack.c.l.bf16 %v2721
    %v2863 = vunpack.c.h.bf16 %v2721
    %v2864 = vunpack.c.l.bf16 %v2728
    %v2865 = vunpack.c.h.bf16 %v2728
    %v2866 = vunpack.c.l.bf16 %v2732
    %v2867 = vunpack.c.h.bf16 %v2732
    %v2868 = vunpack.c.l.bf16 %v2739
    %v2869 = vunpack.c.h.bf16 %v2739
    %v2870 = vunpack.c.l.bf16 %v2743
    %v2871 = vunpack.c.h.bf16 %v2743
    %v2872 = vadd.f32 %v1856, %v2744
    %v2873 = vadd.f32 %v1859, %v2745
    %v2874 = vadd.f32 %v1864, %v2746
    %v2875 = vadd.f32 %v1867, %v2747
    %v2876 = vadd.f32 %v1872, %v2748
    %v2877 = vadd.f32 %v1875, %v2749
    %v2878 = vadd.f32 %v1880, %v2750
    %v2879 = vadd.f32 %v1883, %v2751
    %v2880 = vadd.f32 %v1888, %v2752
    %v2881 = vadd.f32 %v1891, %v2753
    %v2882 = vadd.f32 %v1896, %v2754
    %v2883 = vadd.f32 %v1899, %v2755
    %v2884 = vadd.f32 %v1904, %v2756
    %v2885 = vadd.f32 %v1907, %v2757
    %v2886 = vadd.f32 %v1912, %v2758
    %v2887 = vadd.f32 %v1915, %v2759
    %v2888 = vadd.f32 %v1920, %v2760
    %v2889 = vadd.f32 %v1923, %v2761
    %v2890 = vadd.f32 %v1928, %v2762
    %v2891 = vadd.f32 %v1931, %v2763
    %v2892 = vadd.f32 %v1936, %v2764
    %v2893 = vadd.f32 %v1939, %v2765
    %v2894 = vadd.f32 %v1944, %v2766
    %v2895 = vadd.f32 %v1947, %v2767
    %v2896 = vadd.f32 %v1952, %v2768
    %v2897 = vadd.f32 %v1955, %v2769
    %v2898 = vadd.f32 %v1960, %v2770
    %v2899 = vadd.f32 %v1963, %v2771
    %v2900 = vadd.f32 %v1968, %v2772
    %v2901 = vadd.f32 %v1971, %v2773
    %v2902 = vadd.f32 %v1976, %v2774
    %v2903 = vadd.f32 %v1979, %v2775
    %v2904 = vadd.f32 %v1984, %v2776
    %v2905 = vadd.f32 %v1987, %v2777
    %v2906 = vadd.f32 %v1992, %v2778
    %v2907 = vadd.f32 %v1995, %v2779
    %v2908 = vadd.f32 %v2000, %v2780
    %v2909 = vadd.f32 %v2003, %v2781
    %v2910 = vadd.f32 %v2008, %v2782
    %v2911 = vadd.f32 %v2011, %v2783
    %v2912 = vadd.f32 %v2016, %v2784
    %v2913 = vadd.f32 %v2019, %v2785
    %v2914 = vadd.f32 %v2024, %v2786
    %v2915 = vadd.f32 %v2027, %v2787
    %v2916 = vadd.f32 %v2032, %v2788
    %v2917 = vadd.f32 %v2035, %v2789
    %v2918 = vadd.f32 %v2040, %v2790
    %v2919 = vadd.f32 %v2043, %v2791
    %v2920 = vadd.f32 %v2048, %v2792
    %v2921 = vadd.f32 %v2051, %v2793
    %v2922 = vadd.f32 %v2056, %v2794
    %v2923 = vadd.f32 %v2059, %v2795
    %v2924 = vadd.f32 %v2064, %v2796
    %v2925 = vadd.f32 %v2067, %v2797
    %v2926 = vadd.f32 %v2072, %v2798
    %v2927 = vadd.f32 %v2075, %v2799
    %v2928 = vadd.f32 %v2080, %v2800
    %v2929 = vadd.f32 %v2083, %v2801
    %v2930 = vadd.f32 %v2088, %v2802
    %v2931 = vadd.f32 %v2091, %v2803
    %v2932 = vadd.f32 %v2096, %v2804
    %v2933 = vadd.f32 %v2099, %v2805
    %v2934 = vadd.f32 %v2104, %v2806
    %v2935 = vadd.f32 %v2107, %v2807
    %v2936 = vadd.f32 %v2112, %v2808
    %v2937 = vadd.f32 %v2115, %v2809
    %v2938 = vadd.f32 %v2120, %v2810
    %v2939 = vadd.f32 %v2123, %v2811
    %v2940 = vadd.f32 %v2128, %v2812
    %v2941 = vadd.f32 %v2131, %v2813
    %v2942 = vadd.f32 %v2136, %v2814
    %v2943 = vadd.f32 %v2139, %v2815
    %v2944 = vadd.f32 %v2144, %v2816
    %v2945 = vadd.f32 %v2147, %v2817
    %v2946 = vadd.f32 %v2152, %v2818
    %v2947 = vadd.f32 %v2155, %v2819
    %v2948 = vadd.f32 %v2160, %v2820
    %v2949 = vadd.f32 %v2163, %v2821
    %v2950 = vadd.f32 %v2168, %v2822
    %v2951 = vadd.f32 %v2171, %v2823
    %v2952 = vadd.f32 %v2176, %v2824
    %v2953 = vadd.f32 %v2179, %v2825
    %v2954 = vadd.f32 %v2184, %v2826
    %v2955 = vadd.f32 %v2187, %v2827
    %v2956 = vadd.f32 %v2192, %v2828
    %v2957 = vadd.f32 %v2195, %v2829
    %v2958 = vadd.f32 %v2200, %v2830
    %v2959 = vadd.f32 %v2203, %v2831
    %v2960 = vadd.f32 %v2208, %v2832
    %v2961 = vadd.f32 %v2211, %v2833
    %v2962 = vadd.f32 %v2216, %v2834
    %v2963 = vadd.f32 %v2219, %v2835
    %v2964 = vadd.f32 %v2224, %v2836
    %v2965 = vadd.f32 %v2227, %v2837
    %v2966 = vadd.f32 %v2232, %v2838
    %v2967 = vadd.f32 %v2235, %v2839
    %v2968 = vadd.f32 %v2240, %v2840
    %v2969 = vadd.f32 %v2243, %v2841
    %v2970 = vadd.f32 %v2248, %v2842
    %v2971 = vadd.f32 %v2251, %v2843
    %v2972 = vadd.f32 %v2256, %v2844
    %v2973 = vadd.f32 %v2259, %v2845
    %v2974 = vadd.f32 %v2264, %v2846
    %v2975 = vadd.f32 %v2267, %v2847
    %v2976 = vadd.f32 %v2272, %v2848
    %v2977 = vadd.f32 %v2275, %v2849
    %v2978 = vadd.f32 %v2280, %v2850
    %v2979 = vadd.f32 %v2283, %v2851
    %v2980 = vadd.f32 %v2288, %v2852
    %v2981 = vadd.f32 %v2291, %v2853
    %v2982 = vadd.f32 %v2296, %v2854
    %v2983 = vadd.f32 %v2299, %v2855
    %v2984 = vadd.f32 %v2304, %v2856
    %v2985 = vadd.f32 %v2307, %v2857
    %v2986 = vadd.f32 %v2312, %v2858
    %v2987 = vadd.f32 %v2315, %v2859
    %v2988 = vadd.f32 %v2320, %v2860
    %v2989 = vadd.f32 %v2323, %v2861
    %v2990 = vadd.f32 %v2328, %v2862
    %v2991 = vadd.f32 %v2331, %v2863
    %v2992 = vadd.f32 %v2336, %v2864
    %v2993 = vadd.f32 %v2339, %v2865
    %v2994 = vadd.f32 %v2344, %v2866
    %v2995 = vadd.f32 %v2347, %v2867
    %v2996 = vadd.f32 %v2352, %v2868
    %v2997 = vadd.f32 %v2355, %v2869
    %v2998 = vadd.f32 %v2360, %v2870
    %v2999 = vadd.f32 %v2363, %v2871
    %v3000 = vmax.f32 %v2872, %v2873
    %v3001 = vmax.f32 %v3000, %v2874
    %v3002 = vmax.f32 %v3001, %v2875
    %v3003 = vrot.slane %v3002, 4
    %v3004 = vmax.f32 %v3002, %v3003
    %v3005 = vrot.slane %v3004, 2
    %v3006 = vmax.f32 %v3004, %v3005
    %v3007 = vrot.slane %v3006, 1
    %v3008 = vmax.f32 %v3006, %v3007
    %v3009 = vmax.f32 %v2876, %v2877
    %v3010 = vmax.f32 %v3009, %v2878
    %v3011 = vmax.f32 %v3010, %v2879
    %v3012 = vrot.slane %v3011, 4
    %v3013 = vmax.f32 %v3011, %v3012
    %v3014 = vrot.slane %v3013, 2
    %v3015 = vmax.f32 %v3013, %v3014
    %v3016 = vrot.slane %v3015, 1
    %v3017 = vmax.f32 %v3015, %v3016
    %v3018 = vmax.f32 %v2880, %v2881
    %v3019 = vmax.f32 %v3018, %v2882
    %v3020 = vmax.f32 %v3019, %v2883
    %v3021 = vrot.slane %v3020, 4
    %v3022 = vmax.f32 %v3020, %v3021
    %v3023 = vrot.slane %v3022, 2
    %v3024 = vmax.f32 %v3022, %v3023
    %v3025 = vrot.slane %v3024, 1
    %v3026 = vmax.f32 %v3024, %v3025
    %v3027 = vmax.f32 %v2884, %v2885
    %v3028 = vmax.f32 %v3027, %v2886
    %v3029 = vmax.f32 %v3028, %v2887
    %v3030 = vrot.slane %v3029, 4
    %v3031 = vmax.f32 %v3029, %v3030
    %v3032 = vrot.slane %v3031, 2
    %v3033 = vmax.f32 %v3031, %v3032
    %v3034 = vrot.slane %v3033, 1
    %v3035 = vmax.f32 %v3033, %v3034
    %v3036 = vmax.f32 %v2888, %v2889
    %v3037 = vmax.f32 %v3036, %v2890
    %v3038 = vmax.f32 %v3037, %v2891
    %v3039 = vrot.slane %v3038, 4
    %v3040 = vmax.f32 %v3038, %v3039
    %v3041 = vrot.slane %v3040, 2
    %v3042 = vmax.f32 %v3040, %v3041
    %v3043 = vrot.slane %v3042, 1
    %v3044 = vmax.f32 %v3042, %v3043
    %v3045 = vmax.f32 %v2892, %v2893
    %v3046 = vmax.f32 %v3045, %v2894
    %v3047 = vmax.f32 %v3046, %v2895
    %v3048 = vrot.slane %v3047, 4
    %v3049 = vmax.f32 %v3047, %v3048
    %v3050 = vrot.slane %v3049, 2
    %v3051 = vmax.f32 %v3049, %v3050
    %v3052 = vrot.slane %v3051, 1
    %v3053 = vmax.f32 %v3051, %v3052
    %v3054 = vmax.f32 %v2896, %v2897
    %v3055 = vmax.f32 %v3054, %v2898
    %v3056 = vmax.f32 %v3055, %v2899
    %v3057 = vrot.slane %v3056, 4
    %v3058 = vmax.f32 %v3056, %v3057
    %v3059 = vrot.slane %v3058, 2
    %v3060 = vmax.f32 %v3058, %v3059
    %v3061 = vrot.slane %v3060, 1
    %v3062 = vmax.f32 %v3060, %v3061
    %v3063 = vmax.f32 %v2900, %v2901
    %v3064 = vmax.f32 %v3063, %v2902
    %v3065 = vmax.f32 %v3064, %v2903
    %v3066 = vrot.slane %v3065, 4
    %v3067 = vmax.f32 %v3065, %v3066
    %v3068 = vrot.slane %v3067, 2
    %v3069 = vmax.f32 %v3067, %v3068
    %v3070 = vrot.slane %v3069, 1
    %v3071 = vmax.f32 %v3069, %v3070
    %v3072 = vmax.f32 %v2904, %v2905
    %v3073 = vmax.f32 %v3072, %v2906
    %v3074 = vmax.f32 %v3073, %v2907
    %v3075 = vrot.slane %v3074, 4
    %v3076 = vmax.f32 %v3074, %v3075
    %v3077 = vrot.slane %v3076, 2
    %v3078 = vmax.f32 %v3076, %v3077
    %v3079 = vrot.slane %v3078, 1
    %v3080 = vmax.f32 %v3078, %v3079
    %v3081 = vmax.f32 %v2908, %v2909
    %v3082 = vmax.f32 %v3081, %v2910
    %v3083 = vmax.f32 %v3082, %v2911
    %v3084 = vrot.slane %v3083, 4
    %v3085 = vmax.f32 %v3083, %v3084
    %v3086 = vrot.slane %v3085, 2
    %v3087 = vmax.f32 %v3085, %v3086
    %v3088 = vrot.slane %v3087, 1
    %v3089 = vmax.f32 %v3087, %v3088
    %v3090 = vmax.f32 %v2912, %v2913
    %v3091 = vmax.f32 %v3090, %v2914
    %v3092 = vmax.f32 %v3091, %v2915
    %v3093 = vrot.slane %v3092, 4
    %v3094 = vmax.f32 %v3092, %v3093
    %v3095 = vrot.slane %v3094, 2
    %v3096 = vmax.f32 %v3094, %v3095
    %v3097 = vrot.slane %v3096, 1
    %v3098 = vmax.f32 %v3096, %v3097
    %v3099 = vmax.f32 %v2916, %v2917
    %v3100 = vmax.f32 %v3099, %v2918
    %v3101 = vmax.f32 %v3100, %v2919
    %v3102 = vrot.slane %v3101, 4
    %v3103 = vmax.f32 %v3101, %v3102
    %v3104 = vrot.slane %v3103, 2
    %v3105 = vmax.f32 %v3103, %v3104
    %v3106 = vrot.slane %v3105, 1
    %v3107 = vmax.f32 %v3105, %v3106
    %v3108 = vmax.f32 %v2920, %v2921
    %v3109 = vmax.f32 %v3108, %v2922
    %v3110 = vmax.f32 %v3109, %v2923
    %v3111 = vrot.slane %v3110, 4
    %v3112 = vmax.f32 %v3110, %v3111
    %v3113 = vrot.slane %v3112, 2
    %v3114 = vmax.f32 %v3112, %v3113
    %v3115 = vrot.slane %v3114, 1
    %v3116 = vmax.f32 %v3114, %v3115
    %v3117 = vmax.f32 %v2924, %v2925
    %v3118 = vmax.f32 %v3117, %v2926
    %v3119 = vmax.f32 %v3118, %v2927
    %v3120 = vrot.slane %v3119, 4
    %v3121 = vmax.f32 %v3119, %v3120
    %v3122 = vrot.slane %v3121, 2
    %v3123 = vmax.f32 %v3121, %v3122
    %v3124 = vrot.slane %v3123, 1
    %v3125 = vmax.f32 %v3123, %v3124
    %v3126 = vmax.f32 %v2928, %v2929
    %v3127 = vmax.f32 %v3126, %v2930
    %v3128 = vmax.f32 %v3127, %v2931
    %v3129 = vrot.slane %v3128, 4
    %v3130 = vmax.f32 %v3128, %v3129
    %v3131 = vrot.slane %v3130, 2
    %v3132 = vmax.f32 %v3130, %v3131
    %v3133 = vrot.slane %v3132, 1
    %v3134 = vmax.f32 %v3132, %v3133
    %v3135 = vmax.f32 %v2932, %v2933
    %v3136 = vmax.f32 %v3135, %v2934
    %v3137 = vmax.f32 %v3136, %v2935
    %v3138 = vrot.slane %v3137, 4
    %v3139 = vmax.f32 %v3137, %v3138
    %v3140 = vrot.slane %v3139, 2
    %v3141 = vmax.f32 %v3139, %v3140
    %v3142 = vrot.slane %v3141, 1
    %v3143 = vmax.f32 %v3141, %v3142
    %v3144 = vmax.f32 %v2936, %v2937
    %v3145 = vmax.f32 %v3144, %v2938
    %v3146 = vmax.f32 %v3145, %v2939
    %v3147 = vrot.slane %v3146, 4
    %v3148 = vmax.f32 %v3146, %v3147
    %v3149 = vrot.slane %v3148, 2
    %v3150 = vmax.f32 %v3148, %v3149
    %v3151 = vrot.slane %v3150, 1
    %v3152 = vmax.f32 %v3150, %v3151
    %v3153 = vmax.f32 %v2940, %v2941
    %v3154 = vmax.f32 %v3153, %v2942
    %v3155 = vmax.f32 %v3154, %v2943
    %v3156 = vrot.slane %v3155, 4
    %v3157 = vmax.f32 %v3155, %v3156
    %v3158 = vrot.slane %v3157, 2
    %v3159 = vmax.f32 %v3157, %v3158
    %v3160 = vrot.slane %v3159, 1
    %v3161 = vmax.f32 %v3159, %v3160
    %v3162 = vmax.f32 %v2944, %v2945
    %v3163 = vmax.f32 %v3162, %v2946
    %v3164 = vmax.f32 %v3163, %v2947
    %v3165 = vrot.slane %v3164, 4
    %v3166 = vmax.f32 %v3164, %v3165
    %v3167 = vrot.slane %v3166, 2
    %v3168 = vmax.f32 %v3166, %v3167
    %v3169 = vrot.slane %v3168, 1
    %v3170 = vmax.f32 %v3168, %v3169
    %v3171 = vmax.f32 %v2948, %v2949
    %v3172 = vmax.f32 %v3171, %v2950
    %v3173 = vmax.f32 %v3172, %v2951
    %v3174 = vrot.slane %v3173, 4
    %v3175 = vmax.f32 %v3173, %v3174
    %v3176 = vrot.slane %v3175, 2
    %v3177 = vmax.f32 %v3175, %v3176
    %v3178 = vrot.slane %v3177, 1
    %v3179 = vmax.f32 %v3177, %v3178
    %v3180 = vmax.f32 %v2952, %v2953
    %v3181 = vmax.f32 %v3180, %v2954
    %v3182 = vmax.f32 %v3181, %v2955
    %v3183 = vrot.slane %v3182, 4
    %v3184 = vmax.f32 %v3182, %v3183
    %v3185 = vrot.slane %v3184, 2
    %v3186 = vmax.f32 %v3184, %v3185
    %v3187 = vrot.slane %v3186, 1
    %v3188 = vmax.f32 %v3186, %v3187
    %v3189 = vmax.f32 %v2956, %v2957
    %v3190 = vmax.f32 %v3189, %v2958
    %v3191 = vmax.f32 %v3190, %v2959
    %v3192 = vrot.slane %v3191, 4
    %v3193 = vmax.f32 %v3191, %v3192
    %v3194 = vrot.slane %v3193, 2
    %v3195 = vmax.f32 %v3193, %v3194
    %v3196 = vrot.slane %v3195, 1
    %v3197 = vmax.f32 %v3195, %v3196
    %v3198 = vmax.f32 %v2960, %v2961
    %v3199 = vmax.f32 %v3198, %v2962
    %v3200 = vmax.f32 %v3199, %v2963
    %v3201 = vrot.slane %v3200, 4
    %v3202 = vmax.f32 %v3200, %v3201
    %v3203 = vrot.slane %v3202, 2
    %v3204 = vmax.f32 %v3202, %v3203
    %v3205 = vrot.slane %v3204, 1
    %v3206 = vmax.f32 %v3204, %v3205
    %v3207 = vmax.f32 %v2964, %v2965
    %v3208 = vmax.f32 %v3207, %v2966
    %v3209 = vmax.f32 %v3208, %v2967
    %v3210 = vrot.slane %v3209, 4
    %v3211 = vmax.f32 %v3209, %v3210
    %v3212 = vrot.slane %v3211, 2
    %v3213 = vmax.f32 %v3211, %v3212
    %v3214 = vrot.slane %v3213, 1
    %v3215 = vmax.f32 %v3213, %v3214
    %v3216 = vmax.f32 %v2968, %v2969
    %v3217 = vmax.f32 %v3216, %v2970
    %v3218 = vmax.f32 %v3217, %v2971
    %v3219 = vrot.slane %v3218, 4
    %v3220 = vmax.f32 %v3218, %v3219
    %v3221 = vrot.slane %v3220, 2
    %v3222 = vmax.f32 %v3220, %v3221
    %v3223 = vrot.slane %v3222, 1
    %v3224 = vmax.f32 %v3222, %v3223
    %v3225 = vmax.f32 %v2972, %v2973
    %v3226 = vmax.f32 %v3225, %v2974
    %v3227 = vmax.f32 %v3226, %v2975
    %v3228 = vrot.slane %v3227, 4
    %v3229 = vmax.f32 %v3227, %v3228
    %v3230 = vrot.slane %v3229, 2
    %v3231 = vmax.f32 %v3229, %v3230
    %v3232 = vrot.slane %v3231, 1
    %v3233 = vmax.f32 %v3231, %v3232
    %v3234 = vmax.f32 %v2976, %v2977
    %v3235 = vmax.f32 %v3234, %v2978
    %v3236 = vmax.f32 %v3235, %v2979
    %v3237 = vrot.slane %v3236, 4
    %v3238 = vmax.f32 %v3236, %v3237
    %v3239 = vrot.slane %v3238, 2
    %v3240 = vmax.f32 %v3238, %v3239
    %v3241 = vrot.slane %v3240, 1
    %v3242 = vmax.f32 %v3240, %v3241
    %v3243 = vmax.f32 %v2980, %v2981
    %v3244 = vmax.f32 %v3243, %v2982
    %v3245 = vmax.f32 %v3244, %v2983
    %v3246 = vrot.slane %v3245, 4
    %v3247 = vmax.f32 %v3245, %v3246
    %v3248 = vrot.slane %v3247, 2
    %v3249 = vmax.f32 %v3247, %v3248
    %v3250 = vrot.slane %v3249, 1
    %v3251 = vmax.f32 %v3249, %v3250
    %v3252 = vmax.f32 %v2984, %v2985
    %v3253 = vmax.f32 %v3252, %v2986
    %v3254 = vmax.f32 %v3253, %v2987
    %v3255 = vrot.slane %v3254, 4
    %v3256 = vmax.f32 %v3254, %v3255
    %v3257 = vrot.slane %v3256, 2
    %v3258 = vmax.f32 %v3256, %v3257
    %v3259 = vrot.slane %v3258, 1
    %v3260 = vmax.f32 %v3258, %v3259
    %v3261 = vmax.f32 %v2988, %v2989
    %v3262 = vmax.f32 %v3261, %v2990
    %v3263 = vmax.f32 %v3262, %v2991
    %v3264 = vrot.slane %v3263, 4
    %v3265 = vmax.f32 %v3263, %v3264
    %v3266 = vrot.slane %v3265, 2
    %v3267 = vmax.f32 %v3265, %v3266
    %v3268 = vrot.slane %v3267, 1
    %v3269 = vmax.f32 %v3267, %v3268
    %v3270 = vmax.f32 %v2992, %v2993
    %v3271 = vmax.f32 %v3270, %v2994
    %v3272 = vmax.f32 %v3271, %v2995
    %v3273 = vrot.slane %v3272, 4
    %v3274 = vmax.f32 %v3272, %v3273
    %v3275 = vrot.slane %v3274, 2
    %v3276 = vmax.f32 %v3274, %v3275
    %v3277 = vrot.slane %v3276, 1
    %v3278 = vmax.f32 %v3276, %v3277
    %v3279 = vmax.f32 %v2996, %v2997
    %v3280 = vmax.f32 %v3279, %v2998
    %v3281 = vmax.f32 %v3280, %v2999
    %v3282 = vrot.slane %v3281, 4
    %v3283 = vmax.f32 %v3281, %v3282
    %v3284 = vrot.slane %v3283, 2
    %v3285 = vmax.f32 %v3283, %v3284
    %v3286 = vrot.slane %v3285, 1
    %v3287 = vmax.f32 %v3285, %v3286
    %v3288 = vmax.f32 %v3008, -1e+30
    %v3289 = vmax.f32 %v3017, -1e+30
    %v3290 = vmax.f32 %v3026, -1e+30
    %v3291 = vmax.f32 %v3035, -1e+30
    %v3292 = vmax.f32 %v3044, -1e+30
    %v3293 = vmax.f32 %v3053, -1e+30
    %v3294 = vmax.f32 %v3062, -1e+30
    %v3295 = vmax.f32 %v3071, -1e+30
    %v3296 = vmax.f32 %v3080, -1e+30
    %v3297 = vmax.f32 %v3089, -1e+30
    %v3298 = vmax.f32 %v3098, -1e+30
    %v3299 = vmax.f32 %v3107, -1e+30
    %v3300 = vmax.f32 %v3116, -1e+30
    %v3301 = vmax.f32 %v3125, -1e+30
    %v3302 = vmax.f32 %v3134, -1e+30
    %v3303 = vmax.f32 %v3143, -1e+30
    %v3304 = vmax.f32 %v3152, -1e+30
    %v3305 = vmax.f32 %v3161, -1e+30
    %v3306 = vmax.f32 %v3170, -1e+30
    %v3307 = vmax.f32 %v3179, -1e+30
    %v3308 = vmax.f32 %v3188, -1e+30
    %v3309 = vmax.f32 %v3197, -1e+30
    %v3310 = vmax.f32 %v3206, -1e+30
    %v3311 = vmax.f32 %v3215, -1e+30
    %v3312 = vmax.f32 %v3224, -1e+30
    %v3313 = vmax.f32 %v3233, -1e+30
    %v3314 = vmax.f32 %v3242, -1e+30
    %v3315 = vmax.f32 %v3251, -1e+30
    %v3316 = vmax.f32 %v3260, -1e+30
    %v3317 = vmax.f32 %v3269, -1e+30
    %v3318 = vmax.f32 %v3278, -1e+30
    %v3319 = vmax.f32 %v3287, -1e+30
    %v3320 = vld [vmem:[%s2] sm:$0xff]
    %v3321 = vld [vmem:[%s2 + $0x8] sm:$0xff]
    %v3322 = vld [vmem:[%s2 + $0x10] sm:$0xff]
    %v3323 = vld [vmem:[%s2 + $0x18] sm:$0xff]
    %vm3324 = vcmp.gt.f32.partialorder %v3320, 0.0
    %vm3325 = vcmp.gt.f32.partialorder %v3321, 0.0
    %vm3326 = vcmp.gt.f32.partialorder %v3322, 0.0
    %vm3327 = vcmp.gt.f32.partialorder %v3323, 0.0
    %v3328 = vsel %vm3324, 1, 0
    %v3329 = vsel %vm3325, 1, 0
    %v3330 = vsel %vm3326, 1, 0
    %v3331 = vsel %vm3327, 1, 0
    %3332 = vset.pattern.permute.xlu0 0
    %3333 = vperm.xlu0 %3332, %v3328
    %v3334 = vpop.permute.xlu0 %3333
    %3335 = vset.pattern.permute.xlu0 0
    %3336 = vperm.xlu0 %3335, %v3329
    %v3337 = vpop.permute.xlu0 %3336
    %3338 = vset.pattern.permute.xlu0 0
    %3339 = vperm.xlu0 %3338, %v3330
    %v3340 = vpop.permute.xlu0 %3339
    %3341 = vset.pattern.permute.xlu0 0
    %3342 = vperm.xlu0 %3341, %v3331
    %v3343 = vpop.permute.xlu0 %3342
    %vm3344 = vcmp.eq.s32.totalorder %v3334, 1
    %vm3345 = vcmp.eq.s32.totalorder %v3337, 1
    %vm3346 = vcmp.eq.s32.totalorder %v3340, 1
    %vm3347 = vcmp.eq.s32.totalorder %v3343, 1
    %vm3380 = vcmask 1041409
    %v3381 = vsel %vm3380, %v3289, %v3288
    %vm3382 = vcmask 1042434
    %v3383 = vsel %vm3382, %v3290, %v3381
    %vm3384 = vcmask 1043459
    %v3385 = vsel %vm3384, %v3291, %v3383
    %vm3386 = vcmask 1044484
    %v3387 = vsel %vm3386, %v3292, %v3385
    %vm3388 = vcmask 1045509
    %v3389 = vsel %vm3388, %v3293, %v3387
    %vm3390 = vcmask 1046534
    %v3391 = vsel %vm3390, %v3294, %v3389
    %vm3392 = vcmask 1047559
    %v3393 = vsel %vm3392, %v3295, %v3391
    %v3394 = vsel %vm3380, %v3297, %v3296
    %v3395 = vsel %vm3382, %v3298, %v3394
    %v3396 = vsel %vm3384, %v3299, %v3395
    %v3397 = vsel %vm3386, %v3300, %v3396
    %v3398 = vsel %vm3388, %v3301, %v3397
    %v3399 = vsel %vm3390, %v3302, %v3398
    %v3400 = vsel %vm3392, %v3303, %v3399
    %v3401 = vsel %vm3380, %v3305, %v3304
    %v3402 = vsel %vm3382, %v3306, %v3401
    %v3403 = vsel %vm3384, %v3307, %v3402
    %v3404 = vsel %vm3386, %v3308, %v3403
    %v3405 = vsel %vm3388, %v3309, %v3404
    %v3406 = vsel %vm3390, %v3310, %v3405
    %v3407 = vsel %vm3392, %v3311, %v3406
    %v3408 = vsel %vm3380, %v3313, %v3312
    %v3409 = vsel %vm3382, %v3314, %v3408
    %v3410 = vsel %vm3384, %v3315, %v3409
    %v3411 = vsel %vm3386, %v3316, %v3410
    %v3412 = vsel %vm3388, %v3317, %v3411
    %v3413 = vsel %vm3390, %v3318, %v3412
    %v3414 = vsel %vm3392, %v3319, %v3413
    %v3419 = vsel %vm3344, %v3393, 0.0
    %v3420 = vsel %vm3345, %v3400, 0.0
    %v3421 = vsel %vm3346, %v3407, 0.0
    %v3422 = vsel %vm3347, %v3414, 0.0
    %v3423 = vmax.f32 %v3419, 0.0
    %v3424 = vmax.f32 %v3420, 0.0
    %v3425 = vmax.f32 %v3421, 0.0
    %v3426 = vmax.f32 %v3422, 0.0
    %3427 = vst [vmem:[%s10] sm:$0xff] %v3423
    %3428 = vst [vmem:[%s10 + $0x8] sm:$0xff] %v3424
    %3429 = vst [vmem:[%s10 + $0x10] sm:$0xff] %v3425
    %3430 = vst [vmem:[%s10 + $0x18] sm:$0xff] %v3426
    // Predicated region
    $region50: #{model_gnn_forward.3} parent=1 // pred_check
      _
    $region51: #{model_gnn_forward.3} parent=1 // pred_check_branch
      %3432 = sbr.rel (0) target = $region53
    $region52: #{model_gnn_forward.3} parent=1 // pred_region
      _
    $region53: #{model_gnn_forward.3} parent=1 // pred_fallthru
      _
    // Predicated region
    $region54: #{model_gnn_forward.3} parent=1 // pred_check
      _
    $region55: #{model_gnn_forward.3} parent=1 // pred_check_branch
      %3434 = sbr.rel (0) target = $region57
    $region56: #{model_gnn_forward.3} parent=1 // pred_region
      _
    $region57: #{model_gnn_forward.3} parent=1 // pred_fallthru
      _
    %3435 = vsyncpa [#allocation4], 1
    %3436 = vsyncpa [#allocation6], 1

// kernel: model_gnn_forward.4
$region0: #{model_gnn_forward.4}
  #allocation0 [shape = 'u32[]', space=smem, size = 0x4, offset = 0x4, fixed_abs, tag = 'smem constant byte address 0x4 - core index']
  #allocation1 [shape = 'u32[144,128]{1,0:T(1,128)}', space=vmem, size = 0x12000, scoped, tag = 'internal scratch']
  #allocation2 [shape = 'bf16[32,128]{1,0:T(8,128)(2,1)}', space=vmem, size = 0x2000, scoped, tag = 'scratch operand']
  %s0 = inlined_call_operand.vmem [shape: f32[32,128], index: 0, kind: input, shape index: {}]
  %s1 = inlined_call_operand.vmem [shape: bf16[1,32,32], index: 1, kind: input, shape index: {}]
  %s2 = inlined_call_operand.vmem [shape: f32[32,1], index: 2, kind: input, shape index: {}]
  %s3 = inlined_call_operand.vmem [shape: bf16[128,128], index: 3, kind: input, shape index: {}]
  %s4 = inlined_call_operand.vmem [shape: bf16[128,128], index: 4, kind: input, shape index: {}]
  %s5 = inlined_call_operand.vmem [shape: f32[1,128], index: 5, kind: input, shape index: {}]
  %s6 = inlined_call_operand.vmem [shape: bf16[128,128], index: 6, kind: input, shape index: {}]
  %s7 = inlined_call_operand.vmem [shape: f32[1,128], index: 7, kind: input, shape index: {}]
  %s8 = inlined_call_operand.vmem [shape: bf16[128,128], index: 8, kind: input, shape index: {}]
  %s9 = inlined_call_operand.vmem [shape: f32[1,128], index: 9, kind: input, shape index: {}]
  %s10 = inlined_call_operand.vmem [shape: f32[32,128], index: 10, kind: output, shape index: {}]
  %s11 = sld [smem:[#allocation0]]
  $region50: #{model_gnn_forward.4} parent=0
    _
  %s13 = ssub.s32 1, %s11
  %s14 = scalar_select 0, %s13, %s11
  // Predicated region
  $region2: #{model_gnn_forward.4} parent=0 // pred_check
    _
  $region3: #{model_gnn_forward.4} parent=0 // pred_check_branch
    %16 = sbr.rel (0) target = $region5
  $region4: #{model_gnn_forward.4} parent=0 // pred_region
    _
  $region5: #{model_gnn_forward.4} parent=0 // pred_fallthru
    _
  // Predicated region
  $region6: #{model_gnn_forward.4} parent=0 // pred_check
    _
  $region7: #{model_gnn_forward.4} parent=0 // pred_check_branch
    %18 = sbr.rel (0) target = $region9
  $region8: #{model_gnn_forward.4} parent=0 // pred_region
    _
  $region9: #{model_gnn_forward.4} parent=0 // pred_fallthru
    _
  // Predicated region
  $region10: #{model_gnn_forward.4} parent=0 // pred_check
    _
  $region11: #{model_gnn_forward.4} parent=0 // pred_check_branch
    %20 = sbr.rel (0) target = $region13
  $region12: #{model_gnn_forward.4} parent=0 // pred_region
    _
  $region13: #{model_gnn_forward.4} parent=0 // pred_fallthru
    _
  // Predicated region
  $region14: #{model_gnn_forward.4} parent=0 // pred_check
    _
  $region15: #{model_gnn_forward.4} parent=0 // pred_check_branch
    %22 = sbr.rel (0) target = $region17
  $region16: #{model_gnn_forward.4} parent=0 // pred_region
    _
  $region17: #{model_gnn_forward.4} parent=0 // pred_fallthru
    _
  // Predicated region
  $region18: #{model_gnn_forward.4} parent=0 // pred_check
    _
  $region19: #{model_gnn_forward.4} parent=0 // pred_check_branch
    %24 = sbr.rel (0) target = $region21
  $region20: #{model_gnn_forward.4} parent=0 // pred_region
    _
  $region21: #{model_gnn_forward.4} parent=0 // pred_fallthru
    _
  // Predicated region
  $region22: #{model_gnn_forward.4} parent=0 // pred_check
    _
  $region23: #{model_gnn_forward.4} parent=0 // pred_check_branch
    %26 = sbr.rel (0) target = $region25
  $region24: #{model_gnn_forward.4} parent=0 // pred_region
    _
  $region25: #{model_gnn_forward.4} parent=0 // pred_fallthru
    _
  // Predicated region
  $region26: #{model_gnn_forward.4} parent=0 // pred_check
    _
  $region27: #{model_gnn_forward.4} parent=0 // pred_check_branch
    %28 = sbr.rel (0) target = $region29
  $region28: #{model_gnn_forward.4} parent=0 // pred_region
    _
  $region29: #{model_gnn_forward.4} parent=0 // pred_fallthru
    _
  // Predicated region
  $region30: #{model_gnn_forward.4} parent=0 // pred_check
    _
  $region31: #{model_gnn_forward.4} parent=0 // pred_check_branch
    %30 = sbr.rel (0) target = $region33
  $region32: #{model_gnn_forward.4} parent=0 // pred_region
    _
  $region33: #{model_gnn_forward.4} parent=0 // pred_fallthru
    _
  // Predicated region
  $region34: #{model_gnn_forward.4} parent=0 // pred_check
    _
  $region35: #{model_gnn_forward.4} parent=0 // pred_check_branch
    %32 = sbr.rel (0) target = $region37
  $region36: #{model_gnn_forward.4} parent=0 // pred_region
    _
  $region37: #{model_gnn_forward.4} parent=0 // pred_fallthru
    _
  // Predicated region
  $region38: #{model_gnn_forward.4} parent=0 // pred_check
    _
  $region39: #{model_gnn_forward.4} parent=0 // pred_check_branch
    %34 = sbr.rel (0) target = $region41
  $region40: #{model_gnn_forward.4} parent=0 // pred_region
    _
  $region41: #{model_gnn_forward.4} parent=0 // pred_fallthru
    _
  %v36 = vld [vmem:[%s0] sm:$0xff]
  %v37 = vld [vmem:[%s0 + $0x8] sm:$0xff]
  %v38 = vld [vmem:[%s0 + $0x10] sm:$0xff]
  %v39 = vld [vmem:[%s0 + $0x18] sm:$0xff]
  %v40 = vpack.c.bf16 %v37, %v36
  %v41 = vpack.c.bf16 %v39, %v38
  %v42 = vld [vmem:[%s4] sm:$0xf]
  %v43 = vld [vmem:[%s4 + $0x4] sm:$0xf]
  %v44 = vld [vmem:[%s4 + $0x8] sm:$0xf]
  %v45 = vld [vmem:[%s4 + $0xc] sm:$0xf]
  %v46 = vld [vmem:[%s4 + $0x10] sm:$0xf]
  %v47 = vld [vmem:[%s4 + $0x14] sm:$0xf]
  %v48 = vld [vmem:[%s4 + $0x18] sm:$0xf]
  %v49 = vld [vmem:[%s4 + $0x1c] sm:$0xf]
  %v50 = vld [vmem:[%s4 + $0x20] sm:$0xf]
  %v51 = vld [vmem:[%s4 + $0x24] sm:$0xf]
  %v52 = vld [vmem:[%s4 + $0x28] sm:$0xf]
  %v53 = vld [vmem:[%s4 + $0x2c] sm:$0xf]
  %v54 = vld [vmem:[%s4 + $0x30] sm:$0xf]
  %v55 = vld [vmem:[%s4 + $0x34] sm:$0xf]
  %v56 = vld [vmem:[%s4 + $0x38] sm:$0xf]
  %v57 = vld [vmem:[%s4 + $0x3c] sm:$0xf]
  %v58 = vld [vmem:[%s5] sm:$0x1]
  %v60 = vlaneseq
  %v61 = vshrl.u32 %v60, 7
  %v62 = vsub.s32 0, %v61
  %v63 = vrot.slane %v58, %v62
  %v81 = vunpack.c.l.b16 %v42
  %v82 = vunpack.c.l.b16 %v43
  %v83 = vunpack.c.l.b16 %v44
  %v84 = vunpack.c.l.b16 %v45
  %v85 = vunpack.c.l.b16 %v46
  %v86 = vunpack.c.l.b16 %v47
  %v87 = vunpack.c.l.b16 %v48
  %v88 = vunpack.c.l.b16 %v49
  %v89 = vunpack.c.l.b16 %v50
  %v90 = vunpack.c.l.b16 %v51
  %v91 = vunpack.c.l.b16 %v52
  %v92 = vunpack.c.l.b16 %v53
  %v93 = vunpack.c.l.b16 %v54
  %v94 = vunpack.c.l.b16 %v55
  %v95 = vunpack.c.l.b16 %v56
  %v96 = vunpack.c.l.b16 %v57
  %v97 = vpack.c.b16 %v82, %v81
  %v98 = vpack.c.b16 %v84, %v83
  %v99 = vpack.c.b16 %v86, %v85
  %v100 = vpack.c.b16 %v88, %v87
  %v101 = vpack.c.b16 %v90, %v89
  %v102 = vpack.c.b16 %v92, %v91
  %v103 = vpack.c.b16 %v94, %v93
  %v104 = vpack.c.b16 %v96, %v95
  %113 = vmatprep.subr.bf16.mxu0 0
  %114 = vmatpush1.bf16.msra.mxu0 %v104
  %115 = vmatprep.subr.bf16.mxu0 0
  %116 = vmatpush1.bf16.msra.mxu0 %v103
  %117 = vmatprep.subr.bf16.mxu0 0
  %118 = vmatpush1.bf16.msra.mxu0 %v102
  %119 = vmatprep.subr.bf16.mxu0 0
  %120 = vmatpush1.bf16.msra.mxu0 %v101
  %121 = vmatprep.subr.bf16.mxu0 0
  %122 = vmatpush1.bf16.msra.mxu0 %v100
  %123 = vmatprep.subr.bf16.mxu0 0
  %124 = vmatpush1.bf16.msra.mxu0 %v99
  %125 = vmatprep.subr.bf16.mxu0 0
  %126 = vmatpush1.bf16.msra.mxu0 %v98
  %127 = vmatprep.subr.bf16.mxu0 0
  %128 = vmatpush1.bf16.msra.mxu0 %v97
  %129 = vmatprep.subr.bf16.mxu0 0
  %130 = vmatpush2.bf16.msra.mxu0 0
  %131 = vmatprep.subr.bf16.mxu0 0
  %132 = vmatpush2.bf16.msra.mxu0 0
  %133 = vmatprep.subr.bf16.mxu0 0
  %134 = vmatpush2.bf16.msra.mxu0 0
  %135 = vmatprep.subr.bf16.mxu0 0
  %136 = vmatpush2.bf16.msra.mxu0 0
  %137 = vmatprep.subr.bf16.mxu0 0
  %138 = vmatpush2.bf16.msra.mxu0 0
  %139 = vmatprep.subr.bf16.mxu0 0
  %140 = vmatpush2.bf16.msra.mxu0 0
  %141 = vmatprep.subr.bf16.mxu0 0
  %142 = vmatpush2.bf16.msra.mxu0 0
  %143 = vmatprep.subr.bf16.mxu0 0
  %144 = vmatpush2.bf16.msra.mxu0 0
  %145 = vmatprep.mubr.bf16.mxu0 0
  %146 = vmatmul.mubr.bf16.gmra.mxu0 %v40
  %v147 = vpop.f32.mrf.mxu0
  %v148 = vadd.f32 %v63, %v147
  %v149 = vpop.f32.mrf.mxu0
  %v150 = vpop.f32.mrf.mxu0
  %v151 = vadd.f32 %v63, %v150
  %v152 = vpop.f32.mrf.mxu0
  %153 = vmatprep.mubr.bf16.mxu0 0
  %154 = vmatmul.mubr.bf16.gmra.mxu0 %v41
  %v155 = vpop.f32.mrf.mxu0
  %v156 = vadd.f32 %v63, %v155
  %v157 = vpop.f32.mrf.mxu0
  %v158 = vpop.f32.mrf.mxu0
  %v159 = vadd.f32 %v63, %v158
  %v160 = vpop.f32.mrf.mxu0
  %161 = vdwg.mxu0
  %v162 = vpack.c.bf16 %v151, %v148
  %v163 = vpack.c.bf16 %v159, %v156
  %v166 = vunpack.c.l.b16 %v162
  %v167 = vunpack.c.h.b16 %v162
  %v168 = vunpack.c.l.b16 %v163
  %v169 = vunpack.c.h.b16 %v163
  %v170 = vpack.c.b16 %v166, %v166
  %v171 = vpack.c.b16 %v167, %v167
  %v172 = vpack.c.b16 %v168, %v168
  %v173 = vpack.c.b16 %v169, %v169
  %178 = vst [vmem:[#allocation2] sm:$0xf] %v170
  %179 = vst [vmem:[#allocation2 + $0x4] sm:$0xf] %v171
  %180 = vst [vmem:[#allocation2 + $0x8] sm:$0xf] %v172
  %181 = vst [vmem:[#allocation2 + $0xc] sm:$0xf] %v173
  %s182 = smul.u32 0, 32
  %s183 = scalar_lea.vmem %s0, %s182
  %v184 = vld [vmem:[%s183] sm:$0xff]
  %v185 = vld [vmem:[%s183 + $0x8] sm:$0xff]
  %v186 = vld [vmem:[%s183 + $0x10] sm:$0xff]
  %v187 = vld [vmem:[%s183 + $0x18] sm:$0xff]
  %v188 = vpack.c.bf16 %v185, %v184
  %v189 = vpack.c.bf16 %v187, %v186
  %v190 = vld [vmem:[%s3] sm:$0xf]
  %v191 = vld [vmem:[%s3 + $0x4] sm:$0xf]
  %v192 = vld [vmem:[%s3 + $0x8] sm:$0xf]
  %v193 = vld [vmem:[%s3 + $0xc] sm:$0xf]
  %v194 = vld [vmem:[%s3 + $0x10] sm:$0xf]
  %v195 = vld [vmem:[%s3 + $0x14] sm:$0xf]
  %v196 = vld [vmem:[%s3 + $0x18] sm:$0xf]
  %v197 = vld [vmem:[%s3 + $0x1c] sm:$0xf]
  %v198 = vld [vmem:[%s3 + $0x20] sm:$0xf]
  %v199 = vld [vmem:[%s3 + $0x24] sm:$0xf]
  %v200 = vld [vmem:[%s3 + $0x28] sm:$0xf]
  %v201 = vld [vmem:[%s3 + $0x2c] sm:$0xf]
  %v202 = vld [vmem:[%s3 + $0x30] sm:$0xf]
  %v203 = vld [vmem:[%s3 + $0x34] sm:$0xf]
  %v204 = vld [vmem:[%s3 + $0x38] sm:$0xf]
  %v205 = vld [vmem:[%s3 + $0x3c] sm:$0xf]
  %v222 = vunpack.c.l.b16 %v190
  %v223 = vunpack.c.l.b16 %v191
  %v224 = vunpack.c.l.b16 %v192
  %v225 = vunpack.c.l.b16 %v193
  %v226 = vunpack.c.l.b16 %v194
  %v227 = vunpack.c.l.b16 %v195
  %v228 = vunpack.c.l.b16 %v196
  %v229 = vunpack.c.l.b16 %v197
  %v230 = vunpack.c.l.b16 %v198
  %v231 = vunpack.c.l.b16 %v199
  %v232 = vunpack.c.l.b16 %v200
  %v233 = vunpack.c.l.b16 %v201
  %v234 = vunpack.c.l.b16 %v202
  %v235 = vunpack.c.l.b16 %v203
  %v236 = vunpack.c.l.b16 %v204
  %v237 = vunpack.c.l.b16 %v205
  %v238 = vpack.c.b16 %v223, %v222
  %v239 = vpack.c.b16 %v225, %v224
  %v240 = vpack.c.b16 %v227, %v226
  %v241 = vpack.c.b16 %v229, %v228
  %v242 = vpack.c.b16 %v231, %v230
  %v243 = vpack.c.b16 %v233, %v232
  %v244 = vpack.c.b16 %v235, %v234
  %v245 = vpack.c.b16 %v237, %v236
  %254 = vmatprep.subr.bf16.mxu0 0
  %255 = vmatpush1.bf16.msra.mxu0 %v245
  %256 = vmatprep.subr.bf16.mxu0 0
  %257 = vmatpush1.bf16.msra.mxu0 %v244
  %258 = vmatprep.subr.bf16.mxu0 0
  %259 = vmatpush1.bf16.msra.mxu0 %v243
  %260 = vmatprep.subr.bf16.mxu0 0
  %261 = vmatpush1.bf16.msra.mxu0 %v242
  %262 = vmatprep.subr.bf16.mxu0 0
  %263 = vmatpush1.bf16.msra.mxu0 %v241
  %264 = vmatprep.subr.bf16.mxu0 0
  %265 = vmatpush1.bf16.msra.mxu0 %v240
  %266 = vmatprep.subr.bf16.mxu0 0
  %267 = vmatpush1.bf16.msra.mxu0 %v239
  %268 = vmatprep.subr.bf16.mxu0 0
  %269 = vmatpush1.bf16.msra.mxu0 %v238
  %270 = vmatprep.subr.bf16.mxu0 0
  %271 = vmatpush2.bf16.msra.mxu0 0
  %272 = vmatprep.subr.bf16.mxu0 0
  %273 = vmatpush2.bf16.msra.mxu0 0
  %274 = vmatprep.subr.bf16.mxu0 0
  %275 = vmatpush2.bf16.msra.mxu0 0
  %276 = vmatprep.subr.bf16.mxu0 0
  %277 = vmatpush2.bf16.msra.mxu0 0
  %278 = vmatprep.subr.bf16.mxu0 0
  %279 = vmatpush2.bf16.msra.mxu0 0
  %280 = vmatprep.subr.bf16.mxu0 0
  %281 = vmatpush2.bf16.msra.mxu0 0
  %282 = vmatprep.subr.bf16.mxu0 0
  %283 = vmatpush2.bf16.msra.mxu0 0
  %284 = vmatprep.subr.bf16.mxu0 0
  %285 = vmatpush2.bf16.msra.mxu0 0
  %286 = vmatprep.mubr.bf16.mxu0 0
  %287 = vmatmul.mubr.bf16.gmra.mxu0 %v188
  %v288 = vpop.f32.mrf.mxu0
  %v289 = vadd.f32 0.0, %v288
  %v290 = vpop.f32.mrf.mxu0
  %v291 = vpop.f32.mrf.mxu0
  %v292 = vadd.f32 0.0, %v291
  %v293 = vpop.f32.mrf.mxu0
  %294 = vmatprep.mubr.bf16.mxu0 0
  %295 = vmatmul.mubr.bf16.gmra.mxu0 %v189
  %v296 = vpop.f32.mrf.mxu0
  %v297 = vadd.f32 0.0, %v296
  %v298 = vpop.f32.mrf.mxu0
  %v299 = vpop.f32.mrf.mxu0
  %v300 = vadd.f32 0.0, %v299
  %v301 = vpop.f32.mrf.mxu0
  %302 = vdwg.mxu0
  %v303 = vld [vmem:[%s4] sm:$0xf]
  %v304 = vld [vmem:[%s4 + $0x4] sm:$0xf]
  %v305 = vld [vmem:[%s4 + $0x8] sm:$0xf]
  %v306 = vld [vmem:[%s4 + $0xc] sm:$0xf]
  %v307 = vld [vmem:[%s4 + $0x10] sm:$0xf]
  %v308 = vld [vmem:[%s4 + $0x14] sm:$0xf]
  %v309 = vld [vmem:[%s4 + $0x18] sm:$0xf]
  %v310 = vld [vmem:[%s4 + $0x1c] sm:$0xf]
  %v311 = vld [vmem:[%s4 + $0x20] sm:$0xf]
  %v312 = vld [vmem:[%s4 + $0x24] sm:$0xf]
  %v313 = vld [vmem:[%s4 + $0x28] sm:$0xf]
  %v314 = vld [vmem:[%s4 + $0x2c] sm:$0xf]
  %v315 = vld [vmem:[%s4 + $0x30] sm:$0xf]
  %v316 = vld [vmem:[%s4 + $0x34] sm:$0xf]
  %v317 = vld [vmem:[%s4 + $0x38] sm:$0xf]
  %v318 = vld [vmem:[%s4 + $0x3c] sm:$0xf]
  %v335 = vunpack.c.l.b16 %v303
  %v336 = vunpack.c.l.b16 %v304
  %v337 = vunpack.c.l.b16 %v305
  %v338 = vunpack.c.l.b16 %v306
  %v339 = vunpack.c.l.b16 %v307
  %v340 = vunpack.c.l.b16 %v308
  %v341 = vunpack.c.l.b16 %v309
  %v342 = vunpack.c.l.b16 %v310
  %v343 = vunpack.c.l.b16 %v311
  %v344 = vunpack.c.l.b16 %v312
  %v345 = vunpack.c.l.b16 %v313
  %v346 = vunpack.c.l.b16 %v314
  %v347 = vunpack.c.l.b16 %v315
  %v348 = vunpack.c.l.b16 %v316
  %v349 = vunpack.c.l.b16 %v317
  %v350 = vunpack.c.l.b16 %v318
  %v351 = vpack.c.b16 %v336, %v335
  %v352 = vpack.c.b16 %v338, %v337
  %v353 = vpack.c.b16 %v340, %v339
  %v354 = vpack.c.b16 %v342, %v341
  %v355 = vpack.c.b16 %v344, %v343
  %v356 = vpack.c.b16 %v346, %v345
  %v357 = vpack.c.b16 %v348, %v347
  %v358 = vpack.c.b16 %v350, %v349
  %367 = vmatprep.subr.bf16.mxu0 0
  %368 = vmatpush1.bf16.msra.mxu0 %v358
  %369 = vmatprep.subr.bf16.mxu0 0
  %370 = vmatpush1.bf16.msra.mxu0 %v357
  %371 = vmatprep.subr.bf16.mxu0 0
  %372 = vmatpush1.bf16.msra.mxu0 %v356
  %373 = vmatprep.subr.bf16.mxu0 0
  %374 = vmatpush1.bf16.msra.mxu0 %v355
  %375 = vmatprep.subr.bf16.mxu0 0
  %376 = vmatpush1.bf16.msra.mxu0 %v354
  %377 = vmatprep.subr.bf16.mxu0 0
  %378 = vmatpush1.bf16.msra.mxu0 %v353
  %379 = vmatprep.subr.bf16.mxu0 0
  %380 = vmatpush1.bf16.msra.mxu0 %v352
  %381 = vmatprep.subr.bf16.mxu0 0
  %382 = vmatpush1.bf16.msra.mxu0 %v351
  %383 = vmatprep.subr.bf16.mxu0 0
  %384 = vmatpush2.bf16.msra.mxu0 0
  %385 = vmatprep.subr.bf16.mxu0 0
  %386 = vmatpush2.bf16.msra.mxu0 0
  %387 = vmatprep.subr.bf16.mxu0 0
  %388 = vmatpush2.bf16.msra.mxu0 0
  %389 = vmatprep.subr.bf16.mxu0 0
  %390 = vmatpush2.bf16.msra.mxu0 0
  %391 = vmatprep.subr.bf16.mxu0 0
  %392 = vmatpush2.bf16.msra.mxu0 0
  %393 = vmatprep.subr.bf16.mxu0 0
  %394 = vmatpush2.bf16.msra.mxu0 0
  %395 = vmatprep.subr.bf16.mxu0 0
  %396 = vmatpush2.bf16.msra.mxu0 0
  %397 = vmatprep.subr.bf16.mxu0 0
  %398 = vmatpush2.bf16.msra.mxu0 0
  %399 = vmatprep.mubr.bf16.mxu0 0
  %400 = vmatmul.mubr.bf16.gmra.mxu0 %v188
  %v401 = vpop.f32.mrf.mxu0
  %v402 = vadd.f32 0.0, %v401
  %v403 = vpop.f32.mrf.mxu0
  %v404 = vpop.f32.mrf.mxu0
  %v405 = vadd.f32 0.0, %v404
  %v406 = vpop.f32.mrf.mxu0
  %407 = vmatprep.mubr.bf16.mxu0 0
  %408 = vmatmul.mubr.bf16.gmra.mxu0 %v189
  %v409 = vpop.f32.mrf.mxu0
  %v410 = vadd.f32 0.0, %v409
  %v411 = vpop.f32.mrf.mxu0
  %v412 = vpop.f32.mrf.mxu0
  %v413 = vadd.f32 0.0, %v412
  %v414 = vpop.f32.mrf.mxu0
  %415 = vdwg.mxu0
  %v416 = vsub.f32 %v289, %v402
  %v417 = vsub.f32 %v292, %v405
  %v418 = vsub.f32 %v297, %v410
  %v419 = vsub.f32 %v300, %v413
  %v420 = vpack.c.bf16 %v417, %v416
  %v421 = vpack.c.bf16 %v419, %v418
  %v422 = vld [vmem:[#allocation2] sm:$0xf]
  %v423 = vld [vmem:[#allocation2 + $0x4] sm:$0xf]
  %v424 = vld [vmem:[#allocation2 + $0x8] sm:$0xf]
  %v425 = vld [vmem:[#allocation2 + $0xc] sm:$0xf]
  %v428 = vcombine.high %v420, %v420
  %v430 = vunpack.c.l.s4 1966171168
  %v431 = vunpack.c.0.s8 %v430
  %v432 = vlaneseq
  %v433 = vshrl.u32 %v432, 7
  %v434 = vsub.s32 %v431, %v433
  %v435 = vrot.slane %v420, %v434
  %v437 = vunpack.c.l.s4 1966171168
  %v438 = vunpack.c.0.s8 %v437
  %v439 = vlaneseq
  %v440 = vshrl.u32 %v439, 7
  %v441 = vsub.s32 %v438, %v440
  %v442 = vrot.slane %v428, %v441
  %v443 = vcombine.high %v435, %v435
  %v444 = vcombine.high %v442, %v442
  %v446 = vunpack.c.l.s4 1966171168
  %v447 = vunpack.c.0.s8 %v446
  %v448 = vlaneseq
  %v449 = vshrl.u32 %v448, 7
  %v450 = vsub.s32 %v447, %v449
  %v451 = vrot.slane %v435, %v450
  %v453 = vunpack.c.l.s4 1966171168
  %v454 = vunpack.c.0.s8 %v453
  %v455 = vlaneseq
  %v456 = vshrl.u32 %v455, 7
  %v457 = vsub.s32 %v454, %v456
  %v458 = vrot.slane %v442, %v457
  %v460 = vunpack.c.l.s4 1966171168
  %v461 = vunpack.c.0.s8 %v460
  %v462 = vlaneseq
  %v463 = vshrl.u32 %v462, 7
  %v464 = vsub.s32 %v461, %v463
  %v465 = vrot.slane %v443, %v464
  %v467 = vunpack.c.l.s4 1966171168
  %v468 = vunpack.c.0.s8 %v467
  %v469 = vlaneseq
  %v470 = vshrl.u32 %v469, 7
  %v471 = vsub.s32 %v468, %v470
  %v472 = vrot.slane %v444, %v471
  %v473 = vcombine.high %v451, %v451
  %v474 = vcombine.high %v458, %v458
  %v475 = vcombine.high %v465, %v465
  %v476 = vcombine.high %v472, %v472
  %v477 = vcombine.high %v421, %v421
  %v479 = vunpack.c.l.s4 1966171168
  %v480 = vunpack.c.0.s8 %v479
  %v481 = vlaneseq
  %v482 = vshrl.u32 %v481, 7
  %v483 = vsub.s32 %v480, %v482
  %v484 = vrot.slane %v421, %v483
  %v486 = vunpack.c.l.s4 1966171168
  %v487 = vunpack.c.0.s8 %v486
  %v488 = vlaneseq
  %v489 = vshrl.u32 %v488, 7
  %v490 = vsub.s32 %v487, %v489
  %v491 = vrot.slane %v477, %v490
  %v492 = vcombine.high %v484, %v484
  %v493 = vcombine.high %v491, %v491
  %v495 = vunpack.c.l.s4 1966171168
  %v496 = vunpack.c.0.s8 %v495
  %v497 = vlaneseq
  %v498 = vshrl.u32 %v497, 7
  %v499 = vsub.s32 %v496, %v498
  %v500 = vrot.slane %v484, %v499
  %v502 = vunpack.c.l.s4 1966171168
  %v503 = vunpack.c.0.s8 %v502
  %v504 = vlaneseq
  %v505 = vshrl.u32 %v504, 7
  %v506 = vsub.s32 %v503, %v505
  %v507 = vrot.slane %v491, %v506
  %v509 = vunpack.c.l.s4 1966171168
  %v510 = vunpack.c.0.s8 %v509
  %v511 = vlaneseq
  %v512 = vshrl.u32 %v511, 7
  %v513 = vsub.s32 %v510, %v512
  %v514 = vrot.slane %v492, %v513
  %v516 = vunpack.c.l.s4 1966171168
  %v517 = vunpack.c.0.s8 %v516
  %v518 = vlaneseq
  %v519 = vshrl.u32 %v518, 7
  %v520 = vsub.s32 %v517, %v519
  %v521 = vrot.slane %v493, %v520
  %v522 = vcombine.high %v500, %v500
  %v523 = vcombine.high %v507, %v507
  %v524 = vcombine.high %v514, %v514
  %v525 = vcombine.high %v521, %v521
  %v526 = vunpack.i.l.s16 %v451
  %v527 = vunpack.i.h.s16 %v451
  %v528 = vunpack.i.l.s16 %v465
  %v529 = vunpack.i.h.s16 %v465
  %v530 = vunpack.i.l.s16 %v473
  %v531 = vunpack.i.h.s16 %v473
  %v532 = vunpack.i.l.s16 %v475
  %v533 = vunpack.i.h.s16 %v475
  %v534 = vunpack.i.l.s16 %v458
  %v535 = vunpack.i.h.s16 %v458
  %v536 = vunpack.i.l.s16 %v472
  %v537 = vunpack.i.h.s16 %v472
  %v538 = vunpack.i.l.s16 %v474
  %v539 = vunpack.i.h.s16 %v474
  %v540 = vunpack.i.l.s16 %v476
  %v541 = vunpack.i.h.s16 %v476
  %v542 = vunpack.i.l.s16 %v500
  %v543 = vunpack.i.h.s16 %v500
  %v544 = vunpack.i.l.s16 %v514
  %v545 = vunpack.i.h.s16 %v514
  %v546 = vunpack.i.l.s16 %v522
  %v547 = vunpack.i.h.s16 %v522
  %v548 = vunpack.i.l.s16 %v524
  %v549 = vunpack.i.h.s16 %v524
  %v550 = vunpack.i.l.s16 %v507
  %v551 = vunpack.i.h.s16 %v507
  %v552 = vunpack.i.l.s16 %v521
  %v553 = vunpack.i.h.s16 %v521
  %v554 = vunpack.i.l.s16 %v523
  %v555 = vunpack.i.h.s16 %v523
  %v556 = vunpack.i.l.s16 %v525
  %v557 = vunpack.i.h.s16 %v525
  %v558 = vpack.i.b16 %v526, %v526
  %v559 = vpack.i.b16 %v527, %v527
  %v560 = vpack.i.b16 %v528, %v528
  %v561 = vpack.i.b16 %v529, %v529
  %v562 = vpack.i.b16 %v530, %v530
  %v563 = vpack.i.b16 %v531, %v531
  %v564 = vpack.i.b16 %v532, %v532
  %v565 = vpack.i.b16 %v533, %v533
  %v566 = vpack.i.b16 %v534, %v534
  %v567 = vpack.i.b16 %v535, %v535
  %v568 = vpack.i.b16 %v536, %v536
  %v569 = vpack.i.b16 %v537, %v537
  %v570 = vpack.i.b16 %v538, %v538
  %v571 = vpack.i.b16 %v539, %v539
  %v572 = vpack.i.b16 %v540, %v540
  %v573 = vpack.i.b16 %v541, %v541
  %v574 = vpack.i.b16 %v542, %v542
  %v575 = vpack.i.b16 %v543, %v543
  %v576 = vpack.i.b16 %v544, %v544
  %v577 = vpack.i.b16 %v545, %v545
  %v578 = vpack.i.b16 %v546, %v546
  %v579 = vpack.i.b16 %v547, %v547
  %v580 = vpack.i.b16 %v548, %v548
  %v581 = vpack.i.b16 %v549, %v549
  %v582 = vpack.i.b16 %v550, %v550
  %v583 = vpack.i.b16 %v551, %v551
  %v584 = vpack.i.b16 %v552, %v552
  %v585 = vpack.i.b16 %v553, %v553
  %v586 = vpack.i.b16 %v554, %v554
  %v587 = vpack.i.b16 %v555, %v555
  %v588 = vpack.i.b16 %v556, %v556
  %v589 = vpack.i.b16 %v557, %v557
  %v590 = vlaneseq
  %v591 = vshrl.u32 %v590, 7
  %v592 = vsub.s32 0, %v591
  %v593 = vrot.slane %v558, %v592
  %v594 = vlaneseq
  %v595 = vshrl.u32 %v594, 7
  %v596 = vsub.s32 0, %v595
  %v597 = vrot.slane %v559, %v596
  %v598 = vlaneseq
  %v599 = vshrl.u32 %v598, 7
  %v600 = vsub.s32 0, %v599
  %v601 = vrot.slane %v560, %v600
  %v602 = vlaneseq
  %v603 = vshrl.u32 %v602, 7
  %v604 = vsub.s32 0, %v603
  %v605 = vrot.slane %v561, %v604
  %v606 = vlaneseq
  %v607 = vshrl.u32 %v606, 7
  %v608 = vsub.s32 0, %v607
  %v609 = vrot.slane %v562, %v608
  %v610 = vlaneseq
  %v611 = vshrl.u32 %v610, 7
  %v612 = vsub.s32 0, %v611
  %v613 = vrot.slane %v563, %v612
  %v614 = vlaneseq
  %v615 = vshrl.u32 %v614, 7
  %v616 = vsub.s32 0, %v615
  %v617 = vrot.slane %v564, %v616
  %v618 = vlaneseq
  %v619 = vshrl.u32 %v618, 7
  %v620 = vsub.s32 0, %v619
  %v621 = vrot.slane %v565, %v620
  %v622 = vlaneseq
  %v623 = vshrl.u32 %v622, 7
  %v624 = vsub.s32 0, %v623
  %v625 = vrot.slane %v566, %v624
  %v626 = vlaneseq
  %v627 = vshrl.u32 %v626, 7
  %v628 = vsub.s32 0, %v627
  %v629 = vrot.slane %v567, %v628
  %v630 = vlaneseq
  %v631 = vshrl.u32 %v630, 7
  %v632 = vsub.s32 0, %v631
  %v633 = vrot.slane %v568, %v632
  %v634 = vlaneseq
  %v635 = vshrl.u32 %v634, 7
  %v636 = vsub.s32 0, %v635
  %v637 = vrot.slane %v569, %v636
  %v638 = vlaneseq
  %v639 = vshrl.u32 %v638, 7
  %v640 = vsub.s32 0, %v639
  %v641 = vrot.slane %v570, %v640
  %v642 = vlaneseq
  %v643 = vshrl.u32 %v642, 7
  %v644 = vsub.s32 0, %v643
  %v645 = vrot.slane %v571, %v644
  %v646 = vlaneseq
  %v647 = vshrl.u32 %v646, 7
  %v648 = vsub.s32 0, %v647
  %v649 = vrot.slane %v572, %v648
  %v650 = vlaneseq
  %v651 = vshrl.u32 %v650, 7
  %v652 = vsub.s32 0, %v651
  %v653 = vrot.slane %v573, %v652
  %v654 = vlaneseq
  %v655 = vshrl.u32 %v654, 7
  %v656 = vsub.s32 0, %v655
  %v657 = vrot.slane %v574, %v656
  %v658 = vlaneseq
  %v659 = vshrl.u32 %v658, 7
  %v660 = vsub.s32 0, %v659
  %v661 = vrot.slane %v575, %v660
  %v662 = vlaneseq
  %v663 = vshrl.u32 %v662, 7
  %v664 = vsub.s32 0, %v663
  %v665 = vrot.slane %v576, %v664
  %v666 = vlaneseq
  %v667 = vshrl.u32 %v666, 7
  %v668 = vsub.s32 0, %v667
  %v669 = vrot.slane %v577, %v668
  %v670 = vlaneseq
  %v671 = vshrl.u32 %v670, 7
  %v672 = vsub.s32 0, %v671
  %v673 = vrot.slane %v578, %v672
  %v674 = vlaneseq
  %v675 = vshrl.u32 %v674, 7
  %v676 = vsub.s32 0, %v675
  %v677 = vrot.slane %v579, %v676
  %v678 = vlaneseq
  %v679 = vshrl.u32 %v678, 7
  %v680 = vsub.s32 0, %v679
  %v681 = vrot.slane %v580, %v680
  %v682 = vlaneseq
  %v683 = vshrl.u32 %v682, 7
  %v684 = vsub.s32 0, %v683
  %v685 = vrot.slane %v581, %v684
  %v686 = vlaneseq
  %v687 = vshrl.u32 %v686, 7
  %v688 = vsub.s32 0, %v687
  %v689 = vrot.slane %v582, %v688
  %v690 = vlaneseq
  %v691 = vshrl.u32 %v690, 7
  %v692 = vsub.s32 0, %v691
  %v693 = vrot.slane %v583, %v692
  %v694 = vlaneseq
  %v695 = vshrl.u32 %v694, 7
  %v696 = vsub.s32 0, %v695
  %v697 = vrot.slane %v584, %v696
  %v698 = vlaneseq
  %v699 = vshrl.u32 %v698, 7
  %v700 = vsub.s32 0, %v699
  %v701 = vrot.slane %v585, %v700
  %v702 = vlaneseq
  %v703 = vshrl.u32 %v702, 7
  %v704 = vsub.s32 0, %v703
  %v705 = vrot.slane %v586, %v704
  %v706 = vlaneseq
  %v707 = vshrl.u32 %v706, 7
  %v708 = vsub.s32 0, %v707
  %v709 = vrot.slane %v587, %v708
  %v710 = vlaneseq
  %v711 = vshrl.u32 %v710, 7
  %v712 = vsub.s32 0, %v711
  %v713 = vrot.slane %v588, %v712
  %v714 = vlaneseq
  %v715 = vshrl.u32 %v714, 7
  %v716 = vsub.s32 0, %v715
  %v717 = vrot.slane %v589, %v716
  %v719 = vpack.i.b16 %v593, %v593
  %v721 = vlaneseq
  %v722 = vshrl.u32 %v721, 7
  %v723 = vsub.s32 0, %v722
  %v724 = vrot.slane %v719, %v723
  %v726 = vpack.i.b16 %v597, %v597
  %v728 = vlaneseq
  %v729 = vshrl.u32 %v728, 7
  %v730 = vsub.s32 0, %v729
  %v731 = vrot.slane %v726, %v730
  %v733 = vpack.i.b16 %v601, %v601
  %v735 = vlaneseq
  %v736 = vshrl.u32 %v735, 7
  %v737 = vsub.s32 0, %v736
  %v738 = vrot.slane %v733, %v737
  %v740 = vpack.i.b16 %v605, %v605
  %v742 = vlaneseq
  %v743 = vshrl.u32 %v742, 7
  %v744 = vsub.s32 0, %v743
  %v745 = vrot.slane %v740, %v744
  %v747 = vpack.i.b16 %v609, %v609
  %v749 = vlaneseq
  %v750 = vshrl.u32 %v749, 7
  %v751 = vsub.s32 0, %v750
  %v752 = vrot.slane %v747, %v751
  %v754 = vpack.i.b16 %v613, %v613
  %v756 = vlaneseq
  %v757 = vshrl.u32 %v756, 7
  %v758 = vsub.s32 0, %v757
  %v759 = vrot.slane %v754, %v758
  %v761 = vpack.i.b16 %v617, %v617
  %v763 = vlaneseq
  %v764 = vshrl.u32 %v763, 7
  %v765 = vsub.s32 0, %v764
  %v766 = vrot.slane %v761, %v765
  %v768 = vpack.i.b16 %v621, %v621
  %v770 = vlaneseq
  %v771 = vshrl.u32 %v770, 7
  %v772 = vsub.s32 0, %v771
  %v773 = vrot.slane %v768, %v772
  %v775 = vpack.i.b16 %v625, %v625
  %v777 = vlaneseq
  %v778 = vshrl.u32 %v777, 7
  %v779 = vsub.s32 0, %v778
  %v780 = vrot.slane %v775, %v779
  %v782 = vpack.i.b16 %v629, %v629
  %v784 = vlaneseq
  %v785 = vshrl.u32 %v784, 7
  %v786 = vsub.s32 0, %v785
  %v787 = vrot.slane %v782, %v786
  %v789 = vpack.i.b16 %v633, %v633
  %v791 = vlaneseq
  %v792 = vshrl.u32 %v791, 7
  %v793 = vsub.s32 0, %v792
  %v794 = vrot.slane %v789, %v793
  %v796 = vpack.i.b16 %v637, %v637
  %v798 = vlaneseq
  %v799 = vshrl.u32 %v798, 7
  %v800 = vsub.s32 0, %v799
  %v801 = vrot.slane %v796, %v800
  %v803 = vpack.i.b16 %v641, %v641
  %v805 = vlaneseq
  %v806 = vshrl.u32 %v805, 7
  %v807 = vsub.s32 0, %v806
  %v808 = vrot.slane %v803, %v807
  %v810 = vpack.i.b16 %v645, %v645
  %v812 = vlaneseq
  %v813 = vshrl.u32 %v812, 7
  %v814 = vsub.s32 0, %v813
  %v815 = vrot.slane %v810, %v814
  %v817 = vpack.i.b16 %v649, %v649
  %v819 = vlaneseq
  %v820 = vshrl.u32 %v819, 7
  %v821 = vsub.s32 0, %v820
  %v822 = vrot.slane %v817, %v821
  %v824 = vpack.i.b16 %v653, %v653
  %v826 = vlaneseq
  %v827 = vshrl.u32 %v826, 7
  %v828 = vsub.s32 0, %v827
  %v829 = vrot.slane %v824, %v828
  %v831 = vpack.i.b16 %v657, %v657
  %v833 = vlaneseq
  %v834 = vshrl.u32 %v833, 7
  %v835 = vsub.s32 0, %v834
  %v836 = vrot.slane %v831, %v835
  %v838 = vpack.i.b16 %v661, %v661
  %v840 = vlaneseq
  %v841 = vshrl.u32 %v840, 7
  %v842 = vsub.s32 0, %v841
  %v843 = vrot.slane %v838, %v842
  %v845 = vpack.i.b16 %v665, %v665
  %v847 = vlaneseq
  %v848 = vshrl.u32 %v847, 7
  %v849 = vsub.s32 0, %v848
  %v850 = vrot.slane %v845, %v849
  %v852 = vpack.i.b16 %v669, %v669
  %v854 = vlaneseq
  %v855 = vshrl.u32 %v854, 7
  %v856 = vsub.s32 0, %v855
  %v857 = vrot.slane %v852, %v856
  %v859 = vpack.i.b16 %v673, %v673
  %v861 = vlaneseq
  %v862 = vshrl.u32 %v861, 7
  %v863 = vsub.s32 0, %v862
  %v864 = vrot.slane %v859, %v863
  %v866 = vpack.i.b16 %v677, %v677
  %v868 = vlaneseq
  %v869 = vshrl.u32 %v868, 7
  %v870 = vsub.s32 0, %v869
  %v871 = vrot.slane %v866, %v870
  %v873 = vpack.i.b16 %v681, %v681
  %v875 = vlaneseq
  %v876 = vshrl.u32 %v875, 7
  %v877 = vsub.s32 0, %v876
  %v878 = vrot.slane %v873, %v877
  %v880 = vpack.i.b16 %v685, %v685
  %v882 = vlaneseq
  %v883 = vshrl.u32 %v882, 7
  %v884 = vsub.s32 0, %v883
  %v885 = vrot.slane %v880, %v884
  %v887 = vpack.i.b16 %v689, %v689
  %v889 = vlaneseq
  %v890 = vshrl.u32 %v889, 7
  %v891 = vsub.s32 0, %v890
  %v892 = vrot.slane %v887, %v891
  %v894 = vpack.i.b16 %v693, %v693
  %v896 = vlaneseq
  %v897 = vshrl.u32 %v896, 7
  %v898 = vsub.s32 0, %v897
  %v899 = vrot.slane %v894, %v898
  %v901 = vpack.i.b16 %v697, %v697
  %v903 = vlaneseq
  %v904 = vshrl.u32 %v903, 7
  %v905 = vsub.s32 0, %v904
  %v906 = vrot.slane %v901, %v905
  %v908 = vpack.i.b16 %v701, %v701
  %v910 = vlaneseq
  %v911 = vshrl.u32 %v910, 7
  %v912 = vsub.s32 0, %v911
  %v913 = vrot.slane %v908, %v912
  %v915 = vpack.i.b16 %v705, %v705
  %v917 = vlaneseq
  %v918 = vshrl.u32 %v917, 7
  %v919 = vsub.s32 0, %v918
  %v920 = vrot.slane %v915, %v919
  %v922 = vpack.i.b16 %v709, %v709
  %v924 = vlaneseq
  %v925 = vshrl.u32 %v924, 7
  %v926 = vsub.s32 0, %v925
  %v927 = vrot.slane %v922, %v926
  %v929 = vpack.i.b16 %v713, %v713
  %v931 = vlaneseq
  %v932 = vshrl.u32 %v931, 7
  %v933 = vsub.s32 0, %v932
  %v934 = vrot.slane %v929, %v933
  %v936 = vpack.i.b16 %v717, %v717
  %v938 = vlaneseq
  %v939 = vshrl.u32 %v938, 7
  %v940 = vsub.s32 0, %v939
  %v941 = vrot.slane %v936, %v940
  %v946 = vunpack.c.l.b16 %v422
  %v947 = vunpack.c.l.b16 %v423
  %v948 = vunpack.c.l.b16 %v424
  %v949 = vunpack.c.l.b16 %v425
  %v950 = vpack.c.b16 %v947, %v946
  %v951 = vpack.c.b16 %v949, %v948
  %v954 = vadd.bf16 %v724, %v950
  %v955 = vadd.bf16 %v724, %v951
  %v956 = vadd.bf16 %v731, %v950
  %v957 = vadd.bf16 %v731, %v951
  %v958 = vadd.bf16 %v738, %v950
  %v959 = vadd.bf16 %v738, %v951
  %v960 = vadd.bf16 %v745, %v950
  %v961 = vadd.bf16 %v745, %v951
  %v962 = vadd.bf16 %v752, %v950
  %v963 = vadd.bf16 %v752, %v951
  %v964 = vadd.bf16 %v759, %v950
  %v965 = vadd.bf16 %v759, %v951
  %v966 = vadd.bf16 %v766, %v950
  %v967 = vadd.bf16 %v766, %v951
  %v968 = vadd.bf16 %v773, %v950
  %v969 = vadd.bf16 %v773, %v951
  %v970 = vadd.bf16 %v780, %v950
  %v971 = vadd.bf16 %v780, %v951
  %v972 = vadd.bf16 %v787, %v950
  %v973 = vadd.bf16 %v787, %v951
  %v974 = vadd.bf16 %v794, %v950
  %v975 = vadd.bf16 %v794, %v951
  %v976 = vadd.bf16 %v801, %v950
  %v977 = vadd.bf16 %v801, %v951
  %v978 = vadd.bf16 %v808, %v950
  %v979 = vadd.bf16 %v808, %v951
  %v980 = vadd.bf16 %v815, %v950
  %v981 = vadd.bf16 %v815, %v951
  %v982 = vadd.bf16 %v822, %v950
  %v983 = vadd.bf16 %v822, %v951
  %v984 = vadd.bf16 %v829, %v950
  %v985 = vadd.bf16 %v829, %v951
  %v986 = vadd.bf16 %v836, %v950
  %v987 = vadd.bf16 %v836, %v951
  %v988 = vadd.bf16 %v843, %v950
  %v989 = vadd.bf16 %v843, %v951
  %v990 = vadd.bf16 %v850, %v950
  %v991 = vadd.bf16 %v850, %v951
  %v992 = vadd.bf16 %v857, %v950
  %v993 = vadd.bf16 %v857, %v951
  %v994 = vadd.bf16 %v864, %v950
  %v995 = vadd.bf16 %v864, %v951
  %v996 = vadd.bf16 %v871, %v950
  %v997 = vadd.bf16 %v871, %v951
  %v998 = vadd.bf16 %v878, %v950
  %v999 = vadd.bf16 %v878, %v951
  %v1000 = vadd.bf16 %v885, %v950
  %v1001 = vadd.bf16 %v885, %v951
  %v1002 = vadd.bf16 %v892, %v950
  %v1003 = vadd.bf16 %v892, %v951
  %v1004 = vadd.bf16 %v899, %v950
  %v1005 = vadd.bf16 %v899, %v951
  %v1006 = vadd.bf16 %v906, %v950
  %v1007 = vadd.bf16 %v906, %v951
  %v1008 = vadd.bf16 %v913, %v950
  %v1009 = vadd.bf16 %v913, %v951
  %v1010 = vadd.bf16 %v920, %v950
  %v1011 = vadd.bf16 %v920, %v951
  %v1012 = vadd.bf16 %v927, %v950
  %v1013 = vadd.bf16 %v927, %v951
  %v1014 = vadd.bf16 %v934, %v950
  %v1015 = vadd.bf16 %v934, %v951
  %v1016 = vadd.bf16 %v941, %v950
  %v1017 = vadd.bf16 %v941, %v951
  %v1018 = vmax.bf16 %v954, 0
  %v1019 = vmax.bf16 %v955, 0
  %v1020 = vmax.bf16 %v956, 0
  %v1021 = vmax.bf16 %v957, 0
  %v1022 = vmax.bf16 %v958, 0
  %v1023 = vmax.bf16 %v959, 0
  %v1024 = vmax.bf16 %v960, 0
  %v1025 = vmax.bf16 %v961, 0
  %v1026 = vmax.bf16 %v962, 0
  %v1027 = vmax.bf16 %v963, 0
  %v1028 = vmax.bf16 %v964, 0
  %v1029 = vmax.bf16 %v965, 0
  %v1030 = vmax.bf16 %v966, 0
  %v1031 = vmax.bf16 %v967, 0
  %v1032 = vmax.bf16 %v968, 0
  %v1033 = vmax.bf16 %v969, 0
  %v1034 = vmax.bf16 %v970, 0
  %v1035 = vmax.bf16 %v971, 0
  %v1036 = vmax.bf16 %v972, 0
  %v1037 = vmax.bf16 %v973, 0
  %v1038 = vmax.bf16 %v974, 0
  %v1039 = vmax.bf16 %v975, 0
  %v1040 = vmax.bf16 %v976, 0
  %v1041 = vmax.bf16 %v977, 0
  %v1042 = vmax.bf16 %v978, 0
  %v1043 = vmax.bf16 %v979, 0
  %v1044 = vmax.bf16 %v980, 0
  %v1045 = vmax.bf16 %v981, 0
  %v1046 = vmax.bf16 %v982, 0
  %v1047 = vmax.bf16 %v983, 0
  %v1048 = vmax.bf16 %v984, 0
  %v1049 = vmax.bf16 %v985, 0
  %v1050 = vmax.bf16 %v986, 0
  %v1051 = vmax.bf16 %v987, 0
  %v1052 = vmax.bf16 %v988, 0
  %v1053 = vmax.bf16 %v989, 0
  %v1054 = vmax.bf16 %v990, 0
  %v1055 = vmax.bf16 %v991, 0
  %v1056 = vmax.bf16 %v992, 0
  %v1057 = vmax.bf16 %v993, 0
  %v1058 = vmax.bf16 %v994, 0
  %v1059 = vmax.bf16 %v995, 0
  %v1060 = vmax.bf16 %v996, 0
  %v1061 = vmax.bf16 %v997, 0
  %v1062 = vmax.bf16 %v998, 0
  %v1063 = vmax.bf16 %v999, 0
  %v1064 = vmax.bf16 %v1000, 0
  %v1065 = vmax.bf16 %v1001, 0
  %v1066 = vmax.bf16 %v1002, 0
  %v1067 = vmax.bf16 %v1003, 0
  %v1068 = vmax.bf16 %v1004, 0
  %v1069 = vmax.bf16 %v1005, 0
  %v1070 = vmax.bf16 %v1006, 0
  %v1071 = vmax.bf16 %v1007, 0
  %v1072 = vmax.bf16 %v1008, 0
  %v1073 = vmax.bf16 %v1009, 0
  %v1074 = vmax.bf16 %v1010, 0
  %v1075 = vmax.bf16 %v1011, 0
  %v1076 = vmax.bf16 %v1012, 0
  %v1077 = vmax.bf16 %v1013, 0
  %v1078 = vmax.bf16 %v1014, 0
  %v1079 = vmax.bf16 %v1015, 0
  %v1080 = vmax.bf16 %v1016, 0
  %v1081 = vmax.bf16 %v1017, 0
  %v1082 = vld [vmem:[%s6] sm:$0xf]
  %v1083 = vld [vmem:[%s6 + $0x4] sm:$0xf]
  %v1084 = vld [vmem:[%s6 + $0x8] sm:$0xf]
  %v1085 = vld [vmem:[%s6 + $0xc] sm:$0xf]
  %v1086 = vld [vmem:[%s6 + $0x10] sm:$0xf]
  %v1087 = vld [vmem:[%s6 + $0x14] sm:$0xf]
  %v1088 = vld [vmem:[%s6 + $0x18] sm:$0xf]
  %v1089 = vld [vmem:[%s6 + $0x1c] sm:$0xf]
  %v1090 = vld [vmem:[%s6 + $0x20] sm:$0xf]
  %v1091 = vld [vmem:[%s6 + $0x24] sm:$0xf]
  %v1092 = vld [vmem:[%s6 + $0x28] sm:$0xf]
  %v1093 = vld [vmem:[%s6 + $0x2c] sm:$0xf]
  %v1094 = vld [vmem:[%s6 + $0x30] sm:$0xf]
  %v1095 = vld [vmem:[%s6 + $0x34] sm:$0xf]
  %v1096 = vld [vmem:[%s6 + $0x38] sm:$0xf]
  %v1097 = vld [vmem:[%s6 + $0x3c] sm:$0xf]
  %v1098 = vld [vmem:[%s7] sm:$0x1]
  %v1100 = vlaneseq
  %v1101 = vshrl.u32 %v1100, 7
  %v1102 = vsub.s32 0, %v1101
  %v1103 = vrot.slane %v1098, %v1102
  %v1121 = vunpack.c.l.b16 %v1082
  %v1122 = vunpack.c.l.b16 %v1083
  %v1123 = vunpack.c.l.b16 %v1084
  %v1124 = vunpack.c.l.b16 %v1085
  %v1125 = vunpack.c.l.b16 %v1086
  %v1126 = vunpack.c.l.b16 %v1087
  %v1127 = vunpack.c.l.b16 %v1088
  %v1128 = vunpack.c.l.b16 %v1089
  %v1129 = vunpack.c.l.b16 %v1090
  %v1130 = vunpack.c.l.b16 %v1091
  %v1131 = vunpack.c.l.b16 %v1092
  %v1132 = vunpack.c.l.b16 %v1093
  %v1133 = vunpack.c.l.b16 %v1094
  %v1134 = vunpack.c.l.b16 %v1095
  %v1135 = vunpack.c.l.b16 %v1096
  %v1136 = vunpack.c.l.b16 %v1097
  %v1137 = vpack.c.b16 %v1122, %v1121
  %v1138 = vpack.c.b16 %v1124, %v1123
  %v1139 = vpack.c.b16 %v1126, %v1125
  %v1140 = vpack.c.b16 %v1128, %v1127
  %v1141 = vpack.c.b16 %v1130, %v1129
  %v1142 = vpack.c.b16 %v1132, %v1131
  %v1143 = vpack.c.b16 %v1134, %v1133
  %v1144 = vpack.c.b16 %v1136, %v1135
  %1153 = vmatprep.subr.bf16.mxu0 0
  %1154 = vmatpush1.bf16.msra.mxu0 %v1144
  %1155 = vmatprep.subr.bf16.mxu0 0
  %1156 = vmatpush1.bf16.msra.mxu0 %v1143
  %1157 = vmatprep.subr.bf16.mxu0 0
  %1158 = vmatpush1.bf16.msra.mxu0 %v1142
  %1159 = vmatprep.subr.bf16.mxu0 0
  %1160 = vmatpush1.bf16.msra.mxu0 %v1141
  %1161 = vmatprep.subr.bf16.mxu0 0
  %1162 = vmatpush1.bf16.msra.mxu0 %v1140
  %1163 = vmatprep.subr.bf16.mxu0 0
  %1164 = vmatpush1.bf16.msra.mxu0 %v1139
  %1165 = vmatprep.subr.bf16.mxu0 0
  %1166 = vmatpush1.bf16.msra.mxu0 %v1138
  %1167 = vmatprep.subr.bf16.mxu0 0
  %1168 = vmatpush1.bf16.msra.mxu0 %v1137
  %1169 = vmatprep.subr.bf16.mxu0 0
  %1170 = vmatpush2.bf16.msra.mxu0 0
  %1171 = vmatprep.subr.bf16.mxu0 0
  %1172 = vmatpush2.bf16.msra.mxu0 0
  %1173 = vmatprep.subr.bf16.mxu0 0
  %1174 = vmatpush2.bf16.msra.mxu0 0
  %1175 = vmatprep.subr.bf16.mxu0 0
  %1176 = vmatpush2.bf16.msra.mxu0 0
  %1177 = vmatprep.subr.bf16.mxu0 0
  %1178 = vmatpush2.bf16.msra.mxu0 0
  %1179 = vmatprep.subr.bf16.mxu0 0
  %1180 = vmatpush2.bf16.msra.mxu0 0
  %1181 = vmatprep.subr.bf16.mxu0 0
  %1182 = vmatpush2.bf16.msra.mxu0 0
  %1183 = vmatprep.subr.bf16.mxu0 0
  %1184 = vmatpush2.bf16.msra.mxu0 0
  %1185 = vmatprep.mubr.bf16.mxu0 0
  %1186 = vmatmul.mubr.bf16.gmra.mxu0 %v1018
  %v1187 = vpop.f32.mrf.mxu0
  %v1188 = vadd.f32 %v1103, %v1187
  %v1189 = vpop.f32.mrf.mxu0
  %v1190 = vpop.f32.mrf.mxu0
  %v1191 = vadd.f32 %v1103, %v1190
  %v1192 = vpop.f32.mrf.mxu0
  %1193 = vmatprep.mubr.bf16.mxu0 0
  %1194 = vmatmul.mubr.bf16.gmra.mxu0 %v1019
  %v1195 = vpop.f32.mrf.mxu0
  %v1196 = vadd.f32 %v1103, %v1195
  %v1197 = vpop.f32.mrf.mxu0
  %v1198 = vpop.f32.mrf.mxu0
  %v1199 = vadd.f32 %v1103, %v1198
  %v1200 = vpop.f32.mrf.mxu0
  %1201 = vmatprep.mubr.bf16.mxu0 0
  %1202 = vmatmul.mubr.bf16.gmra.mxu0 %v1020
  %v1203 = vpop.f32.mrf.mxu0
  %v1204 = vadd.f32 %v1103, %v1203
  %v1205 = vpop.f32.mrf.mxu0
  %v1206 = vpop.f32.mrf.mxu0
  %v1207 = vadd.f32 %v1103, %v1206
  %v1208 = vpop.f32.mrf.mxu0
  %1209 = vmatprep.mubr.bf16.mxu0 0
  %1210 = vmatmul.mubr.bf16.gmra.mxu0 %v1021
  %v1211 = vpop.f32.mrf.mxu0
  %v1212 = vadd.f32 %v1103, %v1211
  %v1213 = vpop.f32.mrf.mxu0
  %v1214 = vpop.f32.mrf.mxu0
  %v1215 = vadd.f32 %v1103, %v1214
  %v1216 = vpop.f32.mrf.mxu0
  %1217 = vmatprep.mubr.bf16.mxu0 0
  %1218 = vmatmul.mubr.bf16.gmra.mxu0 %v1022
  %v1219 = vpop.f32.mrf.mxu0
  %v1220 = vadd.f32 %v1103, %v1219
  %v1221 = vpop.f32.mrf.mxu0
  %v1222 = vpop.f32.mrf.mxu0
  %v1223 = vadd.f32 %v1103, %v1222
  %v1224 = vpop.f32.mrf.mxu0
  %1225 = vmatprep.mubr.bf16.mxu0 0
  %1226 = vmatmul.mubr.bf16.gmra.mxu0 %v1023
  %v1227 = vpop.f32.mrf.mxu0
  %v1228 = vadd.f32 %v1103, %v1227
  %v1229 = vpop.f32.mrf.mxu0
  %v1230 = vpop.f32.mrf.mxu0
  %v1231 = vadd.f32 %v1103, %v1230
  %v1232 = vpop.f32.mrf.mxu0
  %1233 = vmatprep.mubr.bf16.mxu0 0
  %1234 = vmatmul.mubr.bf16.gmra.mxu0 %v1024
  %v1235 = vpop.f32.mrf.mxu0
  %v1236 = vadd.f32 %v1103, %v1235
  %v1237 = vpop.f32.mrf.mxu0
  %v1238 = vpop.f32.mrf.mxu0
  %v1239 = vadd.f32 %v1103, %v1238
  %v1240 = vpop.f32.mrf.mxu0
  %1241 = vmatprep.mubr.bf16.mxu0 0
  %1242 = vmatmul.mubr.bf16.gmra.mxu0 %v1025
  %v1243 = vpop.f32.mrf.mxu0
  %v1244 = vadd.f32 %v1103, %v1243
  %v1245 = vpop.f32.mrf.mxu0
  %v1246 = vpop.f32.mrf.mxu0
  %v1247 = vadd.f32 %v1103, %v1246
  %v1248 = vpop.f32.mrf.mxu0
  %1249 = vmatprep.mubr.bf16.mxu0 0
  %1250 = vmatmul.mubr.bf16.gmra.mxu0 %v1026
  %v1251 = vpop.f32.mrf.mxu0
  %v1252 = vadd.f32 %v1103, %v1251
  %v1253 = vpop.f32.mrf.mxu0
  %v1254 = vpop.f32.mrf.mxu0
  %v1255 = vadd.f32 %v1103, %v1254
  %v1256 = vpop.f32.mrf.mxu0
  %1257 = vmatprep.mubr.bf16.mxu0 0
  %1258 = vmatmul.mubr.bf16.gmra.mxu0 %v1027
  %v1259 = vpop.f32.mrf.mxu0
  %v1260 = vadd.f32 %v1103, %v1259
  %v1261 = vpop.f32.mrf.mxu0
  %v1262 = vpop.f32.mrf.mxu0
  %v1263 = vadd.f32 %v1103, %v1262
  %v1264 = vpop.f32.mrf.mxu0
  %1265 = vmatprep.mubr.bf16.mxu0 0
  %1266 = vmatmul.mubr.bf16.gmra.mxu0 %v1028
  %v1267 = vpop.f32.mrf.mxu0
  %v1268 = vadd.f32 %v1103, %v1267
  %v1269 = vpop.f32.mrf.mxu0
  %v1270 = vpop.f32.mrf.mxu0
  %v1271 = vadd.f32 %v1103, %v1270
  %v1272 = vpop.f32.mrf.mxu0
  %1273 = vmatprep.mubr.bf16.mxu0 0
  %1274 = vmatmul.mubr.bf16.gmra.mxu0 %v1029
  %v1275 = vpop.f32.mrf.mxu0
  %v1276 = vadd.f32 %v1103, %v1275
  %v1277 = vpop.f32.mrf.mxu0
  %v1278 = vpop.f32.mrf.mxu0
  %v1279 = vadd.f32 %v1103, %v1278
  %v1280 = vpop.f32.mrf.mxu0
  %1281 = vmatprep.mubr.bf16.mxu0 0
  %1282 = vmatmul.mubr.bf16.gmra.mxu0 %v1030
  %v1283 = vpop.f32.mrf.mxu0
  %v1284 = vadd.f32 %v1103, %v1283
  %v1285 = vpop.f32.mrf.mxu0
  %v1286 = vpop.f32.mrf.mxu0
  %v1287 = vadd.f32 %v1103, %v1286
  %v1288 = vpop.f32.mrf.mxu0
  %1289 = vmatprep.mubr.bf16.mxu0 0
  %1290 = vmatmul.mubr.bf16.gmra.mxu0 %v1031
  %v1291 = vpop.f32.mrf.mxu0
  %v1292 = vadd.f32 %v1103, %v1291
  %v1293 = vpop.f32.mrf.mxu0
  %v1294 = vpop.f32.mrf.mxu0
  %v1295 = vadd.f32 %v1103, %v1294
  %v1296 = vpop.f32.mrf.mxu0
  %1297 = vmatprep.mubr.bf16.mxu0 0
  %1298 = vmatmul.mubr.bf16.gmra.mxu0 %v1032
  %v1299 = vpop.f32.mrf.mxu0
  %v1300 = vadd.f32 %v1103, %v1299
  %v1301 = vpop.f32.mrf.mxu0
  %v1302 = vpop.f32.mrf.mxu0
  %v1303 = vadd.f32 %v1103, %v1302
  %v1304 = vpop.f32.mrf.mxu0
  %1305 = vmatprep.mubr.bf16.mxu0 0
  %1306 = vmatmul.mubr.bf16.gmra.mxu0 %v1033
  %v1307 = vpop.f32.mrf.mxu0
  %v1308 = vadd.f32 %v1103, %v1307
  %v1309 = vpop.f32.mrf.mxu0
  %v1310 = vpop.f32.mrf.mxu0
  %v1311 = vadd.f32 %v1103, %v1310
  %v1312 = vpop.f32.mrf.mxu0
  %1313 = vmatprep.mubr.bf16.mxu0 0
  %1314 = vmatmul.mubr.bf16.gmra.mxu0 %v1034
  %v1315 = vpop.f32.mrf.mxu0
  %v1316 = vadd.f32 %v1103, %v1315
  %v1317 = vpop.f32.mrf.mxu0
  %v1318 = vpop.f32.mrf.mxu0
  %v1319 = vadd.f32 %v1103, %v1318
  %v1320 = vpop.f32.mrf.mxu0
  %1321 = vmatprep.mubr.bf16.mxu0 0
  %1322 = vmatmul.mubr.bf16.gmra.mxu0 %v1035
  %v1323 = vpop.f32.mrf.mxu0
  %v1324 = vadd.f32 %v1103, %v1323
  %v1325 = vpop.f32.mrf.mxu0
  %v1326 = vpop.f32.mrf.mxu0
  %v1327 = vadd.f32 %v1103, %v1326
  %v1328 = vpop.f32.mrf.mxu0
  %1329 = vmatprep.mubr.bf16.mxu0 0
  %1330 = vmatmul.mubr.bf16.gmra.mxu0 %v1036
  %v1331 = vpop.f32.mrf.mxu0
  %v1332 = vadd.f32 %v1103, %v1331
  %v1333 = vpop.f32.mrf.mxu0
  %v1334 = vpop.f32.mrf.mxu0
  %v1335 = vadd.f32 %v1103, %v1334
  %v1336 = vpop.f32.mrf.mxu0
  %1337 = vmatprep.mubr.bf16.mxu0 0
  %1338 = vmatmul.mubr.bf16.gmra.mxu0 %v1037
  %v1339 = vpop.f32.mrf.mxu0
  %v1340 = vadd.f32 %v1103, %v1339
  %v1341 = vpop.f32.mrf.mxu0
  %v1342 = vpop.f32.mrf.mxu0
  %v1343 = vadd.f32 %v1103, %v1342
  %v1344 = vpop.f32.mrf.mxu0
  %1345 = vmatprep.mubr.bf16.mxu0 0
  %1346 = vmatmul.mubr.bf16.gmra.mxu0 %v1038
  %v1347 = vpop.f32.mrf.mxu0
  %v1348 = vadd.f32 %v1103, %v1347
  %v1349 = vpop.f32.mrf.mxu0
  %v1350 = vpop.f32.mrf.mxu0
  %v1351 = vadd.f32 %v1103, %v1350
  %v1352 = vpop.f32.mrf.mxu0
  %1353 = vmatprep.mubr.bf16.mxu0 0
  %1354 = vmatmul.mubr.bf16.gmra.mxu0 %v1039
  %v1355 = vpop.f32.mrf.mxu0
  %v1356 = vadd.f32 %v1103, %v1355
  %v1357 = vpop.f32.mrf.mxu0
  %v1358 = vpop.f32.mrf.mxu0
  %v1359 = vadd.f32 %v1103, %v1358
  %v1360 = vpop.f32.mrf.mxu0
  %1361 = vmatprep.mubr.bf16.mxu0 0
  %1362 = vmatmul.mubr.bf16.gmra.mxu0 %v1040
  %v1363 = vpop.f32.mrf.mxu0
  %v1364 = vadd.f32 %v1103, %v1363
  %v1365 = vpop.f32.mrf.mxu0
  %v1366 = vpop.f32.mrf.mxu0
  %v1367 = vadd.f32 %v1103, %v1366
  %v1368 = vpop.f32.mrf.mxu0
  %1369 = vmatprep.mubr.bf16.mxu0 0
  %1370 = vmatmul.mubr.bf16.gmra.mxu0 %v1041
  %v1371 = vpop.f32.mrf.mxu0
  %v1372 = vadd.f32 %v1103, %v1371
  %v1373 = vpop.f32.mrf.mxu0
  %v1374 = vpop.f32.mrf.mxu0
  %v1375 = vadd.f32 %v1103, %v1374
  %v1376 = vpop.f32.mrf.mxu0
  %1377 = vmatprep.mubr.bf16.mxu0 0
  %1378 = vmatmul.mubr.bf16.gmra.mxu0 %v1042
  %v1379 = vpop.f32.mrf.mxu0
  %v1380 = vadd.f32 %v1103, %v1379
  %v1381 = vpop.f32.mrf.mxu0
  %v1382 = vpop.f32.mrf.mxu0
  %v1383 = vadd.f32 %v1103, %v1382
  %v1384 = vpop.f32.mrf.mxu0
  %1385 = vmatprep.mubr.bf16.mxu0 0
  %1386 = vmatmul.mubr.bf16.gmra.mxu0 %v1043
  %v1387 = vpop.f32.mrf.mxu0
  %v1388 = vadd.f32 %v1103, %v1387
  %v1389 = vpop.f32.mrf.mxu0
  %v1390 = vpop.f32.mrf.mxu0
  %v1391 = vadd.f32 %v1103, %v1390
  %v1392 = vpop.f32.mrf.mxu0
  %1393 = vmatprep.mubr.bf16.mxu0 0
  %1394 = vmatmul.mubr.bf16.gmra.mxu0 %v1044
  %v1395 = vpop.f32.mrf.mxu0
  %v1396 = vadd.f32 %v1103, %v1395
  %v1397 = vpop.f32.mrf.mxu0
  %v1398 = vpop.f32.mrf.mxu0
  %v1399 = vadd.f32 %v1103, %v1398
  %v1400 = vpop.f32.mrf.mxu0
  %1401 = vmatprep.mubr.bf16.mxu0 0
  %1402 = vmatmul.mubr.bf16.gmra.mxu0 %v1045
  %v1403 = vpop.f32.mrf.mxu0
  %v1404 = vadd.f32 %v1103, %v1403
  %v1405 = vpop.f32.mrf.mxu0
  %v1406 = vpop.f32.mrf.mxu0
  %v1407 = vadd.f32 %v1103, %v1406
  %v1408 = vpop.f32.mrf.mxu0
  %1409 = vmatprep.mubr.bf16.mxu0 0
  %1410 = vmatmul.mubr.bf16.gmra.mxu0 %v1046
  %v1411 = vpop.f32.mrf.mxu0
  %v1412 = vadd.f32 %v1103, %v1411
  %v1413 = vpop.f32.mrf.mxu0
  %v1414 = vpop.f32.mrf.mxu0
  %v1415 = vadd.f32 %v1103, %v1414
  %v1416 = vpop.f32.mrf.mxu0
  %1417 = vmatprep.mubr.bf16.mxu0 0
  %1418 = vmatmul.mubr.bf16.gmra.mxu0 %v1047
  %v1419 = vpop.f32.mrf.mxu0
  %v1420 = vadd.f32 %v1103, %v1419
  %v1421 = vpop.f32.mrf.mxu0
  %v1422 = vpop.f32.mrf.mxu0
  %v1423 = vadd.f32 %v1103, %v1422
  %v1424 = vpop.f32.mrf.mxu0
  %1425 = vmatprep.mubr.bf16.mxu0 0
  %1426 = vmatmul.mubr.bf16.gmra.mxu0 %v1048
  %v1427 = vpop.f32.mrf.mxu0
  %v1428 = vadd.f32 %v1103, %v1427
  %v1429 = vpop.f32.mrf.mxu0
  %v1430 = vpop.f32.mrf.mxu0
  %v1431 = vadd.f32 %v1103, %v1430
  %v1432 = vpop.f32.mrf.mxu0
  %1433 = vmatprep.mubr.bf16.mxu0 0
  %1434 = vmatmul.mubr.bf16.gmra.mxu0 %v1049
  %v1435 = vpop.f32.mrf.mxu0
  %v1436 = vadd.f32 %v1103, %v1435
  %v1437 = vpop.f32.mrf.mxu0
  %v1438 = vpop.f32.mrf.mxu0
  %v1439 = vadd.f32 %v1103, %v1438
  %v1440 = vpop.f32.mrf.mxu0
  %1441 = vmatprep.mubr.bf16.mxu0 0
  %1442 = vmatmul.mubr.bf16.gmra.mxu0 %v1050
  %v1443 = vpop.f32.mrf.mxu0
  %v1444 = vadd.f32 %v1103, %v1443
  %v1445 = vpop.f32.mrf.mxu0
  %v1446 = vpop.f32.mrf.mxu0
  %v1447 = vadd.f32 %v1103, %v1446
  %v1448 = vpop.f32.mrf.mxu0
  %1449 = vmatprep.mubr.bf16.mxu0 0
  %1450 = vmatmul.mubr.bf16.gmra.mxu0 %v1051
  %v1451 = vpop.f32.mrf.mxu0
  %v1452 = vadd.f32 %v1103, %v1451
  %v1453 = vpop.f32.mrf.mxu0
  %v1454 = vpop.f32.mrf.mxu0
  %v1455 = vadd.f32 %v1103, %v1454
  %v1456 = vpop.f32.mrf.mxu0
  %1457 = vmatprep.mubr.bf16.mxu0 0
  %1458 = vmatmul.mubr.bf16.gmra.mxu0 %v1052
  %v1459 = vpop.f32.mrf.mxu0
  %v1460 = vadd.f32 %v1103, %v1459
  %v1461 = vpop.f32.mrf.mxu0
  %v1462 = vpop.f32.mrf.mxu0
  %v1463 = vadd.f32 %v1103, %v1462
  %v1464 = vpop.f32.mrf.mxu0
  %1465 = vmatprep.mubr.bf16.mxu0 0
  %1466 = vmatmul.mubr.bf16.gmra.mxu0 %v1053
  %v1467 = vpop.f32.mrf.mxu0
  %v1468 = vadd.f32 %v1103, %v1467
  %v1469 = vpop.f32.mrf.mxu0
  %v1470 = vpop.f32.mrf.mxu0
  %v1471 = vadd.f32 %v1103, %v1470
  %v1472 = vpop.f32.mrf.mxu0
  %1473 = vmatprep.mubr.bf16.mxu0 0
  %1474 = vmatmul.mubr.bf16.gmra.mxu0 %v1054
  %v1475 = vpop.f32.mrf.mxu0
  %v1476 = vadd.f32 %v1103, %v1475
  %v1477 = vpop.f32.mrf.mxu0
  %v1478 = vpop.f32.mrf.mxu0
  %v1479 = vadd.f32 %v1103, %v1478
  %v1480 = vpop.f32.mrf.mxu0
  %1481 = vmatprep.mubr.bf16.mxu0 0
  %1482 = vmatmul.mubr.bf16.gmra.mxu0 %v1055
  %v1483 = vpop.f32.mrf.mxu0
  %v1484 = vadd.f32 %v1103, %v1483
  %v1485 = vpop.f32.mrf.mxu0
  %v1486 = vpop.f32.mrf.mxu0
  %v1487 = vadd.f32 %v1103, %v1486
  %v1488 = vpop.f32.mrf.mxu0
  %1489 = vmatprep.mubr.bf16.mxu0 0
  %1490 = vmatmul.mubr.bf16.gmra.mxu0 %v1056
  %v1491 = vpop.f32.mrf.mxu0
  %v1492 = vadd.f32 %v1103, %v1491
  %v1493 = vpop.f32.mrf.mxu0
  %v1494 = vpop.f32.mrf.mxu0
  %v1495 = vadd.f32 %v1103, %v1494
  %v1496 = vpop.f32.mrf.mxu0
  %1497 = vmatprep.mubr.bf16.mxu0 0
  %1498 = vmatmul.mubr.bf16.gmra.mxu0 %v1057
  %v1499 = vpop.f32.mrf.mxu0
  %v1500 = vadd.f32 %v1103, %v1499
  %v1501 = vpop.f32.mrf.mxu0
  %v1502 = vpop.f32.mrf.mxu0
  %v1503 = vadd.f32 %v1103, %v1502
  %v1504 = vpop.f32.mrf.mxu0
  %1505 = vmatprep.mubr.bf16.mxu0 0
  %1506 = vmatmul.mubr.bf16.gmra.mxu0 %v1058
  %v1507 = vpop.f32.mrf.mxu0
  %v1508 = vadd.f32 %v1103, %v1507
  %v1509 = vpop.f32.mrf.mxu0
  %v1510 = vpop.f32.mrf.mxu0
  %v1511 = vadd.f32 %v1103, %v1510
  %v1512 = vpop.f32.mrf.mxu0
  %1513 = vmatprep.mubr.bf16.mxu0 0
  %1514 = vmatmul.mubr.bf16.gmra.mxu0 %v1059
  %v1515 = vpop.f32.mrf.mxu0
  %v1516 = vadd.f32 %v1103, %v1515
  %v1517 = vpop.f32.mrf.mxu0
  %v1518 = vpop.f32.mrf.mxu0
  %v1519 = vadd.f32 %v1103, %v1518
  %v1520 = vpop.f32.mrf.mxu0
  %1521 = vmatprep.mubr.bf16.mxu0 0
  %1522 = vmatmul.mubr.bf16.gmra.mxu0 %v1060
  %v1523 = vpop.f32.mrf.mxu0
  %v1524 = vadd.f32 %v1103, %v1523
  %v1525 = vpop.f32.mrf.mxu0
  %v1526 = vpop.f32.mrf.mxu0
  %v1527 = vadd.f32 %v1103, %v1526
  %v1528 = vpop.f32.mrf.mxu0
  %1529 = vmatprep.mubr.bf16.mxu0 0
  %1530 = vmatmul.mubr.bf16.gmra.mxu0 %v1061
  %v1531 = vpop.f32.mrf.mxu0
  %v1532 = vadd.f32 %v1103, %v1531
  %v1533 = vpop.f32.mrf.mxu0
  %v1534 = vpop.f32.mrf.mxu0
  %v1535 = vadd.f32 %v1103, %v1534
  %v1536 = vpop.f32.mrf.mxu0
  %1537 = vmatprep.mubr.bf16.mxu0 0
  %1538 = vmatmul.mubr.bf16.gmra.mxu0 %v1062
  %v1539 = vpop.f32.mrf.mxu0
  %v1540 = vadd.f32 %v1103, %v1539
  %v1541 = vpop.f32.mrf.mxu0
  %v1542 = vpop.f32.mrf.mxu0
  %v1543 = vadd.f32 %v1103, %v1542
  %v1544 = vpop.f32.mrf.mxu0
  %1545 = vmatprep.mubr.bf16.mxu0 0
  %1546 = vmatmul.mubr.bf16.gmra.mxu0 %v1063
  %v1547 = vpop.f32.mrf.mxu0
  %v1548 = vadd.f32 %v1103, %v1547
  %v1549 = vpop.f32.mrf.mxu0
  %v1550 = vpop.f32.mrf.mxu0
  %v1551 = vadd.f32 %v1103, %v1550
  %v1552 = vpop.f32.mrf.mxu0
  %1553 = vmatprep.mubr.bf16.mxu0 0
  %1554 = vmatmul.mubr.bf16.gmra.mxu0 %v1064
  %v1555 = vpop.f32.mrf.mxu0
  %v1556 = vadd.f32 %v1103, %v1555
  %v1557 = vpop.f32.mrf.mxu0
  %v1558 = vpop.f32.mrf.mxu0
  %v1559 = vadd.f32 %v1103, %v1558
  %v1560 = vpop.f32.mrf.mxu0
  %1561 = vmatprep.mubr.bf16.mxu0 0
  %1562 = vmatmul.mubr.bf16.gmra.mxu0 %v1065
  %v1563 = vpop.f32.mrf.mxu0
  %v1564 = vadd.f32 %v1103, %v1563
  %v1565 = vpop.f32.mrf.mxu0
  %v1566 = vpop.f32.mrf.mxu0
  %v1567 = vadd.f32 %v1103, %v1566
  %v1568 = vpop.f32.mrf.mxu0
  %1569 = vmatprep.mubr.bf16.mxu0 0
  %1570 = vmatmul.mubr.bf16.gmra.mxu0 %v1066
  %v1571 = vpop.f32.mrf.mxu0
  %v1572 = vadd.f32 %v1103, %v1571
  %v1573 = vpop.f32.mrf.mxu0
  %v1574 = vpop.f32.mrf.mxu0
  %v1575 = vadd.f32 %v1103, %v1574
  %v1576 = vpop.f32.mrf.mxu0
  %1577 = vmatprep.mubr.bf16.mxu0 0
  %1578 = vmatmul.mubr.bf16.gmra.mxu0 %v1067
  %v1579 = vpop.f32.mrf.mxu0
  %v1580 = vadd.f32 %v1103, %v1579
  %v1581 = vpop.f32.mrf.mxu0
  %v1582 = vpop.f32.mrf.mxu0
  %v1583 = vadd.f32 %v1103, %v1582
  %v1584 = vpop.f32.mrf.mxu0
  %1585 = vmatprep.mubr.bf16.mxu0 0
  %1586 = vmatmul.mubr.bf16.gmra.mxu0 %v1068
  %v1587 = vpop.f32.mrf.mxu0
  %v1588 = vadd.f32 %v1103, %v1587
  %v1589 = vpop.f32.mrf.mxu0
  %v1590 = vpop.f32.mrf.mxu0
  %v1591 = vadd.f32 %v1103, %v1590
  %v1592 = vpop.f32.mrf.mxu0
  %1593 = vmatprep.mubr.bf16.mxu0 0
  %1594 = vmatmul.mubr.bf16.gmra.mxu0 %v1069
  %v1595 = vpop.f32.mrf.mxu0
  %v1596 = vadd.f32 %v1103, %v1595
  %v1597 = vpop.f32.mrf.mxu0
  %v1598 = vpop.f32.mrf.mxu0
  %v1599 = vadd.f32 %v1103, %v1598
  %v1600 = vpop.f32.mrf.mxu0
  %1601 = vmatprep.mubr.bf16.mxu0 0
  %1602 = vmatmul.mubr.bf16.gmra.mxu0 %v1070
  %v1603 = vpop.f32.mrf.mxu0
  %v1604 = vadd.f32 %v1103, %v1603
  %v1605 = vpop.f32.mrf.mxu0
  %v1606 = vpop.f32.mrf.mxu0
  %v1607 = vadd.f32 %v1103, %v1606
  %v1608 = vpop.f32.mrf.mxu0
  %1609 = vmatprep.mubr.bf16.mxu0 0
  %1610 = vmatmul.mubr.bf16.gmra.mxu0 %v1071
  %v1611 = vpop.f32.mrf.mxu0
  %v1612 = vadd.f32 %v1103, %v1611
  %v1613 = vpop.f32.mrf.mxu0
  %v1614 = vpop.f32.mrf.mxu0
  %v1615 = vadd.f32 %v1103, %v1614
  %v1616 = vpop.f32.mrf.mxu0
  %1617 = vmatprep.mubr.bf16.mxu0 0
  %1618 = vmatmul.mubr.bf16.gmra.mxu0 %v1072
  %v1619 = vpop.f32.mrf.mxu0
  %v1620 = vadd.f32 %v1103, %v1619
  %v1621 = vpop.f32.mrf.mxu0
  %v1622 = vpop.f32.mrf.mxu0
  %v1623 = vadd.f32 %v1103, %v1622
  %v1624 = vpop.f32.mrf.mxu0
  %1625 = vmatprep.mubr.bf16.mxu0 0
  %1626 = vmatmul.mubr.bf16.gmra.mxu0 %v1073
  %v1627 = vpop.f32.mrf.mxu0
  %v1628 = vadd.f32 %v1103, %v1627
  %v1629 = vpop.f32.mrf.mxu0
  %v1630 = vpop.f32.mrf.mxu0
  %v1631 = vadd.f32 %v1103, %v1630
  %v1632 = vpop.f32.mrf.mxu0
  %1633 = vmatprep.mubr.bf16.mxu0 0
  %1634 = vmatmul.mubr.bf16.gmra.mxu0 %v1074
  %v1635 = vpop.f32.mrf.mxu0
  %v1636 = vadd.f32 %v1103, %v1635
  %v1637 = vpop.f32.mrf.mxu0
  %v1638 = vpop.f32.mrf.mxu0
  %v1639 = vadd.f32 %v1103, %v1638
  %v1640 = vpop.f32.mrf.mxu0
  %1641 = vmatprep.mubr.bf16.mxu0 0
  %1642 = vmatmul.mubr.bf16.gmra.mxu0 %v1075
  %v1643 = vpop.f32.mrf.mxu0
  %v1644 = vadd.f32 %v1103, %v1643
  %v1645 = vpop.f32.mrf.mxu0
  %v1646 = vpop.f32.mrf.mxu0
  %v1647 = vadd.f32 %v1103, %v1646
  %v1648 = vpop.f32.mrf.mxu0
  %1649 = vmatprep.mubr.bf16.mxu0 0
  %1650 = vmatmul.mubr.bf16.gmra.mxu0 %v1076
  %v1651 = vpop.f32.mrf.mxu0
  %v1652 = vadd.f32 %v1103, %v1651
  %v1653 = vpop.f32.mrf.mxu0
  %v1654 = vpop.f32.mrf.mxu0
  %v1655 = vadd.f32 %v1103, %v1654
  %v1656 = vpop.f32.mrf.mxu0
  %1657 = vmatprep.mubr.bf16.mxu0 0
  %1658 = vmatmul.mubr.bf16.gmra.mxu0 %v1077
  %v1659 = vpop.f32.mrf.mxu0
  %v1660 = vadd.f32 %v1103, %v1659
  %v1661 = vpop.f32.mrf.mxu0
  %v1662 = vpop.f32.mrf.mxu0
  %v1663 = vadd.f32 %v1103, %v1662
  %v1664 = vpop.f32.mrf.mxu0
  %1665 = vmatprep.mubr.bf16.mxu0 0
  %1666 = vmatmul.mubr.bf16.gmra.mxu0 %v1078
  %v1667 = vpop.f32.mrf.mxu0
  %v1668 = vadd.f32 %v1103, %v1667
  %v1669 = vpop.f32.mrf.mxu0
  %v1670 = vpop.f32.mrf.mxu0
  %v1671 = vadd.f32 %v1103, %v1670
  %v1672 = vpop.f32.mrf.mxu0
  %1673 = vmatprep.mubr.bf16.mxu0 0
  %1674 = vmatmul.mubr.bf16.gmra.mxu0 %v1079
  %v1675 = vpop.f32.mrf.mxu0
  %v1676 = vadd.f32 %v1103, %v1675
  %v1677 = vpop.f32.mrf.mxu0
  %v1678 = vpop.f32.mrf.mxu0
  %v1679 = vadd.f32 %v1103, %v1678
  %v1680 = vpop.f32.mrf.mxu0
  %1681 = vmatprep.mubr.bf16.mxu0 0
  %1682 = vmatmul.mubr.bf16.gmra.mxu0 %v1080
  %v1683 = vpop.f32.mrf.mxu0
  %v1684 = vadd.f32 %v1103, %v1683
  %v1685 = vpop.f32.mrf.mxu0
  %v1686 = vpop.f32.mrf.mxu0
  %v1687 = vadd.f32 %v1103, %v1686
  %v1688 = vpop.f32.mrf.mxu0
  %1689 = vmatprep.mubr.bf16.mxu0 0
  %1690 = vmatmul.mubr.bf16.gmra.mxu0 %v1081
  %v1691 = vpop.f32.mrf.mxu0
  %v1692 = vadd.f32 %v1103, %v1691
  %v1693 = vpop.f32.mrf.mxu0
  %v1694 = vpop.f32.mrf.mxu0
  %v1695 = vadd.f32 %v1103, %v1694
  %v1696 = vpop.f32.mrf.mxu0
  %1697 = vdwg.mxu0
  %v1698 = vmax.f32 %v1188, 0.0
  %v1699 = vmax.f32 %v1191, 0.0
  %v1700 = vmax.f32 %v1196, 0.0
  %v1701 = vmax.f32 %v1199, 0.0
  %v1702 = vmax.f32 %v1204, 0.0
  %v1703 = vmax.f32 %v1207, 0.0
  %v1704 = vmax.f32 %v1212, 0.0
  %v1705 = vmax.f32 %v1215, 0.0
  %v1706 = vmax.f32 %v1220, 0.0
  %v1707 = vmax.f32 %v1223, 0.0
  %v1708 = vmax.f32 %v1228, 0.0
  %v1709 = vmax.f32 %v1231, 0.0
  %v1710 = vmax.f32 %v1236, 0.0
  %v1711 = vmax.f32 %v1239, 0.0
  %v1712 = vmax.f32 %v1244, 0.0
  %v1713 = vmax.f32 %v1247, 0.0
  %v1714 = vmax.f32 %v1252, 0.0
  %v1715 = vmax.f32 %v1255, 0.0
  %v1716 = vmax.f32 %v1260, 0.0
  %v1717 = vmax.f32 %v1263, 0.0
  %v1718 = vmax.f32 %v1268, 0.0
  %v1719 = vmax.f32 %v1271, 0.0
  %v1720 = vmax.f32 %v1276, 0.0
  %v1721 = vmax.f32 %v1279, 0.0
  %v1722 = vmax.f32 %v1284, 0.0
  %v1723 = vmax.f32 %v1287, 0.0
  %v1724 = vmax.f32 %v1292, 0.0
  %v1725 = vmax.f32 %v1295, 0.0
  %v1726 = vmax.f32 %v1300, 0.0
  %v1727 = vmax.f32 %v1303, 0.0
  %v1728 = vmax.f32 %v1308, 0.0
  %v1729 = vmax.f32 %v1311, 0.0
  %v1730 = vmax.f32 %v1316, 0.0
  %v1731 = vmax.f32 %v1319, 0.0
  %v1732 = vmax.f32 %v1324, 0.0
  %v1733 = vmax.f32 %v1327, 0.0
  %v1734 = vmax.f32 %v1332, 0.0
  %v1735 = vmax.f32 %v1335, 0.0
  %v1736 = vmax.f32 %v1340, 0.0
  %v1737 = vmax.f32 %v1343, 0.0
  %v1738 = vmax.f32 %v1348, 0.0
  %v1739 = vmax.f32 %v1351, 0.0
  %v1740 = vmax.f32 %v1356, 0.0
  %v1741 = vmax.f32 %v1359, 0.0
  %v1742 = vmax.f32 %v1364, 0.0
  %v1743 = vmax.f32 %v1367, 0.0
  %v1744 = vmax.f32 %v1372, 0.0
  %v1745 = vmax.f32 %v1375, 0.0
  %v1746 = vmax.f32 %v1380, 0.0
  %v1747 = vmax.f32 %v1383, 0.0
  %v1748 = vmax.f32 %v1388, 0.0
  %v1749 = vmax.f32 %v1391, 0.0
  %v1750 = vmax.f32 %v1396, 0.0
  %v1751 = vmax.f32 %v1399, 0.0
  %v1752 = vmax.f32 %v1404, 0.0
  %v1753 = vmax.f32 %v1407, 0.0
  %v1754 = vmax.f32 %v1412, 0.0
  %v1755 = vmax.f32 %v1415, 0.0
  %v1756 = vmax.f32 %v1420, 0.0
  %v1757 = vmax.f32 %v1423, 0.0
  %v1758 = vmax.f32 %v1428, 0.0
  %v1759 = vmax.f32 %v1431, 0.0
  %v1760 = vmax.f32 %v1436, 0.0
  %v1761 = vmax.f32 %v1439, 0.0
  %v1762 = vmax.f32 %v1444, 0.0
  %v1763 = vmax.f32 %v1447, 0.0
  %v1764 = vmax.f32 %v1452, 0.0
  %v1765 = vmax.f32 %v1455, 0.0
  %v1766 = vmax.f32 %v1460, 0.0
  %v1767 = vmax.f32 %v1463, 0.0
  %v1768 = vmax.f32 %v1468, 0.0
  %v1769 = vmax.f32 %v1471, 0.0
  %v1770 = vmax.f32 %v1476, 0.0
  %v1771 = vmax.f32 %v1479, 0.0
  %v1772 = vmax.f32 %v1484, 0.0
  %v1773 = vmax.f32 %v1487, 0.0
  %v1774 = vmax.f32 %v1492, 0.0
  %v1775 = vmax.f32 %v1495, 0.0
  %v1776 = vmax.f32 %v1500, 0.0
  %v1777 = vmax.f32 %v1503, 0.0
  %v1778 = vmax.f32 %v1508, 0.0
  %v1779 = vmax.f32 %v1511, 0.0
  %v1780 = vmax.f32 %v1516, 0.0
  %v1781 = vmax.f32 %v1519, 0.0
  %v1782 = vmax.f32 %v1524, 0.0
  %v1783 = vmax.f32 %v1527, 0.0
  %v1784 = vmax.f32 %v1532, 0.0
  %v1785 = vmax.f32 %v1535, 0.0
  %v1786 = vmax.f32 %v1540, 0.0
  %v1787 = vmax.f32 %v1543, 0.0
  %v1788 = vmax.f32 %v1548, 0.0
  %v1789 = vmax.f32 %v1551, 0.0
  %v1790 = vmax.f32 %v1556, 0.0
  %v1791 = vmax.f32 %v1559, 0.0
  %v1792 = vmax.f32 %v1564, 0.0
  %v1793 = vmax.f32 %v1567, 0.0
  %v1794 = vmax.f32 %v1572, 0.0
  %v1795 = vmax.f32 %v1575, 0.0
  %v1796 = vmax.f32 %v1580, 0.0
  %v1797 = vmax.f32 %v1583, 0.0
  %v1798 = vmax.f32 %v1588, 0.0
  %v1799 = vmax.f32 %v1591, 0.0
  %v1800 = vmax.f32 %v1596, 0.0
  %v1801 = vmax.f32 %v1599, 0.0
  %v1802 = vmax.f32 %v1604, 0.0
  %v1803 = vmax.f32 %v1607, 0.0
  %v1804 = vmax.f32 %v1612, 0.0
  %v1805 = vmax.f32 %v1615, 0.0
  %v1806 = vmax.f32 %v1620, 0.0
  %v1807 = vmax.f32 %v1623, 0.0
  %v1808 = vmax.f32 %v1628, 0.0
  %v1809 = vmax.f32 %v1631, 0.0
  %v1810 = vmax.f32 %v1636, 0.0
  %v1811 = vmax.f32 %v1639, 0.0
  %v1812 = vmax.f32 %v1644, 0.0
  %v1813 = vmax.f32 %v1647, 0.0
  %v1814 = vmax.f32 %v1652, 0.0
  %v1815 = vmax.f32 %v1655, 0.0
  %v1816 = vmax.f32 %v1660, 0.0
  %v1817 = vmax.f32 %v1663, 0.0
  %v1818 = vmax.f32 %v1668, 0.0
  %v1819 = vmax.f32 %v1671, 0.0
  %v1820 = vmax.f32 %v1676, 0.0
  %v1821 = vmax.f32 %v1679, 0.0
  %v1822 = vmax.f32 %v1684, 0.0
  %v1823 = vmax.f32 %v1687, 0.0
  %v1824 = vmax.f32 %v1692, 0.0
  %v1825 = vmax.f32 %v1695, 0.0
  %v1826 = vpack.c.bf16 %v1699, %v1698
  %v1827 = vpack.c.bf16 %v1701, %v1700
  %v1828 = vpack.c.bf16 %v1703, %v1702
  %v1829 = vpack.c.bf16 %v1705, %v1704
  %v1830 = vpack.c.bf16 %v1707, %v1706
  %v1831 = vpack.c.bf16 %v1709, %v1708
  %v1832 = vpack.c.bf16 %v1711, %v1710
  %v1833 = vpack.c.bf16 %v1713, %v1712
  %v1834 = vpack.c.bf16 %v1715, %v1714
  %v1835 = vpack.c.bf16 %v1717, %v1716
  %v1836 = vpack.c.bf16 %v1719, %v1718
  %v1837 = vpack.c.bf16 %v1721, %v1720
  %v1838 = vpack.c.bf16 %v1723, %v1722
  %v1839 = vpack.c.bf16 %v1725, %v1724
  %v1840 = vpack.c.bf16 %v1727, %v1726
  %v1841 = vpack.c.bf16 %v1729, %v1728
  %v1842 = vpack.c.bf16 %v1731, %v1730
  %v1843 = vpack.c.bf16 %v1733, %v1732
  %v1844 = vpack.c.bf16 %v1735, %v1734
  %v1845 = vpack.c.bf16 %v1737, %v1736
  %v1846 = vpack.c.bf16 %v1739, %v1738
  %v1847 = vpack.c.bf16 %v1741, %v1740
  %v1848 = vpack.c.bf16 %v1743, %v1742
  %v1849 = vpack.c.bf16 %v1745, %v1744
  %v1850 = vpack.c.bf16 %v1747, %v1746
  %v1851 = vpack.c.bf16 %v1749, %v1748
  %v1852 = vpack.c.bf16 %v1751, %v1750
  %v1853 = vpack.c.bf16 %v1753, %v1752
  %v1854 = vpack.c.bf16 %v1755, %v1754
  %v1855 = vpack.c.bf16 %v1757, %v1756
  %v1856 = vpack.c.bf16 %v1759, %v1758
  %v1857 = vpack.c.bf16 %v1761, %v1760
  %v1858 = vpack.c.bf16 %v1763, %v1762
  %v1859 = vpack.c.bf16 %v1765, %v1764
  %v1860 = vpack.c.bf16 %v1767, %v1766
  %v1861 = vpack.c.bf16 %v1769, %v1768
  %v1862 = vpack.c.bf16 %v1771, %v1770
  %v1863 = vpack.c.bf16 %v1773, %v1772
  %v1864 = vpack.c.bf16 %v1775, %v1774
  %v1865 = vpack.c.bf16 %v1777, %v1776
  %v1866 = vpack.c.bf16 %v1779, %v1778
  %v1867 = vpack.c.bf16 %v1781, %v1780
  %v1868 = vpack.c.bf16 %v1783, %v1782
  %v1869 = vpack.c.bf16 %v1785, %v1784
  %v1870 = vpack.c.bf16 %v1787, %v1786
  %v1871 = vpack.c.bf16 %v1789, %v1788
  %v1872 = vpack.c.bf16 %v1791, %v1790
  %v1873 = vpack.c.bf16 %v1793, %v1792
  %v1874 = vpack.c.bf16 %v1795, %v1794
  %v1875 = vpack.c.bf16 %v1797, %v1796
  %v1876 = vpack.c.bf16 %v1799, %v1798
  %v1877 = vpack.c.bf16 %v1801, %v1800
  %v1878 = vpack.c.bf16 %v1803, %v1802
  %v1879 = vpack.c.bf16 %v1805, %v1804
  %v1880 = vpack.c.bf16 %v1807, %v1806
  %v1881 = vpack.c.bf16 %v1809, %v1808
  %v1882 = vpack.c.bf16 %v1811, %v1810
  %v1883 = vpack.c.bf16 %v1813, %v1812
  %v1884 = vpack.c.bf16 %v1815, %v1814
  %v1885 = vpack.c.bf16 %v1817, %v1816
  %v1886 = vpack.c.bf16 %v1819, %v1818
  %v1887 = vpack.c.bf16 %v1821, %v1820
  %v1888 = vpack.c.bf16 %v1823, %v1822
  %v1889 = vpack.c.bf16 %v1825, %v1824
  %v1890 = vld [vmem:[%s8] sm:$0xf]
  %v1891 = vld [vmem:[%s8 + $0x4] sm:$0xf]
  %v1892 = vld [vmem:[%s8 + $0x8] sm:$0xf]
  %v1893 = vld [vmem:[%s8 + $0xc] sm:$0xf]
  %v1894 = vld [vmem:[%s8 + $0x10] sm:$0xf]
  %v1895 = vld [vmem:[%s8 + $0x14] sm:$0xf]
  %v1896 = vld [vmem:[%s8 + $0x18] sm:$0xf]
  %v1897 = vld [vmem:[%s8 + $0x1c] sm:$0xf]
  %v1898 = vld [vmem:[%s8 + $0x20] sm:$0xf]
  %v1899 = vld [vmem:[%s8 + $0x24] sm:$0xf]
  %v1900 = vld [vmem:[%s8 + $0x28] sm:$0xf]
  %v1901 = vld [vmem:[%s8 + $0x2c] sm:$0xf]
  %v1902 = vld [vmem:[%s8 + $0x30] sm:$0xf]
  %v1903 = vld [vmem:[%s8 + $0x34] sm:$0xf]
  %v1904 = vld [vmem:[%s8 + $0x38] sm:$0xf]
  %v1905 = vld [vmem:[%s8 + $0x3c] sm:$0xf]
  %v1906 = vld [vmem:[%s9] sm:$0x1]
  %v1908 = vlaneseq
  %v1909 = vshrl.u32 %v1908, 7
  %v1910 = vsub.s32 0, %v1909
  %v1911 = vrot.slane %v1906, %v1910
  %v1929 = vunpack.c.l.b16 %v1890
  %v1930 = vunpack.c.l.b16 %v1891
  %v1931 = vunpack.c.l.b16 %v1892
  %v1932 = vunpack.c.l.b16 %v1893
  %v1933 = vunpack.c.l.b16 %v1894
  %v1934 = vunpack.c.l.b16 %v1895
  %v1935 = vunpack.c.l.b16 %v1896
  %v1936 = vunpack.c.l.b16 %v1897
  %v1937 = vunpack.c.l.b16 %v1898
  %v1938 = vunpack.c.l.b16 %v1899
  %v1939 = vunpack.c.l.b16 %v1900
  %v1940 = vunpack.c.l.b16 %v1901
  %v1941 = vunpack.c.l.b16 %v1902
  %v1942 = vunpack.c.l.b16 %v1903
  %v1943 = vunpack.c.l.b16 %v1904
  %v1944 = vunpack.c.l.b16 %v1905
  %v1945 = vpack.c.b16 %v1930, %v1929
  %v1946 = vpack.c.b16 %v1932, %v1931
  %v1947 = vpack.c.b16 %v1934, %v1933
  %v1948 = vpack.c.b16 %v1936, %v1935
  %v1949 = vpack.c.b16 %v1938, %v1937
  %v1950 = vpack.c.b16 %v1940, %v1939
  %v1951 = vpack.c.b16 %v1942, %v1941
  %v1952 = vpack.c.b16 %v1944, %v1943
  %1961 = vmatprep.subr.bf16.mxu0 0
  %1962 = vmatpush1.bf16.msra.mxu0 %v1952
  %1963 = vmatprep.subr.bf16.mxu0 0
  %1964 = vmatpush1.bf16.msra.mxu0 %v1951
  %1965 = vmatprep.subr.bf16.mxu0 0
  %1966 = vmatpush1.bf16.msra.mxu0 %v1950
  %1967 = vmatprep.subr.bf16.mxu0 0
  %1968 = vmatpush1.bf16.msra.mxu0 %v1949
  %1969 = vmatprep.subr.bf16.mxu0 0
  %1970 = vmatpush1.bf16.msra.mxu0 %v1948
  %1971 = vmatprep.subr.bf16.mxu0 0
  %1972 = vmatpush1.bf16.msra.mxu0 %v1947
  %1973 = vmatprep.subr.bf16.mxu0 0
  %1974 = vmatpush1.bf16.msra.mxu0 %v1946
  %1975 = vmatprep.subr.bf16.mxu0 0
  %1976 = vmatpush1.bf16.msra.mxu0 %v1945
  %1977 = vmatprep.subr.bf16.mxu0 0
  %1978 = vmatpush2.bf16.msra.mxu0 0
  %1979 = vmatprep.subr.bf16.mxu0 0
  %1980 = vmatpush2.bf16.msra.mxu0 0
  %1981 = vmatprep.subr.bf16.mxu0 0
  %1982 = vmatpush2.bf16.msra.mxu0 0
  %1983 = vmatprep.subr.bf16.mxu0 0
  %1984 = vmatpush2.bf16.msra.mxu0 0
  %1985 = vmatprep.subr.bf16.mxu0 0
  %1986 = vmatpush2.bf16.msra.mxu0 0
  %1987 = vmatprep.subr.bf16.mxu0 0
  %1988 = vmatpush2.bf16.msra.mxu0 0
  %1989 = vmatprep.subr.bf16.mxu0 0
  %1990 = vmatpush2.bf16.msra.mxu0 0
  %1991 = vmatprep.subr.bf16.mxu0 0
  %1992 = vmatpush2.bf16.msra.mxu0 0
  %1993 = vmatprep.mubr.bf16.mxu0 0
  %1994 = vmatmul.mubr.bf16.gmra.mxu0 %v1826
  %v1995 = vpop.f32.mrf.mxu0
  %v1996 = vadd.f32 %v1911, %v1995
  %v1997 = vpop.f32.mrf.mxu0
  %v1998 = vpop.f32.mrf.mxu0
  %v1999 = vadd.f32 %v1911, %v1998
  %v2000 = vpop.f32.mrf.mxu0
  %2001 = vmatprep.mubr.bf16.mxu0 0
  %2002 = vmatmul.mubr.bf16.gmra.mxu0 %v1827
  %v2003 = vpop.f32.mrf.mxu0
  %v2004 = vadd.f32 %v1911, %v2003
  %v2005 = vpop.f32.mrf.mxu0
  %v2006 = vpop.f32.mrf.mxu0
  %v2007 = vadd.f32 %v1911, %v2006
  %v2008 = vpop.f32.mrf.mxu0
  %2009 = vmatprep.mubr.bf16.mxu0 0
  %2010 = vmatmul.mubr.bf16.gmra.mxu0 %v1828
  %v2011 = vpop.f32.mrf.mxu0
  %v2012 = vadd.f32 %v1911, %v2011
  %v2013 = vpop.f32.mrf.mxu0
  %v2014 = vpop.f32.mrf.mxu0
  %v2015 = vadd.f32 %v1911, %v2014
  %v2016 = vpop.f32.mrf.mxu0
  %2017 = vmatprep.mubr.bf16.mxu0 0
  %2018 = vmatmul.mubr.bf16.gmra.mxu0 %v1829
  %v2019 = vpop.f32.mrf.mxu0
  %v2020 = vadd.f32 %v1911, %v2019
  %v2021 = vpop.f32.mrf.mxu0
  %v2022 = vpop.f32.mrf.mxu0
  %v2023 = vadd.f32 %v1911, %v2022
  %v2024 = vpop.f32.mrf.mxu0
  %2025 = vmatprep.mubr.bf16.mxu0 0
  %2026 = vmatmul.mubr.bf16.gmra.mxu0 %v1830
  %v2027 = vpop.f32.mrf.mxu0
  %v2028 = vadd.f32 %v1911, %v2027
  %v2029 = vpop.f32.mrf.mxu0
  %v2030 = vpop.f32.mrf.mxu0
  %v2031 = vadd.f32 %v1911, %v2030
  %v2032 = vpop.f32.mrf.mxu0
  %2033 = vmatprep.mubr.bf16.mxu0 0
  %2034 = vmatmul.mubr.bf16.gmra.mxu0 %v1831
  %v2035 = vpop.f32.mrf.mxu0
  %v2036 = vadd.f32 %v1911, %v2035
  %v2037 = vpop.f32.mrf.mxu0
  %v2038 = vpop.f32.mrf.mxu0
  %v2039 = vadd.f32 %v1911, %v2038
  %v2040 = vpop.f32.mrf.mxu0
  %2041 = vmatprep.mubr.bf16.mxu0 0
  %2042 = vmatmul.mubr.bf16.gmra.mxu0 %v1832
  %v2043 = vpop.f32.mrf.mxu0
  %v2044 = vadd.f32 %v1911, %v2043
  %v2045 = vpop.f32.mrf.mxu0
  %v2046 = vpop.f32.mrf.mxu0
  %v2047 = vadd.f32 %v1911, %v2046
  %v2048 = vpop.f32.mrf.mxu0
  %2049 = vmatprep.mubr.bf16.mxu0 0
  %2050 = vmatmul.mubr.bf16.gmra.mxu0 %v1833
  %v2051 = vpop.f32.mrf.mxu0
  %v2052 = vadd.f32 %v1911, %v2051
  %v2053 = vpop.f32.mrf.mxu0
  %v2054 = vpop.f32.mrf.mxu0
  %v2055 = vadd.f32 %v1911, %v2054
  %v2056 = vpop.f32.mrf.mxu0
  %2057 = vmatprep.mubr.bf16.mxu0 0
  %2058 = vmatmul.mubr.bf16.gmra.mxu0 %v1834
  %v2059 = vpop.f32.mrf.mxu0
  %v2060 = vadd.f32 %v1911, %v2059
  %v2061 = vpop.f32.mrf.mxu0
  %v2062 = vpop.f32.mrf.mxu0
  %v2063 = vadd.f32 %v1911, %v2062
  %v2064 = vpop.f32.mrf.mxu0
  %2065 = vmatprep.mubr.bf16.mxu0 0
  %2066 = vmatmul.mubr.bf16.gmra.mxu0 %v1835
  %v2067 = vpop.f32.mrf.mxu0
  %v2068 = vadd.f32 %v1911, %v2067
  %v2069 = vpop.f32.mrf.mxu0
  %v2070 = vpop.f32.mrf.mxu0
  %v2071 = vadd.f32 %v1911, %v2070
  %v2072 = vpop.f32.mrf.mxu0
  %2073 = vmatprep.mubr.bf16.mxu0 0
  %2074 = vmatmul.mubr.bf16.gmra.mxu0 %v1836
  %v2075 = vpop.f32.mrf.mxu0
  %v2076 = vadd.f32 %v1911, %v2075
  %v2077 = vpop.f32.mrf.mxu0
  %v2078 = vpop.f32.mrf.mxu0
  %v2079 = vadd.f32 %v1911, %v2078
  %v2080 = vpop.f32.mrf.mxu0
  %2081 = vmatprep.mubr.bf16.mxu0 0
  %2082 = vmatmul.mubr.bf16.gmra.mxu0 %v1837
  %v2083 = vpop.f32.mrf.mxu0
  %v2084 = vadd.f32 %v1911, %v2083
  %v2085 = vpop.f32.mrf.mxu0
  %v2086 = vpop.f32.mrf.mxu0
  %v2087 = vadd.f32 %v1911, %v2086
  %v2088 = vpop.f32.mrf.mxu0
  %2089 = vmatprep.mubr.bf16.mxu0 0
  %2090 = vmatmul.mubr.bf16.gmra.mxu0 %v1838
  %v2091 = vpop.f32.mrf.mxu0
  %v2092 = vadd.f32 %v1911, %v2091
  %v2093 = vpop.f32.mrf.mxu0
  %v2094 = vpop.f32.mrf.mxu0
  %v2095 = vadd.f32 %v1911, %v2094
  %v2096 = vpop.f32.mrf.mxu0
  %2097 = vmatprep.mubr.bf16.mxu0 0
  %2098 = vmatmul.mubr.bf16.gmra.mxu0 %v1839
  %v2099 = vpop.f32.mrf.mxu0
  %v2100 = vadd.f32 %v1911, %v2099
  %v2101 = vpop.f32.mrf.mxu0
  %v2102 = vpop.f32.mrf.mxu0
  %v2103 = vadd.f32 %v1911, %v2102
  %v2104 = vpop.f32.mrf.mxu0
  %2105 = vmatprep.mubr.bf16.mxu0 0
  %2106 = vmatmul.mubr.bf16.gmra.mxu0 %v1840
  %v2107 = vpop.f32.mrf.mxu0
  %v2108 = vadd.f32 %v1911, %v2107
  %v2109 = vpop.f32.mrf.mxu0
  %v2110 = vpop.f32.mrf.mxu0
  %v2111 = vadd.f32 %v1911, %v2110
  %v2112 = vpop.f32.mrf.mxu0
  %2113 = vmatprep.mubr.bf16.mxu0 0
  %2114 = vmatmul.mubr.bf16.gmra.mxu0 %v1841
  %v2115 = vpop.f32.mrf.mxu0
  %v2116 = vadd.f32 %v1911, %v2115
  %v2117 = vpop.f32.mrf.mxu0
  %v2118 = vpop.f32.mrf.mxu0
  %v2119 = vadd.f32 %v1911, %v2118
  %v2120 = vpop.f32.mrf.mxu0
  %2121 = vmatprep.mubr.bf16.mxu0 0
  %2122 = vmatmul.mubr.bf16.gmra.mxu0 %v1842
  %v2123 = vpop.f32.mrf.mxu0
  %v2124 = vadd.f32 %v1911, %v2123
  %v2125 = vpop.f32.mrf.mxu0
  %v2126 = vpop.f32.mrf.mxu0
  %v2127 = vadd.f32 %v1911, %v2126
  %v2128 = vpop.f32.mrf.mxu0
  %2129 = vmatprep.mubr.bf16.mxu0 0
  %2130 = vmatmul.mubr.bf16.gmra.mxu0 %v1843
  %v2131 = vpop.f32.mrf.mxu0
  %v2132 = vadd.f32 %v1911, %v2131
  %v2133 = vpop.f32.mrf.mxu0
  %v2134 = vpop.f32.mrf.mxu0
  %v2135 = vadd.f32 %v1911, %v2134
  %v2136 = vpop.f32.mrf.mxu0
  %2137 = vmatprep.mubr.bf16.mxu0 0
  %2138 = vmatmul.mubr.bf16.gmra.mxu0 %v1844
  %v2139 = vpop.f32.mrf.mxu0
  %v2140 = vadd.f32 %v1911, %v2139
  %v2141 = vpop.f32.mrf.mxu0
  %v2142 = vpop.f32.mrf.mxu0
  %v2143 = vadd.f32 %v1911, %v2142
  %v2144 = vpop.f32.mrf.mxu0
  %2145 = vmatprep.mubr.bf16.mxu0 0
  %2146 = vmatmul.mubr.bf16.gmra.mxu0 %v1845
  %v2147 = vpop.f32.mrf.mxu0
  %v2148 = vadd.f32 %v1911, %v2147
  %v2149 = vpop.f32.mrf.mxu0
  %v2150 = vpop.f32.mrf.mxu0
  %v2151 = vadd.f32 %v1911, %v2150
  %v2152 = vpop.f32.mrf.mxu0
  %2153 = vmatprep.mubr.bf16.mxu0 0
  %2154 = vmatmul.mubr.bf16.gmra.mxu0 %v1846
  %v2155 = vpop.f32.mrf.mxu0
  %v2156 = vadd.f32 %v1911, %v2155
  %v2157 = vpop.f32.mrf.mxu0
  %v2158 = vpop.f32.mrf.mxu0
  %v2159 = vadd.f32 %v1911, %v2158
  %v2160 = vpop.f32.mrf.mxu0
  %2161 = vmatprep.mubr.bf16.mxu0 0
  %2162 = vmatmul.mubr.bf16.gmra.mxu0 %v1847
  %v2163 = vpop.f32.mrf.mxu0
  %v2164 = vadd.f32 %v1911, %v2163
  %v2165 = vpop.f32.mrf.mxu0
  %v2166 = vpop.f32.mrf.mxu0
  %v2167 = vadd.f32 %v1911, %v2166
  %v2168 = vpop.f32.mrf.mxu0
  %2169 = vmatprep.mubr.bf16.mxu0 0
  %2170 = vmatmul.mubr.bf16.gmra.mxu0 %v1848
  %v2171 = vpop.f32.mrf.mxu0
  %v2172 = vadd.f32 %v1911, %v2171
  %v2173 = vpop.f32.mrf.mxu0
  %v2174 = vpop.f32.mrf.mxu0
  %v2175 = vadd.f32 %v1911, %v2174
  %v2176 = vpop.f32.mrf.mxu0
  %2177 = vmatprep.mubr.bf16.mxu0 0
  %2178 = vmatmul.mubr.bf16.gmra.mxu0 %v1849
  %v2179 = vpop.f32.mrf.mxu0
  %v2180 = vadd.f32 %v1911, %v2179
  %v2181 = vpop.f32.mrf.mxu0
  %v2182 = vpop.f32.mrf.mxu0
  %v2183 = vadd.f32 %v1911, %v2182
  %v2184 = vpop.f32.mrf.mxu0
  %2185 = vmatprep.mubr.bf16.mxu0 0
  %2186 = vmatmul.mubr.bf16.gmra.mxu0 %v1850
  %v2187 = vpop.f32.mrf.mxu0
  %v2188 = vadd.f32 %v1911, %v2187
  %v2189 = vpop.f32.mrf.mxu0
  %v2190 = vpop.f32.mrf.mxu0
  %v2191 = vadd.f32 %v1911, %v2190
  %v2192 = vpop.f32.mrf.mxu0
  %2193 = vmatprep.mubr.bf16.mxu0 0
  %2194 = vmatmul.mubr.bf16.gmra.mxu0 %v1851
  %v2195 = vpop.f32.mrf.mxu0
  %v2196 = vadd.f32 %v1911, %v2195
  %v2197 = vpop.f32.mrf.mxu0
  %v2198 = vpop.f32.mrf.mxu0
  %v2199 = vadd.f32 %v1911, %v2198
  %v2200 = vpop.f32.mrf.mxu0
  %2201 = vmatprep.mubr.bf16.mxu0 0
  %2202 = vmatmul.mubr.bf16.gmra.mxu0 %v1852
  %v2203 = vpop.f32.mrf.mxu0
  %v2204 = vadd.f32 %v1911, %v2203
  %v2205 = vpop.f32.mrf.mxu0
  %v2206 = vpop.f32.mrf.mxu0
  %v2207 = vadd.f32 %v1911, %v2206
  %v2208 = vpop.f32.mrf.mxu0
  %2209 = vmatprep.mubr.bf16.mxu0 0
  %2210 = vmatmul.mubr.bf16.gmra.mxu0 %v1853
  %v2211 = vpop.f32.mrf.mxu0
  %v2212 = vadd.f32 %v1911, %v2211
  %v2213 = vpop.f32.mrf.mxu0
  %v2214 = vpop.f32.mrf.mxu0
  %v2215 = vadd.f32 %v1911, %v2214
  %v2216 = vpop.f32.mrf.mxu0
  %2217 = vmatprep.mubr.bf16.mxu0 0
  %2218 = vmatmul.mubr.bf16.gmra.mxu0 %v1854
  %v2219 = vpop.f32.mrf.mxu0
  %v2220 = vadd.f32 %v1911, %v2219
  %v2221 = vpop.f32.mrf.mxu0
  %v2222 = vpop.f32.mrf.mxu0
  %v2223 = vadd.f32 %v1911, %v2222
  %v2224 = vpop.f32.mrf.mxu0
  %2225 = vmatprep.mubr.bf16.mxu0 0
  %2226 = vmatmul.mubr.bf16.gmra.mxu0 %v1855
  %v2227 = vpop.f32.mrf.mxu0
  %v2228 = vadd.f32 %v1911, %v2227
  %v2229 = vpop.f32.mrf.mxu0
  %v2230 = vpop.f32.mrf.mxu0
  %v2231 = vadd.f32 %v1911, %v2230
  %v2232 = vpop.f32.mrf.mxu0
  %2233 = vmatprep.mubr.bf16.mxu0 0
  %2234 = vmatmul.mubr.bf16.gmra.mxu0 %v1856
  %v2235 = vpop.f32.mrf.mxu0
  %v2236 = vadd.f32 %v1911, %v2235
  %v2237 = vpop.f32.mrf.mxu0
  %v2238 = vpop.f32.mrf.mxu0
  %v2239 = vadd.f32 %v1911, %v2238
  %v2240 = vpop.f32.mrf.mxu0
  %2241 = vmatprep.mubr.bf16.mxu0 0
  %2242 = vmatmul.mubr.bf16.gmra.mxu0 %v1857
  %v2243 = vpop.f32.mrf.mxu0
  %v2244 = vadd.f32 %v1911, %v2243
  %v2245 = vpop.f32.mrf.mxu0
  %v2246 = vpop.f32.mrf.mxu0
  %v2247 = vadd.f32 %v1911, %v2246
  %v2248 = vpop.f32.mrf.mxu0
  %2249 = vmatprep.mubr.bf16.mxu0 0
  %2250 = vmatmul.mubr.bf16.gmra.mxu0 %v1858
  %v2251 = vpop.f32.mrf.mxu0
  %v2252 = vadd.f32 %v1911, %v2251
  %v2253 = vpop.f32.mrf.mxu0
  %v2254 = vpop.f32.mrf.mxu0
  %v2255 = vadd.f32 %v1911, %v2254
  %v2256 = vpop.f32.mrf.mxu0
  %2257 = vmatprep.mubr.bf16.mxu0 0
  %2258 = vmatmul.mubr.bf16.gmra.mxu0 %v1859
  %v2259 = vpop.f32.mrf.mxu0
  %v2260 = vadd.f32 %v1911, %v2259
  %v2261 = vpop.f32.mrf.mxu0
  %v2262 = vpop.f32.mrf.mxu0
  %v2263 = vadd.f32 %v1911, %v2262
  %v2264 = vpop.f32.mrf.mxu0
  %2265 = vmatprep.mubr.bf16.mxu0 0
  %2266 = vmatmul.mubr.bf16.gmra.mxu0 %v1860
  %v2267 = vpop.f32.mrf.mxu0
  %v2268 = vadd.f32 %v1911, %v2267
  %v2269 = vpop.f32.mrf.mxu0
  %v2270 = vpop.f32.mrf.mxu0
  %v2271 = vadd.f32 %v1911, %v2270
  %v2272 = vpop.f32.mrf.mxu0
  %2273 = vmatprep.mubr.bf16.mxu0 0
  %2274 = vmatmul.mubr.bf16.gmra.mxu0 %v1861
  %v2275 = vpop.f32.mrf.mxu0
  %v2276 = vadd.f32 %v1911, %v2275
  %v2277 = vpop.f32.mrf.mxu0
  %v2278 = vpop.f32.mrf.mxu0
  %v2279 = vadd.f32 %v1911, %v2278
  %v2280 = vpop.f32.mrf.mxu0
  %2281 = vmatprep.mubr.bf16.mxu0 0
  %2282 = vmatmul.mubr.bf16.gmra.mxu0 %v1862
  %v2283 = vpop.f32.mrf.mxu0
  %v2284 = vadd.f32 %v1911, %v2283
  %v2285 = vpop.f32.mrf.mxu0
  %v2286 = vpop.f32.mrf.mxu0
  %v2287 = vadd.f32 %v1911, %v2286
  %v2288 = vpop.f32.mrf.mxu0
  %2289 = vmatprep.mubr.bf16.mxu0 0
  %2290 = vmatmul.mubr.bf16.gmra.mxu0 %v1863
  %v2291 = vpop.f32.mrf.mxu0
  %v2292 = vadd.f32 %v1911, %v2291
  %v2293 = vpop.f32.mrf.mxu0
  %v2294 = vpop.f32.mrf.mxu0
  %v2295 = vadd.f32 %v1911, %v2294
  %v2296 = vpop.f32.mrf.mxu0
  %2297 = vmatprep.mubr.bf16.mxu0 0
  %2298 = vmatmul.mubr.bf16.gmra.mxu0 %v1864
  %v2299 = vpop.f32.mrf.mxu0
  %v2300 = vadd.f32 %v1911, %v2299
  %v2301 = vpop.f32.mrf.mxu0
  %v2302 = vpop.f32.mrf.mxu0
  %v2303 = vadd.f32 %v1911, %v2302
  %v2304 = vpop.f32.mrf.mxu0
  %2305 = vmatprep.mubr.bf16.mxu0 0
  %2306 = vmatmul.mubr.bf16.gmra.mxu0 %v1865
  %v2307 = vpop.f32.mrf.mxu0
  %v2308 = vadd.f32 %v1911, %v2307
  %v2309 = vpop.f32.mrf.mxu0
  %v2310 = vpop.f32.mrf.mxu0
  %v2311 = vadd.f32 %v1911, %v2310
  %v2312 = vpop.f32.mrf.mxu0
  %2313 = vmatprep.mubr.bf16.mxu0 0
  %2314 = vmatmul.mubr.bf16.gmra.mxu0 %v1866
  %v2315 = vpop.f32.mrf.mxu0
  %v2316 = vadd.f32 %v1911, %v2315
  %v2317 = vpop.f32.mrf.mxu0
  %v2318 = vpop.f32.mrf.mxu0
  %v2319 = vadd.f32 %v1911, %v2318
  %v2320 = vpop.f32.mrf.mxu0
  %2321 = vmatprep.mubr.bf16.mxu0 0
  %2322 = vmatmul.mubr.bf16.gmra.mxu0 %v1867
  %v2323 = vpop.f32.mrf.mxu0
  %v2324 = vadd.f32 %v1911, %v2323
  %v2325 = vpop.f32.mrf.mxu0
  %v2326 = vpop.f32.mrf.mxu0
  %v2327 = vadd.f32 %v1911, %v2326
  %v2328 = vpop.f32.mrf.mxu0
  %2329 = vmatprep.mubr.bf16.mxu0 0
  %2330 = vmatmul.mubr.bf16.gmra.mxu0 %v1868
  %v2331 = vpop.f32.mrf.mxu0
  %v2332 = vadd.f32 %v1911, %v2331
  %v2333 = vpop.f32.mrf.mxu0
  %v2334 = vpop.f32.mrf.mxu0
  %v2335 = vadd.f32 %v1911, %v2334
  %v2336 = vpop.f32.mrf.mxu0
  %2337 = vmatprep.mubr.bf16.mxu0 0
  %2338 = vmatmul.mubr.bf16.gmra.mxu0 %v1869
  %v2339 = vpop.f32.mrf.mxu0
  %v2340 = vadd.f32 %v1911, %v2339
  %v2341 = vpop.f32.mrf.mxu0
  %v2342 = vpop.f32.mrf.mxu0
  %v2343 = vadd.f32 %v1911, %v2342
  %v2344 = vpop.f32.mrf.mxu0
  %2345 = vmatprep.mubr.bf16.mxu0 0
  %2346 = vmatmul.mubr.bf16.gmra.mxu0 %v1870
  %v2347 = vpop.f32.mrf.mxu0
  %v2348 = vadd.f32 %v1911, %v2347
  %v2349 = vpop.f32.mrf.mxu0
  %v2350 = vpop.f32.mrf.mxu0
  %v2351 = vadd.f32 %v1911, %v2350
  %v2352 = vpop.f32.mrf.mxu0
  %2353 = vmatprep.mubr.bf16.mxu0 0
  %2354 = vmatmul.mubr.bf16.gmra.mxu0 %v1871
  %v2355 = vpop.f32.mrf.mxu0
  %v2356 = vadd.f32 %v1911, %v2355
  %v2357 = vpop.f32.mrf.mxu0
  %v2358 = vpop.f32.mrf.mxu0
  %v2359 = vadd.f32 %v1911, %v2358
  %v2360 = vpop.f32.mrf.mxu0
  %2361 = vmatprep.mubr.bf16.mxu0 0
  %2362 = vmatmul.mubr.bf16.gmra.mxu0 %v1872
  %v2363 = vpop.f32.mrf.mxu0
  %v2364 = vadd.f32 %v1911, %v2363
  %v2365 = vpop.f32.mrf.mxu0
  %v2366 = vpop.f32.mrf.mxu0
  %v2367 = vadd.f32 %v1911, %v2366
  %v2368 = vpop.f32.mrf.mxu0
  %2369 = vmatprep.mubr.bf16.mxu0 0
  %2370 = vmatmul.mubr.bf16.gmra.mxu0 %v1873
  %v2371 = vpop.f32.mrf.mxu0
  %v2372 = vadd.f32 %v1911, %v2371
  %v2373 = vpop.f32.mrf.mxu0
  %v2374 = vpop.f32.mrf.mxu0
  %v2375 = vadd.f32 %v1911, %v2374
  %v2376 = vpop.f32.mrf.mxu0
  %2377 = vmatprep.mubr.bf16.mxu0 0
  %2378 = vmatmul.mubr.bf16.gmra.mxu0 %v1874
  %v2379 = vpop.f32.mrf.mxu0
  %v2380 = vadd.f32 %v1911, %v2379
  %v2381 = vpop.f32.mrf.mxu0
  %v2382 = vpop.f32.mrf.mxu0
  %v2383 = vadd.f32 %v1911, %v2382
  %v2384 = vpop.f32.mrf.mxu0
  %2385 = vmatprep.mubr.bf16.mxu0 0
  %2386 = vmatmul.mubr.bf16.gmra.mxu0 %v1875
  %v2387 = vpop.f32.mrf.mxu0
  %v2388 = vadd.f32 %v1911, %v2387
  %v2389 = vpop.f32.mrf.mxu0
  %v2390 = vpop.f32.mrf.mxu0
  %v2391 = vadd.f32 %v1911, %v2390
  %v2392 = vpop.f32.mrf.mxu0
  %2393 = vmatprep.mubr.bf16.mxu0 0
  %2394 = vmatmul.mubr.bf16.gmra.mxu0 %v1876
  %v2395 = vpop.f32.mrf.mxu0
  %v2396 = vadd.f32 %v1911, %v2395
  %v2397 = vpop.f32.mrf.mxu0
  %v2398 = vpop.f32.mrf.mxu0
  %v2399 = vadd.f32 %v1911, %v2398
  %v2400 = vpop.f32.mrf.mxu0
  %2401 = vmatprep.mubr.bf16.mxu0 0
  %2402 = vmatmul.mubr.bf16.gmra.mxu0 %v1877
  %v2403 = vpop.f32.mrf.mxu0
  %v2404 = vadd.f32 %v1911, %v2403
  %v2405 = vpop.f32.mrf.mxu0
  %v2406 = vpop.f32.mrf.mxu0
  %v2407 = vadd.f32 %v1911, %v2406
  %v2408 = vpop.f32.mrf.mxu0
  %2409 = vmatprep.mubr.bf16.mxu0 0
  %2410 = vmatmul.mubr.bf16.gmra.mxu0 %v1878
  %v2411 = vpop.f32.mrf.mxu0
  %v2412 = vadd.f32 %v1911, %v2411
  %v2413 = vpop.f32.mrf.mxu0
  %v2414 = vpop.f32.mrf.mxu0
  %v2415 = vadd.f32 %v1911, %v2414
  %v2416 = vpop.f32.mrf.mxu0
  %2417 = vmatprep.mubr.bf16.mxu0 0
  %2418 = vmatmul.mubr.bf16.gmra.mxu0 %v1879
  %v2419 = vpop.f32.mrf.mxu0
  %v2420 = vadd.f32 %v1911, %v2419
  %v2421 = vpop.f32.mrf.mxu0
  %v2422 = vpop.f32.mrf.mxu0
  %v2423 = vadd.f32 %v1911, %v2422
  %v2424 = vpop.f32.mrf.mxu0
  %2425 = vmatprep.mubr.bf16.mxu0 0
  %2426 = vmatmul.mubr.bf16.gmra.mxu0 %v1880
  %v2427 = vpop.f32.mrf.mxu0
  %v2428 = vadd.f32 %v1911, %v2427
  %v2429 = vpop.f32.mrf.mxu0
  %v2430 = vpop.f32.mrf.mxu0
  %v2431 = vadd.f32 %v1911, %v2430
  %v2432 = vpop.f32.mrf.mxu0
  %2433 = vmatprep.mubr.bf16.mxu0 0
  %2434 = vmatmul.mubr.bf16.gmra.mxu0 %v1881
  %v2435 = vpop.f32.mrf.mxu0
  %v2436 = vadd.f32 %v1911, %v2435
  %v2437 = vpop.f32.mrf.mxu0
  %v2438 = vpop.f32.mrf.mxu0
  %v2439 = vadd.f32 %v1911, %v2438
  %v2440 = vpop.f32.mrf.mxu0
  %2441 = vmatprep.mubr.bf16.mxu0 0
  %2442 = vmatmul.mubr.bf16.gmra.mxu0 %v1882
  %v2443 = vpop.f32.mrf.mxu0
  %v2444 = vadd.f32 %v1911, %v2443
  %v2445 = vpop.f32.mrf.mxu0
  %v2446 = vpop.f32.mrf.mxu0
  %v2447 = vadd.f32 %v1911, %v2446
  %v2448 = vpop.f32.mrf.mxu0
  %2449 = vmatprep.mubr.bf16.mxu0 0
  %2450 = vmatmul.mubr.bf16.gmra.mxu0 %v1883
  %v2451 = vpop.f32.mrf.mxu0
  %v2452 = vadd.f32 %v1911, %v2451
  %v2453 = vpop.f32.mrf.mxu0
  %v2454 = vpop.f32.mrf.mxu0
  %v2455 = vadd.f32 %v1911, %v2454
  %v2456 = vpop.f32.mrf.mxu0
  %2457 = vmatprep.mubr.bf16.mxu0 0
  %2458 = vmatmul.mubr.bf16.gmra.mxu0 %v1884
  %v2459 = vpop.f32.mrf.mxu0
  %v2460 = vadd.f32 %v1911, %v2459
  %v2461 = vpop.f32.mrf.mxu0
  %v2462 = vpop.f32.mrf.mxu0
  %v2463 = vadd.f32 %v1911, %v2462
  %v2464 = vpop.f32.mrf.mxu0
  %2465 = vmatprep.mubr.bf16.mxu0 0
  %2466 = vmatmul.mubr.bf16.gmra.mxu0 %v1885
  %v2467 = vpop.f32.mrf.mxu0
  %v2468 = vadd.f32 %v1911, %v2467
  %v2469 = vpop.f32.mrf.mxu0
  %v2470 = vpop.f32.mrf.mxu0
  %v2471 = vadd.f32 %v1911, %v2470
  %v2472 = vpop.f32.mrf.mxu0
  %2473 = vmatprep.mubr.bf16.mxu0 0
  %2474 = vmatmul.mubr.bf16.gmra.mxu0 %v1886
  %v2475 = vpop.f32.mrf.mxu0
  %v2476 = vadd.f32 %v1911, %v2475
  %v2477 = vpop.f32.mrf.mxu0
  %v2478 = vpop.f32.mrf.mxu0
  %v2479 = vadd.f32 %v1911, %v2478
  %v2480 = vpop.f32.mrf.mxu0
  %2481 = vmatprep.mubr.bf16.mxu0 0
  %2482 = vmatmul.mubr.bf16.gmra.mxu0 %v1887
  %v2483 = vpop.f32.mrf.mxu0
  %v2484 = vadd.f32 %v1911, %v2483
  %v2485 = vpop.f32.mrf.mxu0
  %v2486 = vpop.f32.mrf.mxu0
  %v2487 = vadd.f32 %v1911, %v2486
  %v2488 = vpop.f32.mrf.mxu0
  %2489 = vmatprep.mubr.bf16.mxu0 0
  %2490 = vmatmul.mubr.bf16.gmra.mxu0 %v1888
  %v2491 = vpop.f32.mrf.mxu0
  %v2492 = vadd.f32 %v1911, %v2491
  %v2493 = vpop.f32.mrf.mxu0
  %v2494 = vpop.f32.mrf.mxu0
  %v2495 = vadd.f32 %v1911, %v2494
  %v2496 = vpop.f32.mrf.mxu0
  %2497 = vmatprep.mubr.bf16.mxu0 0
  %2498 = vmatmul.mubr.bf16.gmra.mxu0 %v1889
  %v2499 = vpop.f32.mrf.mxu0
  %v2500 = vadd.f32 %v1911, %v2499
  %v2501 = vpop.f32.mrf.mxu0
  %v2502 = vpop.f32.mrf.mxu0
  %v2503 = vadd.f32 %v1911, %v2502
  %v2504 = vpop.f32.mrf.mxu0
  %2505 = vdwg.mxu0
  %v2506 = vld [vmem:[%s1] sm:$0xf]
  %v2507 = vld [vmem:[%s1 + $0x4] sm:$0xf]
  %v2508 = vld [vmem:[%s1 + $0x8] sm:$0xf]
  %v2509 = vld [vmem:[%s1 + $0xc] sm:$0xf]
  %v2514 = vunpack.c.l.b16 %v2506
  %v2515 = vunpack.c.l.b16 %v2507
  %v2516 = vunpack.c.l.b16 %v2508
  %v2517 = vunpack.c.l.b16 %v2509
  %v2518 = vpack.c.b16 %v2515, %v2514
  %v2519 = vpack.c.b16 %v2517, %v2516
  %v2521 = vpack.i.b16 %v2518, %v2518
  %v2523 = vlaneseq
  %v2524 = vshrl.u32 %v2523, 7
  %v2525 = vsub.s32 0, %v2524
  %v2526 = vrot.slane %v2521, %v2525
  %2528 = vbcast.lane.c.b16.xlu0 %v2526, 256
  %v2529 = vpop.permute.xlu0 %2528
  %s2531 = sor.u32 256, 16
  %2532 = vbcast.lane.c.b16.xlu0 %v2526, %s2531
  %v2533 = vpop.permute.xlu0 %2532
  %v2534 = vshrl.u32 %v2518, 16
  %v2535 = vpack.i.b16 %v2534, %v2534
  %v2537 = vlaneseq
  %v2538 = vshrl.u32 %v2537, 7
  %v2539 = vsub.s32 0, %v2538
  %v2540 = vrot.slane %v2535, %v2539
  %2542 = vbcast.lane.c.b16.xlu0 %v2540, 256
  %v2543 = vpop.permute.xlu0 %2542
  %s2545 = sor.u32 256, 16
  %2546 = vbcast.lane.c.b16.xlu0 %v2540, %s2545
  %v2547 = vpop.permute.xlu0 %2546
  %v2548 = vlaneseq
  %v2549 = vshrl.u32 %v2548, 7
  %v2550 = vsub.s32 1, %v2549
  %v2551 = vrot.slane %v2521, %v2550
  %2553 = vbcast.lane.c.b16.xlu0 %v2551, 256
  %v2554 = vpop.permute.xlu0 %2553
  %s2556 = sor.u32 256, 16
  %2557 = vbcast.lane.c.b16.xlu0 %v2551, %s2556
  %v2558 = vpop.permute.xlu0 %2557
  %v2559 = vlaneseq
  %v2560 = vshrl.u32 %v2559, 7
  %v2561 = vsub.s32 1, %v2560
  %v2562 = vrot.slane %v2535, %v2561
  %2564 = vbcast.lane.c.b16.xlu0 %v2562, 256
  %v2565 = vpop.permute.xlu0 %2564
  %s2567 = sor.u32 256, 16
  %2568 = vbcast.lane.c.b16.xlu0 %v2562, %s2567
  %v2569 = vpop.permute.xlu0 %2568
  %v2570 = vlaneseq
  %v2571 = vshrl.u32 %v2570, 7
  %v2572 = vsub.s32 2, %v2571
  %v2573 = vrot.slane %v2521, %v2572
  %2575 = vbcast.lane.c.b16.xlu0 %v2573, 256
  %v2576 = vpop.permute.xlu0 %2575
  %s2578 = sor.u32 256, 16
  %2579 = vbcast.lane.c.b16.xlu0 %v2573, %s2578
  %v2580 = vpop.permute.xlu0 %2579
  %v2581 = vlaneseq
  %v2582 = vshrl.u32 %v2581, 7
  %v2583 = vsub.s32 2, %v2582
  %v2584 = vrot.slane %v2535, %v2583
  %2586 = vbcast.lane.c.b16.xlu0 %v2584, 256
  %v2587 = vpop.permute.xlu0 %2586
  %s2589 = sor.u32 256, 16
  %2590 = vbcast.lane.c.b16.xlu0 %v2584, %s2589
  %v2591 = vpop.permute.xlu0 %2590
  %v2592 = vlaneseq
  %v2593 = vshrl.u32 %v2592, 7
  %v2594 = vsub.s32 3, %v2593
  %v2595 = vrot.slane %v2521, %v2594
  %2597 = vbcast.lane.c.b16.xlu0 %v2595, 256
  %v2598 = vpop.permute.xlu0 %2597
  %s2600 = sor.u32 256, 16
  %2601 = vbcast.lane.c.b16.xlu0 %v2595, %s2600
  %v2602 = vpop.permute.xlu0 %2601
  %v2603 = vlaneseq
  %v2604 = vshrl.u32 %v2603, 7
  %v2605 = vsub.s32 3, %v2604
  %v2606 = vrot.slane %v2535, %v2605
  %2608 = vbcast.lane.c.b16.xlu0 %v2606, 256
  %v2609 = vpop.permute.xlu0 %2608
  %s2611 = sor.u32 256, 16
  %2612 = vbcast.lane.c.b16.xlu0 %v2606, %s2611
  %v2613 = vpop.permute.xlu0 %2612
  %v2614 = vlaneseq
  %v2615 = vshrl.u32 %v2614, 7
  %v2616 = vsub.s32 4, %v2615
  %v2617 = vrot.slane %v2521, %v2616
  %2619 = vbcast.lane.c.b16.xlu0 %v2617, 256
  %v2620 = vpop.permute.xlu0 %2619
  %s2622 = sor.u32 256, 16
  %2623 = vbcast.lane.c.b16.xlu0 %v2617, %s2622
  %v2624 = vpop.permute.xlu0 %2623
  %v2625 = vlaneseq
  %v2626 = vshrl.u32 %v2625, 7
  %v2627 = vsub.s32 4, %v2626
  %v2628 = vrot.slane %v2535, %v2627
  %2630 = vbcast.lane.c.b16.xlu0 %v2628, 256
  %v2631 = vpop.permute.xlu0 %2630
  %s2633 = sor.u32 256, 16
  %2634 = vbcast.lane.c.b16.xlu0 %v2628, %s2633
  %v2635 = vpop.permute.xlu0 %2634
  %v2636 = vlaneseq
  %v2637 = vshrl.u32 %v2636, 7
  %v2638 = vsub.s32 5, %v2637
  %v2639 = vrot.slane %v2521, %v2638
  %2641 = vbcast.lane.c.b16.xlu0 %v2639, 256
  %v2642 = vpop.permute.xlu0 %2641
  %s2644 = sor.u32 256, 16
  %2645 = vbcast.lane.c.b16.xlu0 %v2639, %s2644
  %v2646 = vpop.permute.xlu0 %2645
  %v2647 = vlaneseq
  %v2648 = vshrl.u32 %v2647, 7
  %v2649 = vsub.s32 5, %v2648
  %v2650 = vrot.slane %v2535, %v2649
  %2652 = vbcast.lane.c.b16.xlu0 %v2650, 256
  %v2653 = vpop.permute.xlu0 %2652
  %s2655 = sor.u32 256, 16
  %2656 = vbcast.lane.c.b16.xlu0 %v2650, %s2655
  %v2657 = vpop.permute.xlu0 %2656
  %v2658 = vlaneseq
  %v2659 = vshrl.u32 %v2658, 7
  %v2660 = vsub.s32 6, %v2659
  %v2661 = vrot.slane %v2521, %v2660
  %2663 = vbcast.lane.c.b16.xlu0 %v2661, 256
  %v2664 = vpop.permute.xlu0 %2663
  %s2666 = sor.u32 256, 16
  %2667 = vbcast.lane.c.b16.xlu0 %v2661, %s2666
  %v2668 = vpop.permute.xlu0 %2667
  %v2669 = vlaneseq
  %v2670 = vshrl.u32 %v2669, 7
  %v2671 = vsub.s32 6, %v2670
  %v2672 = vrot.slane %v2535, %v2671
  %2674 = vbcast.lane.c.b16.xlu0 %v2672, 256
  %v2675 = vpop.permute.xlu0 %2674
  %s2677 = sor.u32 256, 16
  %2678 = vbcast.lane.c.b16.xlu0 %v2672, %s2677
  %v2679 = vpop.permute.xlu0 %2678
  %v2680 = vlaneseq
  %v2681 = vshrl.u32 %v2680, 7
  %v2682 = vsub.s32 7, %v2681
  %v2683 = vrot.slane %v2521, %v2682
  %2685 = vbcast.lane.c.b16.xlu0 %v2683, 256
  %v2686 = vpop.permute.xlu0 %2685
  %s2688 = sor.u32 256, 16
  %2689 = vbcast.lane.c.b16.xlu0 %v2683, %s2688
  %v2690 = vpop.permute.xlu0 %2689
  %v2691 = vlaneseq
  %v2692 = vshrl.u32 %v2691, 7
  %v2693 = vsub.s32 7, %v2692
  %v2694 = vrot.slane %v2535, %v2693
  %2696 = vbcast.lane.c.b16.xlu0 %v2694, 256
  %v2697 = vpop.permute.xlu0 %2696
  %s2699 = sor.u32 256, 16
  %2700 = vbcast.lane.c.b16.xlu0 %v2694, %s2699
  %v2701 = vpop.permute.xlu0 %2700
  %v2703 = vpack.i.b16 %v2519, %v2519
  %v2705 = vlaneseq
  %v2706 = vshrl.u32 %v2705, 7
  %v2707 = vsub.s32 0, %v2706
  %v2708 = vrot.slane %v2703, %v2707
  %2710 = vbcast.lane.c.b16.xlu0 %v2708, 256
  %v2711 = vpop.permute.xlu0 %2710
  %s2713 = sor.u32 256, 16
  %2714 = vbcast.lane.c.b16.xlu0 %v2708, %s2713
  %v2715 = vpop.permute.xlu0 %2714
  %v2716 = vshrl.u32 %v2519, 16
  %v2717 = vpack.i.b16 %v2716, %v2716
  %v2719 = vlaneseq
  %v2720 = vshrl.u32 %v2719, 7
  %v2721 = vsub.s32 0, %v2720
  %v2722 = vrot.slane %v2717, %v2721
  %2724 = vbcast.lane.c.b16.xlu0 %v2722, 256
  %v2725 = vpop.permute.xlu0 %2724
  %s2727 = sor.u32 256, 16
  %2728 = vbcast.lane.c.b16.xlu0 %v2722, %s2727
  %v2729 = vpop.permute.xlu0 %2728
  %v2730 = vlaneseq
  %v2731 = vshrl.u32 %v2730, 7
  %v2732 = vsub.s32 1, %v2731
  %v2733 = vrot.slane %v2703, %v2732
  %2735 = vbcast.lane.c.b16.xlu0 %v2733, 256
  %v2736 = vpop.permute.xlu0 %2735
  %s2738 = sor.u32 256, 16
  %2739 = vbcast.lane.c.b16.xlu0 %v2733, %s2738
  %v2740 = vpop.permute.xlu0 %2739
  %v2741 = vlaneseq
  %v2742 = vshrl.u32 %v2741, 7
  %v2743 = vsub.s32 1, %v2742
  %v2744 = vrot.slane %v2717, %v2743
  %2746 = vbcast.lane.c.b16.xlu0 %v2744, 256
  %v2747 = vpop.permute.xlu0 %2746
  %s2749 = sor.u32 256, 16
  %2750 = vbcast.lane.c.b16.xlu0 %v2744, %s2749
  %v2751 = vpop.permute.xlu0 %2750
  %v2752 = vlaneseq
  %v2753 = vshrl.u32 %v2752, 7
  %v2754 = vsub.s32 2, %v2753
  %v2755 = vrot.slane %v2703, %v2754
  %2757 = vbcast.lane.c.b16.xlu0 %v2755, 256
  %v2758 = vpop.permute.xlu0 %2757
  %s2760 = sor.u32 256, 16
  %2761 = vbcast.lane.c.b16.xlu0 %v2755, %s2760
  %v2762 = vpop.permute.xlu0 %2761
  %v2763 = vlaneseq
  %v2764 = vshrl.u32 %v2763, 7
  %v2765 = vsub.s32 2, %v2764
  %v2766 = vrot.slane %v2717, %v2765
  %2768 = vbcast.lane.c.b16.xlu0 %v2766, 256
  %v2769 = vpop.permute.xlu0 %2768
  %s2771 = sor.u32 256, 16
  %2772 = vbcast.lane.c.b16.xlu0 %v2766, %s2771
  %v2773 = vpop.permute.xlu0 %2772
  %v2774 = vlaneseq
  %v2775 = vshrl.u32 %v2774, 7
  %v2776 = vsub.s32 3, %v2775
  %v2777 = vrot.slane %v2703, %v2776
  %2779 = vbcast.lane.c.b16.xlu0 %v2777, 256
  %v2780 = vpop.permute.xlu0 %2779
  %s2782 = sor.u32 256, 16
  %2783 = vbcast.lane.c.b16.xlu0 %v2777, %s2782
  %v2784 = vpop.permute.xlu0 %2783
  %v2785 = vlaneseq
  %v2786 = vshrl.u32 %v2785, 7
  %v2787 = vsub.s32 3, %v2786
  %v2788 = vrot.slane %v2717, %v2787
  %2790 = vbcast.lane.c.b16.xlu0 %v2788, 256
  %v2791 = vpop.permute.xlu0 %2790
  %s2793 = sor.u32 256, 16
  %2794 = vbcast.lane.c.b16.xlu0 %v2788, %s2793
  %v2795 = vpop.permute.xlu0 %2794
  %v2796 = vlaneseq
  %v2797 = vshrl.u32 %v2796, 7
  %v2798 = vsub.s32 4, %v2797
  %v2799 = vrot.slane %v2703, %v2798
  %2801 = vbcast.lane.c.b16.xlu0 %v2799, 256
  %v2802 = vpop.permute.xlu0 %2801
  %s2804 = sor.u32 256, 16
  %2805 = vbcast.lane.c.b16.xlu0 %v2799, %s2804
  %v2806 = vpop.permute.xlu0 %2805
  %v2807 = vlaneseq
  %v2808 = vshrl.u32 %v2807, 7
  %v2809 = vsub.s32 4, %v2808
  %v2810 = vrot.slane %v2717, %v2809
  %2812 = vbcast.lane.c.b16.xlu0 %v2810, 256
  %v2813 = vpop.permute.xlu0 %2812
  %s2815 = sor.u32 256, 16
  %2816 = vbcast.lane.c.b16.xlu0 %v2810, %s2815
  %v2817 = vpop.permute.xlu0 %2816
  %v2818 = vlaneseq
  %v2819 = vshrl.u32 %v2818, 7
  %v2820 = vsub.s32 5, %v2819
  %v2821 = vrot.slane %v2703, %v2820
  %2823 = vbcast.lane.c.b16.xlu0 %v2821, 256
  %v2824 = vpop.permute.xlu0 %2823
  %s2826 = sor.u32 256, 16
  %2827 = vbcast.lane.c.b16.xlu0 %v2821, %s2826
  %v2828 = vpop.permute.xlu0 %2827
  %v2829 = vlaneseq
  %v2830 = vshrl.u32 %v2829, 7
  %v2831 = vsub.s32 5, %v2830
  %v2832 = vrot.slane %v2717, %v2831
  %2834 = vbcast.lane.c.b16.xlu0 %v2832, 256
  %v2835 = vpop.permute.xlu0 %2834
  %s2837 = sor.u32 256, 16
  %2838 = vbcast.lane.c.b16.xlu0 %v2832, %s2837
  %v2839 = vpop.permute.xlu0 %2838
  %v2840 = vlaneseq
  %v2841 = vshrl.u32 %v2840, 7
  %v2842 = vsub.s32 6, %v2841
  %v2843 = vrot.slane %v2703, %v2842
  %2845 = vbcast.lane.c.b16.xlu0 %v2843, 256
  %v2846 = vpop.permute.xlu0 %2845
  %s2848 = sor.u32 256, 16
  %2849 = vbcast.lane.c.b16.xlu0 %v2843, %s2848
  %v2850 = vpop.permute.xlu0 %2849
  %v2851 = vlaneseq
  %v2852 = vshrl.u32 %v2851, 7
  %v2853 = vsub.s32 6, %v2852
  %v2854 = vrot.slane %v2717, %v2853
  %2856 = vbcast.lane.c.b16.xlu0 %v2854, 256
  %v2857 = vpop.permute.xlu0 %2856
  %s2859 = sor.u32 256, 16
  %2860 = vbcast.lane.c.b16.xlu0 %v2854, %s2859
  %v2861 = vpop.permute.xlu0 %2860
  %v2862 = vlaneseq
  %v2863 = vshrl.u32 %v2862, 7
  %v2864 = vsub.s32 7, %v2863
  %v2865 = vrot.slane %v2703, %v2864
  %2867 = vbcast.lane.c.b16.xlu0 %v2865, 256
  %v2868 = vpop.permute.xlu0 %2867
  %s2870 = sor.u32 256, 16
  %2871 = vbcast.lane.c.b16.xlu0 %v2865, %s2870
  %v2872 = vpop.permute.xlu0 %2871
  %v2873 = vlaneseq
  %v2874 = vshrl.u32 %v2873, 7
  %v2875 = vsub.s32 7, %v2874
  %v2876 = vrot.slane %v2717, %v2875
  %2878 = vbcast.lane.c.b16.xlu0 %v2876, 256
  %v2879 = vpop.permute.xlu0 %2878
  %s2881 = sor.u32 256, 16
  %2882 = vbcast.lane.c.b16.xlu0 %v2876, %s2881
  %v2883 = vpop.permute.xlu0 %2882
  %v2884 = vunpack.c.l.bf16 %v2529
  %v2885 = vunpack.c.h.bf16 %v2529
  %v2886 = vunpack.c.l.bf16 %v2533
  %v2887 = vunpack.c.h.bf16 %v2533
  %v2888 = vunpack.c.l.bf16 %v2543
  %v2889 = vunpack.c.h.bf16 %v2543
  %v2890 = vunpack.c.l.bf16 %v2547
  %v2891 = vunpack.c.h.bf16 %v2547
  %v2892 = vunpack.c.l.bf16 %v2554
  %v2893 = vunpack.c.h.bf16 %v2554
  %v2894 = vunpack.c.l.bf16 %v2558
  %v2895 = vunpack.c.h.bf16 %v2558
  %v2896 = vunpack.c.l.bf16 %v2565
  %v2897 = vunpack.c.h.bf16 %v2565
  %v2898 = vunpack.c.l.bf16 %v2569
  %v2899 = vunpack.c.h.bf16 %v2569
  %v2900 = vunpack.c.l.bf16 %v2576
  %v2901 = vunpack.c.h.bf16 %v2576
  %v2902 = vunpack.c.l.bf16 %v2580
  %v2903 = vunpack.c.h.bf16 %v2580
  %v2904 = vunpack.c.l.bf16 %v2587
  %v2905 = vunpack.c.h.bf16 %v2587
  %v2906 = vunpack.c.l.bf16 %v2591
  %v2907 = vunpack.c.h.bf16 %v2591
  %v2908 = vunpack.c.l.bf16 %v2598
  %v2909 = vunpack.c.h.bf16 %v2598
  %v2910 = vunpack.c.l.bf16 %v2602
  %v2911 = vunpack.c.h.bf16 %v2602
  %v2912 = vunpack.c.l.bf16 %v2609
  %v2913 = vunpack.c.h.bf16 %v2609
  %v2914 = vunpack.c.l.bf16 %v2613
  %v2915 = vunpack.c.h.bf16 %v2613
  %v2916 = vunpack.c.l.bf16 %v2620
  %v2917 = vunpack.c.h.bf16 %v2620
  %v2918 = vunpack.c.l.bf16 %v2624
  %v2919 = vunpack.c.h.bf16 %v2624
  %v2920 = vunpack.c.l.bf16 %v2631
  %v2921 = vunpack.c.h.bf16 %v2631
  %v2922 = vunpack.c.l.bf16 %v2635
  %v2923 = vunpack.c.h.bf16 %v2635
  %v2924 = vunpack.c.l.bf16 %v2642
  %v2925 = vunpack.c.h.bf16 %v2642
  %v2926 = vunpack.c.l.bf16 %v2646
  %v2927 = vunpack.c.h.bf16 %v2646
  %v2928 = vunpack.c.l.bf16 %v2653
  %v2929 = vunpack.c.h.bf16 %v2653
  %v2930 = vunpack.c.l.bf16 %v2657
  %v2931 = vunpack.c.h.bf16 %v2657
  %v2932 = vunpack.c.l.bf16 %v2664
  %v2933 = vunpack.c.h.bf16 %v2664
  %v2934 = vunpack.c.l.bf16 %v2668
  %v2935 = vunpack.c.h.bf16 %v2668
  %v2936 = vunpack.c.l.bf16 %v2675
  %v2937 = vunpack.c.h.bf16 %v2675
  %v2938 = vunpack.c.l.bf16 %v2679
  %v2939 = vunpack.c.h.bf16 %v2679
  %v2940 = vunpack.c.l.bf16 %v2686
  %v2941 = vunpack.c.h.bf16 %v2686
  %v2942 = vunpack.c.l.bf16 %v2690
  %v2943 = vunpack.c.h.bf16 %v2690
  %v2944 = vunpack.c.l.bf16 %v2697
  %v2945 = vunpack.c.h.bf16 %v2697
  %v2946 = vunpack.c.l.bf16 %v2701
  %v2947 = vunpack.c.h.bf16 %v2701
  %v2948 = vunpack.c.l.bf16 %v2711
  %v2949 = vunpack.c.h.bf16 %v2711
  %v2950 = vunpack.c.l.bf16 %v2715
  %v2951 = vunpack.c.h.bf16 %v2715
  %v2952 = vunpack.c.l.bf16 %v2725
  %v2953 = vunpack.c.h.bf16 %v2725
  %v2954 = vunpack.c.l.bf16 %v2729
  %v2955 = vunpack.c.h.bf16 %v2729
  %v2956 = vunpack.c.l.bf16 %v2736
  %v2957 = vunpack.c.h.bf16 %v2736
  %v2958 = vunpack.c.l.bf16 %v2740
  %v2959 = vunpack.c.h.bf16 %v2740
  %v2960 = vunpack.c.l.bf16 %v2747
  %v2961 = vunpack.c.h.bf16 %v2747
  %v2962 = vunpack.c.l.bf16 %v2751
  %v2963 = vunpack.c.h.bf16 %v2751
  %v2964 = vunpack.c.l.bf16 %v2758
  %v2965 = vunpack.c.h.bf16 %v2758
  %v2966 = vunpack.c.l.bf16 %v2762
  %v2967 = vunpack.c.h.bf16 %v2762
  %v2968 = vunpack.c.l.bf16 %v2769
  %v2969 = vunpack.c.h.bf16 %v2769
  %v2970 = vunpack.c.l.bf16 %v2773
  %v2971 = vunpack.c.h.bf16 %v2773
  %v2972 = vunpack.c.l.bf16 %v2780
  %v2973 = vunpack.c.h.bf16 %v2780
  %v2974 = vunpack.c.l.bf16 %v2784
  %v2975 = vunpack.c.h.bf16 %v2784
  %v2976 = vunpack.c.l.bf16 %v2791
  %v2977 = vunpack.c.h.bf16 %v2791
  %v2978 = vunpack.c.l.bf16 %v2795
  %v2979 = vunpack.c.h.bf16 %v2795
  %v2980 = vunpack.c.l.bf16 %v2802
  %v2981 = vunpack.c.h.bf16 %v2802
  %v2982 = vunpack.c.l.bf16 %v2806
  %v2983 = vunpack.c.h.bf16 %v2806
  %v2984 = vunpack.c.l.bf16 %v2813
  %v2985 = vunpack.c.h.bf16 %v2813
  %v2986 = vunpack.c.l.bf16 %v2817
  %v2987 = vunpack.c.h.bf16 %v2817
  %v2988 = vunpack.c.l.bf16 %v2824
  %v2989 = vunpack.c.h.bf16 %v2824
  %v2990 = vunpack.c.l.bf16 %v2828
  %v2991 = vunpack.c.h.bf16 %v2828
  %v2992 = vunpack.c.l.bf16 %v2835
  %v2993 = vunpack.c.h.bf16 %v2835
  %v2994 = vunpack.c.l.bf16 %v2839
  %v2995 = vunpack.c.h.bf16 %v2839
  %v2996 = vunpack.c.l.bf16 %v2846
  %v2997 = vunpack.c.h.bf16 %v2846
  %v2998 = vunpack.c.l.bf16 %v2850
  %v2999 = vunpack.c.h.bf16 %v2850
  %v3000 = vunpack.c.l.bf16 %v2857
  %v3001 = vunpack.c.h.bf16 %v2857
  %v3002 = vunpack.c.l.bf16 %v2861
  %v3003 = vunpack.c.h.bf16 %v2861
  %v3004 = vunpack.c.l.bf16 %v2868
  %v3005 = vunpack.c.h.bf16 %v2868
  %v3006 = vunpack.c.l.bf16 %v2872
  %v3007 = vunpack.c.h.bf16 %v2872
  %v3008 = vunpack.c.l.bf16 %v2879
  %v3009 = vunpack.c.h.bf16 %v2879
  %v3010 = vunpack.c.l.bf16 %v2883
  %v3011 = vunpack.c.h.bf16 %v2883
  %v3012 = vadd.f32 %v1996, %v2884
  %v3013 = vadd.f32 %v1999, %v2885
  %v3014 = vadd.f32 %v2004, %v2886
  %v3015 = vadd.f32 %v2007, %v2887
  %v3016 = vadd.f32 %v2012, %v2888
  %v3017 = vadd.f32 %v2015, %v2889
  %v3018 = vadd.f32 %v2020, %v2890
  %v3019 = vadd.f32 %v2023, %v2891
  %v3020 = vadd.f32 %v2028, %v2892
  %v3021 = vadd.f32 %v2031, %v2893
  %v3022 = vadd.f32 %v2036, %v2894
  %v3023 = vadd.f32 %v2039, %v2895
  %v3024 = vadd.f32 %v2044, %v2896
  %v3025 = vadd.f32 %v2047, %v2897
  %v3026 = vadd.f32 %v2052, %v2898
  %v3027 = vadd.f32 %v2055, %v2899
  %v3028 = vadd.f32 %v2060, %v2900
  %v3029 = vadd.f32 %v2063, %v2901
  %v3030 = vadd.f32 %v2068, %v2902
  %v3031 = vadd.f32 %v2071, %v2903
  %v3032 = vadd.f32 %v2076, %v2904
  %v3033 = vadd.f32 %v2079, %v2905
  %v3034 = vadd.f32 %v2084, %v2906
  %v3035 = vadd.f32 %v2087, %v2907
  %v3036 = vadd.f32 %v2092, %v2908
  %v3037 = vadd.f32 %v2095, %v2909
  %v3038 = vadd.f32 %v2100, %v2910
  %v3039 = vadd.f32 %v2103, %v2911
  %v3040 = vadd.f32 %v2108, %v2912
  %v3041 = vadd.f32 %v2111, %v2913
  %v3042 = vadd.f32 %v2116, %v2914
  %v3043 = vadd.f32 %v2119, %v2915
  %v3044 = vadd.f32 %v2124, %v2916
  %v3045 = vadd.f32 %v2127, %v2917
  %v3046 = vadd.f32 %v2132, %v2918
  %v3047 = vadd.f32 %v2135, %v2919
  %v3048 = vadd.f32 %v2140, %v2920
  %v3049 = vadd.f32 %v2143, %v2921
  %v3050 = vadd.f32 %v2148, %v2922
  %v3051 = vadd.f32 %v2151, %v2923
  %v3052 = vadd.f32 %v2156, %v2924
  %v3053 = vadd.f32 %v2159, %v2925
  %v3054 = vadd.f32 %v2164, %v2926
  %v3055 = vadd.f32 %v2167, %v2927
  %v3056 = vadd.f32 %v2172, %v2928
  %v3057 = vadd.f32 %v2175, %v2929
  %v3058 = vadd.f32 %v2180, %v2930
  %v3059 = vadd.f32 %v2183, %v2931
  %v3060 = vadd.f32 %v2188, %v2932
  %v3061 = vadd.f32 %v2191, %v2933
  %v3062 = vadd.f32 %v2196, %v2934
  %v3063 = vadd.f32 %v2199, %v2935
  %v3064 = vadd.f32 %v2204, %v2936
  %v3065 = vadd.f32 %v2207, %v2937
  %v3066 = vadd.f32 %v2212, %v2938
  %v3067 = vadd.f32 %v2215, %v2939
  %v3068 = vadd.f32 %v2220, %v2940
  %v3069 = vadd.f32 %v2223, %v2941
  %v3070 = vadd.f32 %v2228, %v2942
  %v3071 = vadd.f32 %v2231, %v2943
  %v3072 = vadd.f32 %v2236, %v2944
  %v3073 = vadd.f32 %v2239, %v2945
  %v3074 = vadd.f32 %v2244, %v2946
  %v3075 = vadd.f32 %v2247, %v2947
  %v3076 = vadd.f32 %v2252, %v2948
  %v3077 = vadd.f32 %v2255, %v2949
  %v3078 = vadd.f32 %v2260, %v2950
  %v3079 = vadd.f32 %v2263, %v2951
  %v3080 = vadd.f32 %v2268, %v2952
  %v3081 = vadd.f32 %v2271, %v2953
  %v3082 = vadd.f32 %v2276, %v2954
  %v3083 = vadd.f32 %v2279, %v2955
  %v3084 = vadd.f32 %v2284, %v2956
  %v3085 = vadd.f32 %v2287, %v2957
  %v3086 = vadd.f32 %v2292, %v2958
  %v3087 = vadd.f32 %v2295, %v2959
  %v3088 = vadd.f32 %v2300, %v2960
  %v3089 = vadd.f32 %v2303, %v2961
  %v3090 = vadd.f32 %v2308, %v2962
  %v3091 = vadd.f32 %v2311, %v2963
  %v3092 = vadd.f32 %v2316, %v2964
  %v3093 = vadd.f32 %v2319, %v2965
  %v3094 = vadd.f32 %v2324, %v2966
  %v3095 = vadd.f32 %v2327, %v2967
  %v3096 = vadd.f32 %v2332, %v2968
  %v3097 = vadd.f32 %v2335, %v2969
  %v3098 = vadd.f32 %v2340, %v2970
  %v3099 = vadd.f32 %v2343, %v2971
  %v3100 = vadd.f32 %v2348, %v2972
  %v3101 = vadd.f32 %v2351, %v2973
  %v3102 = vadd.f32 %v2356, %v2974
  %v3103 = vadd.f32 %v2359, %v2975
  %v3104 = vadd.f32 %v2364, %v2976
  %v3105 = vadd.f32 %v2367, %v2977
  %v3106 = vadd.f32 %v2372, %v2978
  %v3107 = vadd.f32 %v2375, %v2979
  %v3108 = vadd.f32 %v2380, %v2980
  %v3109 = vadd.f32 %v2383, %v2981
  %v3110 = vadd.f32 %v2388, %v2982
  %v3111 = vadd.f32 %v2391, %v2983
  %v3112 = vadd.f32 %v2396, %v2984
  %v3113 = vadd.f32 %v2399, %v2985
  %v3114 = vadd.f32 %v2404, %v2986
  %v3115 = vadd.f32 %v2407, %v2987
  %v3116 = vadd.f32 %v2412, %v2988
  %v3117 = vadd.f32 %v2415, %v2989
  %v3118 = vadd.f32 %v2420, %v2990
  %v3119 = vadd.f32 %v2423, %v2991
  %v3120 = vadd.f32 %v2428, %v2992
  %v3121 = vadd.f32 %v2431, %v2993
  %v3122 = vadd.f32 %v2436, %v2994
  %v3123 = vadd.f32 %v2439, %v2995
  %v3124 = vadd.f32 %v2444, %v2996
  %v3125 = vadd.f32 %v2447, %v2997
  %v3126 = vadd.f32 %v2452, %v2998
  %v3127 = vadd.f32 %v2455, %v2999
  %v3128 = vadd.f32 %v2460, %v3000
  %v3129 = vadd.f32 %v2463, %v3001
  %v3130 = vadd.f32 %v2468, %v3002
  %v3131 = vadd.f32 %v2471, %v3003
  %v3132 = vadd.f32 %v2476, %v3004
  %v3133 = vadd.f32 %v2479, %v3005
  %v3134 = vadd.f32 %v2484, %v3006
  %v3135 = vadd.f32 %v2487, %v3007
  %v3136 = vadd.f32 %v2492, %v3008
  %v3137 = vadd.f32 %v2495, %v3009
  %v3138 = vadd.f32 %v2500, %v3010
  %v3139 = vadd.f32 %v2503, %v3011
  %v3140 = vmax.f32 %v3012, %v3013
  %v3141 = vmax.f32 %v3140, %v3014
  %v3142 = vmax.f32 %v3141, %v3015
  %v3143 = vrot.slane %v3142, 4
  %v3144 = vmax.f32 %v3142, %v3143
  %v3145 = vrot.slane %v3144, 2
  %v3146 = vmax.f32 %v3144, %v3145
  %v3147 = vrot.slane %v3146, 1
  %v3148 = vmax.f32 %v3146, %v3147
  %v3149 = vmax.f32 %v3016, %v3017
  %v3150 = vmax.f32 %v3149, %v3018
  %v3151 = vmax.f32 %v3150, %v3019
  %v3152 = vrot.slane %v3151, 4
  %v3153 = vmax.f32 %v3151, %v3152
  %v3154 = vrot.slane %v3153, 2
  %v3155 = vmax.f32 %v3153, %v3154
  %v3156 = vrot.slane %v3155, 1
  %v3157 = vmax.f32 %v3155, %v3156
  %v3158 = vmax.f32 %v3020, %v3021
  %v3159 = vmax.f32 %v3158, %v3022
  %v3160 = vmax.f32 %v3159, %v3023
  %v3161 = vrot.slane %v3160, 4
  %v3162 = vmax.f32 %v3160, %v3161
  %v3163 = vrot.slane %v3162, 2
  %v3164 = vmax.f32 %v3162, %v3163
  %v3165 = vrot.slane %v3164, 1
  %v3166 = vmax.f32 %v3164, %v3165
  %v3167 = vmax.f32 %v3024, %v3025
  %v3168 = vmax.f32 %v3167, %v3026
  %v3169 = vmax.f32 %v3168, %v3027
  %v3170 = vrot.slane %v3169, 4
  %v3171 = vmax.f32 %v3169, %v3170
  %v3172 = vrot.slane %v3171, 2
  %v3173 = vmax.f32 %v3171, %v3172
  %v3174 = vrot.slane %v3173, 1
  %v3175 = vmax.f32 %v3173, %v3174
  %v3176 = vmax.f32 %v3028, %v3029
  %v3177 = vmax.f32 %v3176, %v3030
  %v3178 = vmax.f32 %v3177, %v3031
  %v3179 = vrot.slane %v3178, 4
  %v3180 = vmax.f32 %v3178, %v3179
  %v3181 = vrot.slane %v3180, 2
  %v3182 = vmax.f32 %v3180, %v3181
  %v3183 = vrot.slane %v3182, 1
  %v3184 = vmax.f32 %v3182, %v3183
  %v3185 = vmax.f32 %v3032, %v3033
  %v3186 = vmax.f32 %v3185, %v3034
  %v3187 = vmax.f32 %v3186, %v3035
  %v3188 = vrot.slane %v3187, 4
  %v3189 = vmax.f32 %v3187, %v3188
  %v3190 = vrot.slane %v3189, 2
  %v3191 = vmax.f32 %v3189, %v3190
  %v3192 = vrot.slane %v3191, 1
  %v3193 = vmax.f32 %v3191, %v3192
  %v3194 = vmax.f32 %v3036, %v3037
  %v3195 = vmax.f32 %v3194, %v3038
  %v3196 = vmax.f32 %v3195, %v3039
  %v3197 = vrot.slane %v3196, 4
  %v3198 = vmax.f32 %v3196, %v3197
  %v3199 = vrot.slane %v3198, 2
  %v3200 = vmax.f32 %v3198, %v3199
  %v3201 = vrot.slane %v3200, 1
  %v3202 = vmax.f32 %v3200, %v3201
  %v3203 = vmax.f32 %v3040, %v3041
  %v3204 = vmax.f32 %v3203, %v3042
  %v3205 = vmax.f32 %v3204, %v3043
  %v3206 = vrot.slane %v3205, 4
  %v3207 = vmax.f32 %v3205, %v3206
  %v3208 = vrot.slane %v3207, 2
  %v3209 = vmax.f32 %v3207, %v3208
  %v3210 = vrot.slane %v3209, 1
  %v3211 = vmax.f32 %v3209, %v3210
  %v3212 = vmax.f32 %v3044, %v3045
  %v3213 = vmax.f32 %v3212, %v3046
  %v3214 = vmax.f32 %v3213, %v3047
  %v3215 = vrot.slane %v3214, 4
  %v3216 = vmax.f32 %v3214, %v3215
  %v3217 = vrot.slane %v3216, 2
  %v3218 = vmax.f32 %v3216, %v3217
  %v3219 = vrot.slane %v3218, 1
  %v3220 = vmax.f32 %v3218, %v3219
  %v3221 = vmax.f32 %v3048, %v3049
  %v3222 = vmax.f32 %v3221, %v3050
  %v3223 = vmax.f32 %v3222, %v3051
  %v3224 = vrot.slane %v3223, 4
  %v3225 = vmax.f32 %v3223, %v3224
  %v3226 = vrot.slane %v3225, 2
  %v3227 = vmax.f32 %v3225, %v3226
  %v3228 = vrot.slane %v3227, 1
  %v3229 = vmax.f32 %v3227, %v3228
  %v3230 = vmax.f32 %v3052, %v3053
  %v3231 = vmax.f32 %v3230, %v3054
  %v3232 = vmax.f32 %v3231, %v3055
  %v3233 = vrot.slane %v3232, 4
  %v3234 = vmax.f32 %v3232, %v3233
  %v3235 = vrot.slane %v3234, 2
  %v3236 = vmax.f32 %v3234, %v3235
  %v3237 = vrot.slane %v3236, 1
  %v3238 = vmax.f32 %v3236, %v3237
  %v3239 = vmax.f32 %v3056, %v3057
  %v3240 = vmax.f32 %v3239, %v3058
  %v3241 = vmax.f32 %v3240, %v3059
  %v3242 = vrot.slane %v3241, 4
  %v3243 = vmax.f32 %v3241, %v3242
  %v3244 = vrot.slane %v3243, 2
  %v3245 = vmax.f32 %v3243, %v3244
  %v3246 = vrot.slane %v3245, 1
  %v3247 = vmax.f32 %v3245, %v3246
  %v3248 = vmax.f32 %v3060, %v3061
  %v3249 = vmax.f32 %v3248, %v3062
  %v3250 = vmax.f32 %v3249, %v3063
  %v3251 = vrot.slane %v3250, 4
  %v3252 = vmax.f32 %v3250, %v3251
  %v3253 = vrot.slane %v3252, 2
  %v3254 = vmax.f32 %v3252, %v3253
  %v3255 = vrot.slane %v3254, 1
  %v3256 = vmax.f32 %v3254, %v3255
  %v3257 = vmax.f32 %v3064, %v3065
  %v3258 = vmax.f32 %v3257, %v3066
  %v3259 = vmax.f32 %v3258, %v3067
  %v3260 = vrot.slane %v3259, 4
  %v3261 = vmax.f32 %v3259, %v3260
  %v3262 = vrot.slane %v3261, 2
  %v3263 = vmax.f32 %v3261, %v3262
  %v3264 = vrot.slane %v3263, 1
  %v3265 = vmax.f32 %v3263, %v3264
  %v3266 = vmax.f32 %v3068, %v3069
  %v3267 = vmax.f32 %v3266, %v3070
  %v3268 = vmax.f32 %v3267, %v3071
  %v3269 = vrot.slane %v3268, 4
  %v3270 = vmax.f32 %v3268, %v3269
  %v3271 = vrot.slane %v3270, 2
  %v3272 = vmax.f32 %v3270, %v3271
  %v3273 = vrot.slane %v3272, 1
  %v3274 = vmax.f32 %v3272, %v3273
  %v3275 = vmax.f32 %v3072, %v3073
  %v3276 = vmax.f32 %v3275, %v3074
  %v3277 = vmax.f32 %v3276, %v3075
  %v3278 = vrot.slane %v3277, 4
  %v3279 = vmax.f32 %v3277, %v3278
  %v3280 = vrot.slane %v3279, 2
  %v3281 = vmax.f32 %v3279, %v3280
  %v3282 = vrot.slane %v3281, 1
  %v3283 = vmax.f32 %v3281, %v3282
  %v3284 = vmax.f32 %v3076, %v3077
  %v3285 = vmax.f32 %v3284, %v3078
  %v3286 = vmax.f32 %v3285, %v3079
  %v3287 = vrot.slane %v3286, 4
  %v3288 = vmax.f32 %v3286, %v3287
  %v3289 = vrot.slane %v3288, 2
  %v3290 = vmax.f32 %v3288, %v3289
  %v3291 = vrot.slane %v3290, 1
  %v3292 = vmax.f32 %v3290, %v3291
  %v3293 = vmax.f32 %v3080, %v3081
  %v3294 = vmax.f32 %v3293, %v3082
  %v3295 = vmax.f32 %v3294, %v3083
  %v3296 = vrot.slane %v3295, 4
  %v3297 = vmax.f32 %v3295, %v3296
  %v3298 = vrot.slane %v3297, 2
  %v3299 = vmax.f32 %v3297, %v3298
  %v3300 = vrot.slane %v3299, 1
  %v3301 = vmax.f32 %v3299, %v3300
  %v3302 = vmax.f32 %v3084, %v3085
  %v3303 = vmax.f32 %v3302, %v3086
  %v3304 = vmax.f32 %v3303, %v3087
  %v3305 = vrot.slane %v3304, 4
  %v3306 = vmax.f32 %v3304, %v3305
  %v3307 = vrot.slane %v3306, 2
  %v3308 = vmax.f32 %v3306, %v3307
  %v3309 = vrot.slane %v3308, 1
  %v3310 = vmax.f32 %v3308, %v3309
  %v3311 = vmax.f32 %v3088, %v3089
  %v3312 = vmax.f32 %v3311, %v3090
  %v3313 = vmax.f32 %v3312, %v3091
  %v3314 = vrot.slane %v3313, 4
  %v3315 = vmax.f32 %v3313, %v3314
  %v3316 = vrot.slane %v3315, 2
  %v3317 = vmax.f32 %v3315, %v3316
  %v3318 = vrot.slane %v3317, 1
  %v3319 = vmax.f32 %v3317, %v3318
  %v3320 = vmax.f32 %v3092, %v3093
  %v3321 = vmax.f32 %v3320, %v3094
  %v3322 = vmax.f32 %v3321, %v3095
  %v3323 = vrot.slane %v3322, 4
  %v3324 = vmax.f32 %v3322, %v3323
  %v3325 = vrot.slane %v3324, 2
  %v3326 = vmax.f32 %v3324, %v3325
  %v3327 = vrot.slane %v3326, 1
  %v3328 = vmax.f32 %v3326, %v3327
  %v3329 = vmax.f32 %v3096, %v3097
  %v3330 = vmax.f32 %v3329, %v3098
  %v3331 = vmax.f32 %v3330, %v3099
  %v3332 = vrot.slane %v3331, 4
  %v3333 = vmax.f32 %v3331, %v3332
  %v3334 = vrot.slane %v3333, 2
  %v3335 = vmax.f32 %v3333, %v3334
  %v3336 = vrot.slane %v3335, 1
  %v3337 = vmax.f32 %v3335, %v3336
  %v3338 = vmax.f32 %v3100, %v3101
  %v3339 = vmax.f32 %v3338, %v3102
  %v3340 = vmax.f32 %v3339, %v3103
  %v3341 = vrot.slane %v3340, 4
  %v3342 = vmax.f32 %v3340, %v3341
  %v3343 = vrot.slane %v3342, 2
  %v3344 = vmax.f32 %v3342, %v3343
  %v3345 = vrot.slane %v3344, 1
  %v3346 = vmax.f32 %v3344, %v3345
  %v3347 = vmax.f32 %v3104, %v3105
  %v3348 = vmax.f32 %v3347, %v3106
  %v3349 = vmax.f32 %v3348, %v3107
  %v3350 = vrot.slane %v3349, 4
  %v3351 = vmax.f32 %v3349, %v3350
  %v3352 = vrot.slane %v3351, 2
  %v3353 = vmax.f32 %v3351, %v3352
  %v3354 = vrot.slane %v3353, 1
  %v3355 = vmax.f32 %v3353, %v3354
  %v3356 = vmax.f32 %v3108, %v3109
  %v3357 = vmax.f32 %v3356, %v3110
  %v3358 = vmax.f32 %v3357, %v3111
  %v3359 = vrot.slane %v3358, 4
  %v3360 = vmax.f32 %v3358, %v3359
  %v3361 = vrot.slane %v3360, 2
  %v3362 = vmax.f32 %v3360, %v3361
  %v3363 = vrot.slane %v3362, 1
  %v3364 = vmax.f32 %v3362, %v3363
  %v3365 = vmax.f32 %v3112, %v3113
  %v3366 = vmax.f32 %v3365, %v3114
  %v3367 = vmax.f32 %v3366, %v3115
  %v3368 = vrot.slane %v3367, 4
  %v3369 = vmax.f32 %v3367, %v3368
  %v3370 = vrot.slane %v3369, 2
  %v3371 = vmax.f32 %v3369, %v3370
  %v3372 = vrot.slane %v3371, 1
  %v3373 = vmax.f32 %v3371, %v3372
  %v3374 = vmax.f32 %v3116, %v3117
  %v3375 = vmax.f32 %v3374, %v3118
  %v3376 = vmax.f32 %v3375, %v3119
  %v3377 = vrot.slane %v3376, 4
  %v3378 = vmax.f32 %v3376, %v3377
  %v3379 = vrot.slane %v3378, 2
  %v3380 = vmax.f32 %v3378, %v3379
  %v3381 = vrot.slane %v3380, 1
  %v3382 = vmax.f32 %v3380, %v3381
  %v3383 = vmax.f32 %v3120, %v3121
  %v3384 = vmax.f32 %v3383, %v3122
  %v3385 = vmax.f32 %v3384, %v3123
  %v3386 = vrot.slane %v3385, 4
  %v3387 = vmax.f32 %v3385, %v3386
  %v3388 = vrot.slane %v3387, 2
  %v3389 = vmax.f32 %v3387, %v3388
  %v3390 = vrot.slane %v3389, 1
  %v3391 = vmax.f32 %v3389, %v3390
  %v3392 = vmax.f32 %v3124, %v3125
  %v3393 = vmax.f32 %v3392, %v3126
  %v3394 = vmax.f32 %v3393, %v3127
  %v3395 = vrot.slane %v3394, 4
  %v3396 = vmax.f32 %v3394, %v3395
  %v3397 = vrot.slane %v3396, 2
  %v3398 = vmax.f32 %v3396, %v3397
  %v3399 = vrot.slane %v3398, 1
  %v3400 = vmax.f32 %v3398, %v3399
  %v3401 = vmax.f32 %v3128, %v3129
  %v3402 = vmax.f32 %v3401, %v3130
  %v3403 = vmax.f32 %v3402, %v3131
  %v3404 = vrot.slane %v3403, 4
  %v3405 = vmax.f32 %v3403, %v3404
  %v3406 = vrot.slane %v3405, 2
  %v3407 = vmax.f32 %v3405, %v3406
  %v3408 = vrot.slane %v3407, 1
  %v3409 = vmax.f32 %v3407, %v3408
  %v3410 = vmax.f32 %v3132, %v3133
  %v3411 = vmax.f32 %v3410, %v3134
  %v3412 = vmax.f32 %v3411, %v3135
  %v3413 = vrot.slane %v3412, 4
  %v3414 = vmax.f32 %v3412, %v3413
  %v3415 = vrot.slane %v3414, 2
  %v3416 = vmax.f32 %v3414, %v3415
  %v3417 = vrot.slane %v3416, 1
  %v3418 = vmax.f32 %v3416, %v3417
  %v3419 = vmax.f32 %v3136, %v3137
  %v3420 = vmax.f32 %v3419, %v3138
  %v3421 = vmax.f32 %v3420, %v3139
  %v3422 = vrot.slane %v3421, 4
  %v3423 = vmax.f32 %v3421, %v3422
  %v3424 = vrot.slane %v3423, 2
  %v3425 = vmax.f32 %v3423, %v3424
  %v3426 = vrot.slane %v3425, 1
  %v3427 = vmax.f32 %v3425, %v3426
  %v3428 = vmax.f32 %v3148, -1e+30
  %v3429 = vmax.f32 %v3157, -1e+30
  %v3430 = vmax.f32 %v3166, -1e+30
  %v3431 = vmax.f32 %v3175, -1e+30
  %v3432 = vmax.f32 %v3184, -1e+30
  %v3433 = vmax.f32 %v3193, -1e+30
  %v3434 = vmax.f32 %v3202, -1e+30
  %v3435 = vmax.f32 %v3211, -1e+30
  %v3436 = vmax.f32 %v3220, -1e+30
  %v3437 = vmax.f32 %v3229, -1e+30
  %v3438 = vmax.f32 %v3238, -1e+30
  %v3439 = vmax.f32 %v3247, -1e+30
  %v3440 = vmax.f32 %v3256, -1e+30
  %v3441 = vmax.f32 %v3265, -1e+30
  %v3442 = vmax.f32 %v3274, -1e+30
  %v3443 = vmax.f32 %v3283, -1e+30
  %v3444 = vmax.f32 %v3292, -1e+30
  %v3445 = vmax.f32 %v3301, -1e+30
  %v3446 = vmax.f32 %v3310, -1e+30
  %v3447 = vmax.f32 %v3319, -1e+30
  %v3448 = vmax.f32 %v3328, -1e+30
  %v3449 = vmax.f32 %v3337, -1e+30
  %v3450 = vmax.f32 %v3346, -1e+30
  %v3451 = vmax.f32 %v3355, -1e+30
  %v3452 = vmax.f32 %v3364, -1e+30
  %v3453 = vmax.f32 %v3373, -1e+30
  %v3454 = vmax.f32 %v3382, -1e+30
  %v3455 = vmax.f32 %v3391, -1e+30
  %v3456 = vmax.f32 %v3400, -1e+30
  %v3457 = vmax.f32 %v3409, -1e+30
  %v3458 = vmax.f32 %v3418, -1e+30
  %v3459 = vmax.f32 %v3427, -1e+30
  %v3460 = vld [vmem:[%s2] sm:$0xff]
  %v3461 = vld [vmem:[%s2 + $0x8] sm:$0xff]
  %v3462 = vld [vmem:[%s2 + $0x10] sm:$0xff]
  %v3463 = vld [vmem:[%s2 + $0x18] sm:$0xff]
  %vm3464 = vcmp.gt.f32.partialorder %v3460, 0.0
  %vm3465 = vcmp.gt.f32.partialorder %v3461, 0.0
  %vm3466 = vcmp.gt.f32.partialorder %v3462, 0.0
  %vm3467 = vcmp.gt.f32.partialorder %v3463, 0.0
  %v3468 = vsel %vm3464, 1, 0
  %v3469 = vsel %vm3465, 1, 0
  %v3470 = vsel %vm3466, 1, 0
  %v3471 = vsel %vm3467, 1, 0
  %3472 = vset.pattern.permute.xlu0 0
  %3473 = vperm.xlu0 %3472, %v3468
  %v3474 = vpop.permute.xlu0 %3473
  %3475 = vset.pattern.permute.xlu0 0
  %3476 = vperm.xlu0 %3475, %v3469
  %v3477 = vpop.permute.xlu0 %3476
  %3478 = vset.pattern.permute.xlu0 0
  %3479 = vperm.xlu0 %3478, %v3470
  %v3480 = vpop.permute.xlu0 %3479
  %3481 = vset.pattern.permute.xlu0 0
  %3482 = vperm.xlu0 %3481, %v3471
  %v3483 = vpop.permute.xlu0 %3482
  %vm3484 = vcmp.eq.s32.totalorder %v3474, 1
  %vm3485 = vcmp.eq.s32.totalorder %v3477, 1
  %vm3486 = vcmp.eq.s32.totalorder %v3480, 1
  %vm3487 = vcmp.eq.s32.totalorder %v3483, 1
  %vm3520 = vcmask 1041409
  %v3521 = vsel %vm3520, %v3429, %v3428
  %vm3522 = vcmask 1042434
  %v3523 = vsel %vm3522, %v3430, %v3521
  %vm3524 = vcmask 1043459
  %v3525 = vsel %vm3524, %v3431, %v3523
  %vm3526 = vcmask 1044484
  %v3527 = vsel %vm3526, %v3432, %v3525
  %vm3528 = vcmask 1045509
  %v3529 = vsel %vm3528, %v3433, %v3527
  %vm3530 = vcmask 1046534
  %v3531 = vsel %vm3530, %v3434, %v3529
  %vm3532 = vcmask 1047559
  %v3533 = vsel %vm3532, %v3435, %v3531
  %v3534 = vsel %vm3520, %v3437, %v3436
  %v3535 = vsel %vm3522, %v3438, %v3534
  %v3536 = vsel %vm3524, %v3439, %v3535
  %v3537 = vsel %vm3526, %v3440, %v3536
  %v3538 = vsel %vm3528, %v3441, %v3537
  %v3539 = vsel %vm3530, %v3442, %v3538
  %v3540 = vsel %vm3532, %v3443, %v3539
  %v3541 = vsel %vm3520, %v3445, %v3444
  %v3542 = vsel %vm3522, %v3446, %v3541
  %v3543 = vsel %vm3524, %v3447, %v3542
  %v3544 = vsel %vm3526, %v3448, %v3543
  %v3545 = vsel %vm3528, %v3449, %v3544
  %v3546 = vsel %vm3530, %v3450, %v3545
  %v3547 = vsel %vm3532, %v3451, %v3546
  %v3548 = vsel %vm3520, %v3453, %v3452
  %v3549 = vsel %vm3522, %v3454, %v3548
  %v3550 = vsel %vm3524, %v3455, %v3549
  %v3551 = vsel %vm3526, %v3456, %v3550
  %v3552 = vsel %vm3528, %v3457, %v3551
  %v3553 = vsel %vm3530, %v3458, %v3552
  %v3554 = vsel %vm3532, %v3459, %v3553
  %v3559 = vsel %vm3484, %v3533, 0.0
  %v3560 = vsel %vm3485, %v3540, 0.0
  %v3561 = vsel %vm3486, %v3547, 0.0
  %v3562 = vsel %vm3487, %v3554, 0.0
  %v3563 = vmax.f32 %v3559, 0.0
  %v3564 = vmax.f32 %v3560, 0.0
  %v3565 = vmax.f32 %v3561, 0.0
  %v3566 = vmax.f32 %v3562, 0.0
  %3567 = vst [vmem:[%s10] sm:$0xff] %v3563
  %3568 = vst [vmem:[%s10 + $0x8] sm:$0xff] %v3564
  %3569 = vst [vmem:[%s10 + $0x10] sm:$0xff] %v3565
  %3570 = vst [vmem:[%s10 + $0x18] sm:$0xff] %v3566
  // Predicated region
  $region42: #{model_gnn_forward.4} parent=0 // pred_check
    _
  $region43: #{model_gnn_forward.4} parent=0 // pred_check_branch
    %3572 = sbr.rel (0) target = $region45
  $region44: #{model_gnn_forward.4} parent=0 // pred_region
    _
  $region45: #{model_gnn_forward.4} parent=0 // pred_fallthru
    _
  // Predicated region
  $region46: #{model_gnn_forward.4} parent=0 // pred_check
    _
  $region47: #{model_gnn_forward.4} parent=0 // pred_check_branch
    %3574 = sbr.rel (0) target = $region49
  $region48: #{model_gnn_forward.4} parent=0 // pred_region
    _
  $region49: #{model_gnn_forward.4} parent=0 // pred_fallthru
    _

</llo_original>
